<compile_context>
chip_gen: v7x
topology: tpu7x:2x2x1
jax: 0.10.0
libtpu: 0.0.40
codegen_flags: <defaults>
</compile_context>

<pallas_src>
import jax
import jax.numpy as jnp
from jax.experimental import pallas as pl
from jax.experimental.pallas import tpu as pltpu

GNN_OUT = 300            # gnn_output_size
PROJ_DIM = 300           # project_table output
CAT_DIM = 4 * PROJ_DIM   # 1200
REG_HID = 1024
LN_EPS = 1e-5
VMEM_LIMIT = 16 * 1024 * 1024   # ~7 MB footprint single-buffered, ~12 MB if weights double-buffer
TARGET_ROWS = 256               # aim K*n_pad at ~one MXU tile (use ~128 on v5e)


# ---------------------------------------------------------------------------
# Kernel: scores K graph pairs per invocation
# ---------------------------------------------------------------------------

def _matching_kernel(a_ref, b_ref, ma_ref, mb_ref,
                     wp_ref, bp_ref, g_ref, be_ref,
                     wa_ref, wb_ref, wprod_ref, bd_ref,
                     w1_ref, b1_ref, w2_ref, b2_ref,
                     out_ref):
    """a_ref/b_ref: (K, n_pad, 300) f32; ma_ref/mb_ref: (K, n_pad, 1) f32 row-validity masks;
    out_ref: (1, K) f32.  All K pairs are flattened into one (K*n_pad, .) slab so the three big
    MXU passes run with M = K*n_pad instead of n_pad (n_pad is a multiple of 8, so the reshapes
    only relabel (8,128) tiles)."""
    k_pairs, n_pad, _ = a_ref.shape
    rows = k_pairs * n_pad

    a = a_ref[...].reshape(rows, GNN_OUT)
    b = b_ref[...].reshape(rows, GNN_OUT)
    ma = ma_ref[...].reshape(rows, 1)
    mb = mb_ref[...].reshape(rows, 1)

    def project(x, row_mask):
        # project_table: Linear(300,300) (bf16 weights, f32 accumulation) + LayerNorm(300).
        # row_mask zeroes rows that come from padding (F.pad happens AFTER project_table in the
        # PyTorch code, so padded rows must be exactly zero entering dim_reduction).
        y = jnp.dot(x.astype(jnp.bfloat16), wp_ref[...],
                    preferred_element_type=jnp.float32) + bp_ref[...]
        mu = jnp.mean(y, axis=-1, keepdims=True)
        var = jnp.mean((y - mu) * (y - mu), axis=-1, keepdims=True)
        y = (y - mu) * jax.lax.rsqrt(var + LN_EPS)
        y = y * g_ref[...] + be_ref[...]
        return y * row_mask

    ta = project(a, ma)
    tb = project(b, mb)

    # dim_reduction pre-activation with the (a-b) block folded at weight-prep time:
    #   cat([a, b, a-b, a*b], 1) @ W_dr + b_dr == a@(Wa+Wd) + b@(Wb-Wd) + (a*b)@Wp + b_dr
    pre = (jnp.dot(ta.astype(jnp.bfloat16), wa_ref[...],
                   preferred_element_type=jnp.float32)
           + jnp.dot(tb.astype(jnp.bfloat16), wb_ref[...],
                     preferred_element_type=jnp.float32)
           + jnp.dot((ta * tb).astype(jnp.bfloat16), wprod_ref[...],
                     preferred_element_type=jnp.float32)
           + bd_ref[...])

    # Rows >= max(n_a, n_b) exist only because of bucket / sublane padding; PyTorch never sees
    # them, so exclude them from the per-pair row max.  (All-invalid dummy pairs give -inf ->
    # tanh(-inf) = -1, finite; their scores are sliced off in the wrapper.)
    valid = jnp.maximum(ma, mb)                              # (rows, 1)
    pre = jnp.where(valid > 0.0, pre, -jnp.inf)

    # tanh is monotone increasing -> max(tanh(x), 0) == tanh(max(x, 0)); per-pair row max.
    rep = jnp.tanh(jnp.max(pre.reshape(k_pairs, n_pad, CAT_DIM), axis=1))   # (K, 1200)

    # regression head: Dropout(0.1) == identity (eval), Linear(1200,1024), LeakyReLU(0.2).
    r = jnp.dot(rep.astype(jnp.bfloat16), w1_ref[...],
                preferred_element_type=jnp.float32) + b1_ref[...]
    r = jnp.where(r >= 0, r, 0.2 * r)                        # (K, 1024)

    # Final Linear(1024,1) as an NT matmul so the K scores land lane-contiguous in (1, K).
    out_ref[...] = jax.lax.dot_general(
        w2_ref[...], r.astype(jnp.bfloat16),
        dimension_numbers=(((1,), (1,)), ((), ())),
        preferred_element_type=jnp.float32) + b2_ref[...]


# ---------------------------------------------------------------------------
# Parameters
# ---------------------------------------------------------------------------

def init_torch_params(key):
    """f32 parameters matching the PyTorch module (Linear weights pre-transposed to [in,out])."""
    ks = jax.random.split(key, 8)
    s = 0.05
    return {
        # project_table: Linear(300, 300) + LayerNorm(300)
        "w_proj": jax.random.normal(ks[0], (GNN_OUT, PROJ_DIM), jnp.float32) * s,
        "b_proj": jax.random.normal(ks[1], (1, PROJ_DIM), jnp.float32) * s,
        "ln_gamma": jnp.ones((1, PROJ_DIM), jnp.float32),
        "ln_beta": jnp.zeros((1, PROJ_DIM), jnp.float32),
        # dim_reduction: Linear(1200, 1200) + Tanh
        "w_dr": jax.random.normal(ks[2], (CAT_DIM, CAT_DIM), jnp.float32) * s,
        "b_dr": jax.random.normal(ks[3], (1, CAT_DIM), jnp.float32) * s,
        # regression: Linear(1200, 1024) -> LeakyReLU(0.2) -> Linear(1024, 1)
        "w_r1": jax.random.normal(ks[4], (CAT_DIM, REG_HID), jnp.float32) * s,
        "b_r1": jax.random.normal(ks[5], (1, REG_HID), jnp.float32) * s,
        "w_r2": jax.random.normal(ks[6], (REG_HID, 1), jnp.float32) * s,
        "b_r2": jax.random.normal(ks[7], (1, 1), jnp.float32) * s,
    }


def prepare_params(p):
    """One-time (model-load-time) preprocessing, NOT done per call:
      * split w_dr into its four concat blocks and fold the (a-b) block:
            cat([a,b,a-b,a*b]) @ W == a @ (Wa+Wd) + b @ (Wb-Wd) + (a*b) @ Wp
      * store the large streamed weights in bf16 (kernel is weight-DMA bound); LayerNorm params
        and biases stay f32.  Any future fp8/int8 quantization must be applied to the FOLDED
        matrices below, not the original blocks, or the fold identity breaks."""
    w = p["w_dr"]
    wa = w[0 * PROJ_DIM:1 * PROJ_DIM]
    wb = w[1 * PROJ_DIM:2 * PROJ_DIM]
    wd = w[2 * PROJ_DIM:3 * PROJ_DIM]
    wprod = w[3 * PROJ_DIM:4 * PROJ_DIM]
    return {
        "w_proj": p["w_proj"].astype(jnp.bfloat16),
        "b_proj": p["b_proj"],
        "ln_gamma": p["ln_gamma"],
        "ln_beta": p["ln_beta"],
        "w_dr_a": (wa + wd).astype(jnp.bfloat16),
        "w_dr_b": (wb - wd).astype(jnp.bfloat16),
        "w_dr_prod": wprod.astype(jnp.bfloat16),
        "b_dr": p["b_dr"],
        "w_r1": p["w_r1"].astype(jnp.bfloat16),
        "b_r1": p["b_r1"],
        "w_r2": p["w_r2"].reshape(1, REG_HID).astype(jnp.bfloat16),
        "b_r2": p["b_r2"],
    }


def _weight_args(q):
    return (q["w_proj"], q["b_proj"], q["ln_gamma"], q["ln_beta"],
            q["w_dr_a"], q["w_dr_b"], q["w_dr_prod"], q["b_dr"],
            q["w_r1"], q["b_r1"], q["w_r2"], q["b_r2"])


def _pad_rows(x, n_pad):
    return jnp.zeros((n_pad, x.shape[1]), jnp.float32).at[:x.shape[0]].set(x)


def _bucket_rows(n):
    """Bucketed row padding (power of two, >= 16): sublane alignment + bounded recompiles."""
    n = max(int(n), 1)
    b = 16
    while b < n:
        b *= 2
    return b


# ---------------------------------------------------------------------------
# Single-pair forward (no grid, single-buffered whole-array VMEM residency)
# ---------------------------------------------------------------------------

def matching_model_forward(creps_a, creps_b, prepared):
    """Single graph pair, minimum latency.  NOTE: this path still streams ~4.8 MB of bf16
    weights from HBM every call; when scoring many pairs use matching_model_forward_batched,
    which keeps the weights VMEM-resident across all pairs of the call."""
    n_a, n_b = int(creps_a.shape[0]), int(creps_b.shape[0])
    n_pad = _bucket_rows(max(n_a, n_b))
    a = _pad_rows(creps_a, n_pad)[None]                       # (1, n_pad, 300)
    b = _pad_rows(creps_b, n_pad)[None]
    rows = jnp.arange(n_pad)
    mask_a = (rows < n_a).astype(jnp.float32)[None, :, None]  # (1, n_pad, 1)
    mask_b = (rows < n_b).astype(jnp.float32)[None, :, None]

    inputs = (a, b, mask_a, mask_b) + _weight_args(prepared)
    vmem_spec = pl.BlockSpec(memory_space=pltpu.MemorySpace.VMEM)

    score = pl.pallas_call(
        _matching_kernel,
        out_shape=jax.ShapeDtypeStruct((1, 1), jnp.float32),
        # No grid: whole arrays live in VMEM, single-buffered (no pointless double-buffering
        # of the weights for a 1-step "pipeline").
        in_specs=[vmem_spec] * len(inputs),
        out_specs=vmem_spec,
        compiler_params=pltpu.CompilerParams(vmem_limit_bytes=VMEM_LIMIT),
    )(*inputs)
    return score.reshape((1,))


# ---------------------------------------------------------------------------
# Batched forward: K pairs per grid step, weights VMEM-resident across steps
# ---------------------------------------------------------------------------

def matching_model_forward_batched(creps_a_list, creps_b_list, prepared,
                                   pairs_per_step=None, target_rows=TARGET_ROWS):
    """Scores P graph pairs in one pallas_call.  Each grid step handles K pairs (K*n_pad ~ one
    MXU tile); weight BlockSpecs use a constant block index so the bf16 weights are DMA'd once
    and reused for every step."""
    n_pairs = len(creps_a_list)
    n_max = max(max(x.shape[0] for x in creps_a_list),
                max(x.shape[0] for x in creps_b_list))
    n_pad = _bucket_rows(n_max)

    if pairs_per_step is None:
        pairs_per_step = max(1, min(n_pairs, target_rows // n_pad))
    k = int(pairs_per_step)
    n_blocks = -(-n_pairs // k)
    p_pad = n_blocks * k                                      # pad pair count with dummies

    def stack_rows(lst):
        arrs = [_pad_rows(x, n_pad) for x in lst]
        arrs += [jnp.zeros((n_pad, GNN_OUT), jnp.float32)] * (p_pad - n_pairs)
        return jnp.stack(arrs)                                # (p_pad, n_pad, 300)

    row_ids = jnp.arange(n_pad)

    def stack_masks(lst):
        ms = [(row_ids < x.shape[0]).astype(jnp.float32)[:, None] for x in lst]
        ms += [jnp.zeros((n_pad, 1), jnp.float32)] * (p_pad - n_pairs)
        return jnp.stack(ms)                                  # (p_pad, n_pad, 1)

    a = stack_rows(creps_a_list)
    b = stack_rows(creps_b_list)
    mask_a = stack_masks(creps_a_list)
    mask_b = stack_masks(creps_b_list)
    weights = _weight_args(prepared)

    # Megacore: shard the pair-block axis across TensorCores only when each core gets enough
    # pairs to amortize its own copy of the resident weights; otherwise keep it "arbitrary".
    semantics = ("parallel",) if n_blocks >= 2 else ("arbitrary",)

    def build(buffered_weights):
        def per_block(feat):
            # K pairs per step; block index g along the pair axis.
            return pl.BlockSpec((k, n_pad, feat), lambda g: (g, 0, 0))

        def resident(w):
            # Constant block index: DMA'd once, stays VMEM-resident across grid steps.
            # Single-buffer it (the second buffer would be pure VMEM waste).
            if buffered_weights:
                return pl.BlockSpec(w.shape, lambda g: (0,) * w.ndim,
                                    pipeline_mode=pl.Buffered(1))
            return pl.BlockSpec(w.shape, lambda g: (0,) * w.ndim)

        in_specs = ([per_block(GNN_OUT), per_block(GNN_OUT),
                     per_block(1), per_block(1)]
                    + [resident(w) for w in weights])

        return pl.pallas_call(
            _matching_kernel,
            out_shape=jax.ShapeDtypeStruct((n_blocks, 1, k), jnp.float32),
            grid=(n_blocks,),
            in_specs=in_specs,
            out_specs=pl.BlockSpec((None, 1, k), lambda g: (g, 0, 0)),
            compiler_params=pltpu.CompilerParams(
                dimension_semantics=semantics,
                vmem_limit_bytes=VMEM_LIMIT),
        )

    try:
        out = jax.block_until_ready(build(True)(a, b, mask_a, mask_b, *weights))
    except Exception:
        # TODO(synk): pl.Buffered(1) (single-buffered resident weights) rejected by this jax
        # version; fall back to the default double-buffered weight specs (still VMEM-resident).
        out = build(False)(a, b, mask_a, mask_b, *weights)
    return out.reshape(p_pad)[:n_pairs]


# ---------------------------------------------------------------------------
# References
# ---------------------------------------------------------------------------

def _reference_forward_matched(creps_a, creps_b, q):
    """Pure-JAX reference mirroring the kernel's bf16 weight storage / casts / (a-b) fold —
    validates kernel plumbing with a tight tolerance."""
    def project(x):
        y = jnp.dot(x.astype(jnp.bfloat16), q["w_proj"],
                    preferred_element_type=jnp.float32) + q["b_proj"]
        mu = jnp.mean(y, axis=-1, keepdims=True)
        var = jnp.mean((y - mu) ** 2, axis=-1, keepdims=True)
        y = (y - mu) * jax.lax.rsqrt(var + LN_EPS)
        return y * q["ln_gamma"] + q["ln_beta"]

    ta, tb = project(creps_a), project(creps_b)
    n_max = max(ta.shape[0], tb.shape[0])
    ta = jnp.pad(ta, ((0, n_max - ta.shape[0]), (0, 0)))
    tb = jnp.pad(tb, ((0, n_max - tb.shape[0]), (0, 0)))
    pre = (jnp.dot(ta.astype(jnp.bfloat16), q["w_dr_a"], preferred_element_type=jnp.float32)
           + jnp.dot(tb.astype(jnp.bfloat16), q["w_dr_b"], preferred_element_type=jnp.float32)
           + jnp.dot((ta * tb).astype(jnp.bfloat16), q["w_dr_prod"],
                     preferred_element_type=jnp.float32)
           + q["b_dr"])
    rep = jnp.tanh(jnp.max(pre, axis=0, keepdims=True))
    r = jnp.dot(rep.astype(jnp.bfloat16), q["w_r1"],
                preferred_element_type=jnp.float32) + q["b_r1"]
    r = jnp.where(r >= 0, r, 0.2 * r)
    score = jax.lax.dot_general(q["w_r2"], r.astype(jnp.bfloat16),
                                dimension_numbers=(((1,), (1,)), ((), ())),
                                preferred_element_type=jnp.float32) + q["b_r2"]
    return score.reshape((1,))


def _reference_forward_f32(creps_a, creps_b, p):
    """Faithful f32 reference of the original PyTorch forward (no fold, no bf16): bounds the
    bf16 weight-quantization error of the kernel with a loose tolerance."""
    def project(x):
        y = x @ p["w_proj"] + p["b_proj"]
        mu = jnp.mean(y, axis=-1, keepdims=True)
        var = jnp.mean((y - mu) ** 2, axis=-1, keepdims=True)
        y = (y - mu) / jnp.sqrt(var + LN_EPS)
        return y * p["ln_gamma"] + p["ln_beta"]

    ta, tb = project(creps_a), project(creps_b)
    n_max = max(ta.shape[0], tb.shape[0])
    ta = jnp.pad(ta, ((0, n_max - ta.shape[0]), (0, 0)))
    tb = jnp.pad(tb, ((0, n_max - tb.shape[0]), (0, 0)))
    hidden = jnp.concatenate([ta, tb, ta - tb, ta * tb], axis=1)
    hidden = jnp.tanh(hidden @ p["w_dr"] + p["b_dr"])
    rep = jnp.max(hidden, axis=0, keepdims=True)
    r = rep @ p["w_r1"] + p["b_r1"]
    r = jnp.where(r >= 0, r, 0.2 * r)
    return (r @ p["w_r2"] + p["b_r2"]).reshape((1,))


# ---------------------------------------------------------------------------

if __name__ == "__main__":
    key = jax.random.PRNGKey(0)
    k_p, k_data = jax.random.split(key)
    torch_params = init_torch_params(k_p)
    prepared = prepare_params(torch_params)    # one-time weight prep (split/fold/bf16)

    n_test_pairs = 10
    sizes_a = [6, 12, 3, 5, 16, 7, 10, 2, 14, 9]
    sizes_b = [9, 3, 12, 16, 4, 11, 6, 13, 8, 5]
    keys = jax.random.split(k_data, 2 * n_test_pairs)
    pairs_a = [jax.random.normal(keys[i], (sizes_a[i], GNN_OUT), jnp.float32)
               for i in range(n_test_pairs)]
    pairs_b = [jax.random.normal(keys[n_test_pairs + i], (sizes_b[i], GNN_OUT), jnp.float32)
               for i in range(n_test_pairs)]

    # 1) Single-pair path (no grid, whole-VMEM).
    score = jax.block_until_ready(matching_model_forward(pairs_a[0], pairs_b[0], prepared))
    ref_m = _reference_forward_matched(pairs_a[0], pairs_b[0], prepared)
    ref_f = _reference_forward_f32(pairs_a[0], pairs_b[0], torch_params)
    assert score.shape == (1,)
    assert jnp.allclose(score, ref_m, rtol=2e-3, atol=5e-4), (score, ref_m)
    assert jnp.allclose(score, ref_f, rtol=1e-1, atol=1e-1), (score, ref_f)

    # 2) Batched path, single grid step (3 pairs share one VMEM-resident weight load).
    batched3 = jax.block_until_ready(
        matching_model_forward_batched(pairs_a[:3], pairs_b[:3], prepared))
    refs3 = jnp.concatenate([_reference_forward_matched(x, y, prepared)
                             for x, y in zip(pairs_a[:3], pairs_b[:3])])
    assert batched3.shape == (3,)
    assert jnp.allclose(batched3, refs3, rtol=2e-3, atol=5e-4), (batched3, refs3)

    # 3) Batched path, multi-block grid: 10 pairs, 4 per step -> 3 blocks ("parallel" pair axis,
    #    2 zero-length dummy pairs padded onto the last block and sliced off).
    batched10 = jax.block_until_ready(
        matching_model_forward_batched(pairs_a, pairs_b, prepared, pairs_per_step=4))
    refs10 = jnp.concatenate([_reference_forward_matched(x, y, prepared)
                              for x, y in zip(pairs_a, pairs_b)])
    refs10_f = jnp.concatenate([_reference_forward_f32(x, y, torch_params)
                                for x, y in zip(pairs_a, pairs_b)])
    assert batched10.shape == (n_test_pairs,)
    assert jnp.allclose(batched10, refs10, rtol=2e-3, atol=5e-4), (batched10, refs10)
    assert jnp.allclose(batched10, refs10_f, rtol=1e-1, atol=1e-1), (batched10, refs10_f)

    print("KERNEL_OK")
</pallas_src>

<mosaic_0001>
module attributes {stable_mosaic.version = 11 : i64} {
  func.func @_matching_kernel(%arg0: memref<1x16x300xf32, #tpu.memory_space<vmem>>, %arg1: memref<1x16x300xf32, #tpu.memory_space<vmem>>, %arg2: memref<1x16x1xf32, #tpu.memory_space<vmem>>, %arg3: memref<1x16x1xf32, #tpu.memory_space<vmem>>, %arg4: memref<300x300xbf16, #tpu.memory_space<vmem>>, %arg5: memref<1x300xf32, #tpu.memory_space<vmem>>, %arg6: memref<1x300xf32, #tpu.memory_space<vmem>>, %arg7: memref<1x300xf32, #tpu.memory_space<vmem>>, %arg8: memref<300x1200xbf16, #tpu.memory_space<vmem>>, %arg9: memref<300x1200xbf16, #tpu.memory_space<vmem>>, %arg10: memref<300x1200xbf16, #tpu.memory_space<vmem>>, %arg11: memref<1x1200xf32, #tpu.memory_space<vmem>>, %arg12: memref<1200x1024xbf16, #tpu.memory_space<vmem>>, %arg13: memref<1x1024xf32, #tpu.memory_space<vmem>>, %arg14: memref<1x1024xbf16, #tpu.memory_space<vmem>>, %arg15: memref<1x1xf32, #tpu.memory_space<vmem>>, %arg16: memref<1x1xf32, #tpu.memory_space<vmem>>) attributes {dimension_semantics = [], scalar_prefetch = 0 : i64, scratch_operands = 0 : i64, tpu.core_type = #tpu.core_type<tc>} {
    %c0 = arith.constant 0 : index
    %c0_0 = arith.constant 0 : index
    %c0_1 = arith.constant 0 : index
    %0 = vector.load %arg0[%c0, %c0_0, %c0_1] : memref<1x16x300xf32, #tpu.memory_space<vmem>>, vector<1x16x300xf32>
    %1 = vector.shape_cast %0 : vector<1x16x300xf32> to vector<16x300xf32>
    %c0_2 = arith.constant 0 : index
    %c0_3 = arith.constant 0 : index
    %c0_4 = arith.constant 0 : index
    %2 = vector.load %arg1[%c0_2, %c0_3, %c0_4] : memref<1x16x300xf32, #tpu.memory_space<vmem>>, vector<1x16x300xf32>
    %3 = vector.shape_cast %2 : vector<1x16x300xf32> to vector<16x300xf32>
    %c0_5 = arith.constant 0 : index
    %c0_6 = arith.constant 0 : index
    %c0_7 = arith.constant 0 : index
    %4 = vector.load %arg2[%c0_5, %c0_6, %c0_7] : memref<1x16x1xf32, #tpu.memory_space<vmem>>, vector<1x16x1xf32>
    %5 = vector.shape_cast %4 : vector<1x16x1xf32> to vector<16x1xf32>
    %c0_8 = arith.constant 0 : index
    %c0_9 = arith.constant 0 : index
    %c0_10 = arith.constant 0 : index
    %6 = vector.load %arg3[%c0_8, %c0_9, %c0_10] : memref<1x16x1xf32, #tpu.memory_space<vmem>>, vector<1x16x1xf32>
    %7 = vector.shape_cast %6 : vector<1x16x1xf32> to vector<16x1xf32>
    %8 = arith.truncf %1 : vector<16x300xf32> to vector<16x300xbf16>
    %c0_11 = arith.constant 0 : index
    %c0_12 = arith.constant 0 : index
    %9 = vector.load %arg4[%c0_11, %c0_12] : memref<300x300xbf16, #tpu.memory_space<vmem>>, vector<300x300xbf16>
    %cst = arith.constant dense<0.000000e+00> : vector<16x300xf32>
    %10 = tpu.matmul %8, %9, %cst {dimension_numbers = #tpu.dot_dimension_numbers<[1], [0], [0], [1], [0, 0, 1, 1], [], []>} : vector<16x300xbf16>, vector<300x300xbf16>, vector<16x300xf32> -> vector<16x300xf32>
    %c0_13 = arith.constant 0 : index
    %c0_14 = arith.constant 0 : index
    %11 = vector.load %arg5[%c0_13, %c0_14] : memref<1x300xf32, #tpu.memory_space<vmem>>, vector<1x300xf32>
    %12 = vector.broadcast %11 : vector<1x300xf32> to vector<16x300xf32>
    %13 = arith.addf %10, %12 : vector<16x300xf32>
    %cst_15 = arith.constant dense<0.000000e+00> : vector<16xf32>
    %14 = vector.multi_reduction <add>, %13, %cst_15 [1] : vector<16x300xf32> to vector<16xf32>
    %15 = vector.shape_cast %14 : vector<16xf32> to vector<16x1xf32>
    %cst_16 = arith.constant 3.000000e+02 : f32
    %16 = vector.broadcast %cst_16 : f32 to vector<16x1xf32>
    %17 = arith.divf %15, %16 : vector<16x1xf32>
    %18 = vector.broadcast %17 : vector<16x1xf32> to vector<16x300xf32>
    %19 = arith.subf %13, %18 : vector<16x300xf32>
    %20 = vector.broadcast %17 : vector<16x1xf32> to vector<16x300xf32>
    %21 = arith.subf %13, %20 : vector<16x300xf32>
    %22 = arith.mulf %19, %21 : vector<16x300xf32>
    %cst_17 = arith.constant dense<0.000000e+00> : vector<16xf32>
    %23 = vector.multi_reduction <add>, %22, %cst_17 [1] : vector<16x300xf32> to vector<16xf32>
    %24 = vector.shape_cast %23 : vector<16xf32> to vector<16x1xf32>
    %cst_18 = arith.constant 3.000000e+02 : f32
    %25 = vector.broadcast %cst_18 : f32 to vector<16x1xf32>
    %26 = arith.divf %24, %25 : vector<16x1xf32>
    %27 = vector.broadcast %17 : vector<16x1xf32> to vector<16x300xf32>
    %28 = arith.subf %13, %27 : vector<16x300xf32>
    %cst_19 = arith.constant 9.99999974E-6 : f32
    %29 = vector.broadcast %cst_19 : f32 to vector<16x1xf32>
    %30 = arith.addf %26, %29 : vector<16x1xf32>
    %31 = math.rsqrt %30 : vector<16x1xf32>
    %32 = vector.broadcast %31 : vector<16x1xf32> to vector<16x300xf32>
    %33 = arith.mulf %28, %32 : vector<16x300xf32>
    %c0_20 = arith.constant 0 : index
    %c0_21 = arith.constant 0 : index
    %34 = vector.load %arg6[%c0_20, %c0_21] : memref<1x300xf32, #tpu.memory_space<vmem>>, vector<1x300xf32>
    %35 = vector.broadcast %34 : vector<1x300xf32> to vector<16x300xf32>
    %36 = arith.mulf %33, %35 : vector<16x300xf32>
    %c0_22 = arith.constant 0 : index
    %c0_23 = arith.constant 0 : index
    %37 = vector.load %arg7[%c0_22, %c0_23] : memref<1x300xf32, #tpu.memory_space<vmem>>, vector<1x300xf32>
    %38 = vector.broadcast %37 : vector<1x300xf32> to vector<16x300xf32>
    %39 = arith.addf %36, %38 : vector<16x300xf32>
    %40 = vector.broadcast %5 : vector<16x1xf32> to vector<16x300xf32>
    %41 = arith.mulf %39, %40 : vector<16x300xf32>
    %42 = arith.truncf %3 : vector<16x300xf32> to vector<16x300xbf16>
    %c0_24 = arith.constant 0 : index
    %c0_25 = arith.constant 0 : index
    %43 = vector.load %arg4[%c0_24, %c0_25] : memref<300x300xbf16, #tpu.memory_space<vmem>>, vector<300x300xbf16>
    %cst_26 = arith.constant dense<0.000000e+00> : vector<16x300xf32>
    %44 = tpu.matmul %42, %43, %cst_26 {dimension_numbers = #tpu.dot_dimension_numbers<[1], [0], [0], [1], [0, 0, 1, 1], [], []>} : vector<16x300xbf16>, vector<300x300xbf16>, vector<16x300xf32> -> vector<16x300xf32>
    %c0_27 = arith.constant 0 : index
    %c0_28 = arith.constant 0 : index
    %45 = vector.load %arg5[%c0_27, %c0_28] : memref<1x300xf32, #tpu.memory_space<vmem>>, vector<1x300xf32>
    %46 = vector.broadcast %45 : vector<1x300xf32> to vector<16x300xf32>
    %47 = arith.addf %44, %46 : vector<16x300xf32>
    %cst_29 = arith.constant dense<0.000000e+00> : vector<16xf32>
    %48 = vector.multi_reduction <add>, %47, %cst_29 [1] : vector<16x300xf32> to vector<16xf32>
    %49 = vector.shape_cast %48 : vector<16xf32> to vector<16x1xf32>
    %cst_30 = arith.constant 3.000000e+02 : f32
    %50 = vector.broadcast %cst_30 : f32 to vector<16x1xf32>
    %51 = arith.divf %49, %50 : vector<16x1xf32>
    %52 = vector.broadcast %51 : vector<16x1xf32> to vector<16x300xf32>
    %53 = arith.subf %47, %52 : vector<16x300xf32>
    %54 = vector.broadcast %51 : vector<16x1xf32> to vector<16x300xf32>
    %55 = arith.subf %47, %54 : vector<16x300xf32>
    %56 = arith.mulf %53, %55 : vector<16x300xf32>
    %cst_31 = arith.constant dense<0.000000e+00> : vector<16xf32>
    %57 = vector.multi_reduction <add>, %56, %cst_31 [1] : vector<16x300xf32> to vector<16xf32>
    %58 = vector.shape_cast %57 : vector<16xf32> to vector<16x1xf32>
    %cst_32 = arith.constant 3.000000e+02 : f32
    %59 = vector.broadcast %cst_32 : f32 to vector<16x1xf32>
    %60 = arith.divf %58, %59 : vector<16x1xf32>
    %61 = vector.broadcast %51 : vector<16x1xf32> to vector<16x300xf32>
    %62 = arith.subf %47, %61 : vector<16x300xf32>
    %cst_33 = arith.constant 9.99999974E-6 : f32
    %63 = vector.broadcast %cst_33 : f32 to vector<16x1xf32>
    %64 = arith.addf %60, %63 : vector<16x1xf32>
    %65 = math.rsqrt %64 : vector<16x1xf32>
    %66 = vector.broadcast %65 : vector<16x1xf32> to vector<16x300xf32>
    %67 = arith.mulf %62, %66 : vector<16x300xf32>
    %c0_34 = arith.constant 0 : index
    %c0_35 = arith.constant 0 : index
    %68 = vector.load %arg6[%c0_34, %c0_35] : memref<1x300xf32, #tpu.memory_space<vmem>>, vector<1x300xf32>
    %69 = vector.broadcast %68 : vector<1x300xf32> to vector<16x300xf32>
    %70 = arith.mulf %67, %69 : vector<16x300xf32>
    %c0_36 = arith.constant 0 : index
    %c0_37 = arith.constant 0 : index
    %71 = vector.load %arg7[%c0_36, %c0_37] : memref<1x300xf32, #tpu.memory_space<vmem>>, vector<1x300xf32>
    %72 = vector.broadcast %71 : vector<1x300xf32> to vector<16x300xf32>
    %73 = arith.addf %70, %72 : vector<16x300xf32>
    %74 = vector.broadcast %7 : vector<16x1xf32> to vector<16x300xf32>
    %75 = arith.mulf %73, %74 : vector<16x300xf32>
    %76 = arith.truncf %41 : vector<16x300xf32> to vector<16x300xbf16>
    %c0_38 = arith.constant 0 : index
    %c0_39 = arith.constant 0 : index
    %77 = vector.load %arg8[%c0_38, %c0_39] : memref<300x1200xbf16, #tpu.memory_space<vmem>>, vector<300x1200xbf16>
    %cst_40 = arith.constant dense<0.000000e+00> : vector<16x1200xf32>
    %78 = tpu.matmul %76, %77, %cst_40 {dimension_numbers = #tpu.dot_dimension_numbers<[1], [0], [0], [1], [0, 0, 1, 1], [], []>} : vector<16x300xbf16>, vector<300x1200xbf16>, vector<16x1200xf32> -> vector<16x1200xf32>
    %79 = arith.truncf %75 : vector<16x300xf32> to vector<16x300xbf16>
    %c0_41 = arith.constant 0 : index
    %c0_42 = arith.constant 0 : index
    %80 = vector.load %arg9[%c0_41, %c0_42] : memref<300x1200xbf16, #tpu.memory_space<vmem>>, vector<300x1200xbf16>
    %cst_43 = arith.constant dense<0.000000e+00> : vector<16x1200xf32>
    %81 = tpu.matmul %79, %80, %cst_43 {dimension_numbers = #tpu.dot_dimension_numbers<[1], [0], [0], [1], [0, 0, 1, 1], [], []>} : vector<16x300xbf16>, vector<300x1200xbf16>, vector<16x1200xf32> -> vector<16x1200xf32>
    %82 = arith.addf %78, %81 : vector<16x1200xf32>
    %83 = arith.mulf %41, %75 : vector<16x300xf32>
    %84 = arith.truncf %83 : vector<16x300xf32> to vector<16x300xbf16>
    %c0_44 = arith.constant 0 : index
    %c0_45 = arith.constant 0 : index
    %85 = vector.load %arg10[%c0_44, %c0_45] : memref<300x1200xbf16, #tpu.memory_space<vmem>>, vector<300x1200xbf16>
    %cst_46 = arith.constant dense<0.000000e+00> : vector<16x1200xf32>
    %86 = tpu.matmul %84, %85, %cst_46 {dimension_numbers = #tpu.dot_dimension_numbers<[1], [0], [0], [1], [0, 0, 1, 1], [], []>} : vector<16x300xbf16>, vector<300x1200xbf16>, vector<16x1200xf32> -> vector<16x1200xf32>
    %87 = arith.addf %82, %86 : vector<16x1200xf32>
    %c0_47 = arith.constant 0 : index
    %c0_48 = arith.constant 0 : index
    %88 = vector.load %arg11[%c0_47, %c0_48] : memref<1x1200xf32, #tpu.memory_space<vmem>>, vector<1x1200xf32>
    %89 = vector.broadcast %88 : vector<1x1200xf32> to vector<16x1200xf32>
    %90 = arith.addf %87, %89 : vector<16x1200xf32>
    %91 = arith.maximumf %5, %7 : vector<16x1xf32>
    %cst_49 = arith.constant 0.000000e+00 : f32
    %92 = vector.broadcast %cst_49 : f32 to vector<16x1xf32>
    %93 = arith.cmpf ogt, %91, %92 : vector<16x1xf32>
    %cst_50 = arith.constant 0xFF800000 : f32
    %94 = vector.shape_cast %93 : vector<16x1xi1> to vector<16x1xi1>
    %95 = vector.broadcast %94 : vector<16x1xi1> to vector<16x1200xi1>
    %96 = vector.broadcast %cst_50 : f32 to vector<16x1200xf32>
    %97 = arith.select %95, %90, %96 : vector<16x1200xi1>, vector<16x1200xf32>
    %98 = vector.shape_cast %97 : vector<16x1200xf32> to vector<1x16x1200xf32>
    %cst_51 = arith.constant dense<0xFF800000> : vector<1x1200xf32>
    %99 = vector.multi_reduction <maximumf>, %98, %cst_51 [1] : vector<1x16x1200xf32> to vector<1x1200xf32>
    %100 = math.tanh %99 : vector<1x1200xf32>
    %101 = arith.truncf %100 : vector<1x1200xf32> to vector<1x1200xbf16>
    %c0_52 = arith.constant 0 : index
    %c0_53 = arith.constant 0 : index
    %102 = vector.load %arg12[%c0_52, %c0_53] : memref<1200x1024xbf16, #tpu.memory_space<vmem>>, vector<1200x1024xbf16>
    %cst_54 = arith.constant dense<0.000000e+00> : vector<1x1024xf32>
    %103 = tpu.matmul %101, %102, %cst_54 {dimension_numbers = #tpu.dot_dimension_numbers<[1], [0], [0], [1], [0, 0, 1, 1], [], []>} : vector<1x1200xbf16>, vector<1200x1024xbf16>, vector<1x1024xf32> -> vector<1x1024xf32>
    %c0_55 = arith.constant 0 : index
    %c0_56 = arith.constant 0 : index
    %104 = vector.load %arg13[%c0_55, %c0_56] : memref<1x1024xf32, #tpu.memory_space<vmem>>, vector<1x1024xf32>
    %105 = arith.addf %103, %104 : vector<1x1024xf32>
    %cst_57 = arith.constant 0.000000e+00 : f32
    %106 = vector.broadcast %cst_57 : f32 to vector<1x1024xf32>
    %107 = arith.cmpf oge, %105, %106 : vector<1x1024xf32>
    %cst_58 = arith.constant 2.000000e-01 : f32
    %108 = vector.broadcast %cst_58 : f32 to vector<1x1024xf32>
    %109 = arith.mulf %108, %105 : vector<1x1024xf32>
    %110 = arith.select %107, %105, %109 : vector<1x1024xi1>, vector<1x1024xf32>
    %c0_59 = arith.constant 0 : index
    %c0_60 = arith.constant 0 : index
    %111 = vector.load %arg14[%c0_59, %c0_60] : memref<1x1024xbf16, #tpu.memory_space<vmem>>, vector<1x1024xbf16>
    %112 = arith.truncf %110 : vector<1x1024xf32> to vector<1x1024xbf16>
    %113 = arith.extf %111 : vector<1x1024xbf16> to vector<1x1024xf32>
    %114 = arith.extf %112 : vector<1x1024xbf16> to vector<1x1024xf32>
    %cst_61 = arith.constant dense<0.000000e+00> : vector<1xf32>
    %115 = arith.mulf %113, %114 : vector<1x1024xf32>
    %116 = vector.multi_reduction <add>, %115, %cst_61 [1] : vector<1x1024xf32> to vector<1xf32>
    %117 = vector.shape_cast %116 : vector<1xf32> to vector<1x1xf32>
    %c0_62 = arith.constant 0 : index
    %c0_63 = arith.constant 0 : index
    %118 = vector.load %arg15[%c0_62, %c0_63] : memref<1x1xf32, #tpu.memory_space<vmem>>, vector<1x1xf32>
    %119 = arith.addf %117, %118 : vector<1x1xf32>
    %c0_64 = arith.constant 0 : index
    %c0_65 = arith.constant 0 : index
    %120 = vector.load %arg16[%c0_64, %c0_65] : memref<1x1xf32, #tpu.memory_space<vmem>>, vector<1x1xf32>
    tpu.vector_store %arg16[%c0_64, %c0_65], %119 {strides = array<i32>} : memref<1x1xf32, #tpu.memory_space<vmem>>, vector<1x1xf32>,
    return
  }
}

</mosaic_0001>

<llo_original>
// kernel: tpu_custom_call.1
$region0: #{tpu_custom_call.1}
  #allocation0 [shape = 'u32[]', space=smem, size = 0x4, offset = 0x4, fixed_abs, tag = 'smem constant byte address 0x4 - core index']
  #allocation1 [shape = 'u32[144,128]{1,0:T(1,128)}', space=vmem, size = 0x12000, scoped, tag = 'internal scratch']
  #allocation2 [shape = 'f32[1,1]{1,0:T(1,128)S(1)}', space=vmem, size = 0x200, scoped, tag = 'scoped memory for tpu_custom_call.1']
  %s0 = inlined_call_operand.hbm [shape: f32[1,16,300], index: 0, kind: input, shape index: {}]
  %s1 = inlined_call_operand.hbm [shape: f32[1,16,300], index: 1, kind: input, shape index: {}]
  %s2 = inlined_call_operand.vmem [shape: f32[1,16,1], index: 2, kind: input, shape index: {}]
  %s3 = inlined_call_operand.vmem [shape: f32[1,16,1], index: 3, kind: input, shape index: {}]
  %s4 = inlined_call_operand.hbm [shape: bf16[300,300], index: 4, kind: input, shape index: {}]
  %s5 = inlined_call_operand.hbm [shape: f32[1,300], index: 5, kind: input, shape index: {}]
  %s6 = inlined_call_operand.hbm [shape: f32[1,300], index: 6, kind: input, shape index: {}]
  %s7 = inlined_call_operand.hbm [shape: f32[1,300], index: 7, kind: input, shape index: {}]
  %s8 = inlined_call_operand.hbm [shape: bf16[300,1200], index: 8, kind: input, shape index: {}]
  %s9 = inlined_call_operand.hbm [shape: bf16[300,1200], index: 9, kind: input, shape index: {}]
  %s10 = inlined_call_operand.hbm [shape: bf16[300,1200], index: 10, kind: input, shape index: {}]
  %s11 = inlined_call_operand.hbm [shape: f32[1,1200], index: 11, kind: input, shape index: {}]
  %s12 = inlined_call_operand.hbm [shape: bf16[1200,1024], index: 12, kind: input, shape index: {}]
  %s13 = inlined_call_operand.hbm [shape: f32[1,1024], index: 13, kind: input, shape index: {}]
  %s14 = inlined_call_operand.hbm [shape: bf16[1,1024], index: 14, kind: input, shape index: {}]
  %s15 = inlined_call_operand.<no memory space> [shape: f32[1,1], index: 15, kind: input, shape index: {}]
  %s16 = inlined_call_operand.hbm [shape: f32[1,1], index: 16, kind: output, shape index: {}]
  %s17 = sld [smem:[#allocation0]]
  $region126: #{tpu_custom_call.1} parent=0
    _
  %s19 = ssub.s32 1, %s17
  %s20 = scalar_select 0, %s19, %s17
  %v21 = vstv %s15
  %22 = vst [vmem:[#allocation2] sm:$0x1] %v21
  $region1: #{tpu_custom_call.1} parent=0
    #allocation3 [shape = 'u8[24576]{0}', space=vmem, size = 0x6000, scoped, tag = 'input window, operand 0, single buffered']
    #allocation4 [shape = 's32[1]{0}', space=sflag, size = 0x4, scoped, tag = 'scoped memory for tpu_custom_call.1']
    #allocation5 [shape = 's32[1]{0}', space=sflag, size = 0x4, scoped, tag = 'scoped memory for tpu_custom_call.1']
    #allocation6 [shape = 'u8[24576]{0}', space=vmem, size = 0x6000, scoped, tag = 'input window, operand 1, single buffered']
    #allocation7 [shape = 's32[1]{0}', space=sflag, size = 0x4, scoped, tag = 'scoped memory for tpu_custom_call.1']
    #allocation8 [shape = 'u8[233472]{0}', space=vmem, size = 0x39000, scoped, tag = 'input window, operand 4, single buffered']
    #allocation9 [shape = 'u8[1536]{0}', space=vmem, size = 0x800, scoped, tag = 'input window, operand 5, single buffered']
    #allocation10 [shape = 's32[1]{0}', space=sflag, size = 0x4, scoped, tag = 'scoped memory for tpu_custom_call.1']
    #allocation11 [shape = 'u8[1536]{0}', space=vmem, size = 0x800, scoped, tag = 'input window, operand 6, single buffered']
    #allocation12 [shape = 'u8[1536]{0}', space=vmem, size = 0x800, scoped, tag = 'input window, operand 7, single buffered']
    #allocation13 [shape = 's32[1]{0}', space=sflag, size = 0x4, scoped, tag = 'scoped memory for tpu_custom_call.1']
    #allocation14 [shape = 'u8[778240]{0}', space=vmem, size = 0xbe000, scoped, tag = 'input window, operand 8, single buffered']
    #allocation15 [shape = 'u8[778240]{0}', space=vmem, size = 0xbe000, scoped, tag = 'input window, operand 9, single buffered']
    #allocation16 [shape = 's32[1]{0}', space=sflag, size = 0x4, scoped, tag = 'scoped memory for tpu_custom_call.1']
    #allocation17 [shape = 'u8[778240]{0}', space=vmem, size = 0xbe000, scoped, tag = 'input window, operand 10, single buffered']
    #allocation18 [shape = 'u8[5120]{0}', space=vmem, size = 0x1400, scoped, tag = 'input window, operand 11, single buffered']
    #allocation19 [shape = 's32[1]{0}', space=sflag, size = 0x4, scoped, tag = 'scoped memory for tpu_custom_call.1']
    #allocation20 [shape = 'u8[2457600]{0}', space=vmem, size = 0x258000, scoped, tag = 'input window, operand 12, single buffered']
    #allocation21 [shape = 'u8[4096]{0}', space=vmem, size = 0x1000, scoped, tag = 'input window, operand 13, single buffered']
    #allocation22 [shape = 's32[1]{0}', space=sflag, size = 0x4, scoped, tag = 'scoped memory for tpu_custom_call.1']
    #allocation23 [shape = 'u8[4096]{0}', space=vmem, size = 0x1000, scoped, tag = 'input window, operand 14, single buffered']
    #allocation24 [shape = 'u8[512]{0}', space=vmem, size = 0x400, scoped, tag = 'output window, operand 0, single buffered']
    %23 = vsyncpa [#allocation4], 0
    %24 = vsyncpa [#allocation7], 0
    %25 = vsyncpa [#allocation10], 0
    %26 = vsyncpa [#allocation13], 0
    %27 = vsyncpa [#allocation16], 0
    %28 = vsyncpa [#allocation19], 0
    %29 = vsyncpa [#allocation22], 0
    %30 = vsyncpa [#allocation5], 0
    // Predicated region
    $region2: #{tpu_custom_call.1} parent=1 // pred_check
      _
    $region3: #{tpu_custom_call.1} parent=1 // pred_check_branch
      %32 = sbr.rel (0) target = $region5
    $region4: #{tpu_custom_call.1} parent=1 // pred_region
      %s34 = ssub.s32 768, 768
      %35 = vsyncadd [#allocation4], %s34
      %s36 = sshll.u32 [#allocation3], 4
      %s37 = int_to_ptr.vmem [resolvable:$true] %s36
      %42 = dma.hbm_to_vmem [thread:$0]  %s0, 768, %s37, [#allocation4], 384, 384, 24
    $region5: #{tpu_custom_call.1} parent=1 // pred_fallthru
      _
    // Predicated region
    $region6: #{tpu_custom_call.1} parent=1 // pred_check
      _
    $region7: #{tpu_custom_call.1} parent=1 // pred_check_branch
      %44 = sbr.rel (0) target = $region9
    $region8: #{tpu_custom_call.1} parent=1 // pred_region
      %s46 = ssub.s32 768, 768
      %47 = vsyncadd [#allocation7], %s46
      %s48 = sshll.u32 [#allocation6], 4
      %s49 = int_to_ptr.vmem [resolvable:$true] %s48
      %54 = dma.hbm_to_vmem [thread:$0]  %s1, 768, %s49, [#allocation7], 384, 384, 24
    $region9: #{tpu_custom_call.1} parent=1 // pred_fallthru
      _
    // Predicated region
    $region10: #{tpu_custom_call.1} parent=1 // pred_check
      _
    $region11: #{tpu_custom_call.1} parent=1 // pred_check_branch
      %56 = sbr.rel (0) target = $region13
    $region12: #{tpu_custom_call.1} parent=1 // pred_region
      _
    $region13: #{tpu_custom_call.1} parent=1 // pred_fallthru
      _
    // Predicated region
    $region14: #{tpu_custom_call.1} parent=1 // pred_check
      _
    $region15: #{tpu_custom_call.1} parent=1 // pred_check_branch
      %58 = sbr.rel (0) target = $region17
    $region16: #{tpu_custom_call.1} parent=1 // pred_region
      _
    $region17: #{tpu_custom_call.1} parent=1 // pred_fallthru
      _
    // Predicated region
    $region18: #{tpu_custom_call.1} parent=1 // pred_check
      _
    $region19: #{tpu_custom_call.1} parent=1 // pred_check_branch
      %60 = sbr.rel (0) target = $region21
    $region20: #{tpu_custom_call.1} parent=1 // pred_region
      %s62 = ssub.s32 7296, 7296
      %63 = vsyncadd [#allocation7], %s62
      %s64 = sshll.u32 [#allocation8], 4
      %s65 = int_to_ptr.vmem [resolvable:$true] %s64
      %70 = dma.hbm_to_vmem [thread:$0]  %s4, 7296, %s65, [#allocation7], 192, 192, 12
    $region21: #{tpu_custom_call.1} parent=1 // pred_fallthru
      _
    // Predicated region
    $region22: #{tpu_custom_call.1} parent=1 // pred_check
      _
    $region23: #{tpu_custom_call.1} parent=1 // pred_check_branch
      %72 = sbr.rel (0) target = $region25
    $region24: #{tpu_custom_call.1} parent=1 // pred_region
      %s74 = ssub.s32 48, 48
      %75 = vsyncadd [#allocation10], %s74
      %s77 = sshll.u32 [#allocation9], 4
      %s78 = int_to_ptr.vmem [resolvable:$true] %s77
      %80 = dma.hbm_to_vmem [thread:$0]  %s5, 48, %s78, [#allocation10]
    $region25: #{tpu_custom_call.1} parent=1 // pred_fallthru
      _
    // Predicated region
    $region26: #{tpu_custom_call.1} parent=1 // pred_check
      _
    $region27: #{tpu_custom_call.1} parent=1 // pred_check_branch
      %82 = sbr.rel (0) target = $region29
    $region28: #{tpu_custom_call.1} parent=1 // pred_region
      %s84 = ssub.s32 48, 48
      %85 = vsyncadd [#allocation10], %s84
      %s87 = sshll.u32 [#allocation11], 4
      %s88 = int_to_ptr.vmem [resolvable:$true] %s87
      %90 = dma.hbm_to_vmem [thread:$0]  %s6, 48, %s88, [#allocation10]
    $region29: #{tpu_custom_call.1} parent=1 // pred_fallthru
      _
    // Predicated region
    $region30: #{tpu_custom_call.1} parent=1 // pred_check
      _
    $region31: #{tpu_custom_call.1} parent=1 // pred_check_branch
      %92 = sbr.rel (0) target = $region33
    $region32: #{tpu_custom_call.1} parent=1 // pred_region
      %s94 = ssub.s32 48, 48
      %95 = vsyncadd [#allocation13], %s94
      %s97 = sshll.u32 [#allocation12], 4
      %s98 = int_to_ptr.vmem [resolvable:$true] %s97
      %100 = dma.hbm_to_vmem [thread:$0]  %s7, 48, %s98, [#allocation13]
    $region33: #{tpu_custom_call.1} parent=1 // pred_fallthru
      _
    // Predicated region
    $region34: #{tpu_custom_call.1} parent=1 // pred_check
      _
    $region35: #{tpu_custom_call.1} parent=1 // pred_check_branch
      %102 = sbr.rel (0) target = $region37
    $region36: #{tpu_custom_call.1} parent=1 // pred_region
      %s104 = ssub.s32 24320, 24320
      %105 = vsyncadd [#allocation13], %s104
      %s106 = sshll.u32 [#allocation14], 4
      %s107 = int_to_ptr.vmem [resolvable:$true] %s106
      %112 = dma.hbm_to_vmem [thread:$0]  %s8, 24320, %s107, [#allocation13], 640, 640, 40
    $region37: #{tpu_custom_call.1} parent=1 // pred_fallthru
      _
    // Predicated region
    $region38: #{tpu_custom_call.1} parent=1 // pred_check
      _
    $region39: #{tpu_custom_call.1} parent=1 // pred_check_branch
      %114 = sbr.rel (0) target = $region41
    $region40: #{tpu_custom_call.1} parent=1 // pred_region
      %s116 = ssub.s32 24320, 24320
      %117 = vsyncadd [#allocation16], %s116
      %s118 = sshll.u32 [#allocation15], 4
      %s119 = int_to_ptr.vmem [resolvable:$true] %s118
      %124 = dma.hbm_to_vmem [thread:$0]  %s9, 24320, %s119, [#allocation16], 640, 640, 40
    $region41: #{tpu_custom_call.1} parent=1 // pred_fallthru
      _
    // Predicated region
    $region42: #{tpu_custom_call.1} parent=1 // pred_check
      _
    $region43: #{tpu_custom_call.1} parent=1 // pred_check_branch
      %126 = sbr.rel (0) target = $region45
    $region44: #{tpu_custom_call.1} parent=1 // pred_region
      %s128 = ssub.s32 24320, 24320
      %129 = vsyncadd [#allocation16], %s128
      %s130 = sshll.u32 [#allocation17], 4
      %s131 = int_to_ptr.vmem [resolvable:$true] %s130
      %136 = dma.hbm_to_vmem [thread:$0]  %s10, 24320, %s131, [#allocation16], 640, 640, 40
    $region45: #{tpu_custom_call.1} parent=1 // pred_fallthru
      _
    // Predicated region
    $region46: #{tpu_custom_call.1} parent=1 // pred_check
      _
    $region47: #{tpu_custom_call.1} parent=1 // pred_check_branch
      %138 = sbr.rel (0) target = $region49
    $region48: #{tpu_custom_call.1} parent=1 // pred_region
      %s140 = ssub.s32 160, 160
      %141 = vsyncadd [#allocation19], %s140
      %s143 = sshll.u32 [#allocation18], 4
      %s144 = int_to_ptr.vmem [resolvable:$true] %s143
      %146 = dma.hbm_to_vmem [thread:$0]  %s11, 160, %s144, [#allocation19]
    $region49: #{tpu_custom_call.1} parent=1 // pred_fallthru
      _
    // Predicated region
    $region50: #{tpu_custom_call.1} parent=1 // pred_check
      _
    $region51: #{tpu_custom_call.1} parent=1 // pred_check_branch
      %148 = sbr.rel (0) target = $region53
    $region52: #{tpu_custom_call.1} parent=1 // pred_region
      %s150 = ssub.s32 76800, 76800
      %151 = vsyncadd [#allocation19], %s150
      %s152 = sshll.u32 [#allocation20], 4
      %s153 = int_to_ptr.vmem [resolvable:$true] %s152
      %158 = dma.hbm_to_vmem [thread:$0]  %s12, 76800, %s153, [#allocation19], 512, 512, 32
    $region53: #{tpu_custom_call.1} parent=1 // pred_fallthru
      _
    // Predicated region
    $region54: #{tpu_custom_call.1} parent=1 // pred_check
      _
    $region55: #{tpu_custom_call.1} parent=1 // pred_check_branch
      %160 = sbr.rel (0) target = $region57
    $region56: #{tpu_custom_call.1} parent=1 // pred_region
      %s162 = ssub.s32 128, 128
      %163 = vsyncadd [#allocation22], %s162
      %s165 = sshll.u32 [#allocation21], 4
      %s166 = int_to_ptr.vmem [resolvable:$true] %s165
      %168 = dma.hbm_to_vmem [thread:$0]  %s13, 128, %s166, [#allocation22]
    $region57: #{tpu_custom_call.1} parent=1 // pred_fallthru
      _
    // Predicated region
    $region58: #{tpu_custom_call.1} parent=1 // pred_check
      _
    $region59: #{tpu_custom_call.1} parent=1 // pred_check_branch
      %170 = sbr.rel (0) target = $region61
    $region60: #{tpu_custom_call.1} parent=1 // pred_region
      %s172 = ssub.s32 128, 128
      %173 = vsyncadd [#allocation22], %s172
      %s175 = sshll.u32 [#allocation23], 4
      %s176 = int_to_ptr.vmem [resolvable:$true] %s175
      %178 = dma.hbm_to_vmem [thread:$0]  %s14, 128, %s176, [#allocation22]
    $region61: #{tpu_custom_call.1} parent=1 // pred_fallthru
      _
    // Predicated region
    $region62: #{tpu_custom_call.1} parent=1 // pred_check
      _
    $region63: #{tpu_custom_call.1} parent=1 // pred_check_branch
      %180 = sbr.rel (0) target = $region65
    $region64: #{tpu_custom_call.1} parent=1 // pred_region
      _
    $region65: #{tpu_custom_call.1} parent=1 // pred_fallthru
      _
    // Predicated region
    $region66: #{tpu_custom_call.1} parent=1 // pred_check
      _
    $region67: #{tpu_custom_call.1} parent=1 // pred_check_branch
      %182 = sbr.rel (0) target = $region69
    $region68: #{tpu_custom_call.1} parent=1 // pred_region
      %183 = dma.done [#allocation4], 768
    $region69: #{tpu_custom_call.1} parent=1 // pred_fallthru
      _
    // Predicated region
    $region70: #{tpu_custom_call.1} parent=1 // pred_check
      _
    $region71: #{tpu_custom_call.1} parent=1 // pred_check_branch
      %185 = sbr.rel (0) target = $region73
    $region72: #{tpu_custom_call.1} parent=1 // pred_region
      %186 = dma.done [#allocation7], 768
    $region73: #{tpu_custom_call.1} parent=1 // pred_fallthru
      _
    // Predicated region
    $region74: #{tpu_custom_call.1} parent=1 // pred_check
      _
    $region75: #{tpu_custom_call.1} parent=1 // pred_check_branch
      %188 = sbr.rel (0) target = $region77
    $region76: #{tpu_custom_call.1} parent=1 // pred_region
      %189 = dma.done [#allocation7], 7296
    $region77: #{tpu_custom_call.1} parent=1 // pred_fallthru
      _
    // Predicated region
    $region78: #{tpu_custom_call.1} parent=1 // pred_check
      _
    $region79: #{tpu_custom_call.1} parent=1 // pred_check_branch
      %191 = sbr.rel (0) target = $region81
    $region80: #{tpu_custom_call.1} parent=1 // pred_region
      %192 = dma.done [#allocation10], 48
    $region81: #{tpu_custom_call.1} parent=1 // pred_fallthru
      _
    // Predicated region
    $region82: #{tpu_custom_call.1} parent=1 // pred_check
      _
    $region83: #{tpu_custom_call.1} parent=1 // pred_check_branch
      %194 = sbr.rel (0) target = $region85
    $region84: #{tpu_custom_call.1} parent=1 // pred_region
      %195 = dma.done [#allocation10], 48
    $region85: #{tpu_custom_call.1} parent=1 // pred_fallthru
      _
    // Predicated region
    $region86: #{tpu_custom_call.1} parent=1 // pred_check
      _
    $region87: #{tpu_custom_call.1} parent=1 // pred_check_branch
      %197 = sbr.rel (0) target = $region89
    $region88: #{tpu_custom_call.1} parent=1 // pred_region
      %198 = dma.done [#allocation13], 48
    $region89: #{tpu_custom_call.1} parent=1 // pred_fallthru
      _
    // Predicated region
    $region90: #{tpu_custom_call.1} parent=1 // pred_check
      _
    $region91: #{tpu_custom_call.1} parent=1 // pred_check_branch
      %200 = sbr.rel (0) target = $region93
    $region92: #{tpu_custom_call.1} parent=1 // pred_region
      %201 = dma.done [#allocation13], 24320
    $region93: #{tpu_custom_call.1} parent=1 // pred_fallthru
      _
    // Predicated region
    $region94: #{tpu_custom_call.1} parent=1 // pred_check
      _
    $region95: #{tpu_custom_call.1} parent=1 // pred_check_branch
      %203 = sbr.rel (0) target = $region97
    $region96: #{tpu_custom_call.1} parent=1 // pred_region
      %204 = dma.done [#allocation16], 24320
    $region97: #{tpu_custom_call.1} parent=1 // pred_fallthru
      _
    // Predicated region
    $region98: #{tpu_custom_call.1} parent=1 // pred_check
      _
    $region99: #{tpu_custom_call.1} parent=1 // pred_check_branch
      %206 = sbr.rel (0) target = $region101
    $region100: #{tpu_custom_call.1} parent=1 // pred_region
      %207 = dma.done [#allocation16], 24320
    $region101: #{tpu_custom_call.1} parent=1 // pred_fallthru
      _
    // Predicated region
    $region102: #{tpu_custom_call.1} parent=1 // pred_check
      _
    $region103: #{tpu_custom_call.1} parent=1 // pred_check_branch
      %209 = sbr.rel (0) target = $region105
    $region104: #{tpu_custom_call.1} parent=1 // pred_region
      %210 = dma.done [#allocation19], 160
    $region105: #{tpu_custom_call.1} parent=1 // pred_fallthru
      _
    // Predicated region
    $region106: #{tpu_custom_call.1} parent=1 // pred_check
      _
    $region107: #{tpu_custom_call.1} parent=1 // pred_check_branch
      %212 = sbr.rel (0) target = $region109
    $region108: #{tpu_custom_call.1} parent=1 // pred_region
      %213 = dma.done [#allocation19], 76800
    $region109: #{tpu_custom_call.1} parent=1 // pred_fallthru
      _
    // Predicated region
    $region110: #{tpu_custom_call.1} parent=1 // pred_check
      _
    $region111: #{tpu_custom_call.1} parent=1 // pred_check_branch
      %215 = sbr.rel (0) target = $region113
    $region112: #{tpu_custom_call.1} parent=1 // pred_region
      %216 = dma.done [#allocation22], 128
    $region113: #{tpu_custom_call.1} parent=1 // pred_fallthru
      _
    // Predicated region
    $region114: #{tpu_custom_call.1} parent=1 // pred_check
      _
    $region115: #{tpu_custom_call.1} parent=1 // pred_check_branch
      %218 = sbr.rel (0) target = $region117
    $region116: #{tpu_custom_call.1} parent=1 // pred_region
      %219 = dma.done [#allocation22], 128
    $region117: #{tpu_custom_call.1} parent=1 // pred_fallthru
      _
    %v221 = vld [vmem:[#allocation3] sm:$0xff]
    %v222 = vld [vmem:[#allocation3 + $0x8] sm:$0xff]
    %v223 = vld [vmem:[#allocation3 + $0x10] sm:$0xff]
    %v224 = vld [vmem:[#allocation3 + $0x18] sm:$0xff]
    %v225 = vld [vmem:[#allocation3 + $0x20] sm:$0xff]
    %v226 = vld [vmem:[#allocation3 + $0x28] sm:$0xff]
    %v227 = vld [vmem:[#allocation6] sm:$0xff]
    %v228 = vld [vmem:[#allocation6 + $0x8] sm:$0xff]
    %v229 = vld [vmem:[#allocation6 + $0x10] sm:$0xff]
    %v230 = vld [vmem:[#allocation6 + $0x18] sm:$0xff]
    %v231 = vld [vmem:[#allocation6 + $0x20] sm:$0xff]
    %v232 = vld [vmem:[#allocation6 + $0x28] sm:$0xff]
    %v233 = vld [vmem:[%s2] sm:$0xff]
    %v234 = vld [vmem:[%s2 + $0x8] sm:$0xff]
    %v235 = vld [vmem:[%s3] sm:$0xff]
    %v236 = vld [vmem:[%s3 + $0x8] sm:$0xff]
    %v237 = vpack.c.bf16 %v224, %v221
    %v238 = vpack.c.bf16 %v225, %v222
    %v239 = vpack.c.bf16 %v226, %v223
    %v240 = vld [vmem:[#allocation8] sm:$0xff]
    %v241 = vld [vmem:[#allocation8 + $0x8] sm:$0xf]
    %v242 = vld [vmem:[#allocation8 + $0xc] sm:$0xff]
    %v243 = vld [vmem:[#allocation8 + $0x14] sm:$0xf]
    %v244 = vld [vmem:[#allocation8 + $0x18] sm:$0xff]
    %v245 = vld [vmem:[#allocation8 + $0x20] sm:$0xf]
    %v246 = vld [vmem:[#allocation8 + $0x24] sm:$0xff]
    %v247 = vld [vmem:[#allocation8 + $0x2c] sm:$0xf]
    %v248 = vld [vmem:[#allocation8 + $0x30] sm:$0xff]
    %v249 = vld [vmem:[#allocation8 + $0x38] sm:$0xf]
    %v250 = vld [vmem:[#allocation8 + $0x3c] sm:$0xff]
    %v251 = vld [vmem:[#allocation8 + $0x44] sm:$0xf]
    %v252 = vld [vmem:[#allocation8 + $0x48] sm:$0xff]
    %v253 = vld [vmem:[#allocation8 + $0x50] sm:$0xf]
    %v254 = vld [vmem:[#allocation8 + $0x54] sm:$0xff]
    %v255 = vld [vmem:[#allocation8 + $0x5c] sm:$0xf]
    %v256 = vld [vmem:[#allocation8 + $0x60] sm:$0xff]
    %v257 = vld [vmem:[#allocation8 + $0x68] sm:$0xf]
    %v258 = vld [vmem:[#allocation8 + $0x6c] sm:$0xff]
    %v259 = vld [vmem:[#allocation8 + $0x74] sm:$0xf]
    %v260 = vld [vmem:[#allocation8 + $0x78] sm:$0xff]
    %v261 = vld [vmem:[#allocation8 + $0x80] sm:$0xf]
    %v262 = vld [vmem:[#allocation8 + $0x84] sm:$0xff]
    %v263 = vld [vmem:[#allocation8 + $0x8c] sm:$0xf]
    %v264 = vld [vmem:[#allocation8 + $0x90] sm:$0xff]
    %v265 = vld [vmem:[#allocation8 + $0x98] sm:$0xf]
    %v266 = vld [vmem:[#allocation8 + $0x9c] sm:$0xff]
    %v267 = vld [vmem:[#allocation8 + $0xa4] sm:$0xf]
    %v268 = vld [vmem:[#allocation8 + $0xa8] sm:$0xff]
    %v269 = vld [vmem:[#allocation8 + $0xb0] sm:$0xf]
    %v270 = vld [vmem:[#allocation8 + $0xb4] sm:$0xff]
    %v271 = vld [vmem:[#allocation8 + $0xbc] sm:$0xf]
    %v272 = vld [vmem:[#allocation8 + $0xc0] sm:$0xff]
    %v273 = vld [vmem:[#allocation8 + $0xc8] sm:$0xf]
    %v274 = vld [vmem:[#allocation8 + $0xcc] sm:$0xff]
    %v275 = vld [vmem:[#allocation8 + $0xd4] sm:$0xf]
    %v276 = vld [vmem:[#allocation8 + $0xd8] sm:$0xff]
    %v277 = vld [vmem:[#allocation8 + $0xe0] sm:$0xf]
    %v278 = vld [vmem:[#allocation8 + $0xe4] sm:$0xff]
    %v279 = vld [vmem:[#allocation8 + $0xec] sm:$0xf]
    %v280 = vld [vmem:[#allocation8 + $0xf0] sm:$0xff]
    %v281 = vld [vmem:[#allocation8 + $0xf8] sm:$0xf]
    %v282 = vld [vmem:[#allocation8 + $0xfc] sm:$0xff]
    %v283 = vld [vmem:[#allocation8 + $0x104] sm:$0xf]
    %v284 = vld [vmem:[#allocation8 + $0x108] sm:$0xff]
    %v285 = vld [vmem:[#allocation8 + $0x110] sm:$0xf]
    %v286 = vld [vmem:[#allocation8 + $0x114] sm:$0xff]
    %v287 = vld [vmem:[#allocation8 + $0x11c] sm:$0xf]
    %v288 = vld [vmem:[#allocation8 + $0x120] sm:$0xff]
    %v289 = vld [vmem:[#allocation8 + $0x128] sm:$0xf]
    %v290 = vld [vmem:[#allocation8 + $0x12c] sm:$0xff]
    %v291 = vld [vmem:[#allocation8 + $0x134] sm:$0xf]
    %v292 = vld [vmem:[#allocation8 + $0x138] sm:$0xff]
    %v293 = vld [vmem:[#allocation8 + $0x140] sm:$0xf]
    %v294 = vld [vmem:[#allocation8 + $0x144] sm:$0xff]
    %v295 = vld [vmem:[#allocation8 + $0x14c] sm:$0xf]
    %v296 = vld [vmem:[#allocation8 + $0x150] sm:$0xff]
    %v297 = vld [vmem:[#allocation8 + $0x158] sm:$0xf]
    %v298 = vld [vmem:[#allocation8 + $0x15c] sm:$0xff]
    %v299 = vld [vmem:[#allocation8 + $0x164] sm:$0xf]
    %v300 = vld [vmem:[#allocation8 + $0x168] sm:$0xff]
    %v301 = vld [vmem:[#allocation8 + $0x170] sm:$0xf]
    %v302 = vld [vmem:[#allocation8 + $0x174] sm:$0xff]
    %v303 = vld [vmem:[#allocation8 + $0x17c] sm:$0xf]
    %v304 = vld [vmem:[#allocation8 + $0x180] sm:$0xff]
    %v305 = vld [vmem:[#allocation8 + $0x188] sm:$0xf]
    %v306 = vld [vmem:[#allocation8 + $0x18c] sm:$0xff]
    %v307 = vld [vmem:[#allocation8 + $0x194] sm:$0xf]
    %v308 = vld [vmem:[#allocation8 + $0x198] sm:$0xff]
    %v309 = vld [vmem:[#allocation8 + $0x1a0] sm:$0xf]
    %v310 = vld [vmem:[#allocation8 + $0x1a4] sm:$0xff]
    %v311 = vld [vmem:[#allocation8 + $0x1ac] sm:$0xf]
    %v312 = vld [vmem:[#allocation8 + $0x1b0] sm:$0xff]
    %v313 = vld [vmem:[#allocation8 + $0x1b8] sm:$0xf]
    %v314 = vld [vmem:[#allocation8 + $0x1bc] sm:$0x33]
    %v315 = vld [vmem:[#allocation8 + $0x1c4] sm:$0x3]
    %v316 = vld [vmem:[#allocation9] sm:$0x7]
    %v318 = vlaneseq
    %v319 = vshrl.u32 %v318, 7
    %v320 = vsub.s32 0, %v319
    %v321 = vrot.slane %v316, %v320
    %v322 = vlaneseq
    %v323 = vshrl.u32 %v322, 7
    %v324 = vsub.s32 1, %v323
    %v325 = vrot.slane %v316, %v324
    %v326 = vlaneseq
    %v327 = vshrl.u32 %v326, 7
    %v328 = vsub.s32 2, %v327
    %v329 = vrot.slane %v316, %v328
    %v409 = vunpack.c.l.b16 %v240
    %v410 = vunpack.c.h.b16 %v240
    %v411 = vunpack.c.l.b16 %v241
    %v412 = vunpack.c.l.b16 %v242
    %v413 = vunpack.c.h.b16 %v242
    %v414 = vunpack.c.l.b16 %v243
    %v415 = vunpack.c.l.b16 %v244
    %v416 = vunpack.c.h.b16 %v244
    %v417 = vunpack.c.l.b16 %v245
    %v418 = vunpack.c.l.b16 %v246
    %v419 = vunpack.c.h.b16 %v246
    %v420 = vunpack.c.l.b16 %v247
    %v421 = vunpack.c.l.b16 %v248
    %v422 = vunpack.c.h.b16 %v248
    %v423 = vunpack.c.l.b16 %v249
    %v424 = vunpack.c.l.b16 %v250
    %v425 = vunpack.c.h.b16 %v250
    %v426 = vunpack.c.l.b16 %v251
    %v427 = vunpack.c.l.b16 %v252
    %v428 = vunpack.c.h.b16 %v252
    %v429 = vunpack.c.l.b16 %v253
    %v430 = vunpack.c.l.b16 %v254
    %v431 = vunpack.c.h.b16 %v254
    %v432 = vunpack.c.l.b16 %v255
    %v433 = vunpack.c.l.b16 %v256
    %v434 = vunpack.c.h.b16 %v256
    %v435 = vunpack.c.l.b16 %v257
    %v436 = vunpack.c.l.b16 %v258
    %v437 = vunpack.c.h.b16 %v258
    %v438 = vunpack.c.l.b16 %v259
    %v439 = vunpack.c.l.b16 %v260
    %v440 = vunpack.c.h.b16 %v260
    %v441 = vunpack.c.l.b16 %v261
    %v442 = vunpack.c.l.b16 %v262
    %v443 = vunpack.c.h.b16 %v262
    %v444 = vunpack.c.l.b16 %v263
    %v445 = vunpack.c.l.b16 %v264
    %v446 = vunpack.c.h.b16 %v264
    %v447 = vunpack.c.l.b16 %v265
    %v448 = vunpack.c.l.b16 %v266
    %v449 = vunpack.c.h.b16 %v266
    %v450 = vunpack.c.l.b16 %v267
    %v451 = vunpack.c.l.b16 %v268
    %v452 = vunpack.c.h.b16 %v268
    %v453 = vunpack.c.l.b16 %v269
    %v454 = vunpack.c.l.b16 %v270
    %v455 = vunpack.c.h.b16 %v270
    %v456 = vunpack.c.l.b16 %v271
    %v457 = vunpack.c.l.b16 %v272
    %v458 = vunpack.c.h.b16 %v272
    %v459 = vunpack.c.l.b16 %v273
    %v460 = vunpack.c.l.b16 %v274
    %v461 = vunpack.c.h.b16 %v274
    %v462 = vunpack.c.l.b16 %v275
    %v463 = vunpack.c.l.b16 %v276
    %v464 = vunpack.c.h.b16 %v276
    %v465 = vunpack.c.l.b16 %v277
    %v466 = vunpack.c.l.b16 %v278
    %v467 = vunpack.c.h.b16 %v278
    %v468 = vunpack.c.l.b16 %v279
    %v469 = vunpack.c.l.b16 %v280
    %v470 = vunpack.c.h.b16 %v280
    %v471 = vunpack.c.l.b16 %v281
    %v472 = vunpack.c.l.b16 %v282
    %v473 = vunpack.c.h.b16 %v282
    %v474 = vunpack.c.l.b16 %v283
    %v475 = vunpack.c.l.b16 %v284
    %v476 = vunpack.c.h.b16 %v284
    %v477 = vunpack.c.l.b16 %v285
    %v478 = vunpack.c.l.b16 %v286
    %v479 = vunpack.c.h.b16 %v286
    %v480 = vunpack.c.l.b16 %v287
    %v481 = vunpack.c.l.b16 %v288
    %v482 = vunpack.c.h.b16 %v288
    %v483 = vunpack.c.l.b16 %v289
    %v484 = vunpack.c.l.b16 %v290
    %v485 = vunpack.c.h.b16 %v290
    %v486 = vunpack.c.l.b16 %v291
    %v487 = vunpack.c.l.b16 %v292
    %v488 = vunpack.c.h.b16 %v292
    %v489 = vunpack.c.l.b16 %v293
    %v490 = vunpack.c.l.b16 %v294
    %v491 = vunpack.c.h.b16 %v294
    %v492 = vunpack.c.l.b16 %v295
    %v493 = vunpack.c.l.b16 %v296
    %v494 = vunpack.c.h.b16 %v296
    %v495 = vunpack.c.l.b16 %v297
    %v496 = vunpack.c.l.b16 %v298
    %v497 = vunpack.c.h.b16 %v298
    %v498 = vunpack.c.l.b16 %v299
    %v499 = vunpack.c.l.b16 %v300
    %v500 = vunpack.c.h.b16 %v300
    %v501 = vunpack.c.l.b16 %v301
    %v502 = vunpack.c.l.b16 %v302
    %v503 = vunpack.c.h.b16 %v302
    %v504 = vunpack.c.l.b16 %v303
    %v505 = vunpack.c.l.b16 %v304
    %v506 = vunpack.c.h.b16 %v304
    %v507 = vunpack.c.l.b16 %v305
    %v508 = vunpack.c.l.b16 %v306
    %v509 = vunpack.c.h.b16 %v306
    %v510 = vunpack.c.l.b16 %v307
    %v511 = vunpack.c.l.b16 %v308
    %v512 = vunpack.c.h.b16 %v308
    %v513 = vunpack.c.l.b16 %v309
    %v514 = vunpack.c.l.b16 %v310
    %v515 = vunpack.c.h.b16 %v310
    %v516 = vunpack.c.l.b16 %v311
    %v517 = vunpack.c.l.b16 %v312
    %v518 = vunpack.c.h.b16 %v312
    %v519 = vunpack.c.l.b16 %v313
    %v520 = vunpack.c.l.b16 %v314
    %v521 = vunpack.c.h.b16 %v314
    %v522 = vunpack.c.l.b16 %v315
    %v523 = vpack.c.b16 %v412, %v409
    %v524 = vpack.c.b16 %v413, %v410
    %v525 = vpack.c.b16 %v414, %v411
    %v526 = vpack.c.b16 %v418, %v415
    %v527 = vpack.c.b16 %v419, %v416
    %v528 = vpack.c.b16 %v420, %v417
    %v529 = vpack.c.b16 %v424, %v421
    %v530 = vpack.c.b16 %v425, %v422
    %v531 = vpack.c.b16 %v426, %v423
    %v532 = vpack.c.b16 %v430, %v427
    %v533 = vpack.c.b16 %v431, %v428
    %v534 = vpack.c.b16 %v432, %v429
    %v535 = vpack.c.b16 %v436, %v433
    %v536 = vpack.c.b16 %v437, %v434
    %v537 = vpack.c.b16 %v438, %v435
    %v538 = vpack.c.b16 %v442, %v439
    %v539 = vpack.c.b16 %v443, %v440
    %v540 = vpack.c.b16 %v444, %v441
    %v541 = vpack.c.b16 %v448, %v445
    %v542 = vpack.c.b16 %v449, %v446
    %v543 = vpack.c.b16 %v450, %v447
    %v544 = vpack.c.b16 %v454, %v451
    %v545 = vpack.c.b16 %v455, %v452
    %v546 = vpack.c.b16 %v456, %v453
    %v547 = vpack.c.b16 %v460, %v457
    %v548 = vpack.c.b16 %v461, %v458
    %v549 = vpack.c.b16 %v462, %v459
    %v550 = vpack.c.b16 %v466, %v463
    %v551 = vpack.c.b16 %v467, %v464
    %v552 = vpack.c.b16 %v468, %v465
    %v553 = vpack.c.b16 %v472, %v469
    %v554 = vpack.c.b16 %v473, %v470
    %v555 = vpack.c.b16 %v474, %v471
    %v556 = vpack.c.b16 %v478, %v475
    %v557 = vpack.c.b16 %v479, %v476
    %v558 = vpack.c.b16 %v480, %v477
    %v559 = vpack.c.b16 %v484, %v481
    %v560 = vpack.c.b16 %v485, %v482
    %v561 = vpack.c.b16 %v486, %v483
    %v562 = vpack.c.b16 %v490, %v487
    %v563 = vpack.c.b16 %v491, %v488
    %v564 = vpack.c.b16 %v492, %v489
    %v565 = vpack.c.b16 %v496, %v493
    %v566 = vpack.c.b16 %v497, %v494
    %v567 = vpack.c.b16 %v498, %v495
    %v568 = vpack.c.b16 %v502, %v499
    %v569 = vpack.c.b16 %v503, %v500
    %v570 = vpack.c.b16 %v504, %v501
    %v571 = vpack.c.b16 %v508, %v505
    %v572 = vpack.c.b16 %v509, %v506
    %v573 = vpack.c.b16 %v510, %v507
    %v574 = vpack.c.b16 %v514, %v511
    %v575 = vpack.c.b16 %v515, %v512
    %v576 = vpack.c.b16 %v516, %v513
    %v577 = vpack.c.b16 %v520, %v517
    %v578 = vpack.c.b16 %v521, %v518
    %v579 = vpack.c.b16 %v522, %v519
    %vm634 = vcmask 359424
    %v636 = vsel %vm634, %v239, 0
    %vm638 = vcmask 1045504
    %v640 = vsel %vm638, %v577, 0
    %v643 = vsel %vm638, %v578, 0
    %v646 = vsel %vm638, %v579, 0
    %648 = vmatprep.subr.bf16.mxu0 %v524
    %649 = vmatpush1.bf16.msra.mxu0 %v523
    %650 = vmatprep.subr.bf16.mxu0 %v527
    %651 = vmatpush1.bf16.msra.mxu0 %v526
    %652 = vmatprep.subr.bf16.mxu0 %v530
    %653 = vmatpush1.bf16.msra.mxu0 %v529
    %654 = vmatprep.subr.bf16.mxu0 %v533
    %655 = vmatpush1.bf16.msra.mxu0 %v532
    %656 = vmatprep.subr.bf16.mxu0 %v536
    %657 = vmatpush1.bf16.msra.mxu0 %v535
    %658 = vmatprep.subr.bf16.mxu0 %v539
    %659 = vmatpush1.bf16.msra.mxu0 %v538
    %660 = vmatprep.subr.bf16.mxu0 %v542
    %661 = vmatpush1.bf16.msra.mxu0 %v541
    %662 = vmatprep.subr.bf16.mxu0 %v545
    %663 = vmatpush1.bf16.msra.mxu0 %v544
    %664 = vmatprep.subr.bf16.mxu0 %v548
    %665 = vmatpush1.bf16.msra.mxu0 %v547
    %666 = vmatprep.subr.bf16.mxu0 %v551
    %667 = vmatpush1.bf16.msra.mxu0 %v550
    %668 = vmatprep.subr.bf16.mxu0 %v554
    %669 = vmatpush1.bf16.msra.mxu0 %v553
    %670 = vmatprep.subr.bf16.mxu0 %v557
    %671 = vmatpush1.bf16.msra.mxu0 %v556
    %672 = vmatprep.subr.bf16.mxu0 %v560
    %673 = vmatpush1.bf16.msra.mxu0 %v559
    %674 = vmatprep.subr.bf16.mxu0 %v563
    %675 = vmatpush1.bf16.msra.mxu0 %v562
    %676 = vmatprep.subr.bf16.mxu0 %v566
    %677 = vmatpush1.bf16.msra.mxu0 %v565
    %678 = vmatprep.subr.bf16.mxu0 %v569
    %679 = vmatpush1.bf16.msra.mxu0 %v568
    %680 = vmatprep.mubr.bf16.mxu0 %v238
    %681 = vmatmul.mubr.bf16.gmra.mrb[0].mxu0 %v237
    %v682 = vpop.f32.mrb[0].mxu0
    %v683 = vadd.f32 %v321, %v682
    %v684 = vpop.f32.mrb[0].mxu0
    %v685 = vadd.f32 %v325, %v684
    %v686 = vpop.f32.mrb[0].mxu0
    %v687 = vadd.f32 %v321, %v686
    %v688 = vpop.f32.mrb[0].mxu0
    %v689 = vadd.f32 %v325, %v688
    %690 = vdwg.mxu0
    %691 = vmatprep.subr.bf16.mxu0 %v572
    %692 = vmatpush1.bf16.msra.mxu0 %v571
    %693 = vmatprep.subr.bf16.mxu0 %v575
    %694 = vmatpush1.bf16.msra.mxu0 %v574
    %695 = vmatprep.subr.bf16.mxu0 %v643
    %696 = vmatpush1.bf16.msra.mxu0 %v640
    %697 = vmatprep.subr.bf16.mxu0 0
    %698 = vmatpush1.bf16.msra.mxu0 0
    %699 = vmatprep.subr.bf16.mxu0 0
    %700 = vmatpush1.bf16.msra.mxu0 0
    %701 = vmatprep.subr.bf16.mxu0 0
    %702 = vmatpush1.bf16.msra.mxu0 0
    %703 = vmatprep.subr.bf16.mxu0 0
    %704 = vmatpush1.bf16.msra.mxu0 0
    %705 = vmatprep.subr.bf16.mxu0 0
    %706 = vmatpush1.bf16.msra.mxu0 0
    %707 = vmatprep.subr.bf16.mxu0 0
    %708 = vmatpush1.bf16.msra.mxu0 0
    %709 = vmatprep.subr.bf16.mxu0 0
    %710 = vmatpush1.bf16.msra.mxu0 0
    %711 = vmatprep.subr.bf16.mxu0 0
    %712 = vmatpush1.bf16.msra.mxu0 0
    %713 = vmatprep.subr.bf16.mxu0 0
    %714 = vmatpush1.bf16.msra.mxu0 0
    %715 = vmatprep.subr.bf16.mxu0 0
    %716 = vmatpush1.bf16.msra.mxu0 0
    %717 = vmatprep.subr.bf16.mxu0 0
    %718 = vmatpush1.bf16.msra.mxu0 0
    %719 = vmatprep.subr.bf16.mxu0 0
    %720 = vmatpush1.bf16.msra.mxu0 0
    %721 = vmatprep.subr.bf16.mxu0 0
    %722 = vmatpush1.bf16.msra.mxu0 0
    %723 = vmatprep.mubr.bf16.mxu0 0
    %724 = vmatmul.mubr.bf16.gmra.mrb[0].mxu0 %v636
    %v725 = vpop.f32.mrb[0].mxu0
    %v726 = vadd.f32 %v683, %v725
    %v727 = vpop.f32.mrb[0].mxu0
    %v728 = vadd.f32 %v685, %v727
    %v729 = vpop.f32.mrb[0].mxu0
    %v730 = vadd.f32 %v687, %v729
    %v731 = vpop.f32.mrb[0].mxu0
    %v732 = vadd.f32 %v689, %v731
    %733 = vdwg.mxu0
    %734 = vmatprep.subr.bf16.mxu0 0
    %735 = vmatpush1.bf16.msra.mxu0 %v525
    %736 = vmatprep.subr.bf16.mxu0 0
    %737 = vmatpush1.bf16.msra.mxu0 %v528
    %738 = vmatprep.subr.bf16.mxu0 0
    %739 = vmatpush1.bf16.msra.mxu0 %v531
    %740 = vmatprep.subr.bf16.mxu0 0
    %741 = vmatpush1.bf16.msra.mxu0 %v534
    %742 = vmatprep.subr.bf16.mxu0 0
    %743 = vmatpush1.bf16.msra.mxu0 %v537
    %744 = vmatprep.subr.bf16.mxu0 0
    %745 = vmatpush1.bf16.msra.mxu0 %v540
    %746 = vmatprep.subr.bf16.mxu0 0
    %747 = vmatpush1.bf16.msra.mxu0 %v543
    %748 = vmatprep.subr.bf16.mxu0 0
    %749 = vmatpush1.bf16.msra.mxu0 %v546
    %750 = vmatprep.subr.bf16.mxu0 0
    %751 = vmatpush1.bf16.msra.mxu0 %v549
    %752 = vmatprep.subr.bf16.mxu0 0
    %753 = vmatpush1.bf16.msra.mxu0 %v552
    %754 = vmatprep.subr.bf16.mxu0 0
    %755 = vmatpush1.bf16.msra.mxu0 %v555
    %756 = vmatprep.subr.bf16.mxu0 0
    %757 = vmatpush1.bf16.msra.mxu0 %v558
    %758 = vmatprep.subr.bf16.mxu0 0
    %759 = vmatpush1.bf16.msra.mxu0 %v561
    %760 = vmatprep.subr.bf16.mxu0 0
    %761 = vmatpush1.bf16.msra.mxu0 %v564
    %762 = vmatprep.subr.bf16.mxu0 0
    %763 = vmatpush1.bf16.msra.mxu0 %v567
    %764 = vmatprep.subr.bf16.mxu0 0
    %765 = vmatpush1.bf16.msra.mxu0 %v570
    %766 = vmatprep.mubr.bf16.mxu0 %v238
    %767 = vmatmul.mubr.bf16.gmra.mrb[0].mxu0 %v237
    %v768 = vpop.f32.mrb[0].mxu0
    %v769 = vadd.f32 %v329, %v768
    %v770 = vpop.f32.mrb[0].mxu0
    %v771 = vpop.f32.mrb[0].mxu0
    %v772 = vadd.f32 %v329, %v771
    %v773 = vpop.f32.mrb[0].mxu0
    %774 = vdwg.mxu0
    %775 = vmatprep.subr.bf16.mxu0 0
    %776 = vmatpush1.bf16.msra.mxu0 %v573
    %777 = vmatprep.subr.bf16.mxu0 0
    %778 = vmatpush1.bf16.msra.mxu0 %v576
    %779 = vmatprep.subr.bf16.mxu0 0
    %780 = vmatpush1.bf16.msra.mxu0 %v646
    %781 = vmatprep.subr.bf16.mxu0 0
    %782 = vmatpush1.bf16.msra.mxu0 0
    %783 = vmatprep.subr.bf16.mxu0 0
    %784 = vmatpush1.bf16.msra.mxu0 0
    %785 = vmatprep.subr.bf16.mxu0 0
    %786 = vmatpush1.bf16.msra.mxu0 0
    %787 = vmatprep.subr.bf16.mxu0 0
    %788 = vmatpush1.bf16.msra.mxu0 0
    %789 = vmatprep.subr.bf16.mxu0 0
    %790 = vmatpush1.bf16.msra.mxu0 0
    %791 = vmatprep.subr.bf16.mxu0 0
    %792 = vmatpush1.bf16.msra.mxu0 0
    %793 = vmatprep.subr.bf16.mxu0 0
    %794 = vmatpush1.bf16.msra.mxu0 0
    %795 = vmatprep.subr.bf16.mxu0 0
    %796 = vmatpush1.bf16.msra.mxu0 0
    %797 = vmatprep.subr.bf16.mxu0 0
    %798 = vmatpush1.bf16.msra.mxu0 0
    %799 = vmatprep.subr.bf16.mxu0 0
    %800 = vmatpush1.bf16.msra.mxu0 0
    %801 = vmatprep.subr.bf16.mxu0 0
    %802 = vmatpush1.bf16.msra.mxu0 0
    %803 = vmatprep.subr.bf16.mxu0 0
    %804 = vmatpush1.bf16.msra.mxu0 0
    %805 = vmatprep.subr.bf16.mxu0 0
    %806 = vmatpush1.bf16.msra.mxu0 0
    %807 = vmatprep.mubr.bf16.mxu0 0
    %808 = vmatmul.mubr.bf16.gmra.mrb[0].mxu0 %v636
    %v809 = vpop.f32.mrb[0].mxu0
    %v810 = vadd.f32 %v769, %v809
    %v811 = vpop.f32.mrb[0].mxu0
    %v812 = vpop.f32.mrb[0].mxu0
    %v813 = vadd.f32 %v772, %v812
    %v814 = vpop.f32.mrb[0].mxu0
    %815 = vdwg.mxu0
    %v816 = vadd.f32 %v726, %v728
    %v817 = vsel %vm634, %v810, 0.0
    %v818 = vadd.f32 %v816, %v817
    %819 = vadd.xlane.f32.xlu0 %v818
    %v820 = vpop.xlane.xlu0 %819
    %v821 = vadd.f32 %v730, %v732
    %v822 = vsel %vm634, %v813, 0.0
    %v823 = vadd.f32 %v821, %v822
    %824 = vadd.xlane.f32.xlu0 %v823
    %v825 = vpop.xlane.xlu0 %824
    %v826 = vrcp.pop 300.0
    %v827 = vmul.f32 %v820, %v826
    %v828 = vmul.f32 %v825, %v826
    %v829 = vsub.f32 %v726, %v827
    %v830 = vsub.f32 %v728, %v827
    %v831 = vsub.f32 %v810, %v827
    %v832 = vsub.f32 %v730, %v828
    %v833 = vsub.f32 %v732, %v828
    %v834 = vsub.f32 %v813, %v828
    %v835 = vmul.f32 %v829, %v829
    %v836 = vmul.f32 %v830, %v830
    %v837 = vmul.f32 %v831, %v831
    %v838 = vmul.f32 %v832, %v832
    %v839 = vmul.f32 %v833, %v833
    %v840 = vmul.f32 %v834, %v834
    %v841 = vadd.f32 %v835, %v836
    %v842 = vsel %vm634, %v837, 0.0
    %v843 = vadd.f32 %v841, %v842
    %844 = vadd.xlane.f32.xlu0 %v843
    %v845 = vpop.xlane.xlu0 %844
    %v846 = vadd.f32 %v838, %v839
    %v847 = vsel %vm634, %v840, 0.0
    %v848 = vadd.f32 %v846, %v847
    %849 = vadd.xlane.f32.xlu0 %v848
    %v850 = vpop.xlane.xlu0 %849
    %v851 = vmul.f32 %v845, %v826
    %v852 = vmul.f32 %v850, %v826
    %v853 = vadd.f32 %v851, 1e-05
    %v854 = vadd.f32 %v852, 1e-05
    %v855 = vrsqrt.pop %v853
    %v856 = vrsqrt.pop %v854
    %v857 = vmul.f32 %v829, %v855
    %v858 = vmul.f32 %v830, %v855
    %v859 = vmul.f32 %v831, %v855
    %v860 = vmul.f32 %v832, %v856
    %v861 = vmul.f32 %v833, %v856
    %v862 = vmul.f32 %v834, %v856
    %v863 = vld [vmem:[#allocation11] sm:$0x7]
    %v865 = vlaneseq
    %v866 = vshrl.u32 %v865, 7
    %v867 = vsub.s32 0, %v866
    %v868 = vrot.slane %v863, %v867
    %v869 = vlaneseq
    %v870 = vshrl.u32 %v869, 7
    %v871 = vsub.s32 1, %v870
    %v872 = vrot.slane %v863, %v871
    %v873 = vlaneseq
    %v874 = vshrl.u32 %v873, 7
    %v875 = vsub.s32 2, %v874
    %v876 = vrot.slane %v863, %v875
    %v880 = vmul.f32 %v857, %v868
    %v881 = vmul.f32 %v858, %v872
    %v882 = vmul.f32 %v859, %v876
    %v883 = vmul.f32 %v860, %v868
    %v884 = vmul.f32 %v861, %v872
    %v885 = vmul.f32 %v862, %v876
    %v886 = vld [vmem:[#allocation12] sm:$0x7]
    %v888 = vlaneseq
    %v889 = vshrl.u32 %v888, 7
    %v890 = vsub.s32 0, %v889
    %v891 = vrot.slane %v886, %v890
    %v892 = vlaneseq
    %v893 = vshrl.u32 %v892, 7
    %v894 = vsub.s32 1, %v893
    %v895 = vrot.slane %v886, %v894
    %v896 = vlaneseq
    %v897 = vshrl.u32 %v896, 7
    %v898 = vsub.s32 2, %v897
    %v899 = vrot.slane %v886, %v898
    %v903 = vadd.f32 %v880, %v891
    %v904 = vadd.f32 %v881, %v895
    %v905 = vadd.f32 %v882, %v899
    %v906 = vadd.f32 %v883, %v891
    %v907 = vadd.f32 %v884, %v895
    %v908 = vadd.f32 %v885, %v899
    %910 = vset.pattern.permute.xlu0 0
    %911 = vperm.xlu0 %910, %v233
    %v912 = vpop.permute.xlu0 %911
    %915 = vset.pattern.permute.xlu0 0
    %916 = vperm.xlu0 %915, %v234
    %v917 = vpop.permute.xlu0 %916
    %v919 = vmul.f32 %v903, %v912
    %v920 = vmul.f32 %v904, %v912
    %v921 = vmul.f32 %v905, %v912
    %v922 = vmul.f32 %v906, %v917
    %v923 = vmul.f32 %v907, %v917
    %v924 = vmul.f32 %v908, %v917
    %v925 = vpack.c.bf16 %v230, %v227
    %v926 = vpack.c.bf16 %v231, %v228
    %v927 = vpack.c.bf16 %v232, %v229
    %v929 = vsel %vm634, %v927, 0
    %931 = vmatprep.subr.bf16.mxu0 %v524
    %932 = vmatpush1.bf16.msra.mxu0 %v523
    %933 = vmatprep.subr.bf16.mxu0 %v527
    %934 = vmatpush1.bf16.msra.mxu0 %v526
    %935 = vmatprep.subr.bf16.mxu0 %v530
    %936 = vmatpush1.bf16.msra.mxu0 %v529
    %937 = vmatprep.subr.bf16.mxu0 %v533
    %938 = vmatpush1.bf16.msra.mxu0 %v532
    %939 = vmatprep.subr.bf16.mxu0 %v536
    %940 = vmatpush1.bf16.msra.mxu0 %v535
    %941 = vmatprep.subr.bf16.mxu0 %v539
    %942 = vmatpush1.bf16.msra.mxu0 %v538
    %943 = vmatprep.subr.bf16.mxu0 %v542
    %944 = vmatpush1.bf16.msra.mxu0 %v541
    %945 = vmatprep.subr.bf16.mxu0 %v545
    %946 = vmatpush1.bf16.msra.mxu0 %v544
    %947 = vmatprep.subr.bf16.mxu0 %v548
    %948 = vmatpush1.bf16.msra.mxu0 %v547
    %949 = vmatprep.subr.bf16.mxu0 %v551
    %950 = vmatpush1.bf16.msra.mxu0 %v550
    %951 = vmatprep.subr.bf16.mxu0 %v554
    %952 = vmatpush1.bf16.msra.mxu0 %v553
    %953 = vmatprep.subr.bf16.mxu0 %v557
    %954 = vmatpush1.bf16.msra.mxu0 %v556
    %955 = vmatprep.subr.bf16.mxu0 %v560
    %956 = vmatpush1.bf16.msra.mxu0 %v559
    %957 = vmatprep.subr.bf16.mxu0 %v563
    %958 = vmatpush1.bf16.msra.mxu0 %v562
    %959 = vmatprep.subr.bf16.mxu0 %v566
    %960 = vmatpush1.bf16.msra.mxu0 %v565
    %961 = vmatprep.subr.bf16.mxu0 %v569
    %962 = vmatpush1.bf16.msra.mxu0 %v568
    %963 = vmatprep.mubr.bf16.mxu0 %v926
    %964 = vmatmul.mubr.bf16.gmra.mrb[0].mxu0 %v925
    %v965 = vpop.f32.mrb[0].mxu0
    %v966 = vadd.f32 %v321, %v965
    %v967 = vpop.f32.mrb[0].mxu0
    %v968 = vadd.f32 %v325, %v967
    %v969 = vpop.f32.mrb[0].mxu0
    %v970 = vadd.f32 %v321, %v969
    %v971 = vpop.f32.mrb[0].mxu0
    %v972 = vadd.f32 %v325, %v971
    %973 = vdwg.mxu0
    %974 = vmatprep.subr.bf16.mxu0 %v572
    %975 = vmatpush1.bf16.msra.mxu0 %v571
    %976 = vmatprep.subr.bf16.mxu0 %v575
    %977 = vmatpush1.bf16.msra.mxu0 %v574
    %978 = vmatprep.subr.bf16.mxu0 %v643
    %979 = vmatpush1.bf16.msra.mxu0 %v640
    %980 = vmatprep.subr.bf16.mxu0 0
    %981 = vmatpush1.bf16.msra.mxu0 0
    %982 = vmatprep.subr.bf16.mxu0 0
    %983 = vmatpush1.bf16.msra.mxu0 0
    %984 = vmatprep.subr.bf16.mxu0 0
    %985 = vmatpush1.bf16.msra.mxu0 0
    %986 = vmatprep.subr.bf16.mxu0 0
    %987 = vmatpush1.bf16.msra.mxu0 0
    %988 = vmatprep.subr.bf16.mxu0 0
    %989 = vmatpush1.bf16.msra.mxu0 0
    %990 = vmatprep.subr.bf16.mxu0 0
    %991 = vmatpush1.bf16.msra.mxu0 0
    %992 = vmatprep.subr.bf16.mxu0 0
    %993 = vmatpush1.bf16.msra.mxu0 0
    %994 = vmatprep.subr.bf16.mxu0 0
    %995 = vmatpush1.bf16.msra.mxu0 0
    %996 = vmatprep.subr.bf16.mxu0 0
    %997 = vmatpush1.bf16.msra.mxu0 0
    %998 = vmatprep.subr.bf16.mxu0 0
    %999 = vmatpush1.bf16.msra.mxu0 0
    %1000 = vmatprep.subr.bf16.mxu0 0
    %1001 = vmatpush1.bf16.msra.mxu0 0
    %1002 = vmatprep.subr.bf16.mxu0 0
    %1003 = vmatpush1.bf16.msra.mxu0 0
    %1004 = vmatprep.subr.bf16.mxu0 0
    %1005 = vmatpush1.bf16.msra.mxu0 0
    %1006 = vmatprep.mubr.bf16.mxu0 0
    %1007 = vmatmul.mubr.bf16.gmra.mrb[0].mxu0 %v929
    %v1008 = vpop.f32.mrb[0].mxu0
    %v1009 = vadd.f32 %v966, %v1008
    %v1010 = vpop.f32.mrb[0].mxu0
    %v1011 = vadd.f32 %v968, %v1010
    %v1012 = vpop.f32.mrb[0].mxu0
    %v1013 = vadd.f32 %v970, %v1012
    %v1014 = vpop.f32.mrb[0].mxu0
    %v1015 = vadd.f32 %v972, %v1014
    %1016 = vdwg.mxu0
    %1017 = vmatprep.subr.bf16.mxu0 0
    %1018 = vmatpush1.bf16.msra.mxu0 %v525
    %1019 = vmatprep.subr.bf16.mxu0 0
    %1020 = vmatpush1.bf16.msra.mxu0 %v528
    %1021 = vmatprep.subr.bf16.mxu0 0
    %1022 = vmatpush1.bf16.msra.mxu0 %v531
    %1023 = vmatprep.subr.bf16.mxu0 0
    %1024 = vmatpush1.bf16.msra.mxu0 %v534
    %1025 = vmatprep.subr.bf16.mxu0 0
    %1026 = vmatpush1.bf16.msra.mxu0 %v537
    %1027 = vmatprep.subr.bf16.mxu0 0
    %1028 = vmatpush1.bf16.msra.mxu0 %v540
    %1029 = vmatprep.subr.bf16.mxu0 0
    %1030 = vmatpush1.bf16.msra.mxu0 %v543
    %1031 = vmatprep.subr.bf16.mxu0 0
    %1032 = vmatpush1.bf16.msra.mxu0 %v546
    %1033 = vmatprep.subr.bf16.mxu0 0
    %1034 = vmatpush1.bf16.msra.mxu0 %v549
    %1035 = vmatprep.subr.bf16.mxu0 0
    %1036 = vmatpush1.bf16.msra.mxu0 %v552
    %1037 = vmatprep.subr.bf16.mxu0 0
    %1038 = vmatpush1.bf16.msra.mxu0 %v555
    %1039 = vmatprep.subr.bf16.mxu0 0
    %1040 = vmatpush1.bf16.msra.mxu0 %v558
    %1041 = vmatprep.subr.bf16.mxu0 0
    %1042 = vmatpush1.bf16.msra.mxu0 %v561
    %1043 = vmatprep.subr.bf16.mxu0 0
    %1044 = vmatpush1.bf16.msra.mxu0 %v564
    %1045 = vmatprep.subr.bf16.mxu0 0
    %1046 = vmatpush1.bf16.msra.mxu0 %v567
    %1047 = vmatprep.subr.bf16.mxu0 0
    %1048 = vmatpush1.bf16.msra.mxu0 %v570
    %1049 = vmatprep.mubr.bf16.mxu0 %v926
    %1050 = vmatmul.mubr.bf16.gmra.mrb[0].mxu0 %v925
    %v1051 = vpop.f32.mrb[0].mxu0
    %v1052 = vadd.f32 %v329, %v1051
    %v1053 = vpop.f32.mrb[0].mxu0
    %v1054 = vpop.f32.mrb[0].mxu0
    %v1055 = vadd.f32 %v329, %v1054
    %v1056 = vpop.f32.mrb[0].mxu0
    %1057 = vdwg.mxu0
    %1058 = vmatprep.subr.bf16.mxu0 0
    %1059 = vmatpush1.bf16.msra.mxu0 %v573
    %1060 = vmatprep.subr.bf16.mxu0 0
    %1061 = vmatpush1.bf16.msra.mxu0 %v576
    %1062 = vmatprep.subr.bf16.mxu0 0
    %1063 = vmatpush1.bf16.msra.mxu0 %v646
    %1064 = vmatprep.subr.bf16.mxu0 0
    %1065 = vmatpush1.bf16.msra.mxu0 0
    %1066 = vmatprep.subr.bf16.mxu0 0
    %1067 = vmatpush1.bf16.msra.mxu0 0
    %1068 = vmatprep.subr.bf16.mxu0 0
    %1069 = vmatpush1.bf16.msra.mxu0 0
    %1070 = vmatprep.subr.bf16.mxu0 0
    %1071 = vmatpush1.bf16.msra.mxu0 0
    %1072 = vmatprep.subr.bf16.mxu0 0
    %1073 = vmatpush1.bf16.msra.mxu0 0
    %1074 = vmatprep.subr.bf16.mxu0 0
    %1075 = vmatpush1.bf16.msra.mxu0 0
    %1076 = vmatprep.subr.bf16.mxu0 0
    %1077 = vmatpush1.bf16.msra.mxu0 0
    %1078 = vmatprep.subr.bf16.mxu0 0
    %1079 = vmatpush1.bf16.msra.mxu0 0
    %1080 = vmatprep.subr.bf16.mxu0 0
    %1081 = vmatpush1.bf16.msra.mxu0 0
    %1082 = vmatprep.subr.bf16.mxu0 0
    %1083 = vmatpush1.bf16.msra.mxu0 0
    %1084 = vmatprep.subr.bf16.mxu0 0
    %1085 = vmatpush1.bf16.msra.mxu0 0
    %1086 = vmatprep.subr.bf16.mxu0 0
    %1087 = vmatpush1.bf16.msra.mxu0 0
    %1088 = vmatprep.subr.bf16.mxu0 0
    %1089 = vmatpush1.bf16.msra.mxu0 0
    %1090 = vmatprep.mubr.bf16.mxu0 0
    %1091 = vmatmul.mubr.bf16.gmra.mrb[0].mxu0 %v929
    %v1092 = vpop.f32.mrb[0].mxu0
    %v1093 = vadd.f32 %v1052, %v1092
    %v1094 = vpop.f32.mrb[0].mxu0
    %v1095 = vpop.f32.mrb[0].mxu0
    %v1096 = vadd.f32 %v1055, %v1095
    %v1097 = vpop.f32.mrb[0].mxu0
    %1098 = vdwg.mxu0
    %v1099 = vadd.f32 %v1009, %v1011
    %v1100 = vsel %vm634, %v1093, 0.0
    %v1101 = vadd.f32 %v1099, %v1100
    %1102 = vadd.xlane.f32.xlu0 %v1101
    %v1103 = vpop.xlane.xlu0 %1102
    %v1104 = vadd.f32 %v1013, %v1015
    %v1105 = vsel %vm634, %v1096, 0.0
    %v1106 = vadd.f32 %v1104, %v1105
    %1107 = vadd.xlane.f32.xlu0 %v1106
    %v1108 = vpop.xlane.xlu0 %1107
    %v1109 = vmul.f32 %v1103, %v826
    %v1110 = vmul.f32 %v1108, %v826
    %v1111 = vsub.f32 %v1009, %v1109
    %v1112 = vsub.f32 %v1011, %v1109
    %v1113 = vsub.f32 %v1093, %v1109
    %v1114 = vsub.f32 %v1013, %v1110
    %v1115 = vsub.f32 %v1015, %v1110
    %v1116 = vsub.f32 %v1096, %v1110
    %v1117 = vmul.f32 %v1111, %v1111
    %v1118 = vmul.f32 %v1112, %v1112
    %v1119 = vmul.f32 %v1113, %v1113
    %v1120 = vmul.f32 %v1114, %v1114
    %v1121 = vmul.f32 %v1115, %v1115
    %v1122 = vmul.f32 %v1116, %v1116
    %v1123 = vadd.f32 %v1117, %v1118
    %v1124 = vsel %vm634, %v1119, 0.0
    %v1125 = vadd.f32 %v1123, %v1124
    %1126 = vadd.xlane.f32.xlu0 %v1125
    %v1127 = vpop.xlane.xlu0 %1126
    %v1128 = vadd.f32 %v1120, %v1121
    %v1129 = vsel %vm634, %v1122, 0.0
    %v1130 = vadd.f32 %v1128, %v1129
    %1131 = vadd.xlane.f32.xlu0 %v1130
    %v1132 = vpop.xlane.xlu0 %1131
    %v1133 = vmul.f32 %v1127, %v826
    %v1134 = vmul.f32 %v1132, %v826
    %v1135 = vadd.f32 %v1133, 1e-05
    %v1136 = vadd.f32 %v1134, 1e-05
    %v1137 = vrsqrt.pop %v1135
    %v1138 = vrsqrt.pop %v1136
    %v1139 = vmul.f32 %v1111, %v1137
    %v1140 = vmul.f32 %v1112, %v1137
    %v1141 = vmul.f32 %v1113, %v1137
    %v1142 = vmul.f32 %v1114, %v1138
    %v1143 = vmul.f32 %v1115, %v1138
    %v1144 = vmul.f32 %v1116, %v1138
    %v1145 = vmul.f32 %v1139, %v868
    %v1146 = vmul.f32 %v1140, %v872
    %v1147 = vmul.f32 %v1141, %v876
    %v1148 = vmul.f32 %v1142, %v868
    %v1149 = vmul.f32 %v1143, %v872
    %v1150 = vmul.f32 %v1144, %v876
    %v1151 = vadd.f32 %v1145, %v891
    %v1152 = vadd.f32 %v1146, %v895
    %v1153 = vadd.f32 %v1147, %v899
    %v1154 = vadd.f32 %v1148, %v891
    %v1155 = vadd.f32 %v1149, %v895
    %v1156 = vadd.f32 %v1150, %v899
    %1158 = vset.pattern.permute.xlu0 0
    %1159 = vperm.xlu0 %1158, %v235
    %v1160 = vpop.permute.xlu0 %1159
    %1163 = vset.pattern.permute.xlu0 0
    %1164 = vperm.xlu0 %1163, %v236
    %v1165 = vpop.permute.xlu0 %1164
    %v1167 = vmul.f32 %v1151, %v1160
    %v1168 = vmul.f32 %v1152, %v1160
    %v1169 = vmul.f32 %v1153, %v1160
    %v1170 = vmul.f32 %v1154, %v1165
    %v1171 = vmul.f32 %v1155, %v1165
    %v1172 = vmul.f32 %v1156, %v1165
    %v1173 = vpack.c.bf16 %v922, %v919
    %v1174 = vpack.c.bf16 %v923, %v920
    %v1175 = vpack.c.bf16 %v924, %v921
    %v1176 = vld [vmem:[#allocation14] sm:$0xff]
    %v1177 = vld [vmem:[#allocation14 + $0x8] sm:$0xff]
    %v1178 = vld [vmem:[#allocation14 + $0x10] sm:$0xff]
    %v1179 = vld [vmem:[#allocation14 + $0x18] sm:$0xff]
    %v1180 = vld [vmem:[#allocation14 + $0x20] sm:$0xff]
    %v1181 = vld [vmem:[#allocation14 + $0x28] sm:$0xff]
    %v1182 = vld [vmem:[#allocation14 + $0x30] sm:$0xff]
    %v1183 = vld [vmem:[#allocation14 + $0x38] sm:$0xff]
    %v1184 = vld [vmem:[#allocation14 + $0x40] sm:$0xff]
    %v1185 = vld [vmem:[#allocation14 + $0x48] sm:$0xff]
    %v1186 = vld [vmem:[#allocation14 + $0x50] sm:$0xff]
    %v1187 = vld [vmem:[#allocation14 + $0x58] sm:$0xff]
    %v1188 = vld [vmem:[#allocation14 + $0x60] sm:$0xff]
    %v1189 = vld [vmem:[#allocation14 + $0x68] sm:$0xff]
    %v1190 = vld [vmem:[#allocation14 + $0x70] sm:$0xff]
    %v1191 = vld [vmem:[#allocation14 + $0x78] sm:$0xff]
    %v1192 = vld [vmem:[#allocation14 + $0x80] sm:$0xff]
    %v1193 = vld [vmem:[#allocation14 + $0x88] sm:$0xff]
    %v1194 = vld [vmem:[#allocation14 + $0x90] sm:$0xff]
    %v1195 = vld [vmem:[#allocation14 + $0x98] sm:$0xff]
    %v1196 = vld [vmem:[#allocation14 + $0xa0] sm:$0xff]
    %v1197 = vld [vmem:[#allocation14 + $0xa8] sm:$0xff]
    %v1198 = vld [vmem:[#allocation14 + $0xb0] sm:$0xff]
    %v1199 = vld [vmem:[#allocation14 + $0xb8] sm:$0xff]
    %v1200 = vld [vmem:[#allocation14 + $0xc0] sm:$0xff]
    %v1201 = vld [vmem:[#allocation14 + $0xc8] sm:$0xff]
    %v1202 = vld [vmem:[#allocation14 + $0xd0] sm:$0xff]
    %v1203 = vld [vmem:[#allocation14 + $0xd8] sm:$0xff]
    %v1204 = vld [vmem:[#allocation14 + $0xe0] sm:$0xff]
    %v1205 = vld [vmem:[#allocation14 + $0xe8] sm:$0xff]
    %v1206 = vld [vmem:[#allocation14 + $0xf0] sm:$0xff]
    %v1207 = vld [vmem:[#allocation14 + $0xf8] sm:$0xff]
    %v1208 = vld [vmem:[#allocation14 + $0x100] sm:$0xff]
    %v1209 = vld [vmem:[#allocation14 + $0x108] sm:$0xff]
    %v1210 = vld [vmem:[#allocation14 + $0x110] sm:$0xff]
    %v1211 = vld [vmem:[#allocation14 + $0x118] sm:$0xff]
    %v1212 = vld [vmem:[#allocation14 + $0x120] sm:$0xff]
    %v1213 = vld [vmem:[#allocation14 + $0x128] sm:$0xff]
    %v1214 = vld [vmem:[#allocation14 + $0x130] sm:$0xff]
    %v1215 = vld [vmem:[#allocation14 + $0x138] sm:$0xff]
    %v1216 = vld [vmem:[#allocation14 + $0x140] sm:$0xff]
    %v1217 = vld [vmem:[#allocation14 + $0x148] sm:$0xff]
    %v1218 = vld [vmem:[#allocation14 + $0x150] sm:$0xff]
    %v1219 = vld [vmem:[#allocation14 + $0x158] sm:$0xff]
    %v1220 = vld [vmem:[#allocation14 + $0x160] sm:$0xff]
    %v1221 = vld [vmem:[#allocation14 + $0x168] sm:$0xff]
    %v1222 = vld [vmem:[#allocation14 + $0x170] sm:$0xff]
    %v1223 = vld [vmem:[#allocation14 + $0x178] sm:$0xff]
    %v1224 = vld [vmem:[#allocation14 + $0x180] sm:$0xff]
    %v1225 = vld [vmem:[#allocation14 + $0x188] sm:$0xff]
    %v1226 = vld [vmem:[#allocation14 + $0x190] sm:$0xff]
    %v1227 = vld [vmem:[#allocation14 + $0x198] sm:$0xff]
    %v1228 = vld [vmem:[#allocation14 + $0x1a0] sm:$0xff]
    %v1229 = vld [vmem:[#allocation14 + $0x1a8] sm:$0xff]
    %v1230 = vld [vmem:[#allocation14 + $0x1b0] sm:$0xff]
    %v1231 = vld [vmem:[#allocation14 + $0x1b8] sm:$0xff]
    %v1232 = vld [vmem:[#allocation14 + $0x1c0] sm:$0xff]
    %v1233 = vld [vmem:[#allocation14 + $0x1c8] sm:$0xff]
    %v1234 = vld [vmem:[#allocation14 + $0x1d0] sm:$0xff]
    %v1235 = vld [vmem:[#allocation14 + $0x1d8] sm:$0xff]
    %v1236 = vld [vmem:[#allocation14 + $0x1e0] sm:$0xff]
    %v1237 = vld [vmem:[#allocation14 + $0x1e8] sm:$0xff]
    %v1238 = vld [vmem:[#allocation14 + $0x1f0] sm:$0xff]
    %v1239 = vld [vmem:[#allocation14 + $0x1f8] sm:$0xff]
    %v1240 = vld [vmem:[#allocation14 + $0x200] sm:$0xff]
    %v1241 = vld [vmem:[#allocation14 + $0x208] sm:$0xff]
    %v1242 = vld [vmem:[#allocation14 + $0x210] sm:$0xff]
    %v1243 = vld [vmem:[#allocation14 + $0x218] sm:$0xff]
    %v1244 = vld [vmem:[#allocation14 + $0x220] sm:$0xff]
    %v1245 = vld [vmem:[#allocation14 + $0x228] sm:$0xff]
    %v1246 = vld [vmem:[#allocation14 + $0x230] sm:$0xff]
    %v1247 = vld [vmem:[#allocation14 + $0x238] sm:$0xff]
    %v1248 = vld [vmem:[#allocation14 + $0x240] sm:$0xff]
    %v1249 = vld [vmem:[#allocation14 + $0x248] sm:$0xff]
    %v1250 = vld [vmem:[#allocation14 + $0x250] sm:$0xff]
    %v1251 = vld [vmem:[#allocation14 + $0x258] sm:$0xff]
    %v1252 = vld [vmem:[#allocation14 + $0x260] sm:$0xff]
    %v1253 = vld [vmem:[#allocation14 + $0x268] sm:$0xff]
    %v1254 = vld [vmem:[#allocation14 + $0x270] sm:$0xff]
    %v1255 = vld [vmem:[#allocation14 + $0x278] sm:$0xff]
    %v1256 = vld [vmem:[#allocation14 + $0x280] sm:$0xff]
    %v1257 = vld [vmem:[#allocation14 + $0x288] sm:$0xff]
    %v1258 = vld [vmem:[#allocation14 + $0x290] sm:$0xff]
    %v1259 = vld [vmem:[#allocation14 + $0x298] sm:$0xff]
    %v1260 = vld [vmem:[#allocation14 + $0x2a0] sm:$0xff]
    %v1261 = vld [vmem:[#allocation14 + $0x2a8] sm:$0xff]
    %v1262 = vld [vmem:[#allocation14 + $0x2b0] sm:$0xff]
    %v1263 = vld [vmem:[#allocation14 + $0x2b8] sm:$0xff]
    %v1264 = vld [vmem:[#allocation14 + $0x2c0] sm:$0xff]
    %v1265 = vld [vmem:[#allocation14 + $0x2c8] sm:$0xff]
    %v1266 = vld [vmem:[#allocation14 + $0x2d0] sm:$0xff]
    %v1267 = vld [vmem:[#allocation14 + $0x2d8] sm:$0xff]
    %v1268 = vld [vmem:[#allocation14 + $0x2e0] sm:$0xff]
    %v1269 = vld [vmem:[#allocation14 + $0x2e8] sm:$0xff]
    %v1270 = vld [vmem:[#allocation14 + $0x2f0] sm:$0xff]
    %v1271 = vld [vmem:[#allocation14 + $0x2f8] sm:$0xff]
    %v1272 = vld [vmem:[#allocation14 + $0x300] sm:$0xff]
    %v1273 = vld [vmem:[#allocation14 + $0x308] sm:$0xff]
    %v1274 = vld [vmem:[#allocation14 + $0x310] sm:$0xff]
    %v1275 = vld [vmem:[#allocation14 + $0x318] sm:$0xff]
    %v1276 = vld [vmem:[#allocation14 + $0x320] sm:$0xff]
    %v1277 = vld [vmem:[#allocation14 + $0x328] sm:$0xff]
    %v1278 = vld [vmem:[#allocation14 + $0x330] sm:$0xff]
    %v1279 = vld [vmem:[#allocation14 + $0x338] sm:$0xff]
    %v1280 = vld [vmem:[#allocation14 + $0x340] sm:$0xff]
    %v1281 = vld [vmem:[#allocation14 + $0x348] sm:$0xff]
    %v1282 = vld [vmem:[#allocation14 + $0x350] sm:$0xff]
    %v1283 = vld [vmem:[#allocation14 + $0x358] sm:$0xff]
    %v1284 = vld [vmem:[#allocation14 + $0x360] sm:$0xff]
    %v1285 = vld [vmem:[#allocation14 + $0x368] sm:$0xff]
    %v1286 = vld [vmem:[#allocation14 + $0x370] sm:$0xff]
    %v1287 = vld [vmem:[#allocation14 + $0x378] sm:$0xff]
    %v1288 = vld [vmem:[#allocation14 + $0x380] sm:$0xff]
    %v1289 = vld [vmem:[#allocation14 + $0x388] sm:$0xff]
    %v1290 = vld [vmem:[#allocation14 + $0x390] sm:$0xff]
    %v1291 = vld [vmem:[#allocation14 + $0x398] sm:$0xff]
    %v1292 = vld [vmem:[#allocation14 + $0x3a0] sm:$0xff]
    %v1293 = vld [vmem:[#allocation14 + $0x3a8] sm:$0xff]
    %v1294 = vld [vmem:[#allocation14 + $0x3b0] sm:$0xff]
    %v1295 = vld [vmem:[#allocation14 + $0x3b8] sm:$0xff]
    %v1296 = vld [vmem:[#allocation14 + $0x3c0] sm:$0xff]
    %v1297 = vld [vmem:[#allocation14 + $0x3c8] sm:$0xff]
    %v1298 = vld [vmem:[#allocation14 + $0x3d0] sm:$0xff]
    %v1299 = vld [vmem:[#allocation14 + $0x3d8] sm:$0xff]
    %v1300 = vld [vmem:[#allocation14 + $0x3e0] sm:$0xff]
    %v1301 = vld [vmem:[#allocation14 + $0x3e8] sm:$0xff]
    %v1302 = vld [vmem:[#allocation14 + $0x3f0] sm:$0xff]
    %v1303 = vld [vmem:[#allocation14 + $0x3f8] sm:$0xff]
    %v1304 = vld [vmem:[#allocation14 + $0x400] sm:$0xff]
    %v1305 = vld [vmem:[#allocation14 + $0x408] sm:$0xff]
    %v1306 = vld [vmem:[#allocation14 + $0x410] sm:$0xff]
    %v1307 = vld [vmem:[#allocation14 + $0x418] sm:$0xff]
    %v1308 = vld [vmem:[#allocation14 + $0x420] sm:$0xff]
    %v1309 = vld [vmem:[#allocation14 + $0x428] sm:$0xff]
    %v1310 = vld [vmem:[#allocation14 + $0x430] sm:$0xff]
    %v1311 = vld [vmem:[#allocation14 + $0x438] sm:$0xff]
    %v1312 = vld [vmem:[#allocation14 + $0x440] sm:$0xff]
    %v1313 = vld [vmem:[#allocation14 + $0x448] sm:$0xff]
    %v1314 = vld [vmem:[#allocation14 + $0x450] sm:$0xff]
    %v1315 = vld [vmem:[#allocation14 + $0x458] sm:$0xff]
    %v1316 = vld [vmem:[#allocation14 + $0x460] sm:$0xff]
    %v1317 = vld [vmem:[#allocation14 + $0x468] sm:$0xff]
    %v1318 = vld [vmem:[#allocation14 + $0x470] sm:$0xff]
    %v1319 = vld [vmem:[#allocation14 + $0x478] sm:$0xff]
    %v1320 = vld [vmem:[#allocation14 + $0x480] sm:$0xff]
    %v1321 = vld [vmem:[#allocation14 + $0x488] sm:$0xff]
    %v1322 = vld [vmem:[#allocation14 + $0x490] sm:$0xff]
    %v1323 = vld [vmem:[#allocation14 + $0x498] sm:$0xff]
    %v1324 = vld [vmem:[#allocation14 + $0x4a0] sm:$0xff]
    %v1325 = vld [vmem:[#allocation14 + $0x4a8] sm:$0xff]
    %v1326 = vld [vmem:[#allocation14 + $0x4b0] sm:$0xff]
    %v1327 = vld [vmem:[#allocation14 + $0x4b8] sm:$0xff]
    %v1328 = vld [vmem:[#allocation14 + $0x4c0] sm:$0xff]
    %v1329 = vld [vmem:[#allocation14 + $0x4c8] sm:$0xff]
    %v1330 = vld [vmem:[#allocation14 + $0x4d0] sm:$0xff]
    %v1331 = vld [vmem:[#allocation14 + $0x4d8] sm:$0xff]
    %v1332 = vld [vmem:[#allocation14 + $0x4e0] sm:$0xff]
    %v1333 = vld [vmem:[#allocation14 + $0x4e8] sm:$0xff]
    %v1334 = vld [vmem:[#allocation14 + $0x4f0] sm:$0xff]
    %v1335 = vld [vmem:[#allocation14 + $0x4f8] sm:$0xff]
    %v1336 = vld [vmem:[#allocation14 + $0x500] sm:$0xff]
    %v1337 = vld [vmem:[#allocation14 + $0x508] sm:$0xff]
    %v1338 = vld [vmem:[#allocation14 + $0x510] sm:$0xff]
    %v1339 = vld [vmem:[#allocation14 + $0x518] sm:$0xff]
    %v1340 = vld [vmem:[#allocation14 + $0x520] sm:$0xff]
    %v1341 = vld [vmem:[#allocation14 + $0x528] sm:$0xff]
    %v1342 = vld [vmem:[#allocation14 + $0x530] sm:$0xff]
    %v1343 = vld [vmem:[#allocation14 + $0x538] sm:$0xff]
    %v1344 = vld [vmem:[#allocation14 + $0x540] sm:$0xff]
    %v1345 = vld [vmem:[#allocation14 + $0x548] sm:$0xff]
    %v1346 = vld [vmem:[#allocation14 + $0x550] sm:$0xff]
    %v1347 = vld [vmem:[#allocation14 + $0x558] sm:$0xff]
    %v1348 = vld [vmem:[#allocation14 + $0x560] sm:$0xff]
    %v1349 = vld [vmem:[#allocation14 + $0x568] sm:$0xff]
    %v1350 = vld [vmem:[#allocation14 + $0x570] sm:$0xff]
    %v1351 = vld [vmem:[#allocation14 + $0x578] sm:$0xff]
    %v1352 = vld [vmem:[#allocation14 + $0x580] sm:$0xff]
    %v1353 = vld [vmem:[#allocation14 + $0x588] sm:$0xff]
    %v1354 = vld [vmem:[#allocation14 + $0x590] sm:$0xff]
    %v1355 = vld [vmem:[#allocation14 + $0x598] sm:$0xff]
    %v1356 = vld [vmem:[#allocation14 + $0x5a0] sm:$0xff]
    %v1357 = vld [vmem:[#allocation14 + $0x5a8] sm:$0xff]
    %v1358 = vld [vmem:[#allocation14 + $0x5b0] sm:$0xff]
    %v1359 = vld [vmem:[#allocation14 + $0x5b8] sm:$0xff]
    %v1360 = vld [vmem:[#allocation14 + $0x5c0] sm:$0xff]
    %v1361 = vld [vmem:[#allocation14 + $0x5c8] sm:$0x33]
    %v1362 = vld [vmem:[#allocation14 + $0x5d0] sm:$0x33]
    %v1363 = vld [vmem:[#allocation14 + $0x5d8] sm:$0x33]
    %v1364 = vld [vmem:[#allocation14 + $0x5e0] sm:$0x33]
    %v1365 = vld [vmem:[#allocation14 + $0x5e8] sm:$0x33]
    %v1366 = vpack.c.bf16 %v1170, %v1167
    %v1367 = vpack.c.bf16 %v1171, %v1168
    %v1368 = vpack.c.bf16 %v1172, %v1169
    %v1369 = vld [vmem:[#allocation15] sm:$0xff]
    %v1370 = vld [vmem:[#allocation15 + $0x8] sm:$0xff]
    %v1371 = vld [vmem:[#allocation15 + $0x10] sm:$0xff]
    %v1372 = vld [vmem:[#allocation15 + $0x18] sm:$0xff]
    %v1373 = vld [vmem:[#allocation15 + $0x20] sm:$0xff]
    %v1374 = vld [vmem:[#allocation15 + $0x28] sm:$0xff]
    %v1375 = vld [vmem:[#allocation15 + $0x30] sm:$0xff]
    %v1376 = vld [vmem:[#allocation15 + $0x38] sm:$0xff]
    %v1377 = vld [vmem:[#allocation15 + $0x40] sm:$0xff]
    %v1378 = vld [vmem:[#allocation15 + $0x48] sm:$0xff]
    %v1379 = vld [vmem:[#allocation15 + $0x50] sm:$0xff]
    %v1380 = vld [vmem:[#allocation15 + $0x58] sm:$0xff]
    %v1381 = vld [vmem:[#allocation15 + $0x60] sm:$0xff]
    %v1382 = vld [vmem:[#allocation15 + $0x68] sm:$0xff]
    %v1383 = vld [vmem:[#allocation15 + $0x70] sm:$0xff]
    %v1384 = vld [vmem:[#allocation15 + $0x78] sm:$0xff]
    %v1385 = vld [vmem:[#allocation15 + $0x80] sm:$0xff]
    %v1386 = vld [vmem:[#allocation15 + $0x88] sm:$0xff]
    %v1387 = vld [vmem:[#allocation15 + $0x90] sm:$0xff]
    %v1388 = vld [vmem:[#allocation15 + $0x98] sm:$0xff]
    %v1389 = vld [vmem:[#allocation15 + $0xa0] sm:$0xff]
    %v1390 = vld [vmem:[#allocation15 + $0xa8] sm:$0xff]
    %v1391 = vld [vmem:[#allocation15 + $0xb0] sm:$0xff]
    %v1392 = vld [vmem:[#allocation15 + $0xb8] sm:$0xff]
    %v1393 = vld [vmem:[#allocation15 + $0xc0] sm:$0xff]
    %v1394 = vld [vmem:[#allocation15 + $0xc8] sm:$0xff]
    %v1395 = vld [vmem:[#allocation15 + $0xd0] sm:$0xff]
    %v1396 = vld [vmem:[#allocation15 + $0xd8] sm:$0xff]
    %v1397 = vld [vmem:[#allocation15 + $0xe0] sm:$0xff]
    %v1398 = vld [vmem:[#allocation15 + $0xe8] sm:$0xff]
    %v1399 = vld [vmem:[#allocation15 + $0xf0] sm:$0xff]
    %v1400 = vld [vmem:[#allocation15 + $0xf8] sm:$0xff]
    %v1401 = vld [vmem:[#allocation15 + $0x100] sm:$0xff]
    %v1402 = vld [vmem:[#allocation15 + $0x108] sm:$0xff]
    %v1403 = vld [vmem:[#allocation15 + $0x110] sm:$0xff]
    %v1404 = vld [vmem:[#allocation15 + $0x118] sm:$0xff]
    %v1405 = vld [vmem:[#allocation15 + $0x120] sm:$0xff]
    %v1406 = vld [vmem:[#allocation15 + $0x128] sm:$0xff]
    %v1407 = vld [vmem:[#allocation15 + $0x130] sm:$0xff]
    %v1408 = vld [vmem:[#allocation15 + $0x138] sm:$0xff]
    %v1409 = vld [vmem:[#allocation15 + $0x140] sm:$0xff]
    %v1410 = vld [vmem:[#allocation15 + $0x148] sm:$0xff]
    %v1411 = vld [vmem:[#allocation15 + $0x150] sm:$0xff]
    %v1412 = vld [vmem:[#allocation15 + $0x158] sm:$0xff]
    %v1413 = vld [vmem:[#allocation15 + $0x160] sm:$0xff]
    %v1414 = vld [vmem:[#allocation15 + $0x168] sm:$0xff]
    %v1415 = vld [vmem:[#allocation15 + $0x170] sm:$0xff]
    %v1416 = vld [vmem:[#allocation15 + $0x178] sm:$0xff]
    %v1417 = vld [vmem:[#allocation15 + $0x180] sm:$0xff]
    %v1418 = vld [vmem:[#allocation15 + $0x188] sm:$0xff]
    %v1419 = vld [vmem:[#allocation15 + $0x190] sm:$0xff]
    %v1420 = vld [vmem:[#allocation15 + $0x198] sm:$0xff]
    %v1421 = vld [vmem:[#allocation15 + $0x1a0] sm:$0xff]
    %v1422 = vld [vmem:[#allocation15 + $0x1a8] sm:$0xff]
    %v1423 = vld [vmem:[#allocation15 + $0x1b0] sm:$0xff]
    %v1424 = vld [vmem:[#allocation15 + $0x1b8] sm:$0xff]
    %v1425 = vld [vmem:[#allocation15 + $0x1c0] sm:$0xff]
    %v1426 = vld [vmem:[#allocation15 + $0x1c8] sm:$0xff]
    %v1427 = vld [vmem:[#allocation15 + $0x1d0] sm:$0xff]
    %v1428 = vld [vmem:[#allocation15 + $0x1d8] sm:$0xff]
    %v1429 = vld [vmem:[#allocation15 + $0x1e0] sm:$0xff]
    %v1430 = vld [vmem:[#allocation15 + $0x1e8] sm:$0xff]
    %v1431 = vld [vmem:[#allocation15 + $0x1f0] sm:$0xff]
    %v1432 = vld [vmem:[#allocation15 + $0x1f8] sm:$0xff]
    %v1433 = vld [vmem:[#allocation15 + $0x200] sm:$0xff]
    %v1434 = vld [vmem:[#allocation15 + $0x208] sm:$0xff]
    %v1435 = vld [vmem:[#allocation15 + $0x210] sm:$0xff]
    %v1436 = vld [vmem:[#allocation15 + $0x218] sm:$0xff]
    %v1437 = vld [vmem:[#allocation15 + $0x220] sm:$0xff]
    %v1438 = vld [vmem:[#allocation15 + $0x228] sm:$0xff]
    %v1439 = vld [vmem:[#allocation15 + $0x230] sm:$0xff]
    %v1440 = vld [vmem:[#allocation15 + $0x238] sm:$0xff]
    %v1441 = vld [vmem:[#allocation15 + $0x240] sm:$0xff]
    %v1442 = vld [vmem:[#allocation15 + $0x248] sm:$0xff]
    %v1443 = vld [vmem:[#allocation15 + $0x250] sm:$0xff]
    %v1444 = vld [vmem:[#allocation15 + $0x258] sm:$0xff]
    %v1445 = vld [vmem:[#allocation15 + $0x260] sm:$0xff]
    %v1446 = vld [vmem:[#allocation15 + $0x268] sm:$0xff]
    %v1447 = vld [vmem:[#allocation15 + $0x270] sm:$0xff]
    %v1448 = vld [vmem:[#allocation15 + $0x278] sm:$0xff]
    %v1449 = vld [vmem:[#allocation15 + $0x280] sm:$0xff]
    %v1450 = vld [vmem:[#allocation15 + $0x288] sm:$0xff]
    %v1451 = vld [vmem:[#allocation15 + $0x290] sm:$0xff]
    %v1452 = vld [vmem:[#allocation15 + $0x298] sm:$0xff]
    %v1453 = vld [vmem:[#allocation15 + $0x2a0] sm:$0xff]
    %v1454 = vld [vmem:[#allocation15 + $0x2a8] sm:$0xff]
    %v1455 = vld [vmem:[#allocation15 + $0x2b0] sm:$0xff]
    %v1456 = vld [vmem:[#allocation15 + $0x2b8] sm:$0xff]
    %v1457 = vld [vmem:[#allocation15 + $0x2c0] sm:$0xff]
    %v1458 = vld [vmem:[#allocation15 + $0x2c8] sm:$0xff]
    %v1459 = vld [vmem:[#allocation15 + $0x2d0] sm:$0xff]
    %v1460 = vld [vmem:[#allocation15 + $0x2d8] sm:$0xff]
    %v1461 = vld [vmem:[#allocation15 + $0x2e0] sm:$0xff]
    %v1462 = vld [vmem:[#allocation15 + $0x2e8] sm:$0xff]
    %v1463 = vld [vmem:[#allocation15 + $0x2f0] sm:$0xff]
    %v1464 = vld [vmem:[#allocation15 + $0x2f8] sm:$0xff]
    %v1465 = vld [vmem:[#allocation15 + $0x300] sm:$0xff]
    %v1466 = vld [vmem:[#allocation15 + $0x308] sm:$0xff]
    %v1467 = vld [vmem:[#allocation15 + $0x310] sm:$0xff]
    %v1468 = vld [vmem:[#allocation15 + $0x318] sm:$0xff]
    %v1469 = vld [vmem:[#allocation15 + $0x320] sm:$0xff]
    %v1470 = vld [vmem:[#allocation15 + $0x328] sm:$0xff]
    %v1471 = vld [vmem:[#allocation15 + $0x330] sm:$0xff]
    %v1472 = vld [vmem:[#allocation15 + $0x338] sm:$0xff]
    %v1473 = vld [vmem:[#allocation15 + $0x340] sm:$0xff]
    %v1474 = vld [vmem:[#allocation15 + $0x348] sm:$0xff]
    %v1475 = vld [vmem:[#allocation15 + $0x350] sm:$0xff]
    %v1476 = vld [vmem:[#allocation15 + $0x358] sm:$0xff]
    %v1477 = vld [vmem:[#allocation15 + $0x360] sm:$0xff]
    %v1478 = vld [vmem:[#allocation15 + $0x368] sm:$0xff]
    %v1479 = vld [vmem:[#allocation15 + $0x370] sm:$0xff]
    %v1480 = vld [vmem:[#allocation15 + $0x378] sm:$0xff]
    %v1481 = vld [vmem:[#allocation15 + $0x380] sm:$0xff]
    %v1482 = vld [vmem:[#allocation15 + $0x388] sm:$0xff]
    %v1483 = vld [vmem:[#allocation15 + $0x390] sm:$0xff]
    %v1484 = vld [vmem:[#allocation15 + $0x398] sm:$0xff]
    %v1485 = vld [vmem:[#allocation15 + $0x3a0] sm:$0xff]
    %v1486 = vld [vmem:[#allocation15 + $0x3a8] sm:$0xff]
    %v1487 = vld [vmem:[#allocation15 + $0x3b0] sm:$0xff]
    %v1488 = vld [vmem:[#allocation15 + $0x3b8] sm:$0xff]
    %v1489 = vld [vmem:[#allocation15 + $0x3c0] sm:$0xff]
    %v1490 = vld [vmem:[#allocation15 + $0x3c8] sm:$0xff]
    %v1491 = vld [vmem:[#allocation15 + $0x3d0] sm:$0xff]
    %v1492 = vld [vmem:[#allocation15 + $0x3d8] sm:$0xff]
    %v1493 = vld [vmem:[#allocation15 + $0x3e0] sm:$0xff]
    %v1494 = vld [vmem:[#allocation15 + $0x3e8] sm:$0xff]
    %v1495 = vld [vmem:[#allocation15 + $0x3f0] sm:$0xff]
    %v1496 = vld [vmem:[#allocation15 + $0x3f8] sm:$0xff]
    %v1497 = vld [vmem:[#allocation15 + $0x400] sm:$0xff]
    %v1498 = vld [vmem:[#allocation15 + $0x408] sm:$0xff]
    %v1499 = vld [vmem:[#allocation15 + $0x410] sm:$0xff]
    %v1500 = vld [vmem:[#allocation15 + $0x418] sm:$0xff]
    %v1501 = vld [vmem:[#allocation15 + $0x420] sm:$0xff]
    %v1502 = vld [vmem:[#allocation15 + $0x428] sm:$0xff]
    %v1503 = vld [vmem:[#allocation15 + $0x430] sm:$0xff]
    %v1504 = vld [vmem:[#allocation15 + $0x438] sm:$0xff]
    %v1505 = vld [vmem:[#allocation15 + $0x440] sm:$0xff]
    %v1506 = vld [vmem:[#allocation15 + $0x448] sm:$0xff]
    %v1507 = vld [vmem:[#allocation15 + $0x450] sm:$0xff]
    %v1508 = vld [vmem:[#allocation15 + $0x458] sm:$0xff]
    %v1509 = vld [vmem:[#allocation15 + $0x460] sm:$0xff]
    %v1510 = vld [vmem:[#allocation15 + $0x468] sm:$0xff]
    %v1511 = vld [vmem:[#allocation15 + $0x470] sm:$0xff]
    %v1512 = vld [vmem:[#allocation15 + $0x478] sm:$0xff]
    %v1513 = vld [vmem:[#allocation15 + $0x480] sm:$0xff]
    %v1514 = vld [vmem:[#allocation15 + $0x488] sm:$0xff]
    %v1515 = vld [vmem:[#allocation15 + $0x490] sm:$0xff]
    %v1516 = vld [vmem:[#allocation15 + $0x498] sm:$0xff]
    %v1517 = vld [vmem:[#allocation15 + $0x4a0] sm:$0xff]
    %v1518 = vld [vmem:[#allocation15 + $0x4a8] sm:$0xff]
    %v1519 = vld [vmem:[#allocation15 + $0x4b0] sm:$0xff]
    %v1520 = vld [vmem:[#allocation15 + $0x4b8] sm:$0xff]
    %v1521 = vld [vmem:[#allocation15 + $0x4c0] sm:$0xff]
    %v1522 = vld [vmem:[#allocation15 + $0x4c8] sm:$0xff]
    %v1523 = vld [vmem:[#allocation15 + $0x4d0] sm:$0xff]
    %v1524 = vld [vmem:[#allocation15 + $0x4d8] sm:$0xff]
    %v1525 = vld [vmem:[#allocation15 + $0x4e0] sm:$0xff]
    %v1526 = vld [vmem:[#allocation15 + $0x4e8] sm:$0xff]
    %v1527 = vld [vmem:[#allocation15 + $0x4f0] sm:$0xff]
    %v1528 = vld [vmem:[#allocation15 + $0x4f8] sm:$0xff]
    %v1529 = vld [vmem:[#allocation15 + $0x500] sm:$0xff]
    %v1530 = vld [vmem:[#allocation15 + $0x508] sm:$0xff]
    %v1531 = vld [vmem:[#allocation15 + $0x510] sm:$0xff]
    %v1532 = vld [vmem:[#allocation15 + $0x518] sm:$0xff]
    %v1533 = vld [vmem:[#allocation15 + $0x520] sm:$0xff]
    %v1534 = vld [vmem:[#allocation15 + $0x528] sm:$0xff]
    %v1535 = vld [vmem:[#allocation15 + $0x530] sm:$0xff]
    %v1536 = vld [vmem:[#allocation15 + $0x538] sm:$0xff]
    %v1537 = vld [vmem:[#allocation15 + $0x540] sm:$0xff]
    %v1538 = vld [vmem:[#allocation15 + $0x548] sm:$0xff]
    %v1539 = vld [vmem:[#allocation15 + $0x550] sm:$0xff]
    %v1540 = vld [vmem:[#allocation15 + $0x558] sm:$0xff]
    %v1541 = vld [vmem:[#allocation15 + $0x560] sm:$0xff]
    %v1542 = vld [vmem:[#allocation15 + $0x568] sm:$0xff]
    %v1543 = vld [vmem:[#allocation15 + $0x570] sm:$0xff]
    %v1544 = vld [vmem:[#allocation15 + $0x578] sm:$0xff]
    %v1545 = vld [vmem:[#allocation15 + $0x580] sm:$0xff]
    %v1546 = vld [vmem:[#allocation15 + $0x588] sm:$0xff]
    %v1547 = vld [vmem:[#allocation15 + $0x590] sm:$0xff]
    %v1548 = vld [vmem:[#allocation15 + $0x598] sm:$0xff]
    %v1549 = vld [vmem:[#allocation15 + $0x5a0] sm:$0xff]
    %v1550 = vld [vmem:[#allocation15 + $0x5a8] sm:$0xff]
    %v1551 = vld [vmem:[#allocation15 + $0x5b0] sm:$0xff]
    %v1552 = vld [vmem:[#allocation15 + $0x5b8] sm:$0xff]
    %v1553 = vld [vmem:[#allocation15 + $0x5c0] sm:$0xff]
    %v1554 = vld [vmem:[#allocation15 + $0x5c8] sm:$0x33]
    %v1555 = vld [vmem:[#allocation15 + $0x5d0] sm:$0x33]
    %v1556 = vld [vmem:[#allocation15 + $0x5d8] sm:$0x33]
    %v1557 = vld [vmem:[#allocation15 + $0x5e0] sm:$0x33]
    %v1558 = vld [vmem:[#allocation15 + $0x5e8] sm:$0x33]
    %v1749 = vunpack.c.l.b16 %v1369
    %v1750 = vunpack.c.h.b16 %v1369
    %v1751 = vunpack.c.l.b16 %v1370
    %v1752 = vunpack.c.h.b16 %v1370
    %v1753 = vunpack.c.l.b16 %v1371
    %v1754 = vunpack.c.h.b16 %v1371
    %v1755 = vunpack.c.l.b16 %v1372
    %v1756 = vunpack.c.h.b16 %v1372
    %v1757 = vunpack.c.l.b16 %v1373
    %v1758 = vunpack.c.h.b16 %v1373
    %v1759 = vunpack.c.l.b16 %v1374
    %v1760 = vunpack.c.h.b16 %v1374
    %v1761 = vunpack.c.l.b16 %v1375
    %v1762 = vunpack.c.h.b16 %v1375
    %v1763 = vunpack.c.l.b16 %v1376
    %v1764 = vunpack.c.h.b16 %v1376
    %v1765 = vunpack.c.l.b16 %v1377
    %v1766 = vunpack.c.h.b16 %v1377
    %v1767 = vunpack.c.l.b16 %v1378
    %v1768 = vunpack.c.h.b16 %v1378
    %v1769 = vunpack.c.l.b16 %v1379
    %v1770 = vunpack.c.h.b16 %v1379
    %v1771 = vunpack.c.l.b16 %v1380
    %v1772 = vunpack.c.h.b16 %v1380
    %v1773 = vunpack.c.l.b16 %v1381
    %v1774 = vunpack.c.h.b16 %v1381
    %v1775 = vunpack.c.l.b16 %v1382
    %v1776 = vunpack.c.h.b16 %v1382
    %v1777 = vunpack.c.l.b16 %v1383
    %v1778 = vunpack.c.h.b16 %v1383
    %v1779 = vunpack.c.l.b16 %v1384
    %v1780 = vunpack.c.h.b16 %v1384
    %v1781 = vunpack.c.l.b16 %v1385
    %v1782 = vunpack.c.h.b16 %v1385
    %v1783 = vunpack.c.l.b16 %v1386
    %v1784 = vunpack.c.h.b16 %v1386
    %v1785 = vunpack.c.l.b16 %v1387
    %v1786 = vunpack.c.h.b16 %v1387
    %v1787 = vunpack.c.l.b16 %v1388
    %v1788 = vunpack.c.h.b16 %v1388
    %v1789 = vunpack.c.l.b16 %v1389
    %v1790 = vunpack.c.h.b16 %v1389
    %v1791 = vunpack.c.l.b16 %v1390
    %v1792 = vunpack.c.h.b16 %v1390
    %v1793 = vunpack.c.l.b16 %v1391
    %v1794 = vunpack.c.h.b16 %v1391
    %v1795 = vunpack.c.l.b16 %v1392
    %v1796 = vunpack.c.h.b16 %v1392
    %v1797 = vunpack.c.l.b16 %v1393
    %v1798 = vunpack.c.h.b16 %v1393
    %v1799 = vunpack.c.l.b16 %v1394
    %v1800 = vunpack.c.h.b16 %v1394
    %v1801 = vunpack.c.l.b16 %v1395
    %v1802 = vunpack.c.h.b16 %v1395
    %v1803 = vunpack.c.l.b16 %v1396
    %v1804 = vunpack.c.h.b16 %v1396
    %v1805 = vunpack.c.l.b16 %v1397
    %v1806 = vunpack.c.h.b16 %v1397
    %v1807 = vunpack.c.l.b16 %v1398
    %v1808 = vunpack.c.h.b16 %v1398
    %v1809 = vunpack.c.l.b16 %v1399
    %v1810 = vunpack.c.h.b16 %v1399
    %v1811 = vunpack.c.l.b16 %v1400
    %v1812 = vunpack.c.h.b16 %v1400
    %v1813 = vunpack.c.l.b16 %v1401
    %v1814 = vunpack.c.h.b16 %v1401
    %v1815 = vunpack.c.l.b16 %v1402
    %v1816 = vunpack.c.h.b16 %v1402
    %v1817 = vunpack.c.l.b16 %v1403
    %v1818 = vunpack.c.h.b16 %v1403
    %v1819 = vunpack.c.l.b16 %v1404
    %v1820 = vunpack.c.h.b16 %v1404
    %v1821 = vunpack.c.l.b16 %v1405
    %v1822 = vunpack.c.h.b16 %v1405
    %v1823 = vunpack.c.l.b16 %v1406
    %v1824 = vunpack.c.h.b16 %v1406
    %v1825 = vunpack.c.l.b16 %v1407
    %v1826 = vunpack.c.h.b16 %v1407
    %v1827 = vunpack.c.l.b16 %v1408
    %v1828 = vunpack.c.h.b16 %v1408
    %v1829 = vunpack.c.l.b16 %v1409
    %v1830 = vunpack.c.h.b16 %v1409
    %v1831 = vunpack.c.l.b16 %v1410
    %v1832 = vunpack.c.h.b16 %v1410
    %v1833 = vunpack.c.l.b16 %v1411
    %v1834 = vunpack.c.h.b16 %v1411
    %v1835 = vunpack.c.l.b16 %v1412
    %v1836 = vunpack.c.h.b16 %v1412
    %v1837 = vunpack.c.l.b16 %v1413
    %v1838 = vunpack.c.h.b16 %v1413
    %v1839 = vunpack.c.l.b16 %v1414
    %v1840 = vunpack.c.h.b16 %v1414
    %v1841 = vunpack.c.l.b16 %v1415
    %v1842 = vunpack.c.h.b16 %v1415
    %v1843 = vunpack.c.l.b16 %v1416
    %v1844 = vunpack.c.h.b16 %v1416
    %v1845 = vunpack.c.l.b16 %v1417
    %v1846 = vunpack.c.h.b16 %v1417
    %v1847 = vunpack.c.l.b16 %v1418
    %v1848 = vunpack.c.h.b16 %v1418
    %v1849 = vunpack.c.l.b16 %v1419
    %v1850 = vunpack.c.h.b16 %v1419
    %v1851 = vunpack.c.l.b16 %v1420
    %v1852 = vunpack.c.h.b16 %v1420
    %v1853 = vunpack.c.l.b16 %v1421
    %v1854 = vunpack.c.h.b16 %v1421
    %v1855 = vunpack.c.l.b16 %v1422
    %v1856 = vunpack.c.h.b16 %v1422
    %v1857 = vunpack.c.l.b16 %v1423
    %v1858 = vunpack.c.h.b16 %v1423
    %v1859 = vunpack.c.l.b16 %v1424
    %v1860 = vunpack.c.h.b16 %v1424
    %v1861 = vunpack.c.l.b16 %v1425
    %v1862 = vunpack.c.h.b16 %v1425
    %v1863 = vunpack.c.l.b16 %v1426
    %v1864 = vunpack.c.h.b16 %v1426
    %v1865 = vunpack.c.l.b16 %v1427
    %v1866 = vunpack.c.h.b16 %v1427
    %v1867 = vunpack.c.l.b16 %v1428
    %v1868 = vunpack.c.h.b16 %v1428
    %v1869 = vunpack.c.l.b16 %v1429
    %v1870 = vunpack.c.h.b16 %v1429
    %v1871 = vunpack.c.l.b16 %v1430
    %v1872 = vunpack.c.h.b16 %v1430
    %v1873 = vunpack.c.l.b16 %v1431
    %v1874 = vunpack.c.h.b16 %v1431
    %v1875 = vunpack.c.l.b16 %v1432
    %v1876 = vunpack.c.h.b16 %v1432
    %v1877 = vunpack.c.l.b16 %v1433
    %v1878 = vunpack.c.h.b16 %v1433
    %v1879 = vunpack.c.l.b16 %v1434
    %v1880 = vunpack.c.h.b16 %v1434
    %v1881 = vunpack.c.l.b16 %v1435
    %v1882 = vunpack.c.h.b16 %v1435
    %v1883 = vunpack.c.l.b16 %v1436
    %v1884 = vunpack.c.h.b16 %v1436
    %v1885 = vunpack.c.l.b16 %v1437
    %v1886 = vunpack.c.h.b16 %v1437
    %v1887 = vunpack.c.l.b16 %v1438
    %v1888 = vunpack.c.h.b16 %v1438
    %v1889 = vunpack.c.l.b16 %v1439
    %v1890 = vunpack.c.h.b16 %v1439
    %v1891 = vunpack.c.l.b16 %v1440
    %v1892 = vunpack.c.h.b16 %v1440
    %v1893 = vunpack.c.l.b16 %v1441
    %v1894 = vunpack.c.h.b16 %v1441
    %v1895 = vunpack.c.l.b16 %v1442
    %v1896 = vunpack.c.h.b16 %v1442
    %v1897 = vunpack.c.l.b16 %v1443
    %v1898 = vunpack.c.h.b16 %v1443
    %v1899 = vunpack.c.l.b16 %v1444
    %v1900 = vunpack.c.h.b16 %v1444
    %v1901 = vunpack.c.l.b16 %v1445
    %v1902 = vunpack.c.h.b16 %v1445
    %v1903 = vunpack.c.l.b16 %v1446
    %v1904 = vunpack.c.h.b16 %v1446
    %v1905 = vunpack.c.l.b16 %v1447
    %v1906 = vunpack.c.h.b16 %v1447
    %v1907 = vunpack.c.l.b16 %v1448
    %v1908 = vunpack.c.h.b16 %v1448
    %v1909 = vunpack.c.l.b16 %v1449
    %v1910 = vunpack.c.h.b16 %v1449
    %v1911 = vunpack.c.l.b16 %v1450
    %v1912 = vunpack.c.h.b16 %v1450
    %v1913 = vunpack.c.l.b16 %v1451
    %v1914 = vunpack.c.h.b16 %v1451
    %v1915 = vunpack.c.l.b16 %v1452
    %v1916 = vunpack.c.h.b16 %v1452
    %v1917 = vunpack.c.l.b16 %v1453
    %v1918 = vunpack.c.h.b16 %v1453
    %v1919 = vunpack.c.l.b16 %v1454
    %v1920 = vunpack.c.h.b16 %v1454
    %v1921 = vunpack.c.l.b16 %v1455
    %v1922 = vunpack.c.h.b16 %v1455
    %v1923 = vunpack.c.l.b16 %v1456
    %v1924 = vunpack.c.h.b16 %v1456
    %v1925 = vunpack.c.l.b16 %v1457
    %v1926 = vunpack.c.h.b16 %v1457
    %v1927 = vunpack.c.l.b16 %v1458
    %v1928 = vunpack.c.h.b16 %v1458
    %v1929 = vunpack.c.l.b16 %v1459
    %v1930 = vunpack.c.h.b16 %v1459
    %v1931 = vunpack.c.l.b16 %v1460
    %v1932 = vunpack.c.h.b16 %v1460
    %v1933 = vunpack.c.l.b16 %v1461
    %v1934 = vunpack.c.h.b16 %v1461
    %v1935 = vunpack.c.l.b16 %v1462
    %v1936 = vunpack.c.h.b16 %v1462
    %v1937 = vunpack.c.l.b16 %v1463
    %v1938 = vunpack.c.h.b16 %v1463
    %v1939 = vunpack.c.l.b16 %v1464
    %v1940 = vunpack.c.h.b16 %v1464
    %v1941 = vunpack.c.l.b16 %v1465
    %v1942 = vunpack.c.h.b16 %v1465
    %v1943 = vunpack.c.l.b16 %v1466
    %v1944 = vunpack.c.h.b16 %v1466
    %v1945 = vunpack.c.l.b16 %v1467
    %v1946 = vunpack.c.h.b16 %v1467
    %v1947 = vunpack.c.l.b16 %v1468
    %v1948 = vunpack.c.h.b16 %v1468
    %v1949 = vunpack.c.l.b16 %v1469
    %v1950 = vunpack.c.h.b16 %v1469
    %v1951 = vunpack.c.l.b16 %v1470
    %v1952 = vunpack.c.h.b16 %v1470
    %v1953 = vunpack.c.l.b16 %v1471
    %v1954 = vunpack.c.h.b16 %v1471
    %v1955 = vunpack.c.l.b16 %v1472
    %v1956 = vunpack.c.h.b16 %v1472
    %v1957 = vunpack.c.l.b16 %v1473
    %v1958 = vunpack.c.h.b16 %v1473
    %v1959 = vunpack.c.l.b16 %v1474
    %v1960 = vunpack.c.h.b16 %v1474
    %v1961 = vunpack.c.l.b16 %v1475
    %v1962 = vunpack.c.h.b16 %v1475
    %v1963 = vunpack.c.l.b16 %v1476
    %v1964 = vunpack.c.h.b16 %v1476
    %v1965 = vunpack.c.l.b16 %v1477
    %v1966 = vunpack.c.h.b16 %v1477
    %v1967 = vunpack.c.l.b16 %v1478
    %v1968 = vunpack.c.h.b16 %v1478
    %v1969 = vunpack.c.l.b16 %v1479
    %v1970 = vunpack.c.h.b16 %v1479
    %v1971 = vunpack.c.l.b16 %v1480
    %v1972 = vunpack.c.h.b16 %v1480
    %v1973 = vunpack.c.l.b16 %v1481
    %v1974 = vunpack.c.h.b16 %v1481
    %v1975 = vunpack.c.l.b16 %v1482
    %v1976 = vunpack.c.h.b16 %v1482
    %v1977 = vunpack.c.l.b16 %v1483
    %v1978 = vunpack.c.h.b16 %v1483
    %v1979 = vunpack.c.l.b16 %v1484
    %v1980 = vunpack.c.h.b16 %v1484
    %v1981 = vunpack.c.l.b16 %v1485
    %v1982 = vunpack.c.h.b16 %v1485
    %v1983 = vunpack.c.l.b16 %v1486
    %v1984 = vunpack.c.h.b16 %v1486
    %v1985 = vunpack.c.l.b16 %v1487
    %v1986 = vunpack.c.h.b16 %v1487
    %v1987 = vunpack.c.l.b16 %v1488
    %v1988 = vunpack.c.h.b16 %v1488
    %v1989 = vunpack.c.l.b16 %v1489
    %v1990 = vunpack.c.h.b16 %v1489
    %v1991 = vunpack.c.l.b16 %v1490
    %v1992 = vunpack.c.h.b16 %v1490
    %v1993 = vunpack.c.l.b16 %v1491
    %v1994 = vunpack.c.h.b16 %v1491
    %v1995 = vunpack.c.l.b16 %v1492
    %v1996 = vunpack.c.h.b16 %v1492
    %v1997 = vunpack.c.l.b16 %v1493
    %v1998 = vunpack.c.h.b16 %v1493
    %v1999 = vunpack.c.l.b16 %v1494
    %v2000 = vunpack.c.h.b16 %v1494
    %v2001 = vunpack.c.l.b16 %v1495
    %v2002 = vunpack.c.h.b16 %v1495
    %v2003 = vunpack.c.l.b16 %v1496
    %v2004 = vunpack.c.h.b16 %v1496
    %v2005 = vunpack.c.l.b16 %v1497
    %v2006 = vunpack.c.h.b16 %v1497
    %v2007 = vunpack.c.l.b16 %v1498
    %v2008 = vunpack.c.h.b16 %v1498
    %v2009 = vunpack.c.l.b16 %v1499
    %v2010 = vunpack.c.h.b16 %v1499
    %v2011 = vunpack.c.l.b16 %v1500
    %v2012 = vunpack.c.h.b16 %v1500
    %v2013 = vunpack.c.l.b16 %v1501
    %v2014 = vunpack.c.h.b16 %v1501
    %v2015 = vunpack.c.l.b16 %v1502
    %v2016 = vunpack.c.h.b16 %v1502
    %v2017 = vunpack.c.l.b16 %v1503
    %v2018 = vunpack.c.h.b16 %v1503
    %v2019 = vunpack.c.l.b16 %v1504
    %v2020 = vunpack.c.h.b16 %v1504
    %v2021 = vunpack.c.l.b16 %v1505
    %v2022 = vunpack.c.h.b16 %v1505
    %v2023 = vunpack.c.l.b16 %v1506
    %v2024 = vunpack.c.h.b16 %v1506
    %v2025 = vunpack.c.l.b16 %v1507
    %v2026 = vunpack.c.h.b16 %v1507
    %v2027 = vunpack.c.l.b16 %v1508
    %v2028 = vunpack.c.h.b16 %v1508
    %v2029 = vunpack.c.l.b16 %v1509
    %v2030 = vunpack.c.h.b16 %v1509
    %v2031 = vunpack.c.l.b16 %v1510
    %v2032 = vunpack.c.h.b16 %v1510
    %v2033 = vunpack.c.l.b16 %v1511
    %v2034 = vunpack.c.h.b16 %v1511
    %v2035 = vunpack.c.l.b16 %v1512
    %v2036 = vunpack.c.h.b16 %v1512
    %v2037 = vunpack.c.l.b16 %v1513
    %v2038 = vunpack.c.h.b16 %v1513
    %v2039 = vunpack.c.l.b16 %v1514
    %v2040 = vunpack.c.h.b16 %v1514
    %v2041 = vunpack.c.l.b16 %v1515
    %v2042 = vunpack.c.h.b16 %v1515
    %v2043 = vunpack.c.l.b16 %v1516
    %v2044 = vunpack.c.h.b16 %v1516
    %v2045 = vunpack.c.l.b16 %v1517
    %v2046 = vunpack.c.h.b16 %v1517
    %v2047 = vunpack.c.l.b16 %v1518
    %v2048 = vunpack.c.h.b16 %v1518
    %v2049 = vunpack.c.l.b16 %v1519
    %v2050 = vunpack.c.h.b16 %v1519
    %v2051 = vunpack.c.l.b16 %v1520
    %v2052 = vunpack.c.h.b16 %v1520
    %v2053 = vunpack.c.l.b16 %v1521
    %v2054 = vunpack.c.h.b16 %v1521
    %v2055 = vunpack.c.l.b16 %v1522
    %v2056 = vunpack.c.h.b16 %v1522
    %v2057 = vunpack.c.l.b16 %v1523
    %v2058 = vunpack.c.h.b16 %v1523
    %v2059 = vunpack.c.l.b16 %v1524
    %v2060 = vunpack.c.h.b16 %v1524
    %v2061 = vunpack.c.l.b16 %v1525
    %v2062 = vunpack.c.h.b16 %v1525
    %v2063 = vunpack.c.l.b16 %v1526
    %v2064 = vunpack.c.h.b16 %v1526
    %v2065 = vunpack.c.l.b16 %v1527
    %v2066 = vunpack.c.h.b16 %v1527
    %v2067 = vunpack.c.l.b16 %v1528
    %v2068 = vunpack.c.h.b16 %v1528
    %v2069 = vunpack.c.l.b16 %v1529
    %v2070 = vunpack.c.h.b16 %v1529
    %v2071 = vunpack.c.l.b16 %v1530
    %v2072 = vunpack.c.h.b16 %v1530
    %v2073 = vunpack.c.l.b16 %v1531
    %v2074 = vunpack.c.h.b16 %v1531
    %v2075 = vunpack.c.l.b16 %v1532
    %v2076 = vunpack.c.h.b16 %v1532
    %v2077 = vunpack.c.l.b16 %v1533
    %v2078 = vunpack.c.h.b16 %v1533
    %v2079 = vunpack.c.l.b16 %v1534
    %v2080 = vunpack.c.h.b16 %v1534
    %v2081 = vunpack.c.l.b16 %v1535
    %v2082 = vunpack.c.h.b16 %v1535
    %v2083 = vunpack.c.l.b16 %v1536
    %v2084 = vunpack.c.h.b16 %v1536
    %v2085 = vunpack.c.l.b16 %v1537
    %v2086 = vunpack.c.h.b16 %v1537
    %v2087 = vunpack.c.l.b16 %v1538
    %v2088 = vunpack.c.h.b16 %v1538
    %v2089 = vunpack.c.l.b16 %v1539
    %v2090 = vunpack.c.h.b16 %v1539
    %v2091 = vunpack.c.l.b16 %v1540
    %v2092 = vunpack.c.h.b16 %v1540
    %v2093 = vunpack.c.l.b16 %v1541
    %v2094 = vunpack.c.h.b16 %v1541
    %v2095 = vunpack.c.l.b16 %v1542
    %v2096 = vunpack.c.h.b16 %v1542
    %v2097 = vunpack.c.l.b16 %v1543
    %v2098 = vunpack.c.h.b16 %v1543
    %v2099 = vunpack.c.l.b16 %v1544
    %v2100 = vunpack.c.h.b16 %v1544
    %v2101 = vunpack.c.l.b16 %v1545
    %v2102 = vunpack.c.h.b16 %v1545
    %v2103 = vunpack.c.l.b16 %v1546
    %v2104 = vunpack.c.h.b16 %v1546
    %v2105 = vunpack.c.l.b16 %v1547
    %v2106 = vunpack.c.h.b16 %v1547
    %v2107 = vunpack.c.l.b16 %v1548
    %v2108 = vunpack.c.h.b16 %v1548
    %v2109 = vunpack.c.l.b16 %v1549
    %v2110 = vunpack.c.h.b16 %v1549
    %v2111 = vunpack.c.l.b16 %v1550
    %v2112 = vunpack.c.h.b16 %v1550
    %v2113 = vunpack.c.l.b16 %v1551
    %v2114 = vunpack.c.h.b16 %v1551
    %v2115 = vunpack.c.l.b16 %v1552
    %v2116 = vunpack.c.h.b16 %v1552
    %v2117 = vunpack.c.l.b16 %v1553
    %v2118 = vunpack.c.h.b16 %v1553
    %v2119 = vunpack.c.l.b16 %v1554
    %v2120 = vunpack.c.h.b16 %v1554
    %v2121 = vunpack.c.l.b16 %v1555
    %v2122 = vunpack.c.h.b16 %v1555
    %v2123 = vunpack.c.l.b16 %v1556
    %v2124 = vunpack.c.h.b16 %v1556
    %v2125 = vunpack.c.l.b16 %v1557
    %v2126 = vunpack.c.h.b16 %v1557
    %v2127 = vunpack.c.l.b16 %v1558
    %v2128 = vunpack.c.h.b16 %v1558
    %v2129 = vpack.c.b16 %v1759, %v1749
    %v2130 = vpack.c.b16 %v1760, %v1750
    %v2131 = vpack.c.b16 %v1761, %v1751
    %v2132 = vpack.c.b16 %v1762, %v1752
    %v2133 = vpack.c.b16 %v1763, %v1753
    %v2134 = vpack.c.b16 %v1764, %v1754
    %v2135 = vpack.c.b16 %v1765, %v1755
    %v2136 = vpack.c.b16 %v1766, %v1756
    %v2137 = vpack.c.b16 %v1767, %v1757
    %v2138 = vpack.c.b16 %v1768, %v1758
    %v2139 = vpack.c.b16 %v1779, %v1769
    %v2140 = vpack.c.b16 %v1780, %v1770
    %v2141 = vpack.c.b16 %v1781, %v1771
    %v2142 = vpack.c.b16 %v1782, %v1772
    %v2143 = vpack.c.b16 %v1783, %v1773
    %v2144 = vpack.c.b16 %v1784, %v1774
    %v2145 = vpack.c.b16 %v1785, %v1775
    %v2146 = vpack.c.b16 %v1786, %v1776
    %v2147 = vpack.c.b16 %v1787, %v1777
    %v2148 = vpack.c.b16 %v1788, %v1778
    %v2149 = vpack.c.b16 %v1799, %v1789
    %v2150 = vpack.c.b16 %v1800, %v1790
    %v2151 = vpack.c.b16 %v1801, %v1791
    %v2152 = vpack.c.b16 %v1802, %v1792
    %v2153 = vpack.c.b16 %v1803, %v1793
    %v2154 = vpack.c.b16 %v1804, %v1794
    %v2155 = vpack.c.b16 %v1805, %v1795
    %v2156 = vpack.c.b16 %v1806, %v1796
    %v2157 = vpack.c.b16 %v1807, %v1797
    %v2158 = vpack.c.b16 %v1808, %v1798
    %v2159 = vpack.c.b16 %v1819, %v1809
    %v2160 = vpack.c.b16 %v1820, %v1810
    %v2161 = vpack.c.b16 %v1821, %v1811
    %v2162 = vpack.c.b16 %v1822, %v1812
    %v2163 = vpack.c.b16 %v1823, %v1813
    %v2164 = vpack.c.b16 %v1824, %v1814
    %v2165 = vpack.c.b16 %v1825, %v1815
    %v2166 = vpack.c.b16 %v1826, %v1816
    %v2167 = vpack.c.b16 %v1827, %v1817
    %v2168 = vpack.c.b16 %v1828, %v1818
    %v2169 = vpack.c.b16 %v1839, %v1829
    %v2170 = vpack.c.b16 %v1840, %v1830
    %v2171 = vpack.c.b16 %v1841, %v1831
    %v2172 = vpack.c.b16 %v1842, %v1832
    %v2173 = vpack.c.b16 %v1843, %v1833
    %v2174 = vpack.c.b16 %v1844, %v1834
    %v2175 = vpack.c.b16 %v1845, %v1835
    %v2176 = vpack.c.b16 %v1846, %v1836
    %v2177 = vpack.c.b16 %v1847, %v1837
    %v2178 = vpack.c.b16 %v1848, %v1838
    %v2179 = vpack.c.b16 %v1859, %v1849
    %v2180 = vpack.c.b16 %v1860, %v1850
    %v2181 = vpack.c.b16 %v1861, %v1851
    %v2182 = vpack.c.b16 %v1862, %v1852
    %v2183 = vpack.c.b16 %v1863, %v1853
    %v2184 = vpack.c.b16 %v1864, %v1854
    %v2185 = vpack.c.b16 %v1865, %v1855
    %v2186 = vpack.c.b16 %v1866, %v1856
    %v2187 = vpack.c.b16 %v1867, %v1857
    %v2188 = vpack.c.b16 %v1868, %v1858
    %v2189 = vpack.c.b16 %v1879, %v1869
    %v2190 = vpack.c.b16 %v1880, %v1870
    %v2191 = vpack.c.b16 %v1881, %v1871
    %v2192 = vpack.c.b16 %v1882, %v1872
    %v2193 = vpack.c.b16 %v1883, %v1873
    %v2194 = vpack.c.b16 %v1884, %v1874
    %v2195 = vpack.c.b16 %v1885, %v1875
    %v2196 = vpack.c.b16 %v1886, %v1876
    %v2197 = vpack.c.b16 %v1887, %v1877
    %v2198 = vpack.c.b16 %v1888, %v1878
    %v2199 = vpack.c.b16 %v1899, %v1889
    %v2200 = vpack.c.b16 %v1900, %v1890
    %v2201 = vpack.c.b16 %v1901, %v1891
    %v2202 = vpack.c.b16 %v1902, %v1892
    %v2203 = vpack.c.b16 %v1903, %v1893
    %v2204 = vpack.c.b16 %v1904, %v1894
    %v2205 = vpack.c.b16 %v1905, %v1895
    %v2206 = vpack.c.b16 %v1906, %v1896
    %v2207 = vpack.c.b16 %v1907, %v1897
    %v2208 = vpack.c.b16 %v1908, %v1898
    %v2209 = vpack.c.b16 %v1919, %v1909
    %v2210 = vpack.c.b16 %v1920, %v1910
    %v2211 = vpack.c.b16 %v1921, %v1911
    %v2212 = vpack.c.b16 %v1922, %v1912
    %v2213 = vpack.c.b16 %v1923, %v1913
    %v2214 = vpack.c.b16 %v1924, %v1914
    %v2215 = vpack.c.b16 %v1925, %v1915
    %v2216 = vpack.c.b16 %v1926, %v1916
    %v2217 = vpack.c.b16 %v1927, %v1917
    %v2218 = vpack.c.b16 %v1928, %v1918
    %v2219 = vpack.c.b16 %v1939, %v1929
    %v2220 = vpack.c.b16 %v1940, %v1930
    %v2221 = vpack.c.b16 %v1941, %v1931
    %v2222 = vpack.c.b16 %v1942, %v1932
    %v2223 = vpack.c.b16 %v1943, %v1933
    %v2224 = vpack.c.b16 %v1944, %v1934
    %v2225 = vpack.c.b16 %v1945, %v1935
    %v2226 = vpack.c.b16 %v1946, %v1936
    %v2227 = vpack.c.b16 %v1947, %v1937
    %v2228 = vpack.c.b16 %v1948, %v1938
    %v2229 = vpack.c.b16 %v1959, %v1949
    %v2230 = vpack.c.b16 %v1960, %v1950
    %v2231 = vpack.c.b16 %v1961, %v1951
    %v2232 = vpack.c.b16 %v1962, %v1952
    %v2233 = vpack.c.b16 %v1963, %v1953
    %v2234 = vpack.c.b16 %v1964, %v1954
    %v2235 = vpack.c.b16 %v1965, %v1955
    %v2236 = vpack.c.b16 %v1966, %v1956
    %v2237 = vpack.c.b16 %v1967, %v1957
    %v2238 = vpack.c.b16 %v1968, %v1958
    %v2239 = vpack.c.b16 %v1979, %v1969
    %v2240 = vpack.c.b16 %v1980, %v1970
    %v2241 = vpack.c.b16 %v1981, %v1971
    %v2242 = vpack.c.b16 %v1982, %v1972
    %v2243 = vpack.c.b16 %v1983, %v1973
    %v2244 = vpack.c.b16 %v1984, %v1974
    %v2245 = vpack.c.b16 %v1985, %v1975
    %v2246 = vpack.c.b16 %v1986, %v1976
    %v2247 = vpack.c.b16 %v1987, %v1977
    %v2248 = vpack.c.b16 %v1988, %v1978
    %v2249 = vpack.c.b16 %v1999, %v1989
    %v2250 = vpack.c.b16 %v2000, %v1990
    %v2251 = vpack.c.b16 %v2001, %v1991
    %v2252 = vpack.c.b16 %v2002, %v1992
    %v2253 = vpack.c.b16 %v2003, %v1993
    %v2254 = vpack.c.b16 %v2004, %v1994
    %v2255 = vpack.c.b16 %v2005, %v1995
    %v2256 = vpack.c.b16 %v2006, %v1996
    %v2257 = vpack.c.b16 %v2007, %v1997
    %v2258 = vpack.c.b16 %v2008, %v1998
    %v2259 = vpack.c.b16 %v2019, %v2009
    %v2260 = vpack.c.b16 %v2020, %v2010
    %v2261 = vpack.c.b16 %v2021, %v2011
    %v2262 = vpack.c.b16 %v2022, %v2012
    %v2263 = vpack.c.b16 %v2023, %v2013
    %v2264 = vpack.c.b16 %v2024, %v2014
    %v2265 = vpack.c.b16 %v2025, %v2015
    %v2266 = vpack.c.b16 %v2026, %v2016
    %v2267 = vpack.c.b16 %v2027, %v2017
    %v2268 = vpack.c.b16 %v2028, %v2018
    %v2269 = vpack.c.b16 %v2039, %v2029
    %v2270 = vpack.c.b16 %v2040, %v2030
    %v2271 = vpack.c.b16 %v2041, %v2031
    %v2272 = vpack.c.b16 %v2042, %v2032
    %v2273 = vpack.c.b16 %v2043, %v2033
    %v2274 = vpack.c.b16 %v2044, %v2034
    %v2275 = vpack.c.b16 %v2045, %v2035
    %v2276 = vpack.c.b16 %v2046, %v2036
    %v2277 = vpack.c.b16 %v2047, %v2037
    %v2278 = vpack.c.b16 %v2048, %v2038
    %v2279 = vpack.c.b16 %v2059, %v2049
    %v2280 = vpack.c.b16 %v2060, %v2050
    %v2281 = vpack.c.b16 %v2061, %v2051
    %v2282 = vpack.c.b16 %v2062, %v2052
    %v2283 = vpack.c.b16 %v2063, %v2053
    %v2284 = vpack.c.b16 %v2064, %v2054
    %v2285 = vpack.c.b16 %v2065, %v2055
    %v2286 = vpack.c.b16 %v2066, %v2056
    %v2287 = vpack.c.b16 %v2067, %v2057
    %v2288 = vpack.c.b16 %v2068, %v2058
    %v2289 = vpack.c.b16 %v2079, %v2069
    %v2290 = vpack.c.b16 %v2080, %v2070
    %v2291 = vpack.c.b16 %v2081, %v2071
    %v2292 = vpack.c.b16 %v2082, %v2072
    %v2293 = vpack.c.b16 %v2083, %v2073
    %v2294 = vpack.c.b16 %v2084, %v2074
    %v2295 = vpack.c.b16 %v2085, %v2075
    %v2296 = vpack.c.b16 %v2086, %v2076
    %v2297 = vpack.c.b16 %v2087, %v2077
    %v2298 = vpack.c.b16 %v2088, %v2078
    %v2299 = vpack.c.b16 %v2099, %v2089
    %v2300 = vpack.c.b16 %v2100, %v2090
    %v2301 = vpack.c.b16 %v2101, %v2091
    %v2302 = vpack.c.b16 %v2102, %v2092
    %v2303 = vpack.c.b16 %v2103, %v2093
    %v2304 = vpack.c.b16 %v2104, %v2094
    %v2305 = vpack.c.b16 %v2105, %v2095
    %v2306 = vpack.c.b16 %v2106, %v2096
    %v2307 = vpack.c.b16 %v2107, %v2097
    %v2308 = vpack.c.b16 %v2108, %v2098
    %v2309 = vpack.c.b16 %v2119, %v2109
    %v2310 = vpack.c.b16 %v2120, %v2110
    %v2311 = vpack.c.b16 %v2121, %v2111
    %v2312 = vpack.c.b16 %v2122, %v2112
    %v2313 = vpack.c.b16 %v2123, %v2113
    %v2314 = vpack.c.b16 %v2124, %v2114
    %v2315 = vpack.c.b16 %v2125, %v2115
    %v2316 = vpack.c.b16 %v2126, %v2116
    %v2317 = vpack.c.b16 %v2127, %v2117
    %v2318 = vpack.c.b16 %v2128, %v2118
    %v2500 = vsel %vm634, %v1368, 0
    %v2503 = vsel %vm638, %v2309, 0
    %v2506 = vsel %vm638, %v2310, 0
    %v2509 = vsel %vm638, %v2311, 0
    %v2512 = vsel %vm638, %v2312, 0
    %v2515 = vsel %vm638, %v2313, 0
    %v2518 = vsel %vm638, %v2314, 0
    %v2521 = vsel %vm638, %v2315, 0
    %v2524 = vsel %vm638, %v2316, 0
    %v2527 = vsel %vm638, %v2317, 0
    %v2530 = vsel %vm638, %v2318, 0
    %2532 = vmatprep.subr.bf16.mxu0 %v2130
    %2533 = vmatpush1.bf16.msra.mxu0 %v2129
    %2534 = vmatprep.subr.bf16.mxu0 %v2140
    %2535 = vmatpush1.bf16.msra.mxu0 %v2139
    %2536 = vmatprep.subr.bf16.mxu0 %v2150
    %2537 = vmatpush1.bf16.msra.mxu0 %v2149
    %2538 = vmatprep.subr.bf16.mxu0 %v2160
    %2539 = vmatpush1.bf16.msra.mxu0 %v2159
    %2540 = vmatprep.subr.bf16.mxu0 %v2170
    %2541 = vmatpush1.bf16.msra.mxu0 %v2169
    %2542 = vmatprep.subr.bf16.mxu0 %v2180
    %2543 = vmatpush1.bf16.msra.mxu0 %v2179
    %2544 = vmatprep.subr.bf16.mxu0 %v2190
    %2545 = vmatpush1.bf16.msra.mxu0 %v2189
    %2546 = vmatprep.subr.bf16.mxu0 %v2200
    %2547 = vmatpush1.bf16.msra.mxu0 %v2199
    %2548 = vmatprep.subr.bf16.mxu0 %v2210
    %2549 = vmatpush1.bf16.msra.mxu0 %v2209
    %2550 = vmatprep.subr.bf16.mxu0 %v2220
    %2551 = vmatpush1.bf16.msra.mxu0 %v2219
    %2552 = vmatprep.subr.bf16.mxu0 %v2230
    %2553 = vmatpush1.bf16.msra.mxu0 %v2229
    %2554 = vmatprep.subr.bf16.mxu0 %v2240
    %2555 = vmatpush1.bf16.msra.mxu0 %v2239
    %2556 = vmatprep.subr.bf16.mxu0 %v2250
    %2557 = vmatpush1.bf16.msra.mxu0 %v2249
    %2558 = vmatprep.subr.bf16.mxu0 %v2260
    %2559 = vmatpush1.bf16.msra.mxu0 %v2259
    %2560 = vmatprep.subr.bf16.mxu0 %v2270
    %2561 = vmatpush1.bf16.msra.mxu0 %v2269
    %2562 = vmatprep.subr.bf16.mxu0 %v2280
    %2563 = vmatpush1.bf16.msra.mxu0 %v2279
    %2564 = vmatprep.mubr.bf16.mxu0 %v1367
    %2565 = vmatmul.mubr.bf16.gmra.mrb[0].mxu0 %v1366
    %v2566 = vpop.f32.mrb[0].mxu0
    %v2567 = vadd.f32 0.0, %v2566
    %v2568 = vpop.f32.mrb[0].mxu0
    %v2569 = vadd.f32 0.0, %v2568
    %v2570 = vpop.f32.mrb[0].mxu0
    %v2571 = vadd.f32 0.0, %v2570
    %v2572 = vpop.f32.mrb[0].mxu0
    %v2573 = vadd.f32 0.0, %v2572
    %2574 = vdwg.mxu0
    %2575 = vmatprep.subr.bf16.mxu0 %v2290
    %2576 = vmatpush1.bf16.msra.mxu0 %v2289
    %2577 = vmatprep.subr.bf16.mxu0 %v2300
    %2578 = vmatpush1.bf16.msra.mxu0 %v2299
    %2579 = vmatprep.subr.bf16.mxu0 %v2506
    %2580 = vmatpush1.bf16.msra.mxu0 %v2503
    %2581 = vmatprep.subr.bf16.mxu0 0
    %2582 = vmatpush1.bf16.msra.mxu0 0
    %2583 = vmatprep.subr.bf16.mxu0 0
    %2584 = vmatpush1.bf16.msra.mxu0 0
    %2585 = vmatprep.subr.bf16.mxu0 0
    %2586 = vmatpush1.bf16.msra.mxu0 0
    %2587 = vmatprep.subr.bf16.mxu0 0
    %2588 = vmatpush1.bf16.msra.mxu0 0
    %2589 = vmatprep.subr.bf16.mxu0 0
    %2590 = vmatpush1.bf16.msra.mxu0 0
    %2591 = vmatprep.subr.bf16.mxu0 0
    %2592 = vmatpush1.bf16.msra.mxu0 0
    %2593 = vmatprep.subr.bf16.mxu0 0
    %2594 = vmatpush1.bf16.msra.mxu0 0
    %2595 = vmatprep.subr.bf16.mxu0 0
    %2596 = vmatpush1.bf16.msra.mxu0 0
    %2597 = vmatprep.subr.bf16.mxu0 0
    %2598 = vmatpush1.bf16.msra.mxu0 0
    %2599 = vmatprep.subr.bf16.mxu0 0
    %2600 = vmatpush1.bf16.msra.mxu0 0
    %2601 = vmatprep.subr.bf16.mxu0 0
    %2602 = vmatpush1.bf16.msra.mxu0 0
    %2603 = vmatprep.subr.bf16.mxu0 0
    %2604 = vmatpush1.bf16.msra.mxu0 0
    %2605 = vmatprep.subr.bf16.mxu0 0
    %2606 = vmatpush1.bf16.msra.mxu0 0
    %2607 = vmatprep.mubr.bf16.mxu0 0
    %2608 = vmatmul.mubr.bf16.gmra.mrb[0].mxu0 %v2500
    %v2609 = vpop.f32.mrb[0].mxu0
    %v2610 = vadd.f32 %v2567, %v2609
    %v2611 = vpop.f32.mrb[0].mxu0
    %v2612 = vadd.f32 %v2569, %v2611
    %v2613 = vpop.f32.mrb[0].mxu0
    %v2614 = vadd.f32 %v2571, %v2613
    %v2615 = vpop.f32.mrb[0].mxu0
    %v2616 = vadd.f32 %v2573, %v2615
    %2617 = vdwg.mxu0
    %2618 = vmatprep.subr.bf16.mxu0 %v2132
    %2619 = vmatpush1.bf16.msra.mxu0 %v2131
    %2620 = vmatprep.subr.bf16.mxu0 %v2142
    %2621 = vmatpush1.bf16.msra.mxu0 %v2141
    %2622 = vmatprep.subr.bf16.mxu0 %v2152
    %2623 = vmatpush1.bf16.msra.mxu0 %v2151
    %2624 = vmatprep.subr.bf16.mxu0 %v2162
    %2625 = vmatpush1.bf16.msra.mxu0 %v2161
    %2626 = vmatprep.subr.bf16.mxu0 %v2172
    %2627 = vmatpush1.bf16.msra.mxu0 %v2171
    %2628 = vmatprep.subr.bf16.mxu0 %v2182
    %2629 = vmatpush1.bf16.msra.mxu0 %v2181
    %2630 = vmatprep.subr.bf16.mxu0 %v2192
    %2631 = vmatpush1.bf16.msra.mxu0 %v2191
    %2632 = vmatprep.subr.bf16.mxu0 %v2202
    %2633 = vmatpush1.bf16.msra.mxu0 %v2201
    %2634 = vmatprep.subr.bf16.mxu0 %v2212
    %2635 = vmatpush1.bf16.msra.mxu0 %v2211
    %2636 = vmatprep.subr.bf16.mxu0 %v2222
    %2637 = vmatpush1.bf16.msra.mxu0 %v2221
    %2638 = vmatprep.subr.bf16.mxu0 %v2232
    %2639 = vmatpush1.bf16.msra.mxu0 %v2231
    %2640 = vmatprep.subr.bf16.mxu0 %v2242
    %2641 = vmatpush1.bf16.msra.mxu0 %v2241
    %2642 = vmatprep.subr.bf16.mxu0 %v2252
    %2643 = vmatpush1.bf16.msra.mxu0 %v2251
    %2644 = vmatprep.subr.bf16.mxu0 %v2262
    %2645 = vmatpush1.bf16.msra.mxu0 %v2261
    %2646 = vmatprep.subr.bf16.mxu0 %v2272
    %2647 = vmatpush1.bf16.msra.mxu0 %v2271
    %2648 = vmatprep.subr.bf16.mxu0 %v2282
    %2649 = vmatpush1.bf16.msra.mxu0 %v2281
    %2650 = vmatprep.mubr.bf16.mxu0 %v1367
    %2651 = vmatmul.mubr.bf16.gmra.mrb[0].mxu0 %v1366
    %v2652 = vpop.f32.mrb[0].mxu0
    %v2653 = vadd.f32 0.0, %v2652
    %v2654 = vpop.f32.mrb[0].mxu0
    %v2655 = vadd.f32 0.0, %v2654
    %v2656 = vpop.f32.mrb[0].mxu0
    %v2657 = vadd.f32 0.0, %v2656
    %v2658 = vpop.f32.mrb[0].mxu0
    %v2659 = vadd.f32 0.0, %v2658
    %2660 = vdwg.mxu0
    %2661 = vmatprep.subr.bf16.mxu0 %v2292
    %2662 = vmatpush1.bf16.msra.mxu0 %v2291
    %2663 = vmatprep.subr.bf16.mxu0 %v2302
    %2664 = vmatpush1.bf16.msra.mxu0 %v2301
    %2665 = vmatprep.subr.bf16.mxu0 %v2512
    %2666 = vmatpush1.bf16.msra.mxu0 %v2509
    %2667 = vmatprep.subr.bf16.mxu0 0
    %2668 = vmatpush1.bf16.msra.mxu0 0
    %2669 = vmatprep.subr.bf16.mxu0 0
    %2670 = vmatpush1.bf16.msra.mxu0 0
    %2671 = vmatprep.subr.bf16.mxu0 0
    %2672 = vmatpush1.bf16.msra.mxu0 0
    %2673 = vmatprep.subr.bf16.mxu0 0
    %2674 = vmatpush1.bf16.msra.mxu0 0
    %2675 = vmatprep.subr.bf16.mxu0 0
    %2676 = vmatpush1.bf16.msra.mxu0 0
    %2677 = vmatprep.subr.bf16.mxu0 0
    %2678 = vmatpush1.bf16.msra.mxu0 0
    %2679 = vmatprep.subr.bf16.mxu0 0
    %2680 = vmatpush1.bf16.msra.mxu0 0
    %2681 = vmatprep.subr.bf16.mxu0 0
    %2682 = vmatpush1.bf16.msra.mxu0 0
    %2683 = vmatprep.subr.bf16.mxu0 0
    %2684 = vmatpush1.bf16.msra.mxu0 0
    %2685 = vmatprep.subr.bf16.mxu0 0
    %2686 = vmatpush1.bf16.msra.mxu0 0
    %2687 = vmatprep.subr.bf16.mxu0 0
    %2688 = vmatpush1.bf16.msra.mxu0 0
    %2689 = vmatprep.subr.bf16.mxu0 0
    %2690 = vmatpush1.bf16.msra.mxu0 0
    %2691 = vmatprep.subr.bf16.mxu0 0
    %2692 = vmatpush1.bf16.msra.mxu0 0
    %2693 = vmatprep.mubr.bf16.mxu0 0
    %2694 = vmatmul.mubr.bf16.gmra.mrb[0].mxu0 %v2500
    %v2695 = vpop.f32.mrb[0].mxu0
    %v2696 = vadd.f32 %v2653, %v2695
    %v2697 = vpop.f32.mrb[0].mxu0
    %v2698 = vadd.f32 %v2655, %v2697
    %v2699 = vpop.f32.mrb[0].mxu0
    %v2700 = vadd.f32 %v2657, %v2699
    %v2701 = vpop.f32.mrb[0].mxu0
    %v2702 = vadd.f32 %v2659, %v2701
    %2703 = vdwg.mxu0
    %2704 = vmatprep.subr.bf16.mxu0 %v2134
    %2705 = vmatpush1.bf16.msra.mxu0 %v2133
    %2706 = vmatprep.subr.bf16.mxu0 %v2144
    %2707 = vmatpush1.bf16.msra.mxu0 %v2143
    %2708 = vmatprep.subr.bf16.mxu0 %v2154
    %2709 = vmatpush1.bf16.msra.mxu0 %v2153
    %2710 = vmatprep.subr.bf16.mxu0 %v2164
    %2711 = vmatpush1.bf16.msra.mxu0 %v2163
    %2712 = vmatprep.subr.bf16.mxu0 %v2174
    %2713 = vmatpush1.bf16.msra.mxu0 %v2173
    %2714 = vmatprep.subr.bf16.mxu0 %v2184
    %2715 = vmatpush1.bf16.msra.mxu0 %v2183
    %2716 = vmatprep.subr.bf16.mxu0 %v2194
    %2717 = vmatpush1.bf16.msra.mxu0 %v2193
    %2718 = vmatprep.subr.bf16.mxu0 %v2204
    %2719 = vmatpush1.bf16.msra.mxu0 %v2203
    %2720 = vmatprep.subr.bf16.mxu0 %v2214
    %2721 = vmatpush1.bf16.msra.mxu0 %v2213
    %2722 = vmatprep.subr.bf16.mxu0 %v2224
    %2723 = vmatpush1.bf16.msra.mxu0 %v2223
    %2724 = vmatprep.subr.bf16.mxu0 %v2234
    %2725 = vmatpush1.bf16.msra.mxu0 %v2233
    %2726 = vmatprep.subr.bf16.mxu0 %v2244
    %2727 = vmatpush1.bf16.msra.mxu0 %v2243
    %2728 = vmatprep.subr.bf16.mxu0 %v2254
    %2729 = vmatpush1.bf16.msra.mxu0 %v2253
    %2730 = vmatprep.subr.bf16.mxu0 %v2264
    %2731 = vmatpush1.bf16.msra.mxu0 %v2263
    %2732 = vmatprep.subr.bf16.mxu0 %v2274
    %2733 = vmatpush1.bf16.msra.mxu0 %v2273
    %2734 = vmatprep.subr.bf16.mxu0 %v2284
    %2735 = vmatpush1.bf16.msra.mxu0 %v2283
    %2736 = vmatprep.mubr.bf16.mxu0 %v1367
    %2737 = vmatmul.mubr.bf16.gmra.mrb[0].mxu0 %v1366
    %v2738 = vpop.f32.mrb[0].mxu0
    %v2739 = vadd.f32 0.0, %v2738
    %v2740 = vpop.f32.mrb[0].mxu0
    %v2741 = vadd.f32 0.0, %v2740
    %v2742 = vpop.f32.mrb[0].mxu0
    %v2743 = vadd.f32 0.0, %v2742
    %v2744 = vpop.f32.mrb[0].mxu0
    %v2745 = vadd.f32 0.0, %v2744
    %2746 = vdwg.mxu0
    %2747 = vmatprep.subr.bf16.mxu0 %v2294
    %2748 = vmatpush1.bf16.msra.mxu0 %v2293
    %2749 = vmatprep.subr.bf16.mxu0 %v2304
    %2750 = vmatpush1.bf16.msra.mxu0 %v2303
    %2751 = vmatprep.subr.bf16.mxu0 %v2518
    %2752 = vmatpush1.bf16.msra.mxu0 %v2515
    %2753 = vmatprep.subr.bf16.mxu0 0
    %2754 = vmatpush1.bf16.msra.mxu0 0
    %2755 = vmatprep.subr.bf16.mxu0 0
    %2756 = vmatpush1.bf16.msra.mxu0 0
    %2757 = vmatprep.subr.bf16.mxu0 0
    %2758 = vmatpush1.bf16.msra.mxu0 0
    %2759 = vmatprep.subr.bf16.mxu0 0
    %2760 = vmatpush1.bf16.msra.mxu0 0
    %2761 = vmatprep.subr.bf16.mxu0 0
    %2762 = vmatpush1.bf16.msra.mxu0 0
    %2763 = vmatprep.subr.bf16.mxu0 0
    %2764 = vmatpush1.bf16.msra.mxu0 0
    %2765 = vmatprep.subr.bf16.mxu0 0
    %2766 = vmatpush1.bf16.msra.mxu0 0
    %2767 = vmatprep.subr.bf16.mxu0 0
    %2768 = vmatpush1.bf16.msra.mxu0 0
    %2769 = vmatprep.subr.bf16.mxu0 0
    %2770 = vmatpush1.bf16.msra.mxu0 0
    %2771 = vmatprep.subr.bf16.mxu0 0
    %2772 = vmatpush1.bf16.msra.mxu0 0
    %2773 = vmatprep.subr.bf16.mxu0 0
    %2774 = vmatpush1.bf16.msra.mxu0 0
    %2775 = vmatprep.subr.bf16.mxu0 0
    %2776 = vmatpush1.bf16.msra.mxu0 0
    %2777 = vmatprep.subr.bf16.mxu0 0
    %2778 = vmatpush1.bf16.msra.mxu0 0
    %2779 = vmatprep.mubr.bf16.mxu0 0
    %2780 = vmatmul.mubr.bf16.gmra.mrb[0].mxu0 %v2500
    %v2781 = vpop.f32.mrb[0].mxu0
    %v2782 = vadd.f32 %v2739, %v2781
    %v2783 = vpop.f32.mrb[0].mxu0
    %v2784 = vadd.f32 %v2741, %v2783
    %v2785 = vpop.f32.mrb[0].mxu0
    %v2786 = vadd.f32 %v2743, %v2785
    %v2787 = vpop.f32.mrb[0].mxu0
    %v2788 = vadd.f32 %v2745, %v2787
    %2789 = vdwg.mxu0
    %2790 = vmatprep.subr.bf16.mxu0 %v2136
    %2791 = vmatpush1.bf16.msra.mxu0 %v2135
    %2792 = vmatprep.subr.bf16.mxu0 %v2146
    %2793 = vmatpush1.bf16.msra.mxu0 %v2145
    %2794 = vmatprep.subr.bf16.mxu0 %v2156
    %2795 = vmatpush1.bf16.msra.mxu0 %v2155
    %2796 = vmatprep.subr.bf16.mxu0 %v2166
    %2797 = vmatpush1.bf16.msra.mxu0 %v2165
    %2798 = vmatprep.subr.bf16.mxu0 %v2176
    %2799 = vmatpush1.bf16.msra.mxu0 %v2175
    %2800 = vmatprep.subr.bf16.mxu0 %v2186
    %2801 = vmatpush1.bf16.msra.mxu0 %v2185
    %2802 = vmatprep.subr.bf16.mxu0 %v2196
    %2803 = vmatpush1.bf16.msra.mxu0 %v2195
    %2804 = vmatprep.subr.bf16.mxu0 %v2206
    %2805 = vmatpush1.bf16.msra.mxu0 %v2205
    %2806 = vmatprep.subr.bf16.mxu0 %v2216
    %2807 = vmatpush1.bf16.msra.mxu0 %v2215
    %2808 = vmatprep.subr.bf16.mxu0 %v2226
    %2809 = vmatpush1.bf16.msra.mxu0 %v2225
    %2810 = vmatprep.subr.bf16.mxu0 %v2236
    %2811 = vmatpush1.bf16.msra.mxu0 %v2235
    %2812 = vmatprep.subr.bf16.mxu0 %v2246
    %2813 = vmatpush1.bf16.msra.mxu0 %v2245
    %2814 = vmatprep.subr.bf16.mxu0 %v2256
    %2815 = vmatpush1.bf16.msra.mxu0 %v2255
    %2816 = vmatprep.subr.bf16.mxu0 %v2266
    %2817 = vmatpush1.bf16.msra.mxu0 %v2265
    %2818 = vmatprep.subr.bf16.mxu0 %v2276
    %2819 = vmatpush1.bf16.msra.mxu0 %v2275
    %2820 = vmatprep.subr.bf16.mxu0 %v2286
    %2821 = vmatpush1.bf16.msra.mxu0 %v2285
    %2822 = vmatprep.mubr.bf16.mxu0 %v1367
    %2823 = vmatmul.mubr.bf16.gmra.mrb[0].mxu0 %v1366
    %v2824 = vpop.f32.mrb[0].mxu0
    %v2825 = vadd.f32 0.0, %v2824
    %v2826 = vpop.f32.mrb[0].mxu0
    %v2827 = vadd.f32 0.0, %v2826
    %v2828 = vpop.f32.mrb[0].mxu0
    %v2829 = vadd.f32 0.0, %v2828
    %v2830 = vpop.f32.mrb[0].mxu0
    %v2831 = vadd.f32 0.0, %v2830
    %2832 = vdwg.mxu0
    %2833 = vmatprep.subr.bf16.mxu0 %v2296
    %2834 = vmatpush1.bf16.msra.mxu0 %v2295
    %2835 = vmatprep.subr.bf16.mxu0 %v2306
    %2836 = vmatpush1.bf16.msra.mxu0 %v2305
    %2837 = vmatprep.subr.bf16.mxu0 %v2524
    %2838 = vmatpush1.bf16.msra.mxu0 %v2521
    %2839 = vmatprep.subr.bf16.mxu0 0
    %2840 = vmatpush1.bf16.msra.mxu0 0
    %2841 = vmatprep.subr.bf16.mxu0 0
    %2842 = vmatpush1.bf16.msra.mxu0 0
    %2843 = vmatprep.subr.bf16.mxu0 0
    %2844 = vmatpush1.bf16.msra.mxu0 0
    %2845 = vmatprep.subr.bf16.mxu0 0
    %2846 = vmatpush1.bf16.msra.mxu0 0
    %2847 = vmatprep.subr.bf16.mxu0 0
    %2848 = vmatpush1.bf16.msra.mxu0 0
    %2849 = vmatprep.subr.bf16.mxu0 0
    %2850 = vmatpush1.bf16.msra.mxu0 0
    %2851 = vmatprep.subr.bf16.mxu0 0
    %2852 = vmatpush1.bf16.msra.mxu0 0
    %2853 = vmatprep.subr.bf16.mxu0 0
    %2854 = vmatpush1.bf16.msra.mxu0 0
    %2855 = vmatprep.subr.bf16.mxu0 0
    %2856 = vmatpush1.bf16.msra.mxu0 0
    %2857 = vmatprep.subr.bf16.mxu0 0
    %2858 = vmatpush1.bf16.msra.mxu0 0
    %2859 = vmatprep.subr.bf16.mxu0 0
    %2860 = vmatpush1.bf16.msra.mxu0 0
    %2861 = vmatprep.subr.bf16.mxu0 0
    %2862 = vmatpush1.bf16.msra.mxu0 0
    %2863 = vmatprep.subr.bf16.mxu0 0
    %2864 = vmatpush1.bf16.msra.mxu0 0
    %2865 = vmatprep.mubr.bf16.mxu0 0
    %2866 = vmatmul.mubr.bf16.gmra.mrb[0].mxu0 %v2500
    %v2867 = vpop.f32.mrb[0].mxu0
    %v2868 = vadd.f32 %v2825, %v2867
    %v2869 = vpop.f32.mrb[0].mxu0
    %v2870 = vadd.f32 %v2827, %v2869
    %v2871 = vpop.f32.mrb[0].mxu0
    %v2872 = vadd.f32 %v2829, %v2871
    %v2873 = vpop.f32.mrb[0].mxu0
    %v2874 = vadd.f32 %v2831, %v2873
    %2875 = vdwg.mxu0
    %2876 = vmatprep.subr.bf16.mxu0 %v2138
    %2877 = vmatpush1.bf16.msra.mxu0 %v2137
    %2878 = vmatprep.subr.bf16.mxu0 %v2148
    %2879 = vmatpush1.bf16.msra.mxu0 %v2147
    %2880 = vmatprep.subr.bf16.mxu0 %v2158
    %2881 = vmatpush1.bf16.msra.mxu0 %v2157
    %2882 = vmatprep.subr.bf16.mxu0 %v2168
    %2883 = vmatpush1.bf16.msra.mxu0 %v2167
    %2884 = vmatprep.subr.bf16.mxu0 %v2178
    %2885 = vmatpush1.bf16.msra.mxu0 %v2177
    %2886 = vmatprep.subr.bf16.mxu0 %v2188
    %2887 = vmatpush1.bf16.msra.mxu0 %v2187
    %2888 = vmatprep.subr.bf16.mxu0 %v2198
    %2889 = vmatpush1.bf16.msra.mxu0 %v2197
    %2890 = vmatprep.subr.bf16.mxu0 %v2208
    %2891 = vmatpush1.bf16.msra.mxu0 %v2207
    %2892 = vmatprep.subr.bf16.mxu0 %v2218
    %2893 = vmatpush1.bf16.msra.mxu0 %v2217
    %2894 = vmatprep.subr.bf16.mxu0 %v2228
    %2895 = vmatpush1.bf16.msra.mxu0 %v2227
    %2896 = vmatprep.subr.bf16.mxu0 %v2238
    %2897 = vmatpush1.bf16.msra.mxu0 %v2237
    %2898 = vmatprep.subr.bf16.mxu0 %v2248
    %2899 = vmatpush1.bf16.msra.mxu0 %v2247
    %2900 = vmatprep.subr.bf16.mxu0 %v2258
    %2901 = vmatpush1.bf16.msra.mxu0 %v2257
    %2902 = vmatprep.subr.bf16.mxu0 %v2268
    %2903 = vmatpush1.bf16.msra.mxu0 %v2267
    %2904 = vmatprep.subr.bf16.mxu0 %v2278
    %2905 = vmatpush1.bf16.msra.mxu0 %v2277
    %2906 = vmatprep.subr.bf16.mxu0 %v2288
    %2907 = vmatpush1.bf16.msra.mxu0 %v2287
    %2908 = vmatprep.mubr.bf16.mxu0 %v1367
    %2909 = vmatmul.mubr.bf16.gmra.mrb[0].mxu0 %v1366
    %v2910 = vpop.f32.mrb[0].mxu0
    %v2911 = vadd.f32 0.0, %v2910
    %v2912 = vpop.f32.mrb[0].mxu0
    %v2913 = vadd.f32 0.0, %v2912
    %v2914 = vpop.f32.mrb[0].mxu0
    %v2915 = vadd.f32 0.0, %v2914
    %v2916 = vpop.f32.mrb[0].mxu0
    %v2917 = vadd.f32 0.0, %v2916
    %2918 = vdwg.mxu0
    %2919 = vmatprep.subr.bf16.mxu0 %v2298
    %2920 = vmatpush1.bf16.msra.mxu0 %v2297
    %2921 = vmatprep.subr.bf16.mxu0 %v2308
    %2922 = vmatpush1.bf16.msra.mxu0 %v2307
    %2923 = vmatprep.subr.bf16.mxu0 %v2530
    %2924 = vmatpush1.bf16.msra.mxu0 %v2527
    %2925 = vmatprep.subr.bf16.mxu0 0
    %2926 = vmatpush1.bf16.msra.mxu0 0
    %2927 = vmatprep.subr.bf16.mxu0 0
    %2928 = vmatpush1.bf16.msra.mxu0 0
    %2929 = vmatprep.subr.bf16.mxu0 0
    %2930 = vmatpush1.bf16.msra.mxu0 0
    %2931 = vmatprep.subr.bf16.mxu0 0
    %2932 = vmatpush1.bf16.msra.mxu0 0
    %2933 = vmatprep.subr.bf16.mxu0 0
    %2934 = vmatpush1.bf16.msra.mxu0 0
    %2935 = vmatprep.subr.bf16.mxu0 0
    %2936 = vmatpush1.bf16.msra.mxu0 0
    %2937 = vmatprep.subr.bf16.mxu0 0
    %2938 = vmatpush1.bf16.msra.mxu0 0
    %2939 = vmatprep.subr.bf16.mxu0 0
    %2940 = vmatpush1.bf16.msra.mxu0 0
    %2941 = vmatprep.subr.bf16.mxu0 0
    %2942 = vmatpush1.bf16.msra.mxu0 0
    %2943 = vmatprep.subr.bf16.mxu0 0
    %2944 = vmatpush1.bf16.msra.mxu0 0
    %2945 = vmatprep.subr.bf16.mxu0 0
    %2946 = vmatpush1.bf16.msra.mxu0 0
    %2947 = vmatprep.subr.bf16.mxu0 0
    %2948 = vmatpush1.bf16.msra.mxu0 0
    %2949 = vmatprep.subr.bf16.mxu0 0
    %2950 = vmatpush1.bf16.msra.mxu0 0
    %2951 = vmatprep.mubr.bf16.mxu0 0
    %2952 = vmatmul.mubr.bf16.gmra.mrb[0].mxu0 %v2500
    %v2953 = vpop.f32.mrb[0].mxu0
    %v2954 = vadd.f32 %v2911, %v2953
    %v2955 = vpop.f32.mrb[0].mxu0
    %v2956 = vadd.f32 %v2913, %v2955
    %v2957 = vpop.f32.mrb[0].mxu0
    %v2958 = vadd.f32 %v2915, %v2957
    %v2959 = vpop.f32.mrb[0].mxu0
    %v2960 = vadd.f32 %v2917, %v2959
    %2961 = vdwg.mxu0
    %v3152 = vunpack.c.l.b16 %v1176
    %v3153 = vunpack.c.h.b16 %v1176
    %v3154 = vunpack.c.l.b16 %v1177
    %v3155 = vunpack.c.h.b16 %v1177
    %v3156 = vunpack.c.l.b16 %v1178
    %v3157 = vunpack.c.h.b16 %v1178
    %v3158 = vunpack.c.l.b16 %v1179
    %v3159 = vunpack.c.h.b16 %v1179
    %v3160 = vunpack.c.l.b16 %v1180
    %v3161 = vunpack.c.h.b16 %v1180
    %v3162 = vunpack.c.l.b16 %v1181
    %v3163 = vunpack.c.h.b16 %v1181
    %v3164 = vunpack.c.l.b16 %v1182
    %v3165 = vunpack.c.h.b16 %v1182
    %v3166 = vunpack.c.l.b16 %v1183
    %v3167 = vunpack.c.h.b16 %v1183
    %v3168 = vunpack.c.l.b16 %v1184
    %v3169 = vunpack.c.h.b16 %v1184
    %v3170 = vunpack.c.l.b16 %v1185
    %v3171 = vunpack.c.h.b16 %v1185
    %v3172 = vunpack.c.l.b16 %v1186
    %v3173 = vunpack.c.h.b16 %v1186
    %v3174 = vunpack.c.l.b16 %v1187
    %v3175 = vunpack.c.h.b16 %v1187
    %v3176 = vunpack.c.l.b16 %v1188
    %v3177 = vunpack.c.h.b16 %v1188
    %v3178 = vunpack.c.l.b16 %v1189
    %v3179 = vunpack.c.h.b16 %v1189
    %v3180 = vunpack.c.l.b16 %v1190
    %v3181 = vunpack.c.h.b16 %v1190
    %v3182 = vunpack.c.l.b16 %v1191
    %v3183 = vunpack.c.h.b16 %v1191
    %v3184 = vunpack.c.l.b16 %v1192
    %v3185 = vunpack.c.h.b16 %v1192
    %v3186 = vunpack.c.l.b16 %v1193
    %v3187 = vunpack.c.h.b16 %v1193
    %v3188 = vunpack.c.l.b16 %v1194
    %v3189 = vunpack.c.h.b16 %v1194
    %v3190 = vunpack.c.l.b16 %v1195
    %v3191 = vunpack.c.h.b16 %v1195
    %v3192 = vunpack.c.l.b16 %v1196
    %v3193 = vunpack.c.h.b16 %v1196
    %v3194 = vunpack.c.l.b16 %v1197
    %v3195 = vunpack.c.h.b16 %v1197
    %v3196 = vunpack.c.l.b16 %v1198
    %v3197 = vunpack.c.h.b16 %v1198
    %v3198 = vunpack.c.l.b16 %v1199
    %v3199 = vunpack.c.h.b16 %v1199
    %v3200 = vunpack.c.l.b16 %v1200
    %v3201 = vunpack.c.h.b16 %v1200
    %v3202 = vunpack.c.l.b16 %v1201
    %v3203 = vunpack.c.h.b16 %v1201
    %v3204 = vunpack.c.l.b16 %v1202
    %v3205 = vunpack.c.h.b16 %v1202
    %v3206 = vunpack.c.l.b16 %v1203
    %v3207 = vunpack.c.h.b16 %v1203
    %v3208 = vunpack.c.l.b16 %v1204
    %v3209 = vunpack.c.h.b16 %v1204
    %v3210 = vunpack.c.l.b16 %v1205
    %v3211 = vunpack.c.h.b16 %v1205
    %v3212 = vunpack.c.l.b16 %v1206
    %v3213 = vunpack.c.h.b16 %v1206
    %v3214 = vunpack.c.l.b16 %v1207
    %v3215 = vunpack.c.h.b16 %v1207
    %v3216 = vunpack.c.l.b16 %v1208
    %v3217 = vunpack.c.h.b16 %v1208
    %v3218 = vunpack.c.l.b16 %v1209
    %v3219 = vunpack.c.h.b16 %v1209
    %v3220 = vunpack.c.l.b16 %v1210
    %v3221 = vunpack.c.h.b16 %v1210
    %v3222 = vunpack.c.l.b16 %v1211
    %v3223 = vunpack.c.h.b16 %v1211
    %v3224 = vunpack.c.l.b16 %v1212
    %v3225 = vunpack.c.h.b16 %v1212
    %v3226 = vunpack.c.l.b16 %v1213
    %v3227 = vunpack.c.h.b16 %v1213
    %v3228 = vunpack.c.l.b16 %v1214
    %v3229 = vunpack.c.h.b16 %v1214
    %v3230 = vunpack.c.l.b16 %v1215
    %v3231 = vunpack.c.h.b16 %v1215
    %v3232 = vunpack.c.l.b16 %v1216
    %v3233 = vunpack.c.h.b16 %v1216
    %v3234 = vunpack.c.l.b16 %v1217
    %v3235 = vunpack.c.h.b16 %v1217
    %v3236 = vunpack.c.l.b16 %v1218
    %v3237 = vunpack.c.h.b16 %v1218
    %v3238 = vunpack.c.l.b16 %v1219
    %v3239 = vunpack.c.h.b16 %v1219
    %v3240 = vunpack.c.l.b16 %v1220
    %v3241 = vunpack.c.h.b16 %v1220
    %v3242 = vunpack.c.l.b16 %v1221
    %v3243 = vunpack.c.h.b16 %v1221
    %v3244 = vunpack.c.l.b16 %v1222
    %v3245 = vunpack.c.h.b16 %v1222
    %v3246 = vunpack.c.l.b16 %v1223
    %v3247 = vunpack.c.h.b16 %v1223
    %v3248 = vunpack.c.l.b16 %v1224
    %v3249 = vunpack.c.h.b16 %v1224
    %v3250 = vunpack.c.l.b16 %v1225
    %v3251 = vunpack.c.h.b16 %v1225
    %v3252 = vunpack.c.l.b16 %v1226
    %v3253 = vunpack.c.h.b16 %v1226
    %v3254 = vunpack.c.l.b16 %v1227
    %v3255 = vunpack.c.h.b16 %v1227
    %v3256 = vunpack.c.l.b16 %v1228
    %v3257 = vunpack.c.h.b16 %v1228
    %v3258 = vunpack.c.l.b16 %v1229
    %v3259 = vunpack.c.h.b16 %v1229
    %v3260 = vunpack.c.l.b16 %v1230
    %v3261 = vunpack.c.h.b16 %v1230
    %v3262 = vunpack.c.l.b16 %v1231
    %v3263 = vunpack.c.h.b16 %v1231
    %v3264 = vunpack.c.l.b16 %v1232
    %v3265 = vunpack.c.h.b16 %v1232
    %v3266 = vunpack.c.l.b16 %v1233
    %v3267 = vunpack.c.h.b16 %v1233
    %v3268 = vunpack.c.l.b16 %v1234
    %v3269 = vunpack.c.h.b16 %v1234
    %v3270 = vunpack.c.l.b16 %v1235
    %v3271 = vunpack.c.h.b16 %v1235
    %v3272 = vunpack.c.l.b16 %v1236
    %v3273 = vunpack.c.h.b16 %v1236
    %v3274 = vunpack.c.l.b16 %v1237
    %v3275 = vunpack.c.h.b16 %v1237
    %v3276 = vunpack.c.l.b16 %v1238
    %v3277 = vunpack.c.h.b16 %v1238
    %v3278 = vunpack.c.l.b16 %v1239
    %v3279 = vunpack.c.h.b16 %v1239
    %v3280 = vunpack.c.l.b16 %v1240
    %v3281 = vunpack.c.h.b16 %v1240
    %v3282 = vunpack.c.l.b16 %v1241
    %v3283 = vunpack.c.h.b16 %v1241
    %v3284 = vunpack.c.l.b16 %v1242
    %v3285 = vunpack.c.h.b16 %v1242
    %v3286 = vunpack.c.l.b16 %v1243
    %v3287 = vunpack.c.h.b16 %v1243
    %v3288 = vunpack.c.l.b16 %v1244
    %v3289 = vunpack.c.h.b16 %v1244
    %v3290 = vunpack.c.l.b16 %v1245
    %v3291 = vunpack.c.h.b16 %v1245
    %v3292 = vunpack.c.l.b16 %v1246
    %v3293 = vunpack.c.h.b16 %v1246
    %v3294 = vunpack.c.l.b16 %v1247
    %v3295 = vunpack.c.h.b16 %v1247
    %v3296 = vunpack.c.l.b16 %v1248
    %v3297 = vunpack.c.h.b16 %v1248
    %v3298 = vunpack.c.l.b16 %v1249
    %v3299 = vunpack.c.h.b16 %v1249
    %v3300 = vunpack.c.l.b16 %v1250
    %v3301 = vunpack.c.h.b16 %v1250
    %v3302 = vunpack.c.l.b16 %v1251
    %v3303 = vunpack.c.h.b16 %v1251
    %v3304 = vunpack.c.l.b16 %v1252
    %v3305 = vunpack.c.h.b16 %v1252
    %v3306 = vunpack.c.l.b16 %v1253
    %v3307 = vunpack.c.h.b16 %v1253
    %v3308 = vunpack.c.l.b16 %v1254
    %v3309 = vunpack.c.h.b16 %v1254
    %v3310 = vunpack.c.l.b16 %v1255
    %v3311 = vunpack.c.h.b16 %v1255
    %v3312 = vunpack.c.l.b16 %v1256
    %v3313 = vunpack.c.h.b16 %v1256
    %v3314 = vunpack.c.l.b16 %v1257
    %v3315 = vunpack.c.h.b16 %v1257
    %v3316 = vunpack.c.l.b16 %v1258
    %v3317 = vunpack.c.h.b16 %v1258
    %v3318 = vunpack.c.l.b16 %v1259
    %v3319 = vunpack.c.h.b16 %v1259
    %v3320 = vunpack.c.l.b16 %v1260
    %v3321 = vunpack.c.h.b16 %v1260
    %v3322 = vunpack.c.l.b16 %v1261
    %v3323 = vunpack.c.h.b16 %v1261
    %v3324 = vunpack.c.l.b16 %v1262
    %v3325 = vunpack.c.h.b16 %v1262
    %v3326 = vunpack.c.l.b16 %v1263
    %v3327 = vunpack.c.h.b16 %v1263
    %v3328 = vunpack.c.l.b16 %v1264
    %v3329 = vunpack.c.h.b16 %v1264
    %v3330 = vunpack.c.l.b16 %v1265
    %v3331 = vunpack.c.h.b16 %v1265
    %v3332 = vunpack.c.l.b16 %v1266
    %v3333 = vunpack.c.h.b16 %v1266
    %v3334 = vunpack.c.l.b16 %v1267
    %v3335 = vunpack.c.h.b16 %v1267
    %v3336 = vunpack.c.l.b16 %v1268
    %v3337 = vunpack.c.h.b16 %v1268
    %v3338 = vunpack.c.l.b16 %v1269
    %v3339 = vunpack.c.h.b16 %v1269
    %v3340 = vunpack.c.l.b16 %v1270
    %v3341 = vunpack.c.h.b16 %v1270
    %v3342 = vunpack.c.l.b16 %v1271
    %v3343 = vunpack.c.h.b16 %v1271
    %v3344 = vunpack.c.l.b16 %v1272
    %v3345 = vunpack.c.h.b16 %v1272
    %v3346 = vunpack.c.l.b16 %v1273
    %v3347 = vunpack.c.h.b16 %v1273
    %v3348 = vunpack.c.l.b16 %v1274
    %v3349 = vunpack.c.h.b16 %v1274
    %v3350 = vunpack.c.l.b16 %v1275
    %v3351 = vunpack.c.h.b16 %v1275
    %v3352 = vunpack.c.l.b16 %v1276
    %v3353 = vunpack.c.h.b16 %v1276
    %v3354 = vunpack.c.l.b16 %v1277
    %v3355 = vunpack.c.h.b16 %v1277
    %v3356 = vunpack.c.l.b16 %v1278
    %v3357 = vunpack.c.h.b16 %v1278
    %v3358 = vunpack.c.l.b16 %v1279
    %v3359 = vunpack.c.h.b16 %v1279
    %v3360 = vunpack.c.l.b16 %v1280
    %v3361 = vunpack.c.h.b16 %v1280
    %v3362 = vunpack.c.l.b16 %v1281
    %v3363 = vunpack.c.h.b16 %v1281
    %v3364 = vunpack.c.l.b16 %v1282
    %v3365 = vunpack.c.h.b16 %v1282
    %v3366 = vunpack.c.l.b16 %v1283
    %v3367 = vunpack.c.h.b16 %v1283
    %v3368 = vunpack.c.l.b16 %v1284
    %v3369 = vunpack.c.h.b16 %v1284
    %v3370 = vunpack.c.l.b16 %v1285
    %v3371 = vunpack.c.h.b16 %v1285
    %v3372 = vunpack.c.l.b16 %v1286
    %v3373 = vunpack.c.h.b16 %v1286
    %v3374 = vunpack.c.l.b16 %v1287
    %v3375 = vunpack.c.h.b16 %v1287
    %v3376 = vunpack.c.l.b16 %v1288
    %v3377 = vunpack.c.h.b16 %v1288
    %v3378 = vunpack.c.l.b16 %v1289
    %v3379 = vunpack.c.h.b16 %v1289
    %v3380 = vunpack.c.l.b16 %v1290
    %v3381 = vunpack.c.h.b16 %v1290
    %v3382 = vunpack.c.l.b16 %v1291
    %v3383 = vunpack.c.h.b16 %v1291
    %v3384 = vunpack.c.l.b16 %v1292
    %v3385 = vunpack.c.h.b16 %v1292
    %v3386 = vunpack.c.l.b16 %v1293
    %v3387 = vunpack.c.h.b16 %v1293
    %v3388 = vunpack.c.l.b16 %v1294
    %v3389 = vunpack.c.h.b16 %v1294
    %v3390 = vunpack.c.l.b16 %v1295
    %v3391 = vunpack.c.h.b16 %v1295
    %v3392 = vunpack.c.l.b16 %v1296
    %v3393 = vunpack.c.h.b16 %v1296
    %v3394 = vunpack.c.l.b16 %v1297
    %v3395 = vunpack.c.h.b16 %v1297
    %v3396 = vunpack.c.l.b16 %v1298
    %v3397 = vunpack.c.h.b16 %v1298
    %v3398 = vunpack.c.l.b16 %v1299
    %v3399 = vunpack.c.h.b16 %v1299
    %v3400 = vunpack.c.l.b16 %v1300
    %v3401 = vunpack.c.h.b16 %v1300
    %v3402 = vunpack.c.l.b16 %v1301
    %v3403 = vunpack.c.h.b16 %v1301
    %v3404 = vunpack.c.l.b16 %v1302
    %v3405 = vunpack.c.h.b16 %v1302
    %v3406 = vunpack.c.l.b16 %v1303
    %v3407 = vunpack.c.h.b16 %v1303
    %v3408 = vunpack.c.l.b16 %v1304
    %v3409 = vunpack.c.h.b16 %v1304
    %v3410 = vunpack.c.l.b16 %v1305
    %v3411 = vunpack.c.h.b16 %v1305
    %v3412 = vunpack.c.l.b16 %v1306
    %v3413 = vunpack.c.h.b16 %v1306
    %v3414 = vunpack.c.l.b16 %v1307
    %v3415 = vunpack.c.h.b16 %v1307
    %v3416 = vunpack.c.l.b16 %v1308
    %v3417 = vunpack.c.h.b16 %v1308
    %v3418 = vunpack.c.l.b16 %v1309
    %v3419 = vunpack.c.h.b16 %v1309
    %v3420 = vunpack.c.l.b16 %v1310
    %v3421 = vunpack.c.h.b16 %v1310
    %v3422 = vunpack.c.l.b16 %v1311
    %v3423 = vunpack.c.h.b16 %v1311
    %v3424 = vunpack.c.l.b16 %v1312
    %v3425 = vunpack.c.h.b16 %v1312
    %v3426 = vunpack.c.l.b16 %v1313
    %v3427 = vunpack.c.h.b16 %v1313
    %v3428 = vunpack.c.l.b16 %v1314
    %v3429 = vunpack.c.h.b16 %v1314
    %v3430 = vunpack.c.l.b16 %v1315
    %v3431 = vunpack.c.h.b16 %v1315
    %v3432 = vunpack.c.l.b16 %v1316
    %v3433 = vunpack.c.h.b16 %v1316
    %v3434 = vunpack.c.l.b16 %v1317
    %v3435 = vunpack.c.h.b16 %v1317
    %v3436 = vunpack.c.l.b16 %v1318
    %v3437 = vunpack.c.h.b16 %v1318
    %v3438 = vunpack.c.l.b16 %v1319
    %v3439 = vunpack.c.h.b16 %v1319
    %v3440 = vunpack.c.l.b16 %v1320
    %v3441 = vunpack.c.h.b16 %v1320
    %v3442 = vunpack.c.l.b16 %v1321
    %v3443 = vunpack.c.h.b16 %v1321
    %v3444 = vunpack.c.l.b16 %v1322
    %v3445 = vunpack.c.h.b16 %v1322
    %v3446 = vunpack.c.l.b16 %v1323
    %v3447 = vunpack.c.h.b16 %v1323
    %v3448 = vunpack.c.l.b16 %v1324
    %v3449 = vunpack.c.h.b16 %v1324
    %v3450 = vunpack.c.l.b16 %v1325
    %v3451 = vunpack.c.h.b16 %v1325
    %v3452 = vunpack.c.l.b16 %v1326
    %v3453 = vunpack.c.h.b16 %v1326
    %v3454 = vunpack.c.l.b16 %v1327
    %v3455 = vunpack.c.h.b16 %v1327
    %v3456 = vunpack.c.l.b16 %v1328
    %v3457 = vunpack.c.h.b16 %v1328
    %v3458 = vunpack.c.l.b16 %v1329
    %v3459 = vunpack.c.h.b16 %v1329
    %v3460 = vunpack.c.l.b16 %v1330
    %v3461 = vunpack.c.h.b16 %v1330
    %v3462 = vunpack.c.l.b16 %v1331
    %v3463 = vunpack.c.h.b16 %v1331
    %v3464 = vunpack.c.l.b16 %v1332
    %v3465 = vunpack.c.h.b16 %v1332
    %v3466 = vunpack.c.l.b16 %v1333
    %v3467 = vunpack.c.h.b16 %v1333
    %v3468 = vunpack.c.l.b16 %v1334
    %v3469 = vunpack.c.h.b16 %v1334
    %v3470 = vunpack.c.l.b16 %v1335
    %v3471 = vunpack.c.h.b16 %v1335
    %v3472 = vunpack.c.l.b16 %v1336
    %v3473 = vunpack.c.h.b16 %v1336
    %v3474 = vunpack.c.l.b16 %v1337
    %v3475 = vunpack.c.h.b16 %v1337
    %v3476 = vunpack.c.l.b16 %v1338
    %v3477 = vunpack.c.h.b16 %v1338
    %v3478 = vunpack.c.l.b16 %v1339
    %v3479 = vunpack.c.h.b16 %v1339
    %v3480 = vunpack.c.l.b16 %v1340
    %v3481 = vunpack.c.h.b16 %v1340
    %v3482 = vunpack.c.l.b16 %v1341
    %v3483 = vunpack.c.h.b16 %v1341
    %v3484 = vunpack.c.l.b16 %v1342
    %v3485 = vunpack.c.h.b16 %v1342
    %v3486 = vunpack.c.l.b16 %v1343
    %v3487 = vunpack.c.h.b16 %v1343
    %v3488 = vunpack.c.l.b16 %v1344
    %v3489 = vunpack.c.h.b16 %v1344
    %v3490 = vunpack.c.l.b16 %v1345
    %v3491 = vunpack.c.h.b16 %v1345
    %v3492 = vunpack.c.l.b16 %v1346
    %v3493 = vunpack.c.h.b16 %v1346
    %v3494 = vunpack.c.l.b16 %v1347
    %v3495 = vunpack.c.h.b16 %v1347
    %v3496 = vunpack.c.l.b16 %v1348
    %v3497 = vunpack.c.h.b16 %v1348
    %v3498 = vunpack.c.l.b16 %v1349
    %v3499 = vunpack.c.h.b16 %v1349
    %v3500 = vunpack.c.l.b16 %v1350
    %v3501 = vunpack.c.h.b16 %v1350
    %v3502 = vunpack.c.l.b16 %v1351
    %v3503 = vunpack.c.h.b16 %v1351
    %v3504 = vunpack.c.l.b16 %v1352
    %v3505 = vunpack.c.h.b16 %v1352
    %v3506 = vunpack.c.l.b16 %v1353
    %v3507 = vunpack.c.h.b16 %v1353
    %v3508 = vunpack.c.l.b16 %v1354
    %v3509 = vunpack.c.h.b16 %v1354
    %v3510 = vunpack.c.l.b16 %v1355
    %v3511 = vunpack.c.h.b16 %v1355
    %v3512 = vunpack.c.l.b16 %v1356
    %v3513 = vunpack.c.h.b16 %v1356
    %v3514 = vunpack.c.l.b16 %v1357
    %v3515 = vunpack.c.h.b16 %v1357
    %v3516 = vunpack.c.l.b16 %v1358
    %v3517 = vunpack.c.h.b16 %v1358
    %v3518 = vunpack.c.l.b16 %v1359
    %v3519 = vunpack.c.h.b16 %v1359
    %v3520 = vunpack.c.l.b16 %v1360
    %v3521 = vunpack.c.h.b16 %v1360
    %v3522 = vunpack.c.l.b16 %v1361
    %v3523 = vunpack.c.h.b16 %v1361
    %v3524 = vunpack.c.l.b16 %v1362
    %v3525 = vunpack.c.h.b16 %v1362
    %v3526 = vunpack.c.l.b16 %v1363
    %v3527 = vunpack.c.h.b16 %v1363
    %v3528 = vunpack.c.l.b16 %v1364
    %v3529 = vunpack.c.h.b16 %v1364
    %v3530 = vunpack.c.l.b16 %v1365
    %v3531 = vunpack.c.h.b16 %v1365
    %v3532 = vpack.c.b16 %v3162, %v3152
    %v3533 = vpack.c.b16 %v3163, %v3153
    %v3534 = vpack.c.b16 %v3164, %v3154
    %v3535 = vpack.c.b16 %v3165, %v3155
    %v3536 = vpack.c.b16 %v3166, %v3156
    %v3537 = vpack.c.b16 %v3167, %v3157
    %v3538 = vpack.c.b16 %v3168, %v3158
    %v3539 = vpack.c.b16 %v3169, %v3159
    %v3540 = vpack.c.b16 %v3170, %v3160
    %v3541 = vpack.c.b16 %v3171, %v3161
    %v3542 = vpack.c.b16 %v3182, %v3172
    %v3543 = vpack.c.b16 %v3183, %v3173
    %v3544 = vpack.c.b16 %v3184, %v3174
    %v3545 = vpack.c.b16 %v3185, %v3175
    %v3546 = vpack.c.b16 %v3186, %v3176
    %v3547 = vpack.c.b16 %v3187, %v3177
    %v3548 = vpack.c.b16 %v3188, %v3178
    %v3549 = vpack.c.b16 %v3189, %v3179
    %v3550 = vpack.c.b16 %v3190, %v3180
    %v3551 = vpack.c.b16 %v3191, %v3181
    %v3552 = vpack.c.b16 %v3202, %v3192
    %v3553 = vpack.c.b16 %v3203, %v3193
    %v3554 = vpack.c.b16 %v3204, %v3194
    %v3555 = vpack.c.b16 %v3205, %v3195
    %v3556 = vpack.c.b16 %v3206, %v3196
    %v3557 = vpack.c.b16 %v3207, %v3197
    %v3558 = vpack.c.b16 %v3208, %v3198
    %v3559 = vpack.c.b16 %v3209, %v3199
    %v3560 = vpack.c.b16 %v3210, %v3200
    %v3561 = vpack.c.b16 %v3211, %v3201
    %v3562 = vpack.c.b16 %v3222, %v3212
    %v3563 = vpack.c.b16 %v3223, %v3213
    %v3564 = vpack.c.b16 %v3224, %v3214
    %v3565 = vpack.c.b16 %v3225, %v3215
    %v3566 = vpack.c.b16 %v3226, %v3216
    %v3567 = vpack.c.b16 %v3227, %v3217
    %v3568 = vpack.c.b16 %v3228, %v3218
    %v3569 = vpack.c.b16 %v3229, %v3219
    %v3570 = vpack.c.b16 %v3230, %v3220
    %v3571 = vpack.c.b16 %v3231, %v3221
    %v3572 = vpack.c.b16 %v3242, %v3232
    %v3573 = vpack.c.b16 %v3243, %v3233
    %v3574 = vpack.c.b16 %v3244, %v3234
    %v3575 = vpack.c.b16 %v3245, %v3235
    %v3576 = vpack.c.b16 %v3246, %v3236
    %v3577 = vpack.c.b16 %v3247, %v3237
    %v3578 = vpack.c.b16 %v3248, %v3238
    %v3579 = vpack.c.b16 %v3249, %v3239
    %v3580 = vpack.c.b16 %v3250, %v3240
    %v3581 = vpack.c.b16 %v3251, %v3241
    %v3582 = vpack.c.b16 %v3262, %v3252
    %v3583 = vpack.c.b16 %v3263, %v3253
    %v3584 = vpack.c.b16 %v3264, %v3254
    %v3585 = vpack.c.b16 %v3265, %v3255
    %v3586 = vpack.c.b16 %v3266, %v3256
    %v3587 = vpack.c.b16 %v3267, %v3257
    %v3588 = vpack.c.b16 %v3268, %v3258
    %v3589 = vpack.c.b16 %v3269, %v3259
    %v3590 = vpack.c.b16 %v3270, %v3260
    %v3591 = vpack.c.b16 %v3271, %v3261
    %v3592 = vpack.c.b16 %v3282, %v3272
    %v3593 = vpack.c.b16 %v3283, %v3273
    %v3594 = vpack.c.b16 %v3284, %v3274
    %v3595 = vpack.c.b16 %v3285, %v3275
    %v3596 = vpack.c.b16 %v3286, %v3276
    %v3597 = vpack.c.b16 %v3287, %v3277
    %v3598 = vpack.c.b16 %v3288, %v3278
    %v3599 = vpack.c.b16 %v3289, %v3279
    %v3600 = vpack.c.b16 %v3290, %v3280
    %v3601 = vpack.c.b16 %v3291, %v3281
    %v3602 = vpack.c.b16 %v3302, %v3292
    %v3603 = vpack.c.b16 %v3303, %v3293
    %v3604 = vpack.c.b16 %v3304, %v3294
    %v3605 = vpack.c.b16 %v3305, %v3295
    %v3606 = vpack.c.b16 %v3306, %v3296
    %v3607 = vpack.c.b16 %v3307, %v3297
    %v3608 = vpack.c.b16 %v3308, %v3298
    %v3609 = vpack.c.b16 %v3309, %v3299
    %v3610 = vpack.c.b16 %v3310, %v3300
    %v3611 = vpack.c.b16 %v3311, %v3301
    %v3612 = vpack.c.b16 %v3322, %v3312
    %v3613 = vpack.c.b16 %v3323, %v3313
    %v3614 = vpack.c.b16 %v3324, %v3314
    %v3615 = vpack.c.b16 %v3325, %v3315
    %v3616 = vpack.c.b16 %v3326, %v3316
    %v3617 = vpack.c.b16 %v3327, %v3317
    %v3618 = vpack.c.b16 %v3328, %v3318
    %v3619 = vpack.c.b16 %v3329, %v3319
    %v3620 = vpack.c.b16 %v3330, %v3320
    %v3621 = vpack.c.b16 %v3331, %v3321
    %v3622 = vpack.c.b16 %v3342, %v3332
    %v3623 = vpack.c.b16 %v3343, %v3333
    %v3624 = vpack.c.b16 %v3344, %v3334
    %v3625 = vpack.c.b16 %v3345, %v3335
    %v3626 = vpack.c.b16 %v3346, %v3336
    %v3627 = vpack.c.b16 %v3347, %v3337
    %v3628 = vpack.c.b16 %v3348, %v3338
    %v3629 = vpack.c.b16 %v3349, %v3339
    %v3630 = vpack.c.b16 %v3350, %v3340
    %v3631 = vpack.c.b16 %v3351, %v3341
    %v3632 = vpack.c.b16 %v3362, %v3352
    %v3633 = vpack.c.b16 %v3363, %v3353
    %v3634 = vpack.c.b16 %v3364, %v3354
    %v3635 = vpack.c.b16 %v3365, %v3355
    %v3636 = vpack.c.b16 %v3366, %v3356
    %v3637 = vpack.c.b16 %v3367, %v3357
    %v3638 = vpack.c.b16 %v3368, %v3358
    %v3639 = vpack.c.b16 %v3369, %v3359
    %v3640 = vpack.c.b16 %v3370, %v3360
    %v3641 = vpack.c.b16 %v3371, %v3361
    %v3642 = vpack.c.b16 %v3382, %v3372
    %v3643 = vpack.c.b16 %v3383, %v3373
    %v3644 = vpack.c.b16 %v3384, %v3374
    %v3645 = vpack.c.b16 %v3385, %v3375
    %v3646 = vpack.c.b16 %v3386, %v3376
    %v3647 = vpack.c.b16 %v3387, %v3377
    %v3648 = vpack.c.b16 %v3388, %v3378
    %v3649 = vpack.c.b16 %v3389, %v3379
    %v3650 = vpack.c.b16 %v3390, %v3380
    %v3651 = vpack.c.b16 %v3391, %v3381
    %v3652 = vpack.c.b16 %v3402, %v3392
    %v3653 = vpack.c.b16 %v3403, %v3393
    %v3654 = vpack.c.b16 %v3404, %v3394
    %v3655 = vpack.c.b16 %v3405, %v3395
    %v3656 = vpack.c.b16 %v3406, %v3396
    %v3657 = vpack.c.b16 %v3407, %v3397
    %v3658 = vpack.c.b16 %v3408, %v3398
    %v3659 = vpack.c.b16 %v3409, %v3399
    %v3660 = vpack.c.b16 %v3410, %v3400
    %v3661 = vpack.c.b16 %v3411, %v3401
    %v3662 = vpack.c.b16 %v3422, %v3412
    %v3663 = vpack.c.b16 %v3423, %v3413
    %v3664 = vpack.c.b16 %v3424, %v3414
    %v3665 = vpack.c.b16 %v3425, %v3415
    %v3666 = vpack.c.b16 %v3426, %v3416
    %v3667 = vpack.c.b16 %v3427, %v3417
    %v3668 = vpack.c.b16 %v3428, %v3418
    %v3669 = vpack.c.b16 %v3429, %v3419
    %v3670 = vpack.c.b16 %v3430, %v3420
    %v3671 = vpack.c.b16 %v3431, %v3421
    %v3672 = vpack.c.b16 %v3442, %v3432
    %v3673 = vpack.c.b16 %v3443, %v3433
    %v3674 = vpack.c.b16 %v3444, %v3434
    %v3675 = vpack.c.b16 %v3445, %v3435
    %v3676 = vpack.c.b16 %v3446, %v3436
    %v3677 = vpack.c.b16 %v3447, %v3437
    %v3678 = vpack.c.b16 %v3448, %v3438
    %v3679 = vpack.c.b16 %v3449, %v3439
    %v3680 = vpack.c.b16 %v3450, %v3440
    %v3681 = vpack.c.b16 %v3451, %v3441
    %v3682 = vpack.c.b16 %v3462, %v3452
    %v3683 = vpack.c.b16 %v3463, %v3453
    %v3684 = vpack.c.b16 %v3464, %v3454
    %v3685 = vpack.c.b16 %v3465, %v3455
    %v3686 = vpack.c.b16 %v3466, %v3456
    %v3687 = vpack.c.b16 %v3467, %v3457
    %v3688 = vpack.c.b16 %v3468, %v3458
    %v3689 = vpack.c.b16 %v3469, %v3459
    %v3690 = vpack.c.b16 %v3470, %v3460
    %v3691 = vpack.c.b16 %v3471, %v3461
    %v3692 = vpack.c.b16 %v3482, %v3472
    %v3693 = vpack.c.b16 %v3483, %v3473
    %v3694 = vpack.c.b16 %v3484, %v3474
    %v3695 = vpack.c.b16 %v3485, %v3475
    %v3696 = vpack.c.b16 %v3486, %v3476
    %v3697 = vpack.c.b16 %v3487, %v3477
    %v3698 = vpack.c.b16 %v3488, %v3478
    %v3699 = vpack.c.b16 %v3489, %v3479
    %v3700 = vpack.c.b16 %v3490, %v3480
    %v3701 = vpack.c.b16 %v3491, %v3481
    %v3702 = vpack.c.b16 %v3502, %v3492
    %v3703 = vpack.c.b16 %v3503, %v3493
    %v3704 = vpack.c.b16 %v3504, %v3494
    %v3705 = vpack.c.b16 %v3505, %v3495
    %v3706 = vpack.c.b16 %v3506, %v3496
    %v3707 = vpack.c.b16 %v3507, %v3497
    %v3708 = vpack.c.b16 %v3508, %v3498
    %v3709 = vpack.c.b16 %v3509, %v3499
    %v3710 = vpack.c.b16 %v3510, %v3500
    %v3711 = vpack.c.b16 %v3511, %v3501
    %v3712 = vpack.c.b16 %v3522, %v3512
    %v3713 = vpack.c.b16 %v3523, %v3513
    %v3714 = vpack.c.b16 %v3524, %v3514
    %v3715 = vpack.c.b16 %v3525, %v3515
    %v3716 = vpack.c.b16 %v3526, %v3516
    %v3717 = vpack.c.b16 %v3527, %v3517
    %v3718 = vpack.c.b16 %v3528, %v3518
    %v3719 = vpack.c.b16 %v3529, %v3519
    %v3720 = vpack.c.b16 %v3530, %v3520
    %v3721 = vpack.c.b16 %v3531, %v3521
    %v3903 = vsel %vm634, %v1175, 0
    %v3906 = vsel %vm638, %v3712, 0
    %v3909 = vsel %vm638, %v3713, 0
    %v3912 = vsel %vm638, %v3714, 0
    %v3915 = vsel %vm638, %v3715, 0
    %v3918 = vsel %vm638, %v3716, 0
    %v3921 = vsel %vm638, %v3717, 0
    %v3924 = vsel %vm638, %v3718, 0
    %v3927 = vsel %vm638, %v3719, 0
    %v3930 = vsel %vm638, %v3720, 0
    %v3933 = vsel %vm638, %v3721, 0
    %3935 = vmatprep.subr.bf16.mxu0 %v3533
    %3936 = vmatpush1.bf16.msra.mxu0 %v3532
    %3937 = vmatprep.subr.bf16.mxu0 %v3543
    %3938 = vmatpush1.bf16.msra.mxu0 %v3542
    %3939 = vmatprep.subr.bf16.mxu0 %v3553
    %3940 = vmatpush1.bf16.msra.mxu0 %v3552
    %3941 = vmatprep.subr.bf16.mxu0 %v3563
    %3942 = vmatpush1.bf16.msra.mxu0 %v3562
    %3943 = vmatprep.subr.bf16.mxu0 %v3573
    %3944 = vmatpush1.bf16.msra.mxu0 %v3572
    %3945 = vmatprep.subr.bf16.mxu0 %v3583
    %3946 = vmatpush1.bf16.msra.mxu0 %v3582
    %3947 = vmatprep.subr.bf16.mxu0 %v3593
    %3948 = vmatpush1.bf16.msra.mxu0 %v3592
    %3949 = vmatprep.subr.bf16.mxu0 %v3603
    %3950 = vmatpush1.bf16.msra.mxu0 %v3602
    %3951 = vmatprep.subr.bf16.mxu0 %v3613
    %3952 = vmatpush1.bf16.msra.mxu0 %v3612
    %3953 = vmatprep.subr.bf16.mxu0 %v3623
    %3954 = vmatpush1.bf16.msra.mxu0 %v3622
    %3955 = vmatprep.subr.bf16.mxu0 %v3633
    %3956 = vmatpush1.bf16.msra.mxu0 %v3632
    %3957 = vmatprep.subr.bf16.mxu0 %v3643
    %3958 = vmatpush1.bf16.msra.mxu0 %v3642
    %3959 = vmatprep.subr.bf16.mxu0 %v3653
    %3960 = vmatpush1.bf16.msra.mxu0 %v3652
    %3961 = vmatprep.subr.bf16.mxu0 %v3663
    %3962 = vmatpush1.bf16.msra.mxu0 %v3662
    %3963 = vmatprep.subr.bf16.mxu0 %v3673
    %3964 = vmatpush1.bf16.msra.mxu0 %v3672
    %3965 = vmatprep.subr.bf16.mxu0 %v3683
    %3966 = vmatpush1.bf16.msra.mxu0 %v3682
    %3967 = vmatprep.mubr.bf16.mxu0 %v1174
    %3968 = vmatmul.mubr.bf16.gmra.mrb[0].mxu0 %v1173
    %v3969 = vpop.f32.mrb[0].mxu0
    %v3970 = vadd.f32 %v2610, %v3969
    %v3971 = vpop.f32.mrb[0].mxu0
    %v3972 = vadd.f32 %v2612, %v3971
    %v3973 = vpop.f32.mrb[0].mxu0
    %v3974 = vadd.f32 %v2614, %v3973
    %v3975 = vpop.f32.mrb[0].mxu0
    %v3976 = vadd.f32 %v2616, %v3975
    %3977 = vdwg.mxu0
    %3978 = vmatprep.subr.bf16.mxu0 %v3693
    %3979 = vmatpush1.bf16.msra.mxu0 %v3692
    %3980 = vmatprep.subr.bf16.mxu0 %v3703
    %3981 = vmatpush1.bf16.msra.mxu0 %v3702
    %3982 = vmatprep.subr.bf16.mxu0 %v3909
    %3983 = vmatpush1.bf16.msra.mxu0 %v3906
    %3984 = vmatprep.subr.bf16.mxu0 0
    %3985 = vmatpush1.bf16.msra.mxu0 0
    %3986 = vmatprep.subr.bf16.mxu0 0
    %3987 = vmatpush1.bf16.msra.mxu0 0
    %3988 = vmatprep.subr.bf16.mxu0 0
    %3989 = vmatpush1.bf16.msra.mxu0 0
    %3990 = vmatprep.subr.bf16.mxu0 0
    %3991 = vmatpush1.bf16.msra.mxu0 0
    %3992 = vmatprep.subr.bf16.mxu0 0
    %3993 = vmatpush1.bf16.msra.mxu0 0
    %3994 = vmatprep.subr.bf16.mxu0 0
    %3995 = vmatpush1.bf16.msra.mxu0 0
    %3996 = vmatprep.subr.bf16.mxu0 0
    %3997 = vmatpush1.bf16.msra.mxu0 0
    %3998 = vmatprep.subr.bf16.mxu0 0
    %3999 = vmatpush1.bf16.msra.mxu0 0
    %4000 = vmatprep.subr.bf16.mxu0 0
    %4001 = vmatpush1.bf16.msra.mxu0 0
    %4002 = vmatprep.subr.bf16.mxu0 0
    %4003 = vmatpush1.bf16.msra.mxu0 0
    %4004 = vmatprep.subr.bf16.mxu0 0
    %4005 = vmatpush1.bf16.msra.mxu0 0
    %4006 = vmatprep.subr.bf16.mxu0 0
    %4007 = vmatpush1.bf16.msra.mxu0 0
    %4008 = vmatprep.subr.bf16.mxu0 0
    %4009 = vmatpush1.bf16.msra.mxu0 0
    %4010 = vmatprep.mubr.bf16.mxu0 0
    %4011 = vmatmul.mubr.bf16.gmra.mrb[0].mxu0 %v3903
    %v4012 = vpop.f32.mrb[0].mxu0
    %v4013 = vadd.f32 %v3970, %v4012
    %v4014 = vpop.f32.mrb[0].mxu0
    %v4015 = vadd.f32 %v3972, %v4014
    %v4016 = vpop.f32.mrb[0].mxu0
    %v4017 = vadd.f32 %v3974, %v4016
    %v4018 = vpop.f32.mrb[0].mxu0
    %v4019 = vadd.f32 %v3976, %v4018
    %4020 = vdwg.mxu0
    %4021 = vmatprep.subr.bf16.mxu0 %v3535
    %4022 = vmatpush1.bf16.msra.mxu0 %v3534
    %4023 = vmatprep.subr.bf16.mxu0 %v3545
    %4024 = vmatpush1.bf16.msra.mxu0 %v3544
    %4025 = vmatprep.subr.bf16.mxu0 %v3555
    %4026 = vmatpush1.bf16.msra.mxu0 %v3554
    %4027 = vmatprep.subr.bf16.mxu0 %v3565
    %4028 = vmatpush1.bf16.msra.mxu0 %v3564
    %4029 = vmatprep.subr.bf16.mxu0 %v3575
    %4030 = vmatpush1.bf16.msra.mxu0 %v3574
    %4031 = vmatprep.subr.bf16.mxu0 %v3585
    %4032 = vmatpush1.bf16.msra.mxu0 %v3584
    %4033 = vmatprep.subr.bf16.mxu0 %v3595
    %4034 = vmatpush1.bf16.msra.mxu0 %v3594
    %4035 = vmatprep.subr.bf16.mxu0 %v3605
    %4036 = vmatpush1.bf16.msra.mxu0 %v3604
    %4037 = vmatprep.subr.bf16.mxu0 %v3615
    %4038 = vmatpush1.bf16.msra.mxu0 %v3614
    %4039 = vmatprep.subr.bf16.mxu0 %v3625
    %4040 = vmatpush1.bf16.msra.mxu0 %v3624
    %4041 = vmatprep.subr.bf16.mxu0 %v3635
    %4042 = vmatpush1.bf16.msra.mxu0 %v3634
    %4043 = vmatprep.subr.bf16.mxu0 %v3645
    %4044 = vmatpush1.bf16.msra.mxu0 %v3644
    %4045 = vmatprep.subr.bf16.mxu0 %v3655
    %4046 = vmatpush1.bf16.msra.mxu0 %v3654
    %4047 = vmatprep.subr.bf16.mxu0 %v3665
    %4048 = vmatpush1.bf16.msra.mxu0 %v3664
    %4049 = vmatprep.subr.bf16.mxu0 %v3675
    %4050 = vmatpush1.bf16.msra.mxu0 %v3674
    %4051 = vmatprep.subr.bf16.mxu0 %v3685
    %4052 = vmatpush1.bf16.msra.mxu0 %v3684
    %4053 = vmatprep.mubr.bf16.mxu0 %v1174
    %4054 = vmatmul.mubr.bf16.gmra.mrb[0].mxu0 %v1173
    %v4055 = vpop.f32.mrb[0].mxu0
    %v4056 = vadd.f32 %v2696, %v4055
    %v4057 = vpop.f32.mrb[0].mxu0
    %v4058 = vadd.f32 %v2698, %v4057
    %v4059 = vpop.f32.mrb[0].mxu0
    %v4060 = vadd.f32 %v2700, %v4059
    %v4061 = vpop.f32.mrb[0].mxu0
    %v4062 = vadd.f32 %v2702, %v4061
    %4063 = vdwg.mxu0
    %4064 = vmatprep.subr.bf16.mxu0 %v3695
    %4065 = vmatpush1.bf16.msra.mxu0 %v3694
    %4066 = vmatprep.subr.bf16.mxu0 %v3705
    %4067 = vmatpush1.bf16.msra.mxu0 %v3704
    %4068 = vmatprep.subr.bf16.mxu0 %v3915
    %4069 = vmatpush1.bf16.msra.mxu0 %v3912
    %4070 = vmatprep.subr.bf16.mxu0 0
    %4071 = vmatpush1.bf16.msra.mxu0 0
    %4072 = vmatprep.subr.bf16.mxu0 0
    %4073 = vmatpush1.bf16.msra.mxu0 0
    %4074 = vmatprep.subr.bf16.mxu0 0
    %4075 = vmatpush1.bf16.msra.mxu0 0
    %4076 = vmatprep.subr.bf16.mxu0 0
    %4077 = vmatpush1.bf16.msra.mxu0 0
    %4078 = vmatprep.subr.bf16.mxu0 0
    %4079 = vmatpush1.bf16.msra.mxu0 0
    %4080 = vmatprep.subr.bf16.mxu0 0
    %4081 = vmatpush1.bf16.msra.mxu0 0
    %4082 = vmatprep.subr.bf16.mxu0 0
    %4083 = vmatpush1.bf16.msra.mxu0 0
    %4084 = vmatprep.subr.bf16.mxu0 0
    %4085 = vmatpush1.bf16.msra.mxu0 0
    %4086 = vmatprep.subr.bf16.mxu0 0
    %4087 = vmatpush1.bf16.msra.mxu0 0
    %4088 = vmatprep.subr.bf16.mxu0 0
    %4089 = vmatpush1.bf16.msra.mxu0 0
    %4090 = vmatprep.subr.bf16.mxu0 0
    %4091 = vmatpush1.bf16.msra.mxu0 0
    %4092 = vmatprep.subr.bf16.mxu0 0
    %4093 = vmatpush1.bf16.msra.mxu0 0
    %4094 = vmatprep.subr.bf16.mxu0 0
    %4095 = vmatpush1.bf16.msra.mxu0 0
    %4096 = vmatprep.mubr.bf16.mxu0 0
    %4097 = vmatmul.mubr.bf16.gmra.mrb[0].mxu0 %v3903
    %v4098 = vpop.f32.mrb[0].mxu0
    %v4099 = vadd.f32 %v4056, %v4098
    %v4100 = vpop.f32.mrb[0].mxu0
    %v4101 = vadd.f32 %v4058, %v4100
    %v4102 = vpop.f32.mrb[0].mxu0
    %v4103 = vadd.f32 %v4060, %v4102
    %v4104 = vpop.f32.mrb[0].mxu0
    %v4105 = vadd.f32 %v4062, %v4104
    %4106 = vdwg.mxu0
    %4107 = vmatprep.subr.bf16.mxu0 %v3537
    %4108 = vmatpush1.bf16.msra.mxu0 %v3536
    %4109 = vmatprep.subr.bf16.mxu0 %v3547
    %4110 = vmatpush1.bf16.msra.mxu0 %v3546
    %4111 = vmatprep.subr.bf16.mxu0 %v3557
    %4112 = vmatpush1.bf16.msra.mxu0 %v3556
    %4113 = vmatprep.subr.bf16.mxu0 %v3567
    %4114 = vmatpush1.bf16.msra.mxu0 %v3566
    %4115 = vmatprep.subr.bf16.mxu0 %v3577
    %4116 = vmatpush1.bf16.msra.mxu0 %v3576
    %4117 = vmatprep.subr.bf16.mxu0 %v3587
    %4118 = vmatpush1.bf16.msra.mxu0 %v3586
    %4119 = vmatprep.subr.bf16.mxu0 %v3597
    %4120 = vmatpush1.bf16.msra.mxu0 %v3596
    %4121 = vmatprep.subr.bf16.mxu0 %v3607
    %4122 = vmatpush1.bf16.msra.mxu0 %v3606
    %4123 = vmatprep.subr.bf16.mxu0 %v3617
    %4124 = vmatpush1.bf16.msra.mxu0 %v3616
    %4125 = vmatprep.subr.bf16.mxu0 %v3627
    %4126 = vmatpush1.bf16.msra.mxu0 %v3626
    %4127 = vmatprep.subr.bf16.mxu0 %v3637
    %4128 = vmatpush1.bf16.msra.mxu0 %v3636
    %4129 = vmatprep.subr.bf16.mxu0 %v3647
    %4130 = vmatpush1.bf16.msra.mxu0 %v3646
    %4131 = vmatprep.subr.bf16.mxu0 %v3657
    %4132 = vmatpush1.bf16.msra.mxu0 %v3656
    %4133 = vmatprep.subr.bf16.mxu0 %v3667
    %4134 = vmatpush1.bf16.msra.mxu0 %v3666
    %4135 = vmatprep.subr.bf16.mxu0 %v3677
    %4136 = vmatpush1.bf16.msra.mxu0 %v3676
    %4137 = vmatprep.subr.bf16.mxu0 %v3687
    %4138 = vmatpush1.bf16.msra.mxu0 %v3686
    %4139 = vmatprep.mubr.bf16.mxu0 %v1174
    %4140 = vmatmul.mubr.bf16.gmra.mrb[0].mxu0 %v1173
    %v4141 = vpop.f32.mrb[0].mxu0
    %v4142 = vadd.f32 %v2782, %v4141
    %v4143 = vpop.f32.mrb[0].mxu0
    %v4144 = vadd.f32 %v2784, %v4143
    %v4145 = vpop.f32.mrb[0].mxu0
    %v4146 = vadd.f32 %v2786, %v4145
    %v4147 = vpop.f32.mrb[0].mxu0
    %v4148 = vadd.f32 %v2788, %v4147
    %4149 = vdwg.mxu0
    %4150 = vmatprep.subr.bf16.mxu0 %v3697
    %4151 = vmatpush1.bf16.msra.mxu0 %v3696
    %4152 = vmatprep.subr.bf16.mxu0 %v3707
    %4153 = vmatpush1.bf16.msra.mxu0 %v3706
    %4154 = vmatprep.subr.bf16.mxu0 %v3921
    %4155 = vmatpush1.bf16.msra.mxu0 %v3918
    %4156 = vmatprep.subr.bf16.mxu0 0
    %4157 = vmatpush1.bf16.msra.mxu0 0
    %4158 = vmatprep.subr.bf16.mxu0 0
    %4159 = vmatpush1.bf16.msra.mxu0 0
    %4160 = vmatprep.subr.bf16.mxu0 0
    %4161 = vmatpush1.bf16.msra.mxu0 0
    %4162 = vmatprep.subr.bf16.mxu0 0
    %4163 = vmatpush1.bf16.msra.mxu0 0
    %4164 = vmatprep.subr.bf16.mxu0 0
    %4165 = vmatpush1.bf16.msra.mxu0 0
    %4166 = vmatprep.subr.bf16.mxu0 0
    %4167 = vmatpush1.bf16.msra.mxu0 0
    %4168 = vmatprep.subr.bf16.mxu0 0
    %4169 = vmatpush1.bf16.msra.mxu0 0
    %4170 = vmatprep.subr.bf16.mxu0 0
    %4171 = vmatpush1.bf16.msra.mxu0 0
    %4172 = vmatprep.subr.bf16.mxu0 0
    %4173 = vmatpush1.bf16.msra.mxu0 0
    %4174 = vmatprep.subr.bf16.mxu0 0
    %4175 = vmatpush1.bf16.msra.mxu0 0
    %4176 = vmatprep.subr.bf16.mxu0 0
    %4177 = vmatpush1.bf16.msra.mxu0 0
    %4178 = vmatprep.subr.bf16.mxu0 0
    %4179 = vmatpush1.bf16.msra.mxu0 0
    %4180 = vmatprep.subr.bf16.mxu0 0
    %4181 = vmatpush1.bf16.msra.mxu0 0
    %4182 = vmatprep.mubr.bf16.mxu0 0
    %4183 = vmatmul.mubr.bf16.gmra.mrb[0].mxu0 %v3903
    %v4184 = vpop.f32.mrb[0].mxu0
    %v4185 = vadd.f32 %v4142, %v4184
    %v4186 = vpop.f32.mrb[0].mxu0
    %v4187 = vadd.f32 %v4144, %v4186
    %v4188 = vpop.f32.mrb[0].mxu0
    %v4189 = vadd.f32 %v4146, %v4188
    %v4190 = vpop.f32.mrb[0].mxu0
    %v4191 = vadd.f32 %v4148, %v4190
    %4192 = vdwg.mxu0
    %4193 = vmatprep.subr.bf16.mxu0 %v3539
    %4194 = vmatpush1.bf16.msra.mxu0 %v3538
    %4195 = vmatprep.subr.bf16.mxu0 %v3549
    %4196 = vmatpush1.bf16.msra.mxu0 %v3548
    %4197 = vmatprep.subr.bf16.mxu0 %v3559
    %4198 = vmatpush1.bf16.msra.mxu0 %v3558
    %4199 = vmatprep.subr.bf16.mxu0 %v3569
    %4200 = vmatpush1.bf16.msra.mxu0 %v3568
    %4201 = vmatprep.subr.bf16.mxu0 %v3579
    %4202 = vmatpush1.bf16.msra.mxu0 %v3578
    %4203 = vmatprep.subr.bf16.mxu0 %v3589
    %4204 = vmatpush1.bf16.msra.mxu0 %v3588
    %4205 = vmatprep.subr.bf16.mxu0 %v3599
    %4206 = vmatpush1.bf16.msra.mxu0 %v3598
    %4207 = vmatprep.subr.bf16.mxu0 %v3609
    %4208 = vmatpush1.bf16.msra.mxu0 %v3608
    %4209 = vmatprep.subr.bf16.mxu0 %v3619
    %4210 = vmatpush1.bf16.msra.mxu0 %v3618
    %4211 = vmatprep.subr.bf16.mxu0 %v3629
    %4212 = vmatpush1.bf16.msra.mxu0 %v3628
    %4213 = vmatprep.subr.bf16.mxu0 %v3639
    %4214 = vmatpush1.bf16.msra.mxu0 %v3638
    %4215 = vmatprep.subr.bf16.mxu0 %v3649
    %4216 = vmatpush1.bf16.msra.mxu0 %v3648
    %4217 = vmatprep.subr.bf16.mxu0 %v3659
    %4218 = vmatpush1.bf16.msra.mxu0 %v3658
    %4219 = vmatprep.subr.bf16.mxu0 %v3669
    %4220 = vmatpush1.bf16.msra.mxu0 %v3668
    %4221 = vmatprep.subr.bf16.mxu0 %v3679
    %4222 = vmatpush1.bf16.msra.mxu0 %v3678
    %4223 = vmatprep.subr.bf16.mxu0 %v3689
    %4224 = vmatpush1.bf16.msra.mxu0 %v3688
    %4225 = vmatprep.mubr.bf16.mxu0 %v1174
    %4226 = vmatmul.mubr.bf16.gmra.mrb[0].mxu0 %v1173
    %v4227 = vpop.f32.mrb[0].mxu0
    %v4228 = vadd.f32 %v2868, %v4227
    %v4229 = vpop.f32.mrb[0].mxu0
    %v4230 = vadd.f32 %v2870, %v4229
    %v4231 = vpop.f32.mrb[0].mxu0
    %v4232 = vadd.f32 %v2872, %v4231
    %v4233 = vpop.f32.mrb[0].mxu0
    %v4234 = vadd.f32 %v2874, %v4233
    %4235 = vdwg.mxu0
    %4236 = vmatprep.subr.bf16.mxu0 %v3699
    %4237 = vmatpush1.bf16.msra.mxu0 %v3698
    %4238 = vmatprep.subr.bf16.mxu0 %v3709
    %4239 = vmatpush1.bf16.msra.mxu0 %v3708
    %4240 = vmatprep.subr.bf16.mxu0 %v3927
    %4241 = vmatpush1.bf16.msra.mxu0 %v3924
    %4242 = vmatprep.subr.bf16.mxu0 0
    %4243 = vmatpush1.bf16.msra.mxu0 0
    %4244 = vmatprep.subr.bf16.mxu0 0
    %4245 = vmatpush1.bf16.msra.mxu0 0
    %4246 = vmatprep.subr.bf16.mxu0 0
    %4247 = vmatpush1.bf16.msra.mxu0 0
    %4248 = vmatprep.subr.bf16.mxu0 0
    %4249 = vmatpush1.bf16.msra.mxu0 0
    %4250 = vmatprep.subr.bf16.mxu0 0
    %4251 = vmatpush1.bf16.msra.mxu0 0
    %4252 = vmatprep.subr.bf16.mxu0 0
    %4253 = vmatpush1.bf16.msra.mxu0 0
    %4254 = vmatprep.subr.bf16.mxu0 0
    %4255 = vmatpush1.bf16.msra.mxu0 0
    %4256 = vmatprep.subr.bf16.mxu0 0
    %4257 = vmatpush1.bf16.msra.mxu0 0
    %4258 = vmatprep.subr.bf16.mxu0 0
    %4259 = vmatpush1.bf16.msra.mxu0 0
    %4260 = vmatprep.subr.bf16.mxu0 0
    %4261 = vmatpush1.bf16.msra.mxu0 0
    %4262 = vmatprep.subr.bf16.mxu0 0
    %4263 = vmatpush1.bf16.msra.mxu0 0
    %4264 = vmatprep.subr.bf16.mxu0 0
    %4265 = vmatpush1.bf16.msra.mxu0 0
    %4266 = vmatprep.subr.bf16.mxu0 0
    %4267 = vmatpush1.bf16.msra.mxu0 0
    %4268 = vmatprep.mubr.bf16.mxu0 0
    %4269 = vmatmul.mubr.bf16.gmra.mrb[0].mxu0 %v3903
    %v4270 = vpop.f32.mrb[0].mxu0
    %v4271 = vadd.f32 %v4228, %v4270
    %v4272 = vpop.f32.mrb[0].mxu0
    %v4273 = vadd.f32 %v4230, %v4272
    %v4274 = vpop.f32.mrb[0].mxu0
    %v4275 = vadd.f32 %v4232, %v4274
    %v4276 = vpop.f32.mrb[0].mxu0
    %v4277 = vadd.f32 %v4234, %v4276
    %4278 = vdwg.mxu0
    %4279 = vmatprep.subr.bf16.mxu0 %v3541
    %4280 = vmatpush1.bf16.msra.mxu0 %v3540
    %4281 = vmatprep.subr.bf16.mxu0 %v3551
    %4282 = vmatpush1.bf16.msra.mxu0 %v3550
    %4283 = vmatprep.subr.bf16.mxu0 %v3561
    %4284 = vmatpush1.bf16.msra.mxu0 %v3560
    %4285 = vmatprep.subr.bf16.mxu0 %v3571
    %4286 = vmatpush1.bf16.msra.mxu0 %v3570
    %4287 = vmatprep.subr.bf16.mxu0 %v3581
    %4288 = vmatpush1.bf16.msra.mxu0 %v3580
    %4289 = vmatprep.subr.bf16.mxu0 %v3591
    %4290 = vmatpush1.bf16.msra.mxu0 %v3590
    %4291 = vmatprep.subr.bf16.mxu0 %v3601
    %4292 = vmatpush1.bf16.msra.mxu0 %v3600
    %4293 = vmatprep.subr.bf16.mxu0 %v3611
    %4294 = vmatpush1.bf16.msra.mxu0 %v3610
    %4295 = vmatprep.subr.bf16.mxu0 %v3621
    %4296 = vmatpush1.bf16.msra.mxu0 %v3620
    %4297 = vmatprep.subr.bf16.mxu0 %v3631
    %4298 = vmatpush1.bf16.msra.mxu0 %v3630
    %4299 = vmatprep.subr.bf16.mxu0 %v3641
    %4300 = vmatpush1.bf16.msra.mxu0 %v3640
    %4301 = vmatprep.subr.bf16.mxu0 %v3651
    %4302 = vmatpush1.bf16.msra.mxu0 %v3650
    %4303 = vmatprep.subr.bf16.mxu0 %v3661
    %4304 = vmatpush1.bf16.msra.mxu0 %v3660
    %4305 = vmatprep.subr.bf16.mxu0 %v3671
    %4306 = vmatpush1.bf16.msra.mxu0 %v3670
    %4307 = vmatprep.subr.bf16.mxu0 %v3681
    %4308 = vmatpush1.bf16.msra.mxu0 %v3680
    %4309 = vmatprep.subr.bf16.mxu0 %v3691
    %4310 = vmatpush1.bf16.msra.mxu0 %v3690
    %4311 = vmatprep.mubr.bf16.mxu0 %v1174
    %4312 = vmatmul.mubr.bf16.gmra.mrb[0].mxu0 %v1173
    %v4313 = vpop.f32.mrb[0].mxu0
    %v4314 = vadd.f32 %v2954, %v4313
    %v4315 = vpop.f32.mrb[0].mxu0
    %v4316 = vadd.f32 %v2956, %v4315
    %v4317 = vpop.f32.mrb[0].mxu0
    %v4318 = vadd.f32 %v2958, %v4317
    %v4319 = vpop.f32.mrb[0].mxu0
    %v4320 = vadd.f32 %v2960, %v4319
    %4321 = vdwg.mxu0
    %4322 = vmatprep.subr.bf16.mxu0 %v3701
    %4323 = vmatpush1.bf16.msra.mxu0 %v3700
    %4324 = vmatprep.subr.bf16.mxu0 %v3711
    %4325 = vmatpush1.bf16.msra.mxu0 %v3710
    %4326 = vmatprep.subr.bf16.mxu0 %v3933
    %4327 = vmatpush1.bf16.msra.mxu0 %v3930
    %4328 = vmatprep.subr.bf16.mxu0 0
    %4329 = vmatpush1.bf16.msra.mxu0 0
    %4330 = vmatprep.subr.bf16.mxu0 0
    %4331 = vmatpush1.bf16.msra.mxu0 0
    %4332 = vmatprep.subr.bf16.mxu0 0
    %4333 = vmatpush1.bf16.msra.mxu0 0
    %4334 = vmatprep.subr.bf16.mxu0 0
    %4335 = vmatpush1.bf16.msra.mxu0 0
    %4336 = vmatprep.subr.bf16.mxu0 0
    %4337 = vmatpush1.bf16.msra.mxu0 0
    %4338 = vmatprep.subr.bf16.mxu0 0
    %4339 = vmatpush1.bf16.msra.mxu0 0
    %4340 = vmatprep.subr.bf16.mxu0 0
    %4341 = vmatpush1.bf16.msra.mxu0 0
    %4342 = vmatprep.subr.bf16.mxu0 0
    %4343 = vmatpush1.bf16.msra.mxu0 0
    %4344 = vmatprep.subr.bf16.mxu0 0
    %4345 = vmatpush1.bf16.msra.mxu0 0
    %4346 = vmatprep.subr.bf16.mxu0 0
    %4347 = vmatpush1.bf16.msra.mxu0 0
    %4348 = vmatprep.subr.bf16.mxu0 0
    %4349 = vmatpush1.bf16.msra.mxu0 0
    %4350 = vmatprep.subr.bf16.mxu0 0
    %4351 = vmatpush1.bf16.msra.mxu0 0
    %4352 = vmatprep.subr.bf16.mxu0 0
    %4353 = vmatpush1.bf16.msra.mxu0 0
    %4354 = vmatprep.mubr.bf16.mxu0 0
    %4355 = vmatmul.mubr.bf16.gmra.mrb[0].mxu0 %v3903
    %v4356 = vpop.f32.mrb[0].mxu0
    %v4357 = vadd.f32 %v4314, %v4356
    %v4358 = vpop.f32.mrb[0].mxu0
    %v4359 = vadd.f32 %v4316, %v4358
    %v4360 = vpop.f32.mrb[0].mxu0
    %v4361 = vadd.f32 %v4318, %v4360
    %v4362 = vpop.f32.mrb[0].mxu0
    %v4363 = vadd.f32 %v4320, %v4362
    %4364 = vdwg.mxu0
    %v4365 = vmul.f32 %v919, %v1167
    %v4366 = vmul.f32 %v920, %v1168
    %v4367 = vmul.f32 %v921, %v1169
    %v4368 = vmul.f32 %v922, %v1170
    %v4369 = vmul.f32 %v923, %v1171
    %v4370 = vmul.f32 %v924, %v1172
    %v4371 = vpack.c.bf16 %v4368, %v4365
    %v4372 = vpack.c.bf16 %v4369, %v4366
    %v4373 = vpack.c.bf16 %v4370, %v4367
    %v4374 = vld [vmem:[#allocation17] sm:$0xff]
    %v4375 = vld [vmem:[#allocation17 + $0x8] sm:$0xff]
    %v4376 = vld [vmem:[#allocation17 + $0x10] sm:$0xff]
    %v4377 = vld [vmem:[#allocation17 + $0x18] sm:$0xff]
    %v4378 = vld [vmem:[#allocation17 + $0x20] sm:$0xff]
    %v4379 = vld [vmem:[#allocation17 + $0x28] sm:$0xff]
    %v4380 = vld [vmem:[#allocation17 + $0x30] sm:$0xff]
    %v4381 = vld [vmem:[#allocation17 + $0x38] sm:$0xff]
    %v4382 = vld [vmem:[#allocation17 + $0x40] sm:$0xff]
    %v4383 = vld [vmem:[#allocation17 + $0x48] sm:$0xff]
    %v4384 = vld [vmem:[#allocation17 + $0x50] sm:$0xff]
    %v4385 = vld [vmem:[#allocation17 + $0x58] sm:$0xff]
    %v4386 = vld [vmem:[#allocation17 + $0x60] sm:$0xff]
    %v4387 = vld [vmem:[#allocation17 + $0x68] sm:$0xff]
    %v4388 = vld [vmem:[#allocation17 + $0x70] sm:$0xff]
    %v4389 = vld [vmem:[#allocation17 + $0x78] sm:$0xff]
    %v4390 = vld [vmem:[#allocation17 + $0x80] sm:$0xff]
    %v4391 = vld [vmem:[#allocation17 + $0x88] sm:$0xff]
    %v4392 = vld [vmem:[#allocation17 + $0x90] sm:$0xff]
    %v4393 = vld [vmem:[#allocation17 + $0x98] sm:$0xff]
    %v4394 = vld [vmem:[#allocation17 + $0xa0] sm:$0xff]
    %v4395 = vld [vmem:[#allocation17 + $0xa8] sm:$0xff]
    %v4396 = vld [vmem:[#allocation17 + $0xb0] sm:$0xff]
    %v4397 = vld [vmem:[#allocation17 + $0xb8] sm:$0xff]
    %v4398 = vld [vmem:[#allocation17 + $0xc0] sm:$0xff]
    %v4399 = vld [vmem:[#allocation17 + $0xc8] sm:$0xff]
    %v4400 = vld [vmem:[#allocation17 + $0xd0] sm:$0xff]
    %v4401 = vld [vmem:[#allocation17 + $0xd8] sm:$0xff]
    %v4402 = vld [vmem:[#allocation17 + $0xe0] sm:$0xff]
    %v4403 = vld [vmem:[#allocation17 + $0xe8] sm:$0xff]
    %v4404 = vld [vmem:[#allocation17 + $0xf0] sm:$0xff]
    %v4405 = vld [vmem:[#allocation17 + $0xf8] sm:$0xff]
    %v4406 = vld [vmem:[#allocation17 + $0x100] sm:$0xff]
    %v4407 = vld [vmem:[#allocation17 + $0x108] sm:$0xff]
    %v4408 = vld [vmem:[#allocation17 + $0x110] sm:$0xff]
    %v4409 = vld [vmem:[#allocation17 + $0x118] sm:$0xff]
    %v4410 = vld [vmem:[#allocation17 + $0x120] sm:$0xff]
    %v4411 = vld [vmem:[#allocation17 + $0x128] sm:$0xff]
    %v4412 = vld [vmem:[#allocation17 + $0x130] sm:$0xff]
    %v4413 = vld [vmem:[#allocation17 + $0x138] sm:$0xff]
    %v4414 = vld [vmem:[#allocation17 + $0x140] sm:$0xff]
    %v4415 = vld [vmem:[#allocation17 + $0x148] sm:$0xff]
    %v4416 = vld [vmem:[#allocation17 + $0x150] sm:$0xff]
    %v4417 = vld [vmem:[#allocation17 + $0x158] sm:$0xff]
    %v4418 = vld [vmem:[#allocation17 + $0x160] sm:$0xff]
    %v4419 = vld [vmem:[#allocation17 + $0x168] sm:$0xff]
    %v4420 = vld [vmem:[#allocation17 + $0x170] sm:$0xff]
    %v4421 = vld [vmem:[#allocation17 + $0x178] sm:$0xff]
    %v4422 = vld [vmem:[#allocation17 + $0x180] sm:$0xff]
    %v4423 = vld [vmem:[#allocation17 + $0x188] sm:$0xff]
    %v4424 = vld [vmem:[#allocation17 + $0x190] sm:$0xff]
    %v4425 = vld [vmem:[#allocation17 + $0x198] sm:$0xff]
    %v4426 = vld [vmem:[#allocation17 + $0x1a0] sm:$0xff]
    %v4427 = vld [vmem:[#allocation17 + $0x1a8] sm:$0xff]
    %v4428 = vld [vmem:[#allocation17 + $0x1b0] sm:$0xff]
    %v4429 = vld [vmem:[#allocation17 + $0x1b8] sm:$0xff]
    %v4430 = vld [vmem:[#allocation17 + $0x1c0] sm:$0xff]
    %v4431 = vld [vmem:[#allocation17 + $0x1c8] sm:$0xff]
    %v4432 = vld [vmem:[#allocation17 + $0x1d0] sm:$0xff]
    %v4433 = vld [vmem:[#allocation17 + $0x1d8] sm:$0xff]
    %v4434 = vld [vmem:[#allocation17 + $0x1e0] sm:$0xff]
    %v4435 = vld [vmem:[#allocation17 + $0x1e8] sm:$0xff]
    %v4436 = vld [vmem:[#allocation17 + $0x1f0] sm:$0xff]
    %v4437 = vld [vmem:[#allocation17 + $0x1f8] sm:$0xff]
    %v4438 = vld [vmem:[#allocation17 + $0x200] sm:$0xff]
    %v4439 = vld [vmem:[#allocation17 + $0x208] sm:$0xff]
    %v4440 = vld [vmem:[#allocation17 + $0x210] sm:$0xff]
    %v4441 = vld [vmem:[#allocation17 + $0x218] sm:$0xff]
    %v4442 = vld [vmem:[#allocation17 + $0x220] sm:$0xff]
    %v4443 = vld [vmem:[#allocation17 + $0x228] sm:$0xff]
    %v4444 = vld [vmem:[#allocation17 + $0x230] sm:$0xff]
    %v4445 = vld [vmem:[#allocation17 + $0x238] sm:$0xff]
    %v4446 = vld [vmem:[#allocation17 + $0x240] sm:$0xff]
    %v4447 = vld [vmem:[#allocation17 + $0x248] sm:$0xff]
    %v4448 = vld [vmem:[#allocation17 + $0x250] sm:$0xff]
    %v4449 = vld [vmem:[#allocation17 + $0x258] sm:$0xff]
    %v4450 = vld [vmem:[#allocation17 + $0x260] sm:$0xff]
    %v4451 = vld [vmem:[#allocation17 + $0x268] sm:$0xff]
    %v4452 = vld [vmem:[#allocation17 + $0x270] sm:$0xff]
    %v4453 = vld [vmem:[#allocation17 + $0x278] sm:$0xff]
    %v4454 = vld [vmem:[#allocation17 + $0x280] sm:$0xff]
    %v4455 = vld [vmem:[#allocation17 + $0x288] sm:$0xff]
    %v4456 = vld [vmem:[#allocation17 + $0x290] sm:$0xff]
    %v4457 = vld [vmem:[#allocation17 + $0x298] sm:$0xff]
    %v4458 = vld [vmem:[#allocation17 + $0x2a0] sm:$0xff]
    %v4459 = vld [vmem:[#allocation17 + $0x2a8] sm:$0xff]
    %v4460 = vld [vmem:[#allocation17 + $0x2b0] sm:$0xff]
    %v4461 = vld [vmem:[#allocation17 + $0x2b8] sm:$0xff]
    %v4462 = vld [vmem:[#allocation17 + $0x2c0] sm:$0xff]
    %v4463 = vld [vmem:[#allocation17 + $0x2c8] sm:$0xff]
    %v4464 = vld [vmem:[#allocation17 + $0x2d0] sm:$0xff]
    %v4465 = vld [vmem:[#allocation17 + $0x2d8] sm:$0xff]
    %v4466 = vld [vmem:[#allocation17 + $0x2e0] sm:$0xff]
    %v4467 = vld [vmem:[#allocation17 + $0x2e8] sm:$0xff]
    %v4468 = vld [vmem:[#allocation17 + $0x2f0] sm:$0xff]
    %v4469 = vld [vmem:[#allocation17 + $0x2f8] sm:$0xff]
    %v4470 = vld [vmem:[#allocation17 + $0x300] sm:$0xff]
    %v4471 = vld [vmem:[#allocation17 + $0x308] sm:$0xff]
    %v4472 = vld [vmem:[#allocation17 + $0x310] sm:$0xff]
    %v4473 = vld [vmem:[#allocation17 + $0x318] sm:$0xff]
    %v4474 = vld [vmem:[#allocation17 + $0x320] sm:$0xff]
    %v4475 = vld [vmem:[#allocation17 + $0x328] sm:$0xff]
    %v4476 = vld [vmem:[#allocation17 + $0x330] sm:$0xff]
    %v4477 = vld [vmem:[#allocation17 + $0x338] sm:$0xff]
    %v4478 = vld [vmem:[#allocation17 + $0x340] sm:$0xff]
    %v4479 = vld [vmem:[#allocation17 + $0x348] sm:$0xff]
    %v4480 = vld [vmem:[#allocation17 + $0x350] sm:$0xff]
    %v4481 = vld [vmem:[#allocation17 + $0x358] sm:$0xff]
    %v4482 = vld [vmem:[#allocation17 + $0x360] sm:$0xff]
    %v4483 = vld [vmem:[#allocation17 + $0x368] sm:$0xff]
    %v4484 = vld [vmem:[#allocation17 + $0x370] sm:$0xff]
    %v4485 = vld [vmem:[#allocation17 + $0x378] sm:$0xff]
    %v4486 = vld [vmem:[#allocation17 + $0x380] sm:$0xff]
    %v4487 = vld [vmem:[#allocation17 + $0x388] sm:$0xff]
    %v4488 = vld [vmem:[#allocation17 + $0x390] sm:$0xff]
    %v4489 = vld [vmem:[#allocation17 + $0x398] sm:$0xff]
    %v4490 = vld [vmem:[#allocation17 + $0x3a0] sm:$0xff]
    %v4491 = vld [vmem:[#allocation17 + $0x3a8] sm:$0xff]
    %v4492 = vld [vmem:[#allocation17 + $0x3b0] sm:$0xff]
    %v4493 = vld [vmem:[#allocation17 + $0x3b8] sm:$0xff]
    %v4494 = vld [vmem:[#allocation17 + $0x3c0] sm:$0xff]
    %v4495 = vld [vmem:[#allocation17 + $0x3c8] sm:$0xff]
    %v4496 = vld [vmem:[#allocation17 + $0x3d0] sm:$0xff]
    %v4497 = vld [vmem:[#allocation17 + $0x3d8] sm:$0xff]
    %v4498 = vld [vmem:[#allocation17 + $0x3e0] sm:$0xff]
    %v4499 = vld [vmem:[#allocation17 + $0x3e8] sm:$0xff]
    %v4500 = vld [vmem:[#allocation17 + $0x3f0] sm:$0xff]
    %v4501 = vld [vmem:[#allocation17 + $0x3f8] sm:$0xff]
    %v4502 = vld [vmem:[#allocation17 + $0x400] sm:$0xff]
    %v4503 = vld [vmem:[#allocation17 + $0x408] sm:$0xff]
    %v4504 = vld [vmem:[#allocation17 + $0x410] sm:$0xff]
    %v4505 = vld [vmem:[#allocation17 + $0x418] sm:$0xff]
    %v4506 = vld [vmem:[#allocation17 + $0x420] sm:$0xff]
    %v4507 = vld [vmem:[#allocation17 + $0x428] sm:$0xff]
    %v4508 = vld [vmem:[#allocation17 + $0x430] sm:$0xff]
    %v4509 = vld [vmem:[#allocation17 + $0x438] sm:$0xff]
    %v4510 = vld [vmem:[#allocation17 + $0x440] sm:$0xff]
    %v4511 = vld [vmem:[#allocation17 + $0x448] sm:$0xff]
    %v4512 = vld [vmem:[#allocation17 + $0x450] sm:$0xff]
    %v4513 = vld [vmem:[#allocation17 + $0x458] sm:$0xff]
    %v4514 = vld [vmem:[#allocation17 + $0x460] sm:$0xff]
    %v4515 = vld [vmem:[#allocation17 + $0x468] sm:$0xff]
    %v4516 = vld [vmem:[#allocation17 + $0x470] sm:$0xff]
    %v4517 = vld [vmem:[#allocation17 + $0x478] sm:$0xff]
    %v4518 = vld [vmem:[#allocation17 + $0x480] sm:$0xff]
    %v4519 = vld [vmem:[#allocation17 + $0x488] sm:$0xff]
    %v4520 = vld [vmem:[#allocation17 + $0x490] sm:$0xff]
    %v4521 = vld [vmem:[#allocation17 + $0x498] sm:$0xff]
    %v4522 = vld [vmem:[#allocation17 + $0x4a0] sm:$0xff]
    %v4523 = vld [vmem:[#allocation17 + $0x4a8] sm:$0xff]
    %v4524 = vld [vmem:[#allocation17 + $0x4b0] sm:$0xff]
    %v4525 = vld [vmem:[#allocation17 + $0x4b8] sm:$0xff]
    %v4526 = vld [vmem:[#allocation17 + $0x4c0] sm:$0xff]
    %v4527 = vld [vmem:[#allocation17 + $0x4c8] sm:$0xff]
    %v4528 = vld [vmem:[#allocation17 + $0x4d0] sm:$0xff]
    %v4529 = vld [vmem:[#allocation17 + $0x4d8] sm:$0xff]
    %v4530 = vld [vmem:[#allocation17 + $0x4e0] sm:$0xff]
    %v4531 = vld [vmem:[#allocation17 + $0x4e8] sm:$0xff]
    %v4532 = vld [vmem:[#allocation17 + $0x4f0] sm:$0xff]
    %v4533 = vld [vmem:[#allocation17 + $0x4f8] sm:$0xff]
    %v4534 = vld [vmem:[#allocation17 + $0x500] sm:$0xff]
    %v4535 = vld [vmem:[#allocation17 + $0x508] sm:$0xff]
    %v4536 = vld [vmem:[#allocation17 + $0x510] sm:$0xff]
    %v4537 = vld [vmem:[#allocation17 + $0x518] sm:$0xff]
    %v4538 = vld [vmem:[#allocation17 + $0x520] sm:$0xff]
    %v4539 = vld [vmem:[#allocation17 + $0x528] sm:$0xff]
    %v4540 = vld [vmem:[#allocation17 + $0x530] sm:$0xff]
    %v4541 = vld [vmem:[#allocation17 + $0x538] sm:$0xff]
    %v4542 = vld [vmem:[#allocation17 + $0x540] sm:$0xff]
    %v4543 = vld [vmem:[#allocation17 + $0x548] sm:$0xff]
    %v4544 = vld [vmem:[#allocation17 + $0x550] sm:$0xff]
    %v4545 = vld [vmem:[#allocation17 + $0x558] sm:$0xff]
    %v4546 = vld [vmem:[#allocation17 + $0x560] sm:$0xff]
    %v4547 = vld [vmem:[#allocation17 + $0x568] sm:$0xff]
    %v4548 = vld [vmem:[#allocation17 + $0x570] sm:$0xff]
    %v4549 = vld [vmem:[#allocation17 + $0x578] sm:$0xff]
    %v4550 = vld [vmem:[#allocation17 + $0x580] sm:$0xff]
    %v4551 = vld [vmem:[#allocation17 + $0x588] sm:$0xff]
    %v4552 = vld [vmem:[#allocation17 + $0x590] sm:$0xff]
    %v4553 = vld [vmem:[#allocation17 + $0x598] sm:$0xff]
    %v4554 = vld [vmem:[#allocation17 + $0x5a0] sm:$0xff]
    %v4555 = vld [vmem:[#allocation17 + $0x5a8] sm:$0xff]
    %v4556 = vld [vmem:[#allocation17 + $0x5b0] sm:$0xff]
    %v4557 = vld [vmem:[#allocation17 + $0x5b8] sm:$0xff]
    %v4558 = vld [vmem:[#allocation17 + $0x5c0] sm:$0xff]
    %v4559 = vld [vmem:[#allocation17 + $0x5c8] sm:$0x33]
    %v4560 = vld [vmem:[#allocation17 + $0x5d0] sm:$0x33]
    %v4561 = vld [vmem:[#allocation17 + $0x5d8] sm:$0x33]
    %v4562 = vld [vmem:[#allocation17 + $0x5e0] sm:$0x33]
    %v4563 = vld [vmem:[#allocation17 + $0x5e8] sm:$0x33]
    %v4754 = vunpack.c.l.b16 %v4374
    %v4755 = vunpack.c.h.b16 %v4374
    %v4756 = vunpack.c.l.b16 %v4375
    %v4757 = vunpack.c.h.b16 %v4375
    %v4758 = vunpack.c.l.b16 %v4376
    %v4759 = vunpack.c.h.b16 %v4376
    %v4760 = vunpack.c.l.b16 %v4377
    %v4761 = vunpack.c.h.b16 %v4377
    %v4762 = vunpack.c.l.b16 %v4378
    %v4763 = vunpack.c.h.b16 %v4378
    %v4764 = vunpack.c.l.b16 %v4379
    %v4765 = vunpack.c.h.b16 %v4379
    %v4766 = vunpack.c.l.b16 %v4380
    %v4767 = vunpack.c.h.b16 %v4380
    %v4768 = vunpack.c.l.b16 %v4381
    %v4769 = vunpack.c.h.b16 %v4381
    %v4770 = vunpack.c.l.b16 %v4382
    %v4771 = vunpack.c.h.b16 %v4382
    %v4772 = vunpack.c.l.b16 %v4383
    %v4773 = vunpack.c.h.b16 %v4383
    %v4774 = vunpack.c.l.b16 %v4384
    %v4775 = vunpack.c.h.b16 %v4384
    %v4776 = vunpack.c.l.b16 %v4385
    %v4777 = vunpack.c.h.b16 %v4385
    %v4778 = vunpack.c.l.b16 %v4386
    %v4779 = vunpack.c.h.b16 %v4386
    %v4780 = vunpack.c.l.b16 %v4387
    %v4781 = vunpack.c.h.b16 %v4387
    %v4782 = vunpack.c.l.b16 %v4388
    %v4783 = vunpack.c.h.b16 %v4388
    %v4784 = vunpack.c.l.b16 %v4389
    %v4785 = vunpack.c.h.b16 %v4389
    %v4786 = vunpack.c.l.b16 %v4390
    %v4787 = vunpack.c.h.b16 %v4390
    %v4788 = vunpack.c.l.b16 %v4391
    %v4789 = vunpack.c.h.b16 %v4391
    %v4790 = vunpack.c.l.b16 %v4392
    %v4791 = vunpack.c.h.b16 %v4392
    %v4792 = vunpack.c.l.b16 %v4393
    %v4793 = vunpack.c.h.b16 %v4393
    %v4794 = vunpack.c.l.b16 %v4394
    %v4795 = vunpack.c.h.b16 %v4394
    %v4796 = vunpack.c.l.b16 %v4395
    %v4797 = vunpack.c.h.b16 %v4395
    %v4798 = vunpack.c.l.b16 %v4396
    %v4799 = vunpack.c.h.b16 %v4396
    %v4800 = vunpack.c.l.b16 %v4397
    %v4801 = vunpack.c.h.b16 %v4397
    %v4802 = vunpack.c.l.b16 %v4398
    %v4803 = vunpack.c.h.b16 %v4398
    %v4804 = vunpack.c.l.b16 %v4399
    %v4805 = vunpack.c.h.b16 %v4399
    %v4806 = vunpack.c.l.b16 %v4400
    %v4807 = vunpack.c.h.b16 %v4400
    %v4808 = vunpack.c.l.b16 %v4401
    %v4809 = vunpack.c.h.b16 %v4401
    %v4810 = vunpack.c.l.b16 %v4402
    %v4811 = vunpack.c.h.b16 %v4402
    %v4812 = vunpack.c.l.b16 %v4403
    %v4813 = vunpack.c.h.b16 %v4403
    %v4814 = vunpack.c.l.b16 %v4404
    %v4815 = vunpack.c.h.b16 %v4404
    %v4816 = vunpack.c.l.b16 %v4405
    %v4817 = vunpack.c.h.b16 %v4405
    %v4818 = vunpack.c.l.b16 %v4406
    %v4819 = vunpack.c.h.b16 %v4406
    %v4820 = vunpack.c.l.b16 %v4407
    %v4821 = vunpack.c.h.b16 %v4407
    %v4822 = vunpack.c.l.b16 %v4408
    %v4823 = vunpack.c.h.b16 %v4408
    %v4824 = vunpack.c.l.b16 %v4409
    %v4825 = vunpack.c.h.b16 %v4409
    %v4826 = vunpack.c.l.b16 %v4410
    %v4827 = vunpack.c.h.b16 %v4410
    %v4828 = vunpack.c.l.b16 %v4411
    %v4829 = vunpack.c.h.b16 %v4411
    %v4830 = vunpack.c.l.b16 %v4412
    %v4831 = vunpack.c.h.b16 %v4412
    %v4832 = vunpack.c.l.b16 %v4413
    %v4833 = vunpack.c.h.b16 %v4413
    %v4834 = vunpack.c.l.b16 %v4414
    %v4835 = vunpack.c.h.b16 %v4414
    %v4836 = vunpack.c.l.b16 %v4415
    %v4837 = vunpack.c.h.b16 %v4415
    %v4838 = vunpack.c.l.b16 %v4416
    %v4839 = vunpack.c.h.b16 %v4416
    %v4840 = vunpack.c.l.b16 %v4417
    %v4841 = vunpack.c.h.b16 %v4417
    %v4842 = vunpack.c.l.b16 %v4418
    %v4843 = vunpack.c.h.b16 %v4418
    %v4844 = vunpack.c.l.b16 %v4419
    %v4845 = vunpack.c.h.b16 %v4419
    %v4846 = vunpack.c.l.b16 %v4420
    %v4847 = vunpack.c.h.b16 %v4420
    %v4848 = vunpack.c.l.b16 %v4421
    %v4849 = vunpack.c.h.b16 %v4421
    %v4850 = vunpack.c.l.b16 %v4422
    %v4851 = vunpack.c.h.b16 %v4422
    %v4852 = vunpack.c.l.b16 %v4423
    %v4853 = vunpack.c.h.b16 %v4423
    %v4854 = vunpack.c.l.b16 %v4424
    %v4855 = vunpack.c.h.b16 %v4424
    %v4856 = vunpack.c.l.b16 %v4425
    %v4857 = vunpack.c.h.b16 %v4425
    %v4858 = vunpack.c.l.b16 %v4426
    %v4859 = vunpack.c.h.b16 %v4426
    %v4860 = vunpack.c.l.b16 %v4427
    %v4861 = vunpack.c.h.b16 %v4427
    %v4862 = vunpack.c.l.b16 %v4428
    %v4863 = vunpack.c.h.b16 %v4428
    %v4864 = vunpack.c.l.b16 %v4429
    %v4865 = vunpack.c.h.b16 %v4429
    %v4866 = vunpack.c.l.b16 %v4430
    %v4867 = vunpack.c.h.b16 %v4430
    %v4868 = vunpack.c.l.b16 %v4431
    %v4869 = vunpack.c.h.b16 %v4431
    %v4870 = vunpack.c.l.b16 %v4432
    %v4871 = vunpack.c.h.b16 %v4432
    %v4872 = vunpack.c.l.b16 %v4433
    %v4873 = vunpack.c.h.b16 %v4433
    %v4874 = vunpack.c.l.b16 %v4434
    %v4875 = vunpack.c.h.b16 %v4434
    %v4876 = vunpack.c.l.b16 %v4435
    %v4877 = vunpack.c.h.b16 %v4435
    %v4878 = vunpack.c.l.b16 %v4436
    %v4879 = vunpack.c.h.b16 %v4436
    %v4880 = vunpack.c.l.b16 %v4437
    %v4881 = vunpack.c.h.b16 %v4437
    %v4882 = vunpack.c.l.b16 %v4438
    %v4883 = vunpack.c.h.b16 %v4438
    %v4884 = vunpack.c.l.b16 %v4439
    %v4885 = vunpack.c.h.b16 %v4439
    %v4886 = vunpack.c.l.b16 %v4440
    %v4887 = vunpack.c.h.b16 %v4440
    %v4888 = vunpack.c.l.b16 %v4441
    %v4889 = vunpack.c.h.b16 %v4441
    %v4890 = vunpack.c.l.b16 %v4442
    %v4891 = vunpack.c.h.b16 %v4442
    %v4892 = vunpack.c.l.b16 %v4443
    %v4893 = vunpack.c.h.b16 %v4443
    %v4894 = vunpack.c.l.b16 %v4444
    %v4895 = vunpack.c.h.b16 %v4444
    %v4896 = vunpack.c.l.b16 %v4445
    %v4897 = vunpack.c.h.b16 %v4445
    %v4898 = vunpack.c.l.b16 %v4446
    %v4899 = vunpack.c.h.b16 %v4446
    %v4900 = vunpack.c.l.b16 %v4447
    %v4901 = vunpack.c.h.b16 %v4447
    %v4902 = vunpack.c.l.b16 %v4448
    %v4903 = vunpack.c.h.b16 %v4448
    %v4904 = vunpack.c.l.b16 %v4449
    %v4905 = vunpack.c.h.b16 %v4449
    %v4906 = vunpack.c.l.b16 %v4450
    %v4907 = vunpack.c.h.b16 %v4450
    %v4908 = vunpack.c.l.b16 %v4451
    %v4909 = vunpack.c.h.b16 %v4451
    %v4910 = vunpack.c.l.b16 %v4452
    %v4911 = vunpack.c.h.b16 %v4452
    %v4912 = vunpack.c.l.b16 %v4453
    %v4913 = vunpack.c.h.b16 %v4453
    %v4914 = vunpack.c.l.b16 %v4454
    %v4915 = vunpack.c.h.b16 %v4454
    %v4916 = vunpack.c.l.b16 %v4455
    %v4917 = vunpack.c.h.b16 %v4455
    %v4918 = vunpack.c.l.b16 %v4456
    %v4919 = vunpack.c.h.b16 %v4456
    %v4920 = vunpack.c.l.b16 %v4457
    %v4921 = vunpack.c.h.b16 %v4457
    %v4922 = vunpack.c.l.b16 %v4458
    %v4923 = vunpack.c.h.b16 %v4458
    %v4924 = vunpack.c.l.b16 %v4459
    %v4925 = vunpack.c.h.b16 %v4459
    %v4926 = vunpack.c.l.b16 %v4460
    %v4927 = vunpack.c.h.b16 %v4460
    %v4928 = vunpack.c.l.b16 %v4461
    %v4929 = vunpack.c.h.b16 %v4461
    %v4930 = vunpack.c.l.b16 %v4462
    %v4931 = vunpack.c.h.b16 %v4462
    %v4932 = vunpack.c.l.b16 %v4463
    %v4933 = vunpack.c.h.b16 %v4463
    %v4934 = vunpack.c.l.b16 %v4464
    %v4935 = vunpack.c.h.b16 %v4464
    %v4936 = vunpack.c.l.b16 %v4465
    %v4937 = vunpack.c.h.b16 %v4465
    %v4938 = vunpack.c.l.b16 %v4466
    %v4939 = vunpack.c.h.b16 %v4466
    %v4940 = vunpack.c.l.b16 %v4467
    %v4941 = vunpack.c.h.b16 %v4467
    %v4942 = vunpack.c.l.b16 %v4468
    %v4943 = vunpack.c.h.b16 %v4468
    %v4944 = vunpack.c.l.b16 %v4469
    %v4945 = vunpack.c.h.b16 %v4469
    %v4946 = vunpack.c.l.b16 %v4470
    %v4947 = vunpack.c.h.b16 %v4470
    %v4948 = vunpack.c.l.b16 %v4471
    %v4949 = vunpack.c.h.b16 %v4471
    %v4950 = vunpack.c.l.b16 %v4472
    %v4951 = vunpack.c.h.b16 %v4472
    %v4952 = vunpack.c.l.b16 %v4473
    %v4953 = vunpack.c.h.b16 %v4473
    %v4954 = vunpack.c.l.b16 %v4474
    %v4955 = vunpack.c.h.b16 %v4474
    %v4956 = vunpack.c.l.b16 %v4475
    %v4957 = vunpack.c.h.b16 %v4475
    %v4958 = vunpack.c.l.b16 %v4476
    %v4959 = vunpack.c.h.b16 %v4476
    %v4960 = vunpack.c.l.b16 %v4477
    %v4961 = vunpack.c.h.b16 %v4477
    %v4962 = vunpack.c.l.b16 %v4478
    %v4963 = vunpack.c.h.b16 %v4478
    %v4964 = vunpack.c.l.b16 %v4479
    %v4965 = vunpack.c.h.b16 %v4479
    %v4966 = vunpack.c.l.b16 %v4480
    %v4967 = vunpack.c.h.b16 %v4480
    %v4968 = vunpack.c.l.b16 %v4481
    %v4969 = vunpack.c.h.b16 %v4481
    %v4970 = vunpack.c.l.b16 %v4482
    %v4971 = vunpack.c.h.b16 %v4482
    %v4972 = vunpack.c.l.b16 %v4483
    %v4973 = vunpack.c.h.b16 %v4483
    %v4974 = vunpack.c.l.b16 %v4484
    %v4975 = vunpack.c.h.b16 %v4484
    %v4976 = vunpack.c.l.b16 %v4485
    %v4977 = vunpack.c.h.b16 %v4485
    %v4978 = vunpack.c.l.b16 %v4486
    %v4979 = vunpack.c.h.b16 %v4486
    %v4980 = vunpack.c.l.b16 %v4487
    %v4981 = vunpack.c.h.b16 %v4487
    %v4982 = vunpack.c.l.b16 %v4488
    %v4983 = vunpack.c.h.b16 %v4488
    %v4984 = vunpack.c.l.b16 %v4489
    %v4985 = vunpack.c.h.b16 %v4489
    %v4986 = vunpack.c.l.b16 %v4490
    %v4987 = vunpack.c.h.b16 %v4490
    %v4988 = vunpack.c.l.b16 %v4491
    %v4989 = vunpack.c.h.b16 %v4491
    %v4990 = vunpack.c.l.b16 %v4492
    %v4991 = vunpack.c.h.b16 %v4492
    %v4992 = vunpack.c.l.b16 %v4493
    %v4993 = vunpack.c.h.b16 %v4493
    %v4994 = vunpack.c.l.b16 %v4494
    %v4995 = vunpack.c.h.b16 %v4494
    %v4996 = vunpack.c.l.b16 %v4495
    %v4997 = vunpack.c.h.b16 %v4495
    %v4998 = vunpack.c.l.b16 %v4496
    %v4999 = vunpack.c.h.b16 %v4496
    %v5000 = vunpack.c.l.b16 %v4497
    %v5001 = vunpack.c.h.b16 %v4497
    %v5002 = vunpack.c.l.b16 %v4498
    %v5003 = vunpack.c.h.b16 %v4498
    %v5004 = vunpack.c.l.b16 %v4499
    %v5005 = vunpack.c.h.b16 %v4499
    %v5006 = vunpack.c.l.b16 %v4500
    %v5007 = vunpack.c.h.b16 %v4500
    %v5008 = vunpack.c.l.b16 %v4501
    %v5009 = vunpack.c.h.b16 %v4501
    %v5010 = vunpack.c.l.b16 %v4502
    %v5011 = vunpack.c.h.b16 %v4502
    %v5012 = vunpack.c.l.b16 %v4503
    %v5013 = vunpack.c.h.b16 %v4503
    %v5014 = vunpack.c.l.b16 %v4504
    %v5015 = vunpack.c.h.b16 %v4504
    %v5016 = vunpack.c.l.b16 %v4505
    %v5017 = vunpack.c.h.b16 %v4505
    %v5018 = vunpack.c.l.b16 %v4506
    %v5019 = vunpack.c.h.b16 %v4506
    %v5020 = vunpack.c.l.b16 %v4507
    %v5021 = vunpack.c.h.b16 %v4507
    %v5022 = vunpack.c.l.b16 %v4508
    %v5023 = vunpack.c.h.b16 %v4508
    %v5024 = vunpack.c.l.b16 %v4509
    %v5025 = vunpack.c.h.b16 %v4509
    %v5026 = vunpack.c.l.b16 %v4510
    %v5027 = vunpack.c.h.b16 %v4510
    %v5028 = vunpack.c.l.b16 %v4511
    %v5029 = vunpack.c.h.b16 %v4511
    %v5030 = vunpack.c.l.b16 %v4512
    %v5031 = vunpack.c.h.b16 %v4512
    %v5032 = vunpack.c.l.b16 %v4513
    %v5033 = vunpack.c.h.b16 %v4513
    %v5034 = vunpack.c.l.b16 %v4514
    %v5035 = vunpack.c.h.b16 %v4514
    %v5036 = vunpack.c.l.b16 %v4515
    %v5037 = vunpack.c.h.b16 %v4515
    %v5038 = vunpack.c.l.b16 %v4516
    %v5039 = vunpack.c.h.b16 %v4516
    %v5040 = vunpack.c.l.b16 %v4517
    %v5041 = vunpack.c.h.b16 %v4517
    %v5042 = vunpack.c.l.b16 %v4518
    %v5043 = vunpack.c.h.b16 %v4518
    %v5044 = vunpack.c.l.b16 %v4519
    %v5045 = vunpack.c.h.b16 %v4519
    %v5046 = vunpack.c.l.b16 %v4520
    %v5047 = vunpack.c.h.b16 %v4520
    %v5048 = vunpack.c.l.b16 %v4521
    %v5049 = vunpack.c.h.b16 %v4521
    %v5050 = vunpack.c.l.b16 %v4522
    %v5051 = vunpack.c.h.b16 %v4522
    %v5052 = vunpack.c.l.b16 %v4523
    %v5053 = vunpack.c.h.b16 %v4523
    %v5054 = vunpack.c.l.b16 %v4524
    %v5055 = vunpack.c.h.b16 %v4524
    %v5056 = vunpack.c.l.b16 %v4525
    %v5057 = vunpack.c.h.b16 %v4525
    %v5058 = vunpack.c.l.b16 %v4526
    %v5059 = vunpack.c.h.b16 %v4526
    %v5060 = vunpack.c.l.b16 %v4527
    %v5061 = vunpack.c.h.b16 %v4527
    %v5062 = vunpack.c.l.b16 %v4528
    %v5063 = vunpack.c.h.b16 %v4528
    %v5064 = vunpack.c.l.b16 %v4529
    %v5065 = vunpack.c.h.b16 %v4529
    %v5066 = vunpack.c.l.b16 %v4530
    %v5067 = vunpack.c.h.b16 %v4530
    %v5068 = vunpack.c.l.b16 %v4531
    %v5069 = vunpack.c.h.b16 %v4531
    %v5070 = vunpack.c.l.b16 %v4532
    %v5071 = vunpack.c.h.b16 %v4532
    %v5072 = vunpack.c.l.b16 %v4533
    %v5073 = vunpack.c.h.b16 %v4533
    %v5074 = vunpack.c.l.b16 %v4534
    %v5075 = vunpack.c.h.b16 %v4534
    %v5076 = vunpack.c.l.b16 %v4535
    %v5077 = vunpack.c.h.b16 %v4535
    %v5078 = vunpack.c.l.b16 %v4536
    %v5079 = vunpack.c.h.b16 %v4536
    %v5080 = vunpack.c.l.b16 %v4537
    %v5081 = vunpack.c.h.b16 %v4537
    %v5082 = vunpack.c.l.b16 %v4538
    %v5083 = vunpack.c.h.b16 %v4538
    %v5084 = vunpack.c.l.b16 %v4539
    %v5085 = vunpack.c.h.b16 %v4539
    %v5086 = vunpack.c.l.b16 %v4540
    %v5087 = vunpack.c.h.b16 %v4540
    %v5088 = vunpack.c.l.b16 %v4541
    %v5089 = vunpack.c.h.b16 %v4541
    %v5090 = vunpack.c.l.b16 %v4542
    %v5091 = vunpack.c.h.b16 %v4542
    %v5092 = vunpack.c.l.b16 %v4543
    %v5093 = vunpack.c.h.b16 %v4543
    %v5094 = vunpack.c.l.b16 %v4544
    %v5095 = vunpack.c.h.b16 %v4544
    %v5096 = vunpack.c.l.b16 %v4545
    %v5097 = vunpack.c.h.b16 %v4545
    %v5098 = vunpack.c.l.b16 %v4546
    %v5099 = vunpack.c.h.b16 %v4546
    %v5100 = vunpack.c.l.b16 %v4547
    %v5101 = vunpack.c.h.b16 %v4547
    %v5102 = vunpack.c.l.b16 %v4548
    %v5103 = vunpack.c.h.b16 %v4548
    %v5104 = vunpack.c.l.b16 %v4549
    %v5105 = vunpack.c.h.b16 %v4549
    %v5106 = vunpack.c.l.b16 %v4550
    %v5107 = vunpack.c.h.b16 %v4550
    %v5108 = vunpack.c.l.b16 %v4551
    %v5109 = vunpack.c.h.b16 %v4551
    %v5110 = vunpack.c.l.b16 %v4552
    %v5111 = vunpack.c.h.b16 %v4552
    %v5112 = vunpack.c.l.b16 %v4553
    %v5113 = vunpack.c.h.b16 %v4553
    %v5114 = vunpack.c.l.b16 %v4554
    %v5115 = vunpack.c.h.b16 %v4554
    %v5116 = vunpack.c.l.b16 %v4555
    %v5117 = vunpack.c.h.b16 %v4555
    %v5118 = vunpack.c.l.b16 %v4556
    %v5119 = vunpack.c.h.b16 %v4556
    %v5120 = vunpack.c.l.b16 %v4557
    %v5121 = vunpack.c.h.b16 %v4557
    %v5122 = vunpack.c.l.b16 %v4558
    %v5123 = vunpack.c.h.b16 %v4558
    %v5124 = vunpack.c.l.b16 %v4559
    %v5125 = vunpack.c.h.b16 %v4559
    %v5126 = vunpack.c.l.b16 %v4560
    %v5127 = vunpack.c.h.b16 %v4560
    %v5128 = vunpack.c.l.b16 %v4561
    %v5129 = vunpack.c.h.b16 %v4561
    %v5130 = vunpack.c.l.b16 %v4562
    %v5131 = vunpack.c.h.b16 %v4562
    %v5132 = vunpack.c.l.b16 %v4563
    %v5133 = vunpack.c.h.b16 %v4563
    %v5134 = vpack.c.b16 %v4764, %v4754
    %v5135 = vpack.c.b16 %v4765, %v4755
    %v5136 = vpack.c.b16 %v4766, %v4756
    %v5137 = vpack.c.b16 %v4767, %v4757
    %v5138 = vpack.c.b16 %v4768, %v4758
    %v5139 = vpack.c.b16 %v4769, %v4759
    %v5140 = vpack.c.b16 %v4770, %v4760
    %v5141 = vpack.c.b16 %v4771, %v4761
    %v5142 = vpack.c.b16 %v4772, %v4762
    %v5143 = vpack.c.b16 %v4773, %v4763
    %v5144 = vpack.c.b16 %v4784, %v4774
    %v5145 = vpack.c.b16 %v4785, %v4775
    %v5146 = vpack.c.b16 %v4786, %v4776
    %v5147 = vpack.c.b16 %v4787, %v4777
    %v5148 = vpack.c.b16 %v4788, %v4778
    %v5149 = vpack.c.b16 %v4789, %v4779
    %v5150 = vpack.c.b16 %v4790, %v4780
    %v5151 = vpack.c.b16 %v4791, %v4781
    %v5152 = vpack.c.b16 %v4792, %v4782
    %v5153 = vpack.c.b16 %v4793, %v4783
    %v5154 = vpack.c.b16 %v4804, %v4794
    %v5155 = vpack.c.b16 %v4805, %v4795
    %v5156 = vpack.c.b16 %v4806, %v4796
    %v5157 = vpack.c.b16 %v4807, %v4797
    %v5158 = vpack.c.b16 %v4808, %v4798
    %v5159 = vpack.c.b16 %v4809, %v4799
    %v5160 = vpack.c.b16 %v4810, %v4800
    %v5161 = vpack.c.b16 %v4811, %v4801
    %v5162 = vpack.c.b16 %v4812, %v4802
    %v5163 = vpack.c.b16 %v4813, %v4803
    %v5164 = vpack.c.b16 %v4824, %v4814
    %v5165 = vpack.c.b16 %v4825, %v4815
    %v5166 = vpack.c.b16 %v4826, %v4816
    %v5167 = vpack.c.b16 %v4827, %v4817
    %v5168 = vpack.c.b16 %v4828, %v4818
    %v5169 = vpack.c.b16 %v4829, %v4819
    %v5170 = vpack.c.b16 %v4830, %v4820
    %v5171 = vpack.c.b16 %v4831, %v4821
    %v5172 = vpack.c.b16 %v4832, %v4822
    %v5173 = vpack.c.b16 %v4833, %v4823
    %v5174 = vpack.c.b16 %v4844, %v4834
    %v5175 = vpack.c.b16 %v4845, %v4835
    %v5176 = vpack.c.b16 %v4846, %v4836
    %v5177 = vpack.c.b16 %v4847, %v4837
    %v5178 = vpack.c.b16 %v4848, %v4838
    %v5179 = vpack.c.b16 %v4849, %v4839
    %v5180 = vpack.c.b16 %v4850, %v4840
    %v5181 = vpack.c.b16 %v4851, %v4841
    %v5182 = vpack.c.b16 %v4852, %v4842
    %v5183 = vpack.c.b16 %v4853, %v4843
    %v5184 = vpack.c.b16 %v4864, %v4854
    %v5185 = vpack.c.b16 %v4865, %v4855
    %v5186 = vpack.c.b16 %v4866, %v4856
    %v5187 = vpack.c.b16 %v4867, %v4857
    %v5188 = vpack.c.b16 %v4868, %v4858
    %v5189 = vpack.c.b16 %v4869, %v4859
    %v5190 = vpack.c.b16 %v4870, %v4860
    %v5191 = vpack.c.b16 %v4871, %v4861
    %v5192 = vpack.c.b16 %v4872, %v4862
    %v5193 = vpack.c.b16 %v4873, %v4863
    %v5194 = vpack.c.b16 %v4884, %v4874
    %v5195 = vpack.c.b16 %v4885, %v4875
    %v5196 = vpack.c.b16 %v4886, %v4876
    %v5197 = vpack.c.b16 %v4887, %v4877
    %v5198 = vpack.c.b16 %v4888, %v4878
    %v5199 = vpack.c.b16 %v4889, %v4879
    %v5200 = vpack.c.b16 %v4890, %v4880
    %v5201 = vpack.c.b16 %v4891, %v4881
    %v5202 = vpack.c.b16 %v4892, %v4882
    %v5203 = vpack.c.b16 %v4893, %v4883
    %v5204 = vpack.c.b16 %v4904, %v4894
    %v5205 = vpack.c.b16 %v4905, %v4895
    %v5206 = vpack.c.b16 %v4906, %v4896
    %v5207 = vpack.c.b16 %v4907, %v4897
    %v5208 = vpack.c.b16 %v4908, %v4898
    %v5209 = vpack.c.b16 %v4909, %v4899
    %v5210 = vpack.c.b16 %v4910, %v4900
    %v5211 = vpack.c.b16 %v4911, %v4901
    %v5212 = vpack.c.b16 %v4912, %v4902
    %v5213 = vpack.c.b16 %v4913, %v4903
    %v5214 = vpack.c.b16 %v4924, %v4914
    %v5215 = vpack.c.b16 %v4925, %v4915
    %v5216 = vpack.c.b16 %v4926, %v4916
    %v5217 = vpack.c.b16 %v4927, %v4917
    %v5218 = vpack.c.b16 %v4928, %v4918
    %v5219 = vpack.c.b16 %v4929, %v4919
    %v5220 = vpack.c.b16 %v4930, %v4920
    %v5221 = vpack.c.b16 %v4931, %v4921
    %v5222 = vpack.c.b16 %v4932, %v4922
    %v5223 = vpack.c.b16 %v4933, %v4923
    %v5224 = vpack.c.b16 %v4944, %v4934
    %v5225 = vpack.c.b16 %v4945, %v4935
    %v5226 = vpack.c.b16 %v4946, %v4936
    %v5227 = vpack.c.b16 %v4947, %v4937
    %v5228 = vpack.c.b16 %v4948, %v4938
    %v5229 = vpack.c.b16 %v4949, %v4939
    %v5230 = vpack.c.b16 %v4950, %v4940
    %v5231 = vpack.c.b16 %v4951, %v4941
    %v5232 = vpack.c.b16 %v4952, %v4942
    %v5233 = vpack.c.b16 %v4953, %v4943
    %v5234 = vpack.c.b16 %v4964, %v4954
    %v5235 = vpack.c.b16 %v4965, %v4955
    %v5236 = vpack.c.b16 %v4966, %v4956
    %v5237 = vpack.c.b16 %v4967, %v4957
    %v5238 = vpack.c.b16 %v4968, %v4958
    %v5239 = vpack.c.b16 %v4969, %v4959
    %v5240 = vpack.c.b16 %v4970, %v4960
    %v5241 = vpack.c.b16 %v4971, %v4961
    %v5242 = vpack.c.b16 %v4972, %v4962
    %v5243 = vpack.c.b16 %v4973, %v4963
    %v5244 = vpack.c.b16 %v4984, %v4974
    %v5245 = vpack.c.b16 %v4985, %v4975
    %v5246 = vpack.c.b16 %v4986, %v4976
    %v5247 = vpack.c.b16 %v4987, %v4977
    %v5248 = vpack.c.b16 %v4988, %v4978
    %v5249 = vpack.c.b16 %v4989, %v4979
    %v5250 = vpack.c.b16 %v4990, %v4980
    %v5251 = vpack.c.b16 %v4991, %v4981
    %v5252 = vpack.c.b16 %v4992, %v4982
    %v5253 = vpack.c.b16 %v4993, %v4983
    %v5254 = vpack.c.b16 %v5004, %v4994
    %v5255 = vpack.c.b16 %v5005, %v4995
    %v5256 = vpack.c.b16 %v5006, %v4996
    %v5257 = vpack.c.b16 %v5007, %v4997
    %v5258 = vpack.c.b16 %v5008, %v4998
    %v5259 = vpack.c.b16 %v5009, %v4999
    %v5260 = vpack.c.b16 %v5010, %v5000
    %v5261 = vpack.c.b16 %v5011, %v5001
    %v5262 = vpack.c.b16 %v5012, %v5002
    %v5263 = vpack.c.b16 %v5013, %v5003
    %v5264 = vpack.c.b16 %v5024, %v5014
    %v5265 = vpack.c.b16 %v5025, %v5015
    %v5266 = vpack.c.b16 %v5026, %v5016
    %v5267 = vpack.c.b16 %v5027, %v5017
    %v5268 = vpack.c.b16 %v5028, %v5018
    %v5269 = vpack.c.b16 %v5029, %v5019
    %v5270 = vpack.c.b16 %v5030, %v5020
    %v5271 = vpack.c.b16 %v5031, %v5021
    %v5272 = vpack.c.b16 %v5032, %v5022
    %v5273 = vpack.c.b16 %v5033, %v5023
    %v5274 = vpack.c.b16 %v5044, %v5034
    %v5275 = vpack.c.b16 %v5045, %v5035
    %v5276 = vpack.c.b16 %v5046, %v5036
    %v5277 = vpack.c.b16 %v5047, %v5037
    %v5278 = vpack.c.b16 %v5048, %v5038
    %v5279 = vpack.c.b16 %v5049, %v5039
    %v5280 = vpack.c.b16 %v5050, %v5040
    %v5281 = vpack.c.b16 %v5051, %v5041
    %v5282 = vpack.c.b16 %v5052, %v5042
    %v5283 = vpack.c.b16 %v5053, %v5043
    %v5284 = vpack.c.b16 %v5064, %v5054
    %v5285 = vpack.c.b16 %v5065, %v5055
    %v5286 = vpack.c.b16 %v5066, %v5056
    %v5287 = vpack.c.b16 %v5067, %v5057
    %v5288 = vpack.c.b16 %v5068, %v5058
    %v5289 = vpack.c.b16 %v5069, %v5059
    %v5290 = vpack.c.b16 %v5070, %v5060
    %v5291 = vpack.c.b16 %v5071, %v5061
    %v5292 = vpack.c.b16 %v5072, %v5062
    %v5293 = vpack.c.b16 %v5073, %v5063
    %v5294 = vpack.c.b16 %v5084, %v5074
    %v5295 = vpack.c.b16 %v5085, %v5075
    %v5296 = vpack.c.b16 %v5086, %v5076
    %v5297 = vpack.c.b16 %v5087, %v5077
    %v5298 = vpack.c.b16 %v5088, %v5078
    %v5299 = vpack.c.b16 %v5089, %v5079
    %v5300 = vpack.c.b16 %v5090, %v5080
    %v5301 = vpack.c.b16 %v5091, %v5081
    %v5302 = vpack.c.b16 %v5092, %v5082
    %v5303 = vpack.c.b16 %v5093, %v5083
    %v5304 = vpack.c.b16 %v5104, %v5094
    %v5305 = vpack.c.b16 %v5105, %v5095
    %v5306 = vpack.c.b16 %v5106, %v5096
    %v5307 = vpack.c.b16 %v5107, %v5097
    %v5308 = vpack.c.b16 %v5108, %v5098
    %v5309 = vpack.c.b16 %v5109, %v5099
    %v5310 = vpack.c.b16 %v5110, %v5100
    %v5311 = vpack.c.b16 %v5111, %v5101
    %v5312 = vpack.c.b16 %v5112, %v5102
    %v5313 = vpack.c.b16 %v5113, %v5103
    %v5314 = vpack.c.b16 %v5124, %v5114
    %v5315 = vpack.c.b16 %v5125, %v5115
    %v5316 = vpack.c.b16 %v5126, %v5116
    %v5317 = vpack.c.b16 %v5127, %v5117
    %v5318 = vpack.c.b16 %v5128, %v5118
    %v5319 = vpack.c.b16 %v5129, %v5119
    %v5320 = vpack.c.b16 %v5130, %v5120
    %v5321 = vpack.c.b16 %v5131, %v5121
    %v5322 = vpack.c.b16 %v5132, %v5122
    %v5323 = vpack.c.b16 %v5133, %v5123
    %v5505 = vsel %vm634, %v4373, 0
    %v5508 = vsel %vm638, %v5314, 0
    %v5511 = vsel %vm638, %v5315, 0
    %v5514 = vsel %vm638, %v5316, 0
    %v5517 = vsel %vm638, %v5317, 0
    %v5520 = vsel %vm638, %v5318, 0
    %v5523 = vsel %vm638, %v5319, 0
    %v5526 = vsel %vm638, %v5320, 0
    %v5529 = vsel %vm638, %v5321, 0
    %v5532 = vsel %vm638, %v5322, 0
    %v5535 = vsel %vm638, %v5323, 0
    %5537 = vmatprep.subr.bf16.mxu0 %v5135
    %5538 = vmatpush1.bf16.msra.mxu0 %v5134
    %5539 = vmatprep.subr.bf16.mxu0 %v5145
    %5540 = vmatpush1.bf16.msra.mxu0 %v5144
    %5541 = vmatprep.subr.bf16.mxu0 %v5155
    %5542 = vmatpush1.bf16.msra.mxu0 %v5154
    %5543 = vmatprep.subr.bf16.mxu0 %v5165
    %5544 = vmatpush1.bf16.msra.mxu0 %v5164
    %5545 = vmatprep.subr.bf16.mxu0 %v5175
    %5546 = vmatpush1.bf16.msra.mxu0 %v5174
    %5547 = vmatprep.subr.bf16.mxu0 %v5185
    %5548 = vmatpush1.bf16.msra.mxu0 %v5184
    %5549 = vmatprep.subr.bf16.mxu0 %v5195
    %5550 = vmatpush1.bf16.msra.mxu0 %v5194
    %5551 = vmatprep.subr.bf16.mxu0 %v5205
    %5552 = vmatpush1.bf16.msra.mxu0 %v5204
    %5553 = vmatprep.subr.bf16.mxu0 %v5215
    %5554 = vmatpush1.bf16.msra.mxu0 %v5214
    %5555 = vmatprep.subr.bf16.mxu0 %v5225
    %5556 = vmatpush1.bf16.msra.mxu0 %v5224
    %5557 = vmatprep.subr.bf16.mxu0 %v5235
    %5558 = vmatpush1.bf16.msra.mxu0 %v5234
    %5559 = vmatprep.subr.bf16.mxu0 %v5245
    %5560 = vmatpush1.bf16.msra.mxu0 %v5244
    %5561 = vmatprep.subr.bf16.mxu0 %v5255
    %5562 = vmatpush1.bf16.msra.mxu0 %v5254
    %5563 = vmatprep.subr.bf16.mxu0 %v5265
    %5564 = vmatpush1.bf16.msra.mxu0 %v5264
    %5565 = vmatprep.subr.bf16.mxu0 %v5275
    %5566 = vmatpush1.bf16.msra.mxu0 %v5274
    %5567 = vmatprep.subr.bf16.mxu0 %v5285
    %5568 = vmatpush1.bf16.msra.mxu0 %v5284
    %5569 = vmatprep.mubr.bf16.mxu0 %v4372
    %5570 = vmatmul.mubr.bf16.gmra.mrb[0].mxu0 %v4371
    %v5571 = vpop.f32.mrb[0].mxu0
    %v5572 = vadd.f32 0.0, %v5571
    %v5573 = vpop.f32.mrb[0].mxu0
    %v5574 = vadd.f32 0.0, %v5573
    %v5575 = vpop.f32.mrb[0].mxu0
    %v5576 = vadd.f32 0.0, %v5575
    %v5577 = vpop.f32.mrb[0].mxu0
    %v5578 = vadd.f32 0.0, %v5577
    %5579 = vdwg.mxu0
    %5580 = vmatprep.subr.bf16.mxu0 %v5295
    %5581 = vmatpush1.bf16.msra.mxu0 %v5294
    %5582 = vmatprep.subr.bf16.mxu0 %v5305
    %5583 = vmatpush1.bf16.msra.mxu0 %v5304
    %5584 = vmatprep.subr.bf16.mxu0 %v5511
    %5585 = vmatpush1.bf16.msra.mxu0 %v5508
    %5586 = vmatprep.subr.bf16.mxu0 0
    %5587 = vmatpush1.bf16.msra.mxu0 0
    %5588 = vmatprep.subr.bf16.mxu0 0
    %5589 = vmatpush1.bf16.msra.mxu0 0
    %5590 = vmatprep.subr.bf16.mxu0 0
    %5591 = vmatpush1.bf16.msra.mxu0 0
    %5592 = vmatprep.subr.bf16.mxu0 0
    %5593 = vmatpush1.bf16.msra.mxu0 0
    %5594 = vmatprep.subr.bf16.mxu0 0
    %5595 = vmatpush1.bf16.msra.mxu0 0
    %5596 = vmatprep.subr.bf16.mxu0 0
    %5597 = vmatpush1.bf16.msra.mxu0 0
    %5598 = vmatprep.subr.bf16.mxu0 0
    %5599 = vmatpush1.bf16.msra.mxu0 0
    %5600 = vmatprep.subr.bf16.mxu0 0
    %5601 = vmatpush1.bf16.msra.mxu0 0
    %5602 = vmatprep.subr.bf16.mxu0 0
    %5603 = vmatpush1.bf16.msra.mxu0 0
    %5604 = vmatprep.subr.bf16.mxu0 0
    %5605 = vmatpush1.bf16.msra.mxu0 0
    %5606 = vmatprep.subr.bf16.mxu0 0
    %5607 = vmatpush1.bf16.msra.mxu0 0
    %5608 = vmatprep.subr.bf16.mxu0 0
    %5609 = vmatpush1.bf16.msra.mxu0 0
    %5610 = vmatprep.subr.bf16.mxu0 0
    %5611 = vmatpush1.bf16.msra.mxu0 0
    %5612 = vmatprep.mubr.bf16.mxu0 0
    %5613 = vmatmul.mubr.bf16.gmra.mrb[0].mxu0 %v5505
    %v5614 = vpop.f32.mrb[0].mxu0
    %v5615 = vadd.f32 %v5572, %v5614
    %v5616 = vpop.f32.mrb[0].mxu0
    %v5617 = vadd.f32 %v5574, %v5616
    %v5618 = vpop.f32.mrb[0].mxu0
    %v5619 = vadd.f32 %v5576, %v5618
    %v5620 = vpop.f32.mrb[0].mxu0
    %v5621 = vadd.f32 %v5578, %v5620
    %5622 = vdwg.mxu0
    %5623 = vmatprep.subr.bf16.mxu0 %v5137
    %5624 = vmatpush1.bf16.msra.mxu0 %v5136
    %5625 = vmatprep.subr.bf16.mxu0 %v5147
    %5626 = vmatpush1.bf16.msra.mxu0 %v5146
    %5627 = vmatprep.subr.bf16.mxu0 %v5157
    %5628 = vmatpush1.bf16.msra.mxu0 %v5156
    %5629 = vmatprep.subr.bf16.mxu0 %v5167
    %5630 = vmatpush1.bf16.msra.mxu0 %v5166
    %5631 = vmatprep.subr.bf16.mxu0 %v5177
    %5632 = vmatpush1.bf16.msra.mxu0 %v5176
    %5633 = vmatprep.subr.bf16.mxu0 %v5187
    %5634 = vmatpush1.bf16.msra.mxu0 %v5186
    %5635 = vmatprep.subr.bf16.mxu0 %v5197
    %5636 = vmatpush1.bf16.msra.mxu0 %v5196
    %5637 = vmatprep.subr.bf16.mxu0 %v5207
    %5638 = vmatpush1.bf16.msra.mxu0 %v5206
    %5639 = vmatprep.subr.bf16.mxu0 %v5217
    %5640 = vmatpush1.bf16.msra.mxu0 %v5216
    %5641 = vmatprep.subr.bf16.mxu0 %v5227
    %5642 = vmatpush1.bf16.msra.mxu0 %v5226
    %5643 = vmatprep.subr.bf16.mxu0 %v5237
    %5644 = vmatpush1.bf16.msra.mxu0 %v5236
    %5645 = vmatprep.subr.bf16.mxu0 %v5247
    %5646 = vmatpush1.bf16.msra.mxu0 %v5246
    %5647 = vmatprep.subr.bf16.mxu0 %v5257
    %5648 = vmatpush1.bf16.msra.mxu0 %v5256
    %5649 = vmatprep.subr.bf16.mxu0 %v5267
    %5650 = vmatpush1.bf16.msra.mxu0 %v5266
    %5651 = vmatprep.subr.bf16.mxu0 %v5277
    %5652 = vmatpush1.bf16.msra.mxu0 %v5276
    %5653 = vmatprep.subr.bf16.mxu0 %v5287
    %5654 = vmatpush1.bf16.msra.mxu0 %v5286
    %5655 = vmatprep.mubr.bf16.mxu0 %v4372
    %5656 = vmatmul.mubr.bf16.gmra.mrb[0].mxu0 %v4371
    %v5657 = vpop.f32.mrb[0].mxu0
    %v5658 = vadd.f32 0.0, %v5657
    %v5659 = vpop.f32.mrb[0].mxu0
    %v5660 = vadd.f32 0.0, %v5659
    %v5661 = vpop.f32.mrb[0].mxu0
    %v5662 = vadd.f32 0.0, %v5661
    %v5663 = vpop.f32.mrb[0].mxu0
    %v5664 = vadd.f32 0.0, %v5663
    %5665 = vdwg.mxu0
    %5666 = vmatprep.subr.bf16.mxu0 %v5297
    %5667 = vmatpush1.bf16.msra.mxu0 %v5296
    %5668 = vmatprep.subr.bf16.mxu0 %v5307
    %5669 = vmatpush1.bf16.msra.mxu0 %v5306
    %5670 = vmatprep.subr.bf16.mxu0 %v5517
    %5671 = vmatpush1.bf16.msra.mxu0 %v5514
    %5672 = vmatprep.subr.bf16.mxu0 0
    %5673 = vmatpush1.bf16.msra.mxu0 0
    %5674 = vmatprep.subr.bf16.mxu0 0
    %5675 = vmatpush1.bf16.msra.mxu0 0
    %5676 = vmatprep.subr.bf16.mxu0 0
    %5677 = vmatpush1.bf16.msra.mxu0 0
    %5678 = vmatprep.subr.bf16.mxu0 0
    %5679 = vmatpush1.bf16.msra.mxu0 0
    %5680 = vmatprep.subr.bf16.mxu0 0
    %5681 = vmatpush1.bf16.msra.mxu0 0
    %5682 = vmatprep.subr.bf16.mxu0 0
    %5683 = vmatpush1.bf16.msra.mxu0 0
    %5684 = vmatprep.subr.bf16.mxu0 0
    %5685 = vmatpush1.bf16.msra.mxu0 0
    %5686 = vmatprep.subr.bf16.mxu0 0
    %5687 = vmatpush1.bf16.msra.mxu0 0
    %5688 = vmatprep.subr.bf16.mxu0 0
    %5689 = vmatpush1.bf16.msra.mxu0 0
    %5690 = vmatprep.subr.bf16.mxu0 0
    %5691 = vmatpush1.bf16.msra.mxu0 0
    %5692 = vmatprep.subr.bf16.mxu0 0
    %5693 = vmatpush1.bf16.msra.mxu0 0
    %5694 = vmatprep.subr.bf16.mxu0 0
    %5695 = vmatpush1.bf16.msra.mxu0 0
    %5696 = vmatprep.subr.bf16.mxu0 0
    %5697 = vmatpush1.bf16.msra.mxu0 0
    %5698 = vmatprep.mubr.bf16.mxu0 0
    %5699 = vmatmul.mubr.bf16.gmra.mrb[0].mxu0 %v5505
    %v5700 = vpop.f32.mrb[0].mxu0
    %v5701 = vadd.f32 %v5658, %v5700
    %v5702 = vpop.f32.mrb[0].mxu0
    %v5703 = vadd.f32 %v5660, %v5702
    %v5704 = vpop.f32.mrb[0].mxu0
    %v5705 = vadd.f32 %v5662, %v5704
    %v5706 = vpop.f32.mrb[0].mxu0
    %v5707 = vadd.f32 %v5664, %v5706
    %5708 = vdwg.mxu0
    %5709 = vmatprep.subr.bf16.mxu0 %v5139
    %5710 = vmatpush1.bf16.msra.mxu0 %v5138
    %5711 = vmatprep.subr.bf16.mxu0 %v5149
    %5712 = vmatpush1.bf16.msra.mxu0 %v5148
    %5713 = vmatprep.subr.bf16.mxu0 %v5159
    %5714 = vmatpush1.bf16.msra.mxu0 %v5158
    %5715 = vmatprep.subr.bf16.mxu0 %v5169
    %5716 = vmatpush1.bf16.msra.mxu0 %v5168
    %5717 = vmatprep.subr.bf16.mxu0 %v5179
    %5718 = vmatpush1.bf16.msra.mxu0 %v5178
    %5719 = vmatprep.subr.bf16.mxu0 %v5189
    %5720 = vmatpush1.bf16.msra.mxu0 %v5188
    %5721 = vmatprep.subr.bf16.mxu0 %v5199
    %5722 = vmatpush1.bf16.msra.mxu0 %v5198
    %5723 = vmatprep.subr.bf16.mxu0 %v5209
    %5724 = vmatpush1.bf16.msra.mxu0 %v5208
    %5725 = vmatprep.subr.bf16.mxu0 %v5219
    %5726 = vmatpush1.bf16.msra.mxu0 %v5218
    %5727 = vmatprep.subr.bf16.mxu0 %v5229
    %5728 = vmatpush1.bf16.msra.mxu0 %v5228
    %5729 = vmatprep.subr.bf16.mxu0 %v5239
    %5730 = vmatpush1.bf16.msra.mxu0 %v5238
    %5731 = vmatprep.subr.bf16.mxu0 %v5249
    %5732 = vmatpush1.bf16.msra.mxu0 %v5248
    %5733 = vmatprep.subr.bf16.mxu0 %v5259
    %5734 = vmatpush1.bf16.msra.mxu0 %v5258
    %5735 = vmatprep.subr.bf16.mxu0 %v5269
    %5736 = vmatpush1.bf16.msra.mxu0 %v5268
    %5737 = vmatprep.subr.bf16.mxu0 %v5279
    %5738 = vmatpush1.bf16.msra.mxu0 %v5278
    %5739 = vmatprep.subr.bf16.mxu0 %v5289
    %5740 = vmatpush1.bf16.msra.mxu0 %v5288
    %5741 = vmatprep.mubr.bf16.mxu0 %v4372
    %5742 = vmatmul.mubr.bf16.gmra.mrb[0].mxu0 %v4371
    %v5743 = vpop.f32.mrb[0].mxu0
    %v5744 = vadd.f32 0.0, %v5743
    %v5745 = vpop.f32.mrb[0].mxu0
    %v5746 = vadd.f32 0.0, %v5745
    %v5747 = vpop.f32.mrb[0].mxu0
    %v5748 = vadd.f32 0.0, %v5747
    %v5749 = vpop.f32.mrb[0].mxu0
    %v5750 = vadd.f32 0.0, %v5749
    %5751 = vdwg.mxu0
    %5752 = vmatprep.subr.bf16.mxu0 %v5299
    %5753 = vmatpush1.bf16.msra.mxu0 %v5298
    %5754 = vmatprep.subr.bf16.mxu0 %v5309
    %5755 = vmatpush1.bf16.msra.mxu0 %v5308
    %5756 = vmatprep.subr.bf16.mxu0 %v5523
    %5757 = vmatpush1.bf16.msra.mxu0 %v5520
    %5758 = vmatprep.subr.bf16.mxu0 0
    %5759 = vmatpush1.bf16.msra.mxu0 0
    %5760 = vmatprep.subr.bf16.mxu0 0
    %5761 = vmatpush1.bf16.msra.mxu0 0
    %5762 = vmatprep.subr.bf16.mxu0 0
    %5763 = vmatpush1.bf16.msra.mxu0 0
    %5764 = vmatprep.subr.bf16.mxu0 0
    %5765 = vmatpush1.bf16.msra.mxu0 0
    %5766 = vmatprep.subr.bf16.mxu0 0
    %5767 = vmatpush1.bf16.msra.mxu0 0
    %5768 = vmatprep.subr.bf16.mxu0 0
    %5769 = vmatpush1.bf16.msra.mxu0 0
    %5770 = vmatprep.subr.bf16.mxu0 0
    %5771 = vmatpush1.bf16.msra.mxu0 0
    %5772 = vmatprep.subr.bf16.mxu0 0
    %5773 = vmatpush1.bf16.msra.mxu0 0
    %5774 = vmatprep.subr.bf16.mxu0 0
    %5775 = vmatpush1.bf16.msra.mxu0 0
    %5776 = vmatprep.subr.bf16.mxu0 0
    %5777 = vmatpush1.bf16.msra.mxu0 0
    %5778 = vmatprep.subr.bf16.mxu0 0
    %5779 = vmatpush1.bf16.msra.mxu0 0
    %5780 = vmatprep.subr.bf16.mxu0 0
    %5781 = vmatpush1.bf16.msra.mxu0 0
    %5782 = vmatprep.subr.bf16.mxu0 0
    %5783 = vmatpush1.bf16.msra.mxu0 0
    %5784 = vmatprep.mubr.bf16.mxu0 0
    %5785 = vmatmul.mubr.bf16.gmra.mrb[0].mxu0 %v5505
    %v5786 = vpop.f32.mrb[0].mxu0
    %v5787 = vadd.f32 %v5744, %v5786
    %v5788 = vpop.f32.mrb[0].mxu0
    %v5789 = vadd.f32 %v5746, %v5788
    %v5790 = vpop.f32.mrb[0].mxu0
    %v5791 = vadd.f32 %v5748, %v5790
    %v5792 = vpop.f32.mrb[0].mxu0
    %v5793 = vadd.f32 %v5750, %v5792
    %5794 = vdwg.mxu0
    %5795 = vmatprep.subr.bf16.mxu0 %v5141
    %5796 = vmatpush1.bf16.msra.mxu0 %v5140
    %5797 = vmatprep.subr.bf16.mxu0 %v5151
    %5798 = vmatpush1.bf16.msra.mxu0 %v5150
    %5799 = vmatprep.subr.bf16.mxu0 %v5161
    %5800 = vmatpush1.bf16.msra.mxu0 %v5160
    %5801 = vmatprep.subr.bf16.mxu0 %v5171
    %5802 = vmatpush1.bf16.msra.mxu0 %v5170
    %5803 = vmatprep.subr.bf16.mxu0 %v5181
    %5804 = vmatpush1.bf16.msra.mxu0 %v5180
    %5805 = vmatprep.subr.bf16.mxu0 %v5191
    %5806 = vmatpush1.bf16.msra.mxu0 %v5190
    %5807 = vmatprep.subr.bf16.mxu0 %v5201
    %5808 = vmatpush1.bf16.msra.mxu0 %v5200
    %5809 = vmatprep.subr.bf16.mxu0 %v5211
    %5810 = vmatpush1.bf16.msra.mxu0 %v5210
    %5811 = vmatprep.subr.bf16.mxu0 %v5221
    %5812 = vmatpush1.bf16.msra.mxu0 %v5220
    %5813 = vmatprep.subr.bf16.mxu0 %v5231
    %5814 = vmatpush1.bf16.msra.mxu0 %v5230
    %5815 = vmatprep.subr.bf16.mxu0 %v5241
    %5816 = vmatpush1.bf16.msra.mxu0 %v5240
    %5817 = vmatprep.subr.bf16.mxu0 %v5251
    %5818 = vmatpush1.bf16.msra.mxu0 %v5250
    %5819 = vmatprep.subr.bf16.mxu0 %v5261
    %5820 = vmatpush1.bf16.msra.mxu0 %v5260
    %5821 = vmatprep.subr.bf16.mxu0 %v5271
    %5822 = vmatpush1.bf16.msra.mxu0 %v5270
    %5823 = vmatprep.subr.bf16.mxu0 %v5281
    %5824 = vmatpush1.bf16.msra.mxu0 %v5280
    %5825 = vmatprep.subr.bf16.mxu0 %v5291
    %5826 = vmatpush1.bf16.msra.mxu0 %v5290
    %5827 = vmatprep.mubr.bf16.mxu0 %v4372
    %5828 = vmatmul.mubr.bf16.gmra.mrb[0].mxu0 %v4371
    %v5829 = vpop.f32.mrb[0].mxu0
    %v5830 = vadd.f32 0.0, %v5829
    %v5831 = vpop.f32.mrb[0].mxu0
    %v5832 = vadd.f32 0.0, %v5831
    %v5833 = vpop.f32.mrb[0].mxu0
    %v5834 = vadd.f32 0.0, %v5833
    %v5835 = vpop.f32.mrb[0].mxu0
    %v5836 = vadd.f32 0.0, %v5835
    %5837 = vdwg.mxu0
    %5838 = vmatprep.subr.bf16.mxu0 %v5301
    %5839 = vmatpush1.bf16.msra.mxu0 %v5300
    %5840 = vmatprep.subr.bf16.mxu0 %v5311
    %5841 = vmatpush1.bf16.msra.mxu0 %v5310
    %5842 = vmatprep.subr.bf16.mxu0 %v5529
    %5843 = vmatpush1.bf16.msra.mxu0 %v5526
    %5844 = vmatprep.subr.bf16.mxu0 0
    %5845 = vmatpush1.bf16.msra.mxu0 0
    %5846 = vmatprep.subr.bf16.mxu0 0
    %5847 = vmatpush1.bf16.msra.mxu0 0
    %5848 = vmatprep.subr.bf16.mxu0 0
    %5849 = vmatpush1.bf16.msra.mxu0 0
    %5850 = vmatprep.subr.bf16.mxu0 0
    %5851 = vmatpush1.bf16.msra.mxu0 0
    %5852 = vmatprep.subr.bf16.mxu0 0
    %5853 = vmatpush1.bf16.msra.mxu0 0
    %5854 = vmatprep.subr.bf16.mxu0 0
    %5855 = vmatpush1.bf16.msra.mxu0 0
    %5856 = vmatprep.subr.bf16.mxu0 0
    %5857 = vmatpush1.bf16.msra.mxu0 0
    %5858 = vmatprep.subr.bf16.mxu0 0
    %5859 = vmatpush1.bf16.msra.mxu0 0
    %5860 = vmatprep.subr.bf16.mxu0 0
    %5861 = vmatpush1.bf16.msra.mxu0 0
    %5862 = vmatprep.subr.bf16.mxu0 0
    %5863 = vmatpush1.bf16.msra.mxu0 0
    %5864 = vmatprep.subr.bf16.mxu0 0
    %5865 = vmatpush1.bf16.msra.mxu0 0
    %5866 = vmatprep.subr.bf16.mxu0 0
    %5867 = vmatpush1.bf16.msra.mxu0 0
    %5868 = vmatprep.subr.bf16.mxu0 0
    %5869 = vmatpush1.bf16.msra.mxu0 0
    %5870 = vmatprep.mubr.bf16.mxu0 0
    %5871 = vmatmul.mubr.bf16.gmra.mrb[0].mxu0 %v5505
    %v5872 = vpop.f32.mrb[0].mxu0
    %v5873 = vadd.f32 %v5830, %v5872
    %v5874 = vpop.f32.mrb[0].mxu0
    %v5875 = vadd.f32 %v5832, %v5874
    %v5876 = vpop.f32.mrb[0].mxu0
    %v5877 = vadd.f32 %v5834, %v5876
    %v5878 = vpop.f32.mrb[0].mxu0
    %v5879 = vadd.f32 %v5836, %v5878
    %5880 = vdwg.mxu0
    %5881 = vmatprep.subr.bf16.mxu0 %v5143
    %5882 = vmatpush1.bf16.msra.mxu0 %v5142
    %5883 = vmatprep.subr.bf16.mxu0 %v5153
    %5884 = vmatpush1.bf16.msra.mxu0 %v5152
    %5885 = vmatprep.subr.bf16.mxu0 %v5163
    %5886 = vmatpush1.bf16.msra.mxu0 %v5162
    %5887 = vmatprep.subr.bf16.mxu0 %v5173
    %5888 = vmatpush1.bf16.msra.mxu0 %v5172
    %5889 = vmatprep.subr.bf16.mxu0 %v5183
    %5890 = vmatpush1.bf16.msra.mxu0 %v5182
    %5891 = vmatprep.subr.bf16.mxu0 %v5193
    %5892 = vmatpush1.bf16.msra.mxu0 %v5192
    %5893 = vmatprep.subr.bf16.mxu0 %v5203
    %5894 = vmatpush1.bf16.msra.mxu0 %v5202
    %5895 = vmatprep.subr.bf16.mxu0 %v5213
    %5896 = vmatpush1.bf16.msra.mxu0 %v5212
    %5897 = vmatprep.subr.bf16.mxu0 %v5223
    %5898 = vmatpush1.bf16.msra.mxu0 %v5222
    %5899 = vmatprep.subr.bf16.mxu0 %v5233
    %5900 = vmatpush1.bf16.msra.mxu0 %v5232
    %5901 = vmatprep.subr.bf16.mxu0 %v5243
    %5902 = vmatpush1.bf16.msra.mxu0 %v5242
    %5903 = vmatprep.subr.bf16.mxu0 %v5253
    %5904 = vmatpush1.bf16.msra.mxu0 %v5252
    %5905 = vmatprep.subr.bf16.mxu0 %v5263
    %5906 = vmatpush1.bf16.msra.mxu0 %v5262
    %5907 = vmatprep.subr.bf16.mxu0 %v5273
    %5908 = vmatpush1.bf16.msra.mxu0 %v5272
    %5909 = vmatprep.subr.bf16.mxu0 %v5283
    %5910 = vmatpush1.bf16.msra.mxu0 %v5282
    %5911 = vmatprep.subr.bf16.mxu0 %v5293
    %5912 = vmatpush1.bf16.msra.mxu0 %v5292
    %5913 = vmatprep.mubr.bf16.mxu0 %v4372
    %5914 = vmatmul.mubr.bf16.gmra.mrb[0].mxu0 %v4371
    %v5915 = vpop.f32.mrb[0].mxu0
    %v5916 = vadd.f32 0.0, %v5915
    %v5917 = vpop.f32.mrb[0].mxu0
    %v5918 = vadd.f32 0.0, %v5917
    %v5919 = vpop.f32.mrb[0].mxu0
    %v5920 = vadd.f32 0.0, %v5919
    %v5921 = vpop.f32.mrb[0].mxu0
    %v5922 = vadd.f32 0.0, %v5921
    %5923 = vdwg.mxu0
    %5924 = vmatprep.subr.bf16.mxu0 %v5303
    %5925 = vmatpush1.bf16.msra.mxu0 %v5302
    %5926 = vmatprep.subr.bf16.mxu0 %v5313
    %5927 = vmatpush1.bf16.msra.mxu0 %v5312
    %5928 = vmatprep.subr.bf16.mxu0 %v5535
    %5929 = vmatpush1.bf16.msra.mxu0 %v5532
    %5930 = vmatprep.subr.bf16.mxu0 0
    %5931 = vmatpush1.bf16.msra.mxu0 0
    %5932 = vmatprep.subr.bf16.mxu0 0
    %5933 = vmatpush1.bf16.msra.mxu0 0
    %5934 = vmatprep.subr.bf16.mxu0 0
    %5935 = vmatpush1.bf16.msra.mxu0 0
    %5936 = vmatprep.subr.bf16.mxu0 0
    %5937 = vmatpush1.bf16.msra.mxu0 0
    %5938 = vmatprep.subr.bf16.mxu0 0
    %5939 = vmatpush1.bf16.msra.mxu0 0
    %5940 = vmatprep.subr.bf16.mxu0 0
    %5941 = vmatpush1.bf16.msra.mxu0 0
    %5942 = vmatprep.subr.bf16.mxu0 0
    %5943 = vmatpush1.bf16.msra.mxu0 0
    %5944 = vmatprep.subr.bf16.mxu0 0
    %5945 = vmatpush1.bf16.msra.mxu0 0
    %5946 = vmatprep.subr.bf16.mxu0 0
    %5947 = vmatpush1.bf16.msra.mxu0 0
    %5948 = vmatprep.subr.bf16.mxu0 0
    %5949 = vmatpush1.bf16.msra.mxu0 0
    %5950 = vmatprep.subr.bf16.mxu0 0
    %5951 = vmatpush1.bf16.msra.mxu0 0
    %5952 = vmatprep.subr.bf16.mxu0 0
    %5953 = vmatpush1.bf16.msra.mxu0 0
    %5954 = vmatprep.subr.bf16.mxu0 0
    %5955 = vmatpush1.bf16.msra.mxu0 0
    %5956 = vmatprep.mubr.bf16.mxu0 0
    %5957 = vmatmul.mubr.bf16.gmra.mrb[0].mxu0 %v5505
    %v5958 = vpop.f32.mrb[0].mxu0
    %v5959 = vadd.f32 %v5916, %v5958
    %v5960 = vpop.f32.mrb[0].mxu0
    %v5961 = vadd.f32 %v5918, %v5960
    %v5962 = vpop.f32.mrb[0].mxu0
    %v5963 = vadd.f32 %v5920, %v5962
    %v5964 = vpop.f32.mrb[0].mxu0
    %v5965 = vadd.f32 %v5922, %v5964
    %5966 = vdwg.mxu0
    %v5967 = vadd.f32 %v4013, %v5615
    %v5968 = vadd.f32 %v4015, %v5617
    %v5969 = vadd.f32 %v4099, %v5701
    %v5970 = vadd.f32 %v4101, %v5703
    %v5971 = vadd.f32 %v4185, %v5787
    %v5972 = vadd.f32 %v4187, %v5789
    %v5973 = vadd.f32 %v4271, %v5873
    %v5974 = vadd.f32 %v4273, %v5875
    %v5975 = vadd.f32 %v4357, %v5959
    %v5976 = vadd.f32 %v4359, %v5961
    %v5977 = vadd.f32 %v4017, %v5619
    %v5978 = vadd.f32 %v4019, %v5621
    %v5979 = vadd.f32 %v4103, %v5705
    %v5980 = vadd.f32 %v4105, %v5707
    %v5981 = vadd.f32 %v4189, %v5791
    %v5982 = vadd.f32 %v4191, %v5793
    %v5983 = vadd.f32 %v4275, %v5877
    %v5984 = vadd.f32 %v4277, %v5879
    %v5985 = vadd.f32 %v4361, %v5963
    %v5986 = vadd.f32 %v4363, %v5965
    %v5987 = vld [vmem:[#allocation18] sm:$0xff]
    %v5988 = vld [vmem:[#allocation18 + $0x8] sm:$0x3]
    %v5991 = vlaneseq
    %v5992 = vshrl.u32 %v5991, 7
    %v5993 = vsub.s32 0, %v5992
    %v5994 = vrot.slane %v5987, %v5993
    %v5995 = vlaneseq
    %v5996 = vshrl.u32 %v5995, 7
    %v5997 = vsub.s32 1, %v5996
    %v5998 = vrot.slane %v5987, %v5997
    %v5999 = vlaneseq
    %v6000 = vshrl.u32 %v5999, 7
    %v6001 = vsub.s32 2, %v6000
    %v6002 = vrot.slane %v5987, %v6001
    %v6003 = vlaneseq
    %v6004 = vshrl.u32 %v6003, 7
    %v6005 = vsub.s32 3, %v6004
    %v6006 = vrot.slane %v5987, %v6005
    %v6007 = vlaneseq
    %v6008 = vshrl.u32 %v6007, 7
    %v6009 = vsub.s32 4, %v6008
    %v6010 = vrot.slane %v5987, %v6009
    %v6011 = vlaneseq
    %v6012 = vshrl.u32 %v6011, 7
    %v6013 = vsub.s32 5, %v6012
    %v6014 = vrot.slane %v5987, %v6013
    %v6015 = vlaneseq
    %v6016 = vshrl.u32 %v6015, 7
    %v6017 = vsub.s32 6, %v6016
    %v6018 = vrot.slane %v5987, %v6017
    %v6019 = vlaneseq
    %v6020 = vshrl.u32 %v6019, 7
    %v6021 = vsub.s32 7, %v6020
    %v6022 = vrot.slane %v5987, %v6021
    %v6023 = vlaneseq
    %v6024 = vshrl.u32 %v6023, 7
    %v6025 = vsub.s32 0, %v6024
    %v6026 = vrot.slane %v5988, %v6025
    %v6027 = vlaneseq
    %v6028 = vshrl.u32 %v6027, 7
    %v6029 = vsub.s32 1, %v6028
    %v6030 = vrot.slane %v5988, %v6029
    %v6041 = vadd.f32 %v5967, %v5994
    %v6042 = vadd.f32 %v5968, %v5998
    %v6043 = vadd.f32 %v5969, %v6002
    %v6044 = vadd.f32 %v5970, %v6006
    %v6045 = vadd.f32 %v5971, %v6010
    %v6046 = vadd.f32 %v5972, %v6014
    %v6047 = vadd.f32 %v5973, %v6018
    %v6048 = vadd.f32 %v5974, %v6022
    %v6049 = vadd.f32 %v5975, %v6026
    %v6050 = vadd.f32 %v5976, %v6030
    %v6051 = vadd.f32 %v5977, %v5994
    %v6052 = vadd.f32 %v5978, %v5998
    %v6053 = vadd.f32 %v5979, %v6002
    %v6054 = vadd.f32 %v5980, %v6006
    %v6055 = vadd.f32 %v5981, %v6010
    %v6056 = vadd.f32 %v5982, %v6014
    %v6057 = vadd.f32 %v5983, %v6018
    %v6058 = vadd.f32 %v5984, %v6022
    %v6059 = vadd.f32 %v5985, %v6026
    %v6060 = vadd.f32 %v5986, %v6030
    %v6061 = vmax.f32 %v233, %v235
    %v6062 = vmax.f32 %v234, %v236
    %vm6063 = vcmp.gt.f32.partialorder %v6061, 0.0
    %vm6064 = vcmp.gt.f32.partialorder %v6062, 0.0
    %v6065 = vsel %vm6063, 1, 0
    %v6066 = vsel %vm6064, 1, 0
    %6067 = vset.pattern.permute.xlu0 0
    %6068 = vperm.xlu0 %6067, %v6065
    %v6069 = vpop.permute.xlu0 %6068
    %6070 = vset.pattern.permute.xlu0 0
    %6071 = vperm.xlu0 %6070, %v6066
    %v6072 = vpop.permute.xlu0 %6071
    %vm6073 = vcmp.eq.s32.totalorder %v6069, 1
    %vm6074 = vcmp.eq.s32.totalorder %v6072, 1
    %v6075 = vsel %vm6073, %v6041, -inf
    %v6076 = vsel %vm6073, %v6042, -inf
    %v6077 = vsel %vm6073, %v6043, -inf
    %v6078 = vsel %vm6073, %v6044, -inf
    %v6079 = vsel %vm6073, %v6045, -inf
    %v6080 = vsel %vm6073, %v6046, -inf
    %v6081 = vsel %vm6073, %v6047, -inf
    %v6082 = vsel %vm6073, %v6048, -inf
    %v6083 = vsel %vm6073, %v6049, -inf
    %v6084 = vsel %vm6073, %v6050, -inf
    %v6085 = vsel %vm6074, %v6051, -inf
    %v6086 = vsel %vm6074, %v6052, -inf
    %v6087 = vsel %vm6074, %v6053, -inf
    %v6088 = vsel %vm6074, %v6054, -inf
    %v6089 = vsel %vm6074, %v6055, -inf
    %v6090 = vsel %vm6074, %v6056, -inf
    %v6091 = vsel %vm6074, %v6057, -inf
    %v6092 = vsel %vm6074, %v6058, -inf
    %v6093 = vsel %vm6074, %v6059, -inf
    %v6094 = vsel %vm6074, %v6060, -inf
    %v6095 = vmax.f32 %v6075, %v6085
    %v6096 = vrot.slane %v6095, 4
    %v6097 = vmax.f32 %v6095, %v6096
    %v6098 = vrot.slane %v6097, 2
    %v6099 = vmax.f32 %v6097, %v6098
    %v6100 = vrot.slane %v6099, 1
    %v6101 = vmax.f32 %v6099, %v6100
    %v6102 = vmax.f32 %v6076, %v6086
    %v6103 = vrot.slane %v6102, 4
    %v6104 = vmax.f32 %v6102, %v6103
    %v6105 = vrot.slane %v6104, 2
    %v6106 = vmax.f32 %v6104, %v6105
    %v6107 = vrot.slane %v6106, 1
    %v6108 = vmax.f32 %v6106, %v6107
    %v6109 = vmax.f32 %v6077, %v6087
    %v6110 = vrot.slane %v6109, 4
    %v6111 = vmax.f32 %v6109, %v6110
    %v6112 = vrot.slane %v6111, 2
    %v6113 = vmax.f32 %v6111, %v6112
    %v6114 = vrot.slane %v6113, 1
    %v6115 = vmax.f32 %v6113, %v6114
    %v6116 = vmax.f32 %v6078, %v6088
    %v6117 = vrot.slane %v6116, 4
    %v6118 = vmax.f32 %v6116, %v6117
    %v6119 = vrot.slane %v6118, 2
    %v6120 = vmax.f32 %v6118, %v6119
    %v6121 = vrot.slane %v6120, 1
    %v6122 = vmax.f32 %v6120, %v6121
    %v6123 = vmax.f32 %v6079, %v6089
    %v6124 = vrot.slane %v6123, 4
    %v6125 = vmax.f32 %v6123, %v6124
    %v6126 = vrot.slane %v6125, 2
    %v6127 = vmax.f32 %v6125, %v6126
    %v6128 = vrot.slane %v6127, 1
    %v6129 = vmax.f32 %v6127, %v6128
    %v6130 = vmax.f32 %v6080, %v6090
    %v6131 = vrot.slane %v6130, 4
    %v6132 = vmax.f32 %v6130, %v6131
    %v6133 = vrot.slane %v6132, 2
    %v6134 = vmax.f32 %v6132, %v6133
    %v6135 = vrot.slane %v6134, 1
    %v6136 = vmax.f32 %v6134, %v6135
    %v6137 = vmax.f32 %v6081, %v6091
    %v6138 = vrot.slane %v6137, 4
    %v6139 = vmax.f32 %v6137, %v6138
    %v6140 = vrot.slane %v6139, 2
    %v6141 = vmax.f32 %v6139, %v6140
    %v6142 = vrot.slane %v6141, 1
    %v6143 = vmax.f32 %v6141, %v6142
    %v6144 = vmax.f32 %v6082, %v6092
    %v6145 = vrot.slane %v6144, 4
    %v6146 = vmax.f32 %v6144, %v6145
    %v6147 = vrot.slane %v6146, 2
    %v6148 = vmax.f32 %v6146, %v6147
    %v6149 = vrot.slane %v6148, 1
    %v6150 = vmax.f32 %v6148, %v6149
    %v6151 = vmax.f32 %v6083, %v6093
    %v6152 = vrot.slane %v6151, 4
    %v6153 = vmax.f32 %v6151, %v6152
    %v6154 = vrot.slane %v6153, 2
    %v6155 = vmax.f32 %v6153, %v6154
    %v6156 = vrot.slane %v6155, 1
    %v6157 = vmax.f32 %v6155, %v6156
    %vm6158 = vcmask 392192
    %v6159 = vsel %vm6158, %v6084, -inf
    %v6160 = vsel %vm6158, %v6094, -inf
    %v6161 = vmax.f32 %v6159, %v6160
    %v6162 = vrot.slane %v6161, 4
    %v6163 = vmax.f32 %v6161, %v6162
    %v6164 = vrot.slane %v6163, 2
    %v6165 = vmax.f32 %v6163, %v6164
    %v6166 = vrot.slane %v6165, 1
    %v6167 = vmax.f32 %v6165, %v6166
    %v6168 = vtanh.pop %v6101
    %v6169 = vtanh.pop %v6108
    %v6170 = vtanh.pop %v6115
    %v6171 = vtanh.pop %v6122
    %v6172 = vtanh.pop %v6129
    %v6173 = vtanh.pop %v6136
    %v6174 = vtanh.pop %v6143
    %v6175 = vtanh.pop %v6150
    %v6176 = vtanh.pop %v6157
    %v6177 = vtanh.pop %v6167
    %v6178 = vpack.c.bf16 %v6168, %v6168
    %v6179 = vpack.c.bf16 %v6169, %v6169
    %v6180 = vpack.c.bf16 %v6170, %v6170
    %v6181 = vpack.c.bf16 %v6171, %v6171
    %v6182 = vpack.c.bf16 %v6172, %v6172
    %v6183 = vpack.c.bf16 %v6173, %v6173
    %v6184 = vpack.c.bf16 %v6174, %v6174
    %v6185 = vpack.c.bf16 %v6175, %v6175
    %v6186 = vpack.c.bf16 %v6176, %v6176
    %v6187 = vpack.c.bf16 %v6177, %v6177
    %v6188 = vld [vmem:[#allocation20] sm:$0xff]
    %v6189 = vld [vmem:[#allocation20 + $0x8] sm:$0xff]
    %v6190 = vld [vmem:[#allocation20 + $0x10] sm:$0xff]
    %v6191 = vld [vmem:[#allocation20 + $0x18] sm:$0xff]
    %v6192 = vld [vmem:[#allocation20 + $0x20] sm:$0xff]
    %v6193 = vld [vmem:[#allocation20 + $0x28] sm:$0xff]
    %v6194 = vld [vmem:[#allocation20 + $0x30] sm:$0xff]
    %v6195 = vld [vmem:[#allocation20 + $0x38] sm:$0xff]
    %v6196 = vld [vmem:[#allocation20 + $0x40] sm:$0xff]
    %v6197 = vld [vmem:[#allocation20 + $0x48] sm:$0xff]
    %v6198 = vld [vmem:[#allocation20 + $0x50] sm:$0xff]
    %v6199 = vld [vmem:[#allocation20 + $0x58] sm:$0xff]
    %v6200 = vld [vmem:[#allocation20 + $0x60] sm:$0xff]
    %v6201 = vld [vmem:[#allocation20 + $0x68] sm:$0xff]
    %v6202 = vld [vmem:[#allocation20 + $0x70] sm:$0xff]
    %v6203 = vld [vmem:[#allocation20 + $0x78] sm:$0xff]
    %v6204 = vld [vmem:[#allocation20 + $0x80] sm:$0xff]
    %v6205 = vld [vmem:[#allocation20 + $0x88] sm:$0xff]
    %v6206 = vld [vmem:[#allocation20 + $0x90] sm:$0xff]
    %v6207 = vld [vmem:[#allocation20 + $0x98] sm:$0xff]
    %v6208 = vld [vmem:[#allocation20 + $0xa0] sm:$0xff]
    %v6209 = vld [vmem:[#allocation20 + $0xa8] sm:$0xff]
    %v6210 = vld [vmem:[#allocation20 + $0xb0] sm:$0xff]
    %v6211 = vld [vmem:[#allocation20 + $0xb8] sm:$0xff]
    %v6212 = vld [vmem:[#allocation20 + $0xc0] sm:$0xff]
    %v6213 = vld [vmem:[#allocation20 + $0xc8] sm:$0xff]
    %v6214 = vld [vmem:[#allocation20 + $0xd0] sm:$0xff]
    %v6215 = vld [vmem:[#allocation20 + $0xd8] sm:$0xff]
    %v6216 = vld [vmem:[#allocation20 + $0xe0] sm:$0xff]
    %v6217 = vld [vmem:[#allocation20 + $0xe8] sm:$0xff]
    %v6218 = vld [vmem:[#allocation20 + $0xf0] sm:$0xff]
    %v6219 = vld [vmem:[#allocation20 + $0xf8] sm:$0xff]
    %v6220 = vld [vmem:[#allocation20 + $0x100] sm:$0xff]
    %v6221 = vld [vmem:[#allocation20 + $0x108] sm:$0xff]
    %v6222 = vld [vmem:[#allocation20 + $0x110] sm:$0xff]
    %v6223 = vld [vmem:[#allocation20 + $0x118] sm:$0xff]
    %v6224 = vld [vmem:[#allocation20 + $0x120] sm:$0xff]
    %v6225 = vld [vmem:[#allocation20 + $0x128] sm:$0xff]
    %v6226 = vld [vmem:[#allocation20 + $0x130] sm:$0xff]
    %v6227 = vld [vmem:[#allocation20 + $0x138] sm:$0xff]
    %v6228 = vld [vmem:[#allocation20 + $0x140] sm:$0xff]
    %v6229 = vld [vmem:[#allocation20 + $0x148] sm:$0xff]
    %v6230 = vld [vmem:[#allocation20 + $0x150] sm:$0xff]
    %v6231 = vld [vmem:[#allocation20 + $0x158] sm:$0xff]
    %v6232 = vld [vmem:[#allocation20 + $0x160] sm:$0xff]
    %v6233 = vld [vmem:[#allocation20 + $0x168] sm:$0xff]
    %v6234 = vld [vmem:[#allocation20 + $0x170] sm:$0xff]
    %v6235 = vld [vmem:[#allocation20 + $0x178] sm:$0xff]
    %v6236 = vld [vmem:[#allocation20 + $0x180] sm:$0xff]
    %v6237 = vld [vmem:[#allocation20 + $0x188] sm:$0xff]
    %v6238 = vld [vmem:[#allocation20 + $0x190] sm:$0xff]
    %v6239 = vld [vmem:[#allocation20 + $0x198] sm:$0xff]
    %v6240 = vld [vmem:[#allocation20 + $0x1a0] sm:$0xff]
    %v6241 = vld [vmem:[#allocation20 + $0x1a8] sm:$0xff]
    %v6242 = vld [vmem:[#allocation20 + $0x1b0] sm:$0xff]
    %v6243 = vld [vmem:[#allocation20 + $0x1b8] sm:$0xff]
    %v6244 = vld [vmem:[#allocation20 + $0x1c0] sm:$0xff]
    %v6245 = vld [vmem:[#allocation20 + $0x1c8] sm:$0xff]
    %v6246 = vld [vmem:[#allocation20 + $0x1d0] sm:$0xff]
    %v6247 = vld [vmem:[#allocation20 + $0x1d8] sm:$0xff]
    %v6248 = vld [vmem:[#allocation20 + $0x1e0] sm:$0xff]
    %v6249 = vld [vmem:[#allocation20 + $0x1e8] sm:$0xff]
    %v6250 = vld [vmem:[#allocation20 + $0x1f0] sm:$0xff]
    %v6251 = vld [vmem:[#allocation20 + $0x1f8] sm:$0xff]
    %v6252 = vld [vmem:[#allocation20 + $0x200] sm:$0xff]
    %v6253 = vld [vmem:[#allocation20 + $0x208] sm:$0xff]
    %v6254 = vld [vmem:[#allocation20 + $0x210] sm:$0xff]
    %v6255 = vld [vmem:[#allocation20 + $0x218] sm:$0xff]
    %v6256 = vld [vmem:[#allocation20 + $0x220] sm:$0xff]
    %v6257 = vld [vmem:[#allocation20 + $0x228] sm:$0xff]
    %v6258 = vld [vmem:[#allocation20 + $0x230] sm:$0xff]
    %v6259 = vld [vmem:[#allocation20 + $0x238] sm:$0xff]
    %v6260 = vld [vmem:[#allocation20 + $0x240] sm:$0xff]
    %v6261 = vld [vmem:[#allocation20 + $0x248] sm:$0xff]
    %v6262 = vld [vmem:[#allocation20 + $0x250] sm:$0xff]
    %v6263 = vld [vmem:[#allocation20 + $0x258] sm:$0xff]
    %v6264 = vld [vmem:[#allocation20 + $0x260] sm:$0xff]
    %v6265 = vld [vmem:[#allocation20 + $0x268] sm:$0xff]
    %v6266 = vld [vmem:[#allocation20 + $0x270] sm:$0xff]
    %v6267 = vld [vmem:[#allocation20 + $0x278] sm:$0xff]
    %v6268 = vld [vmem:[#allocation20 + $0x280] sm:$0xff]
    %v6269 = vld [vmem:[#allocation20 + $0x288] sm:$0xff]
    %v6270 = vld [vmem:[#allocation20 + $0x290] sm:$0xff]
    %v6271 = vld [vmem:[#allocation20 + $0x298] sm:$0xff]
    %v6272 = vld [vmem:[#allocation20 + $0x2a0] sm:$0xff]
    %v6273 = vld [vmem:[#allocation20 + $0x2a8] sm:$0xff]
    %v6274 = vld [vmem:[#allocation20 + $0x2b0] sm:$0xff]
    %v6275 = vld [vmem:[#allocation20 + $0x2b8] sm:$0xff]
    %v6276 = vld [vmem:[#allocation20 + $0x2c0] sm:$0xff]
    %v6277 = vld [vmem:[#allocation20 + $0x2c8] sm:$0xff]
    %v6278 = vld [vmem:[#allocation20 + $0x2d0] sm:$0xff]
    %v6279 = vld [vmem:[#allocation20 + $0x2d8] sm:$0xff]
    %v6280 = vld [vmem:[#allocation20 + $0x2e0] sm:$0xff]
    %v6281 = vld [vmem:[#allocation20 + $0x2e8] sm:$0xff]
    %v6282 = vld [vmem:[#allocation20 + $0x2f0] sm:$0xff]
    %v6283 = vld [vmem:[#allocation20 + $0x2f8] sm:$0xff]
    %v6284 = vld [vmem:[#allocation20 + $0x300] sm:$0xff]
    %v6285 = vld [vmem:[#allocation20 + $0x308] sm:$0xff]
    %v6286 = vld [vmem:[#allocation20 + $0x310] sm:$0xff]
    %v6287 = vld [vmem:[#allocation20 + $0x318] sm:$0xff]
    %v6288 = vld [vmem:[#allocation20 + $0x320] sm:$0xff]
    %v6289 = vld [vmem:[#allocation20 + $0x328] sm:$0xff]
    %v6290 = vld [vmem:[#allocation20 + $0x330] sm:$0xff]
    %v6291 = vld [vmem:[#allocation20 + $0x338] sm:$0xff]
    %v6292 = vld [vmem:[#allocation20 + $0x340] sm:$0xff]
    %v6293 = vld [vmem:[#allocation20 + $0x348] sm:$0xff]
    %v6294 = vld [vmem:[#allocation20 + $0x350] sm:$0xff]
    %v6295 = vld [vmem:[#allocation20 + $0x358] sm:$0xff]
    %v6296 = vld [vmem:[#allocation20 + $0x360] sm:$0xff]
    %v6297 = vld [vmem:[#allocation20 + $0x368] sm:$0xff]
    %v6298 = vld [vmem:[#allocation20 + $0x370] sm:$0xff]
    %v6299 = vld [vmem:[#allocation20 + $0x378] sm:$0xff]
    %v6300 = vld [vmem:[#allocation20 + $0x380] sm:$0xff]
    %v6301 = vld [vmem:[#allocation20 + $0x388] sm:$0xff]
    %v6302 = vld [vmem:[#allocation20 + $0x390] sm:$0xff]
    %v6303 = vld [vmem:[#allocation20 + $0x398] sm:$0xff]
    %v6304 = vld [vmem:[#allocation20 + $0x3a0] sm:$0xff]
    %v6305 = vld [vmem:[#allocation20 + $0x3a8] sm:$0xff]
    %v6306 = vld [vmem:[#allocation20 + $0x3b0] sm:$0xff]
    %v6307 = vld [vmem:[#allocation20 + $0x3b8] sm:$0xff]
    %v6308 = vld [vmem:[#allocation20 + $0x3c0] sm:$0xff]
    %v6309 = vld [vmem:[#allocation20 + $0x3c8] sm:$0xff]
    %v6310 = vld [vmem:[#allocation20 + $0x3d0] sm:$0xff]
    %v6311 = vld [vmem:[#allocation20 + $0x3d8] sm:$0xff]
    %v6312 = vld [vmem:[#allocation20 + $0x3e0] sm:$0xff]
    %v6313 = vld [vmem:[#allocation20 + $0x3e8] sm:$0xff]
    %v6314 = vld [vmem:[#allocation20 + $0x3f0] sm:$0xff]
    %v6315 = vld [vmem:[#allocation20 + $0x3f8] sm:$0xff]
    %v6316 = vld [vmem:[#allocation20 + $0x400] sm:$0xff]
    %v6317 = vld [vmem:[#allocation20 + $0x408] sm:$0xff]
    %v6318 = vld [vmem:[#allocation20 + $0x410] sm:$0xff]
    %v6319 = vld [vmem:[#allocation20 + $0x418] sm:$0xff]
    %v6320 = vld [vmem:[#allocation20 + $0x420] sm:$0xff]
    %v6321 = vld [vmem:[#allocation20 + $0x428] sm:$0xff]
    %v6322 = vld [vmem:[#allocation20 + $0x430] sm:$0xff]
    %v6323 = vld [vmem:[#allocation20 + $0x438] sm:$0xff]
    %v6324 = vld [vmem:[#allocation20 + $0x440] sm:$0xff]
    %v6325 = vld [vmem:[#allocation20 + $0x448] sm:$0xff]
    %v6326 = vld [vmem:[#allocation20 + $0x450] sm:$0xff]
    %v6327 = vld [vmem:[#allocation20 + $0x458] sm:$0xff]
    %v6328 = vld [vmem:[#allocation20 + $0x460] sm:$0xff]
    %v6329 = vld [vmem:[#allocation20 + $0x468] sm:$0xff]
    %v6330 = vld [vmem:[#allocation20 + $0x470] sm:$0xff]
    %v6331 = vld [vmem:[#allocation20 + $0x478] sm:$0xff]
    %v6332 = vld [vmem:[#allocation20 + $0x480] sm:$0xff]
    %v6333 = vld [vmem:[#allocation20 + $0x488] sm:$0xff]
    %v6334 = vld [vmem:[#allocation20 + $0x490] sm:$0xff]
    %v6335 = vld [vmem:[#allocation20 + $0x498] sm:$0xff]
    %v6336 = vld [vmem:[#allocation20 + $0x4a0] sm:$0xff]
    %v6337 = vld [vmem:[#allocation20 + $0x4a8] sm:$0xff]
    %v6338 = vld [vmem:[#allocation20 + $0x4b0] sm:$0xff]
    %v6339 = vld [vmem:[#allocation20 + $0x4b8] sm:$0xff]
    %v6340 = vld [vmem:[#allocation20 + $0x4c0] sm:$0xff]
    %v6341 = vld [vmem:[#allocation20 + $0x4c8] sm:$0xff]
    %v6342 = vld [vmem:[#allocation20 + $0x4d0] sm:$0xff]
    %v6343 = vld [vmem:[#allocation20 + $0x4d8] sm:$0xff]
    %v6344 = vld [vmem:[#allocation20 + $0x4e0] sm:$0xff]
    %v6345 = vld [vmem:[#allocation20 + $0x4e8] sm:$0xff]
    %v6346 = vld [vmem:[#allocation20 + $0x4f0] sm:$0xff]
    %v6347 = vld [vmem:[#allocation20 + $0x4f8] sm:$0xff]
    %v6348 = vld [vmem:[#allocation20 + $0x500] sm:$0xff]
    %v6349 = vld [vmem:[#allocation20 + $0x508] sm:$0xff]
    %v6350 = vld [vmem:[#allocation20 + $0x510] sm:$0xff]
    %v6351 = vld [vmem:[#allocation20 + $0x518] sm:$0xff]
    %v6352 = vld [vmem:[#allocation20 + $0x520] sm:$0xff]
    %v6353 = vld [vmem:[#allocation20 + $0x528] sm:$0xff]
    %v6354 = vld [vmem:[#allocation20 + $0x530] sm:$0xff]
    %v6355 = vld [vmem:[#allocation20 + $0x538] sm:$0xff]
    %v6356 = vld [vmem:[#allocation20 + $0x540] sm:$0xff]
    %v6357 = vld [vmem:[#allocation20 + $0x548] sm:$0xff]
    %v6358 = vld [vmem:[#allocation20 + $0x550] sm:$0xff]
    %v6359 = vld [vmem:[#allocation20 + $0x558] sm:$0xff]
    %v6360 = vld [vmem:[#allocation20 + $0x560] sm:$0xff]
    %v6361 = vld [vmem:[#allocation20 + $0x568] sm:$0xff]
    %v6362 = vld [vmem:[#allocation20 + $0x570] sm:$0xff]
    %v6363 = vld [vmem:[#allocation20 + $0x578] sm:$0xff]
    %v6364 = vld [vmem:[#allocation20 + $0x580] sm:$0xff]
    %v6365 = vld [vmem:[#allocation20 + $0x588] sm:$0xff]
    %v6366 = vld [vmem:[#allocation20 + $0x590] sm:$0xff]
    %v6367 = vld [vmem:[#allocation20 + $0x598] sm:$0xff]
    %v6368 = vld [vmem:[#allocation20 + $0x5a0] sm:$0xff]
    %v6369 = vld [vmem:[#allocation20 + $0x5a8] sm:$0xff]
    %v6370 = vld [vmem:[#allocation20 + $0x5b0] sm:$0xff]
    %v6371 = vld [vmem:[#allocation20 + $0x5b8] sm:$0xff]
    %v6372 = vld [vmem:[#allocation20 + $0x5c0] sm:$0xff]
    %v6373 = vld [vmem:[#allocation20 + $0x5c8] sm:$0xff]
    %v6374 = vld [vmem:[#allocation20 + $0x5d0] sm:$0xff]
    %v6375 = vld [vmem:[#allocation20 + $0x5d8] sm:$0xff]
    %v6376 = vld [vmem:[#allocation20 + $0x5e0] sm:$0xff]
    %v6377 = vld [vmem:[#allocation20 + $0x5e8] sm:$0xff]
    %v6378 = vld [vmem:[#allocation20 + $0x5f0] sm:$0xff]
    %v6379 = vld [vmem:[#allocation20 + $0x5f8] sm:$0xff]
    %v6380 = vld [vmem:[#allocation20 + $0x600] sm:$0xff]
    %v6381 = vld [vmem:[#allocation20 + $0x608] sm:$0xff]
    %v6382 = vld [vmem:[#allocation20 + $0x610] sm:$0xff]
    %v6383 = vld [vmem:[#allocation20 + $0x618] sm:$0xff]
    %v6384 = vld [vmem:[#allocation20 + $0x620] sm:$0xff]
    %v6385 = vld [vmem:[#allocation20 + $0x628] sm:$0xff]
    %v6386 = vld [vmem:[#allocation20 + $0x630] sm:$0xff]
    %v6387 = vld [vmem:[#allocation20 + $0x638] sm:$0xff]
    %v6388 = vld [vmem:[#allocation20 + $0x640] sm:$0xff]
    %v6389 = vld [vmem:[#allocation20 + $0x648] sm:$0xff]
    %v6390 = vld [vmem:[#allocation20 + $0x650] sm:$0xff]
    %v6391 = vld [vmem:[#allocation20 + $0x658] sm:$0xff]
    %v6392 = vld [vmem:[#allocation20 + $0x660] sm:$0xff]
    %v6393 = vld [vmem:[#allocation20 + $0x668] sm:$0xff]
    %v6394 = vld [vmem:[#allocation20 + $0x670] sm:$0xff]
    %v6395 = vld [vmem:[#allocation20 + $0x678] sm:$0xff]
    %v6396 = vld [vmem:[#allocation20 + $0x680] sm:$0xff]
    %v6397 = vld [vmem:[#allocation20 + $0x688] sm:$0xff]
    %v6398 = vld [vmem:[#allocation20 + $0x690] sm:$0xff]
    %v6399 = vld [vmem:[#allocation20 + $0x698] sm:$0xff]
    %v6400 = vld [vmem:[#allocation20 + $0x6a0] sm:$0xff]
    %v6401 = vld [vmem:[#allocation20 + $0x6a8] sm:$0xff]
    %v6402 = vld [vmem:[#allocation20 + $0x6b0] sm:$0xff]
    %v6403 = vld [vmem:[#allocation20 + $0x6b8] sm:$0xff]
    %v6404 = vld [vmem:[#allocation20 + $0x6c0] sm:$0xff]
    %v6405 = vld [vmem:[#allocation20 + $0x6c8] sm:$0xff]
    %v6406 = vld [vmem:[#allocation20 + $0x6d0] sm:$0xff]
    %v6407 = vld [vmem:[#allocation20 + $0x6d8] sm:$0xff]
    %v6408 = vld [vmem:[#allocation20 + $0x6e0] sm:$0xff]
    %v6409 = vld [vmem:[#allocation20 + $0x6e8] sm:$0xff]
    %v6410 = vld [vmem:[#allocation20 + $0x6f0] sm:$0xff]
    %v6411 = vld [vmem:[#allocation20 + $0x6f8] sm:$0xff]
    %v6412 = vld [vmem:[#allocation20 + $0x700] sm:$0xff]
    %v6413 = vld [vmem:[#allocation20 + $0x708] sm:$0xff]
    %v6414 = vld [vmem:[#allocation20 + $0x710] sm:$0xff]
    %v6415 = vld [vmem:[#allocation20 + $0x718] sm:$0xff]
    %v6416 = vld [vmem:[#allocation20 + $0x720] sm:$0xff]
    %v6417 = vld [vmem:[#allocation20 + $0x728] sm:$0xff]
    %v6418 = vld [vmem:[#allocation20 + $0x730] sm:$0xff]
    %v6419 = vld [vmem:[#allocation20 + $0x738] sm:$0xff]
    %v6420 = vld [vmem:[#allocation20 + $0x740] sm:$0xff]
    %v6421 = vld [vmem:[#allocation20 + $0x748] sm:$0xff]
    %v6422 = vld [vmem:[#allocation20 + $0x750] sm:$0xff]
    %v6423 = vld [vmem:[#allocation20 + $0x758] sm:$0xff]
    %v6424 = vld [vmem:[#allocation20 + $0x760] sm:$0xff]
    %v6425 = vld [vmem:[#allocation20 + $0x768] sm:$0xff]
    %v6426 = vld [vmem:[#allocation20 + $0x770] sm:$0xff]
    %v6427 = vld [vmem:[#allocation20 + $0x778] sm:$0xff]
    %v6428 = vld [vmem:[#allocation20 + $0x780] sm:$0xff]
    %v6429 = vld [vmem:[#allocation20 + $0x788] sm:$0xff]
    %v6430 = vld [vmem:[#allocation20 + $0x790] sm:$0xff]
    %v6431 = vld [vmem:[#allocation20 + $0x798] sm:$0xff]
    %v6432 = vld [vmem:[#allocation20 + $0x7a0] sm:$0xff]
    %v6433 = vld [vmem:[#allocation20 + $0x7a8] sm:$0xff]
    %v6434 = vld [vmem:[#allocation20 + $0x7b0] sm:$0xff]
    %v6435 = vld [vmem:[#allocation20 + $0x7b8] sm:$0xff]
    %v6436 = vld [vmem:[#allocation20 + $0x7c0] sm:$0xff]
    %v6437 = vld [vmem:[#allocation20 + $0x7c8] sm:$0xff]
    %v6438 = vld [vmem:[#allocation20 + $0x7d0] sm:$0xff]
    %v6439 = vld [vmem:[#allocation20 + $0x7d8] sm:$0xff]
    %v6440 = vld [vmem:[#allocation20 + $0x7e0] sm:$0xff]
    %v6441 = vld [vmem:[#allocation20 + $0x7e8] sm:$0xff]
    %v6442 = vld [vmem:[#allocation20 + $0x7f0] sm:$0xff]
    %v6443 = vld [vmem:[#allocation20 + $0x7f8] sm:$0xff]
    %v6444 = vld [vmem:[#allocation20 + $0x800] sm:$0xff]
    %v6445 = vld [vmem:[#allocation20 + $0x808] sm:$0xff]
    %v6446 = vld [vmem:[#allocation20 + $0x810] sm:$0xff]
    %v6447 = vld [vmem:[#allocation20 + $0x818] sm:$0xff]
    %v6448 = vld [vmem:[#allocation20 + $0x820] sm:$0xff]
    %v6449 = vld [vmem:[#allocation20 + $0x828] sm:$0xff]
    %v6450 = vld [vmem:[#allocation20 + $0x830] sm:$0xff]
    %v6451 = vld [vmem:[#allocation20 + $0x838] sm:$0xff]
    %v6452 = vld [vmem:[#allocation20 + $0x840] sm:$0xff]
    %v6453 = vld [vmem:[#allocation20 + $0x848] sm:$0xff]
    %v6454 = vld [vmem:[#allocation20 + $0x850] sm:$0xff]
    %v6455 = vld [vmem:[#allocation20 + $0x858] sm:$0xff]
    %v6456 = vld [vmem:[#allocation20 + $0x860] sm:$0xff]
    %v6457 = vld [vmem:[#allocation20 + $0x868] sm:$0xff]
    %v6458 = vld [vmem:[#allocation20 + $0x870] sm:$0xff]
    %v6459 = vld [vmem:[#allocation20 + $0x878] sm:$0xff]
    %v6460 = vld [vmem:[#allocation20 + $0x880] sm:$0xff]
    %v6461 = vld [vmem:[#allocation20 + $0x888] sm:$0xff]
    %v6462 = vld [vmem:[#allocation20 + $0x890] sm:$0xff]
    %v6463 = vld [vmem:[#allocation20 + $0x898] sm:$0xff]
    %v6464 = vld [vmem:[#allocation20 + $0x8a0] sm:$0xff]
    %v6465 = vld [vmem:[#allocation20 + $0x8a8] sm:$0xff]
    %v6466 = vld [vmem:[#allocation20 + $0x8b0] sm:$0xff]
    %v6467 = vld [vmem:[#allocation20 + $0x8b8] sm:$0xff]
    %v6468 = vld [vmem:[#allocation20 + $0x8c0] sm:$0xff]
    %v6469 = vld [vmem:[#allocation20 + $0x8c8] sm:$0xff]
    %v6470 = vld [vmem:[#allocation20 + $0x8d0] sm:$0xff]
    %v6471 = vld [vmem:[#allocation20 + $0x8d8] sm:$0xff]
    %v6472 = vld [vmem:[#allocation20 + $0x8e0] sm:$0xff]
    %v6473 = vld [vmem:[#allocation20 + $0x8e8] sm:$0xff]
    %v6474 = vld [vmem:[#allocation20 + $0x8f0] sm:$0xff]
    %v6475 = vld [vmem:[#allocation20 + $0x8f8] sm:$0xff]
    %v6476 = vld [vmem:[#allocation20 + $0x900] sm:$0xff]
    %v6477 = vld [vmem:[#allocation20 + $0x908] sm:$0xff]
    %v6478 = vld [vmem:[#allocation20 + $0x910] sm:$0xff]
    %v6479 = vld [vmem:[#allocation20 + $0x918] sm:$0xff]
    %v6480 = vld [vmem:[#allocation20 + $0x920] sm:$0xff]
    %v6481 = vld [vmem:[#allocation20 + $0x928] sm:$0xff]
    %v6482 = vld [vmem:[#allocation20 + $0x930] sm:$0xff]
    %v6483 = vld [vmem:[#allocation20 + $0x938] sm:$0xff]
    %v6484 = vld [vmem:[#allocation20 + $0x940] sm:$0xff]
    %v6485 = vld [vmem:[#allocation20 + $0x948] sm:$0xff]
    %v6486 = vld [vmem:[#allocation20 + $0x950] sm:$0xff]
    %v6487 = vld [vmem:[#allocation20 + $0x958] sm:$0xff]
    %v6488 = vld [vmem:[#allocation20 + $0x960] sm:$0xff]
    %v6489 = vld [vmem:[#allocation20 + $0x968] sm:$0xff]
    %v6490 = vld [vmem:[#allocation20 + $0x970] sm:$0xff]
    %v6491 = vld [vmem:[#allocation20 + $0x978] sm:$0xff]
    %v6492 = vld [vmem:[#allocation20 + $0x980] sm:$0xff]
    %v6493 = vld [vmem:[#allocation20 + $0x988] sm:$0xff]
    %v6494 = vld [vmem:[#allocation20 + $0x990] sm:$0xff]
    %v6495 = vld [vmem:[#allocation20 + $0x998] sm:$0xff]
    %v6496 = vld [vmem:[#allocation20 + $0x9a0] sm:$0xff]
    %v6497 = vld [vmem:[#allocation20 + $0x9a8] sm:$0xff]
    %v6498 = vld [vmem:[#allocation20 + $0x9b0] sm:$0xff]
    %v6499 = vld [vmem:[#allocation20 + $0x9b8] sm:$0xff]
    %v6500 = vld [vmem:[#allocation20 + $0x9c0] sm:$0xff]
    %v6501 = vld [vmem:[#allocation20 + $0x9c8] sm:$0xff]
    %v6502 = vld [vmem:[#allocation20 + $0x9d0] sm:$0xff]
    %v6503 = vld [vmem:[#allocation20 + $0x9d8] sm:$0xff]
    %v6504 = vld [vmem:[#allocation20 + $0x9e0] sm:$0xff]
    %v6505 = vld [vmem:[#allocation20 + $0x9e8] sm:$0xff]
    %v6506 = vld [vmem:[#allocation20 + $0x9f0] sm:$0xff]
    %v6507 = vld [vmem:[#allocation20 + $0x9f8] sm:$0xff]
    %v6508 = vld [vmem:[#allocation20 + $0xa00] sm:$0xff]
    %v6509 = vld [vmem:[#allocation20 + $0xa08] sm:$0xff]
    %v6510 = vld [vmem:[#allocation20 + $0xa10] sm:$0xff]
    %v6511 = vld [vmem:[#allocation20 + $0xa18] sm:$0xff]
    %v6512 = vld [vmem:[#allocation20 + $0xa20] sm:$0xff]
    %v6513 = vld [vmem:[#allocation20 + $0xa28] sm:$0xff]
    %v6514 = vld [vmem:[#allocation20 + $0xa30] sm:$0xff]
    %v6515 = vld [vmem:[#allocation20 + $0xa38] sm:$0xff]
    %v6516 = vld [vmem:[#allocation20 + $0xa40] sm:$0xff]
    %v6517 = vld [vmem:[#allocation20 + $0xa48] sm:$0xff]
    %v6518 = vld [vmem:[#allocation20 + $0xa50] sm:$0xff]
    %v6519 = vld [vmem:[#allocation20 + $0xa58] sm:$0xff]
    %v6520 = vld [vmem:[#allocation20 + $0xa60] sm:$0xff]
    %v6521 = vld [vmem:[#allocation20 + $0xa68] sm:$0xff]
    %v6522 = vld [vmem:[#allocation20 + $0xa70] sm:$0xff]
    %v6523 = vld [vmem:[#allocation20 + $0xa78] sm:$0xff]
    %v6524 = vld [vmem:[#allocation20 + $0xa80] sm:$0xff]
    %v6525 = vld [vmem:[#allocation20 + $0xa88] sm:$0xff]
    %v6526 = vld [vmem:[#allocation20 + $0xa90] sm:$0xff]
    %v6527 = vld [vmem:[#allocation20 + $0xa98] sm:$0xff]
    %v6528 = vld [vmem:[#allocation20 + $0xaa0] sm:$0xff]
    %v6529 = vld [vmem:[#allocation20 + $0xaa8] sm:$0xff]
    %v6530 = vld [vmem:[#allocation20 + $0xab0] sm:$0xff]
    %v6531 = vld [vmem:[#allocation20 + $0xab8] sm:$0xff]
    %v6532 = vld [vmem:[#allocation20 + $0xac0] sm:$0xff]
    %v6533 = vld [vmem:[#allocation20 + $0xac8] sm:$0xff]
    %v6534 = vld [vmem:[#allocation20 + $0xad0] sm:$0xff]
    %v6535 = vld [vmem:[#allocation20 + $0xad8] sm:$0xff]
    %v6536 = vld [vmem:[#allocation20 + $0xae0] sm:$0xff]
    %v6537 = vld [vmem:[#allocation20 + $0xae8] sm:$0xff]
    %v6538 = vld [vmem:[#allocation20 + $0xaf0] sm:$0xff]
    %v6539 = vld [vmem:[#allocation20 + $0xaf8] sm:$0xff]
    %v6540 = vld [vmem:[#allocation20 + $0xb00] sm:$0xff]
    %v6541 = vld [vmem:[#allocation20 + $0xb08] sm:$0xff]
    %v6542 = vld [vmem:[#allocation20 + $0xb10] sm:$0xff]
    %v6543 = vld [vmem:[#allocation20 + $0xb18] sm:$0xff]
    %v6544 = vld [vmem:[#allocation20 + $0xb20] sm:$0xff]
    %v6545 = vld [vmem:[#allocation20 + $0xb28] sm:$0xff]
    %v6546 = vld [vmem:[#allocation20 + $0xb30] sm:$0xff]
    %v6547 = vld [vmem:[#allocation20 + $0xb38] sm:$0xff]
    %v6548 = vld [vmem:[#allocation20 + $0xb40] sm:$0xff]
    %v6549 = vld [vmem:[#allocation20 + $0xb48] sm:$0xff]
    %v6550 = vld [vmem:[#allocation20 + $0xb50] sm:$0xff]
    %v6551 = vld [vmem:[#allocation20 + $0xb58] sm:$0xff]
    %v6552 = vld [vmem:[#allocation20 + $0xb60] sm:$0xff]
    %v6553 = vld [vmem:[#allocation20 + $0xb68] sm:$0xff]
    %v6554 = vld [vmem:[#allocation20 + $0xb70] sm:$0xff]
    %v6555 = vld [vmem:[#allocation20 + $0xb78] sm:$0xff]
    %v6556 = vld [vmem:[#allocation20 + $0xb80] sm:$0xff]
    %v6557 = vld [vmem:[#allocation20 + $0xb88] sm:$0xff]
    %v6558 = vld [vmem:[#allocation20 + $0xb90] sm:$0xff]
    %v6559 = vld [vmem:[#allocation20 + $0xb98] sm:$0xff]
    %v6560 = vld [vmem:[#allocation20 + $0xba0] sm:$0xff]
    %v6561 = vld [vmem:[#allocation20 + $0xba8] sm:$0xff]
    %v6562 = vld [vmem:[#allocation20 + $0xbb0] sm:$0xff]
    %v6563 = vld [vmem:[#allocation20 + $0xbb8] sm:$0xff]
    %v6564 = vld [vmem:[#allocation20 + $0xbc0] sm:$0xff]
    %v6565 = vld [vmem:[#allocation20 + $0xbc8] sm:$0xff]
    %v6566 = vld [vmem:[#allocation20 + $0xbd0] sm:$0xff]
    %v6567 = vld [vmem:[#allocation20 + $0xbd8] sm:$0xff]
    %v6568 = vld [vmem:[#allocation20 + $0xbe0] sm:$0xff]
    %v6569 = vld [vmem:[#allocation20 + $0xbe8] sm:$0xff]
    %v6570 = vld [vmem:[#allocation20 + $0xbf0] sm:$0xff]
    %v6571 = vld [vmem:[#allocation20 + $0xbf8] sm:$0xff]
    %v6572 = vld [vmem:[#allocation20 + $0xc00] sm:$0xff]
    %v6573 = vld [vmem:[#allocation20 + $0xc08] sm:$0xff]
    %v6574 = vld [vmem:[#allocation20 + $0xc10] sm:$0xff]
    %v6575 = vld [vmem:[#allocation20 + $0xc18] sm:$0xff]
    %v6576 = vld [vmem:[#allocation20 + $0xc20] sm:$0xff]
    %v6577 = vld [vmem:[#allocation20 + $0xc28] sm:$0xff]
    %v6578 = vld [vmem:[#allocation20 + $0xc30] sm:$0xff]
    %v6579 = vld [vmem:[#allocation20 + $0xc38] sm:$0xff]
    %v6580 = vld [vmem:[#allocation20 + $0xc40] sm:$0xff]
    %v6581 = vld [vmem:[#allocation20 + $0xc48] sm:$0xff]
    %v6582 = vld [vmem:[#allocation20 + $0xc50] sm:$0xff]
    %v6583 = vld [vmem:[#allocation20 + $0xc58] sm:$0xff]
    %v6584 = vld [vmem:[#allocation20 + $0xc60] sm:$0xff]
    %v6585 = vld [vmem:[#allocation20 + $0xc68] sm:$0xff]
    %v6586 = vld [vmem:[#allocation20 + $0xc70] sm:$0xff]
    %v6587 = vld [vmem:[#allocation20 + $0xc78] sm:$0xff]
    %v6588 = vld [vmem:[#allocation20 + $0xc80] sm:$0xff]
    %v6589 = vld [vmem:[#allocation20 + $0xc88] sm:$0xff]
    %v6590 = vld [vmem:[#allocation20 + $0xc90] sm:$0xff]
    %v6591 = vld [vmem:[#allocation20 + $0xc98] sm:$0xff]
    %v6592 = vld [vmem:[#allocation20 + $0xca0] sm:$0xff]
    %v6593 = vld [vmem:[#allocation20 + $0xca8] sm:$0xff]
    %v6594 = vld [vmem:[#allocation20 + $0xcb0] sm:$0xff]
    %v6595 = vld [vmem:[#allocation20 + $0xcb8] sm:$0xff]
    %v6596 = vld [vmem:[#allocation20 + $0xcc0] sm:$0xff]
    %v6597 = vld [vmem:[#allocation20 + $0xcc8] sm:$0xff]
    %v6598 = vld [vmem:[#allocation20 + $0xcd0] sm:$0xff]
    %v6599 = vld [vmem:[#allocation20 + $0xcd8] sm:$0xff]
    %v6600 = vld [vmem:[#allocation20 + $0xce0] sm:$0xff]
    %v6601 = vld [vmem:[#allocation20 + $0xce8] sm:$0xff]
    %v6602 = vld [vmem:[#allocation20 + $0xcf0] sm:$0xff]
    %v6603 = vld [vmem:[#allocation20 + $0xcf8] sm:$0xff]
    %v6604 = vld [vmem:[#allocation20 + $0xd00] sm:$0xff]
    %v6605 = vld [vmem:[#allocation20 + $0xd08] sm:$0xff]
    %v6606 = vld [vmem:[#allocation20 + $0xd10] sm:$0xff]
    %v6607 = vld [vmem:[#allocation20 + $0xd18] sm:$0xff]
    %v6608 = vld [vmem:[#allocation20 + $0xd20] sm:$0xff]
    %v6609 = vld [vmem:[#allocation20 + $0xd28] sm:$0xff]
    %v6610 = vld [vmem:[#allocation20 + $0xd30] sm:$0xff]
    %v6611 = vld [vmem:[#allocation20 + $0xd38] sm:$0xff]
    %v6612 = vld [vmem:[#allocation20 + $0xd40] sm:$0xff]
    %v6613 = vld [vmem:[#allocation20 + $0xd48] sm:$0xff]
    %v6614 = vld [vmem:[#allocation20 + $0xd50] sm:$0xff]
    %v6615 = vld [vmem:[#allocation20 + $0xd58] sm:$0xff]
    %v6616 = vld [vmem:[#allocation20 + $0xd60] sm:$0xff]
    %v6617 = vld [vmem:[#allocation20 + $0xd68] sm:$0xff]
    %v6618 = vld [vmem:[#allocation20 + $0xd70] sm:$0xff]
    %v6619 = vld [vmem:[#allocation20 + $0xd78] sm:$0xff]
    %v6620 = vld [vmem:[#allocation20 + $0xd80] sm:$0xff]
    %v6621 = vld [vmem:[#allocation20 + $0xd88] sm:$0xff]
    %v6622 = vld [vmem:[#allocation20 + $0xd90] sm:$0xff]
    %v6623 = vld [vmem:[#allocation20 + $0xd98] sm:$0xff]
    %v6624 = vld [vmem:[#allocation20 + $0xda0] sm:$0xff]
    %v6625 = vld [vmem:[#allocation20 + $0xda8] sm:$0xff]
    %v6626 = vld [vmem:[#allocation20 + $0xdb0] sm:$0xff]
    %v6627 = vld [vmem:[#allocation20 + $0xdb8] sm:$0xff]
    %v6628 = vld [vmem:[#allocation20 + $0xdc0] sm:$0xff]
    %v6629 = vld [vmem:[#allocation20 + $0xdc8] sm:$0xff]
    %v6630 = vld [vmem:[#allocation20 + $0xdd0] sm:$0xff]
    %v6631 = vld [vmem:[#allocation20 + $0xdd8] sm:$0xff]
    %v6632 = vld [vmem:[#allocation20 + $0xde0] sm:$0xff]
    %v6633 = vld [vmem:[#allocation20 + $0xde8] sm:$0xff]
    %v6634 = vld [vmem:[#allocation20 + $0xdf0] sm:$0xff]
    %v6635 = vld [vmem:[#allocation20 + $0xdf8] sm:$0xff]
    %v6636 = vld [vmem:[#allocation20 + $0xe00] sm:$0xff]
    %v6637 = vld [vmem:[#allocation20 + $0xe08] sm:$0xff]
    %v6638 = vld [vmem:[#allocation20 + $0xe10] sm:$0xff]
    %v6639 = vld [vmem:[#allocation20 + $0xe18] sm:$0xff]
    %v6640 = vld [vmem:[#allocation20 + $0xe20] sm:$0xff]
    %v6641 = vld [vmem:[#allocation20 + $0xe28] sm:$0xff]
    %v6642 = vld [vmem:[#allocation20 + $0xe30] sm:$0xff]
    %v6643 = vld [vmem:[#allocation20 + $0xe38] sm:$0xff]
    %v6644 = vld [vmem:[#allocation20 + $0xe40] sm:$0xff]
    %v6645 = vld [vmem:[#allocation20 + $0xe48] sm:$0xff]
    %v6646 = vld [vmem:[#allocation20 + $0xe50] sm:$0xff]
    %v6647 = vld [vmem:[#allocation20 + $0xe58] sm:$0xff]
    %v6648 = vld [vmem:[#allocation20 + $0xe60] sm:$0xff]
    %v6649 = vld [vmem:[#allocation20 + $0xe68] sm:$0xff]
    %v6650 = vld [vmem:[#allocation20 + $0xe70] sm:$0xff]
    %v6651 = vld [vmem:[#allocation20 + $0xe78] sm:$0xff]
    %v6652 = vld [vmem:[#allocation20 + $0xe80] sm:$0xff]
    %v6653 = vld [vmem:[#allocation20 + $0xe88] sm:$0xff]
    %v6654 = vld [vmem:[#allocation20 + $0xe90] sm:$0xff]
    %v6655 = vld [vmem:[#allocation20 + $0xe98] sm:$0xff]
    %v6656 = vld [vmem:[#allocation20 + $0xea0] sm:$0xff]
    %v6657 = vld [vmem:[#allocation20 + $0xea8] sm:$0xff]
    %v6658 = vld [vmem:[#allocation20 + $0xeb0] sm:$0xff]
    %v6659 = vld [vmem:[#allocation20 + $0xeb8] sm:$0xff]
    %v6660 = vld [vmem:[#allocation20 + $0xec0] sm:$0xff]
    %v6661 = vld [vmem:[#allocation20 + $0xec8] sm:$0xff]
    %v6662 = vld [vmem:[#allocation20 + $0xed0] sm:$0xff]
    %v6663 = vld [vmem:[#allocation20 + $0xed8] sm:$0xff]
    %v6664 = vld [vmem:[#allocation20 + $0xee0] sm:$0xff]
    %v6665 = vld [vmem:[#allocation20 + $0xee8] sm:$0xff]
    %v6666 = vld [vmem:[#allocation20 + $0xef0] sm:$0xff]
    %v6667 = vld [vmem:[#allocation20 + $0xef8] sm:$0xff]
    %v6668 = vld [vmem:[#allocation20 + $0xf00] sm:$0xff]
    %v6669 = vld [vmem:[#allocation20 + $0xf08] sm:$0xff]
    %v6670 = vld [vmem:[#allocation20 + $0xf10] sm:$0xff]
    %v6671 = vld [vmem:[#allocation20 + $0xf18] sm:$0xff]
    %v6672 = vld [vmem:[#allocation20 + $0xf20] sm:$0xff]
    %v6673 = vld [vmem:[#allocation20 + $0xf28] sm:$0xff]
    %v6674 = vld [vmem:[#allocation20 + $0xf30] sm:$0xff]
    %v6675 = vld [vmem:[#allocation20 + $0xf38] sm:$0xff]
    %v6676 = vld [vmem:[#allocation20 + $0xf40] sm:$0xff]
    %v6677 = vld [vmem:[#allocation20 + $0xf48] sm:$0xff]
    %v6678 = vld [vmem:[#allocation20 + $0xf50] sm:$0xff]
    %v6679 = vld [vmem:[#allocation20 + $0xf58] sm:$0xff]
    %v6680 = vld [vmem:[#allocation20 + $0xf60] sm:$0xff]
    %v6681 = vld [vmem:[#allocation20 + $0xf68] sm:$0xff]
    %v6682 = vld [vmem:[#allocation20 + $0xf70] sm:$0xff]
    %v6683 = vld [vmem:[#allocation20 + $0xf78] sm:$0xff]
    %v6684 = vld [vmem:[#allocation20 + $0xf80] sm:$0xff]
    %v6685 = vld [vmem:[#allocation20 + $0xf88] sm:$0xff]
    %v6686 = vld [vmem:[#allocation20 + $0xf90] sm:$0xff]
    %v6687 = vld [vmem:[#allocation20 + $0xf98] sm:$0xff]
    %v6688 = vld [vmem:[#allocation20 + $0xfa0] sm:$0xff]
    %v6689 = vld [vmem:[#allocation20 + $0xfa8] sm:$0xff]
    %v6690 = vld [vmem:[#allocation20 + $0xfb0] sm:$0xff]
    %v6691 = vld [vmem:[#allocation20 + $0xfb8] sm:$0xff]
    %v6692 = vld [vmem:[#allocation20 + $0xfc0] sm:$0xff]
    %v6693 = vld [vmem:[#allocation20 + $0xfc8] sm:$0xff]
    %v6694 = vld [vmem:[#allocation20 + $0xfd0] sm:$0xff]
    %v6695 = vld [vmem:[#allocation20 + $0xfd8] sm:$0xff]
    %v6696 = vld [vmem:[#allocation20 + $0xfe0] sm:$0xff]
    %v6697 = vld [vmem:[#allocation20 + $0xfe8] sm:$0xff]
    %v6698 = vld [vmem:[#allocation20 + $0xff0] sm:$0xff]
    %v6699 = vld [vmem:[#allocation20 + $0xff8] sm:$0xff]
    %v6700 = vld [vmem:[#allocation20 + $0x1000] sm:$0xff]
    %v6701 = vld [vmem:[#allocation20 + $0x1008] sm:$0xff]
    %v6702 = vld [vmem:[#allocation20 + $0x1010] sm:$0xff]
    %v6703 = vld [vmem:[#allocation20 + $0x1018] sm:$0xff]
    %v6704 = vld [vmem:[#allocation20 + $0x1020] sm:$0xff]
    %v6705 = vld [vmem:[#allocation20 + $0x1028] sm:$0xff]
    %v6706 = vld [vmem:[#allocation20 + $0x1030] sm:$0xff]
    %v6707 = vld [vmem:[#allocation20 + $0x1038] sm:$0xff]
    %v6708 = vld [vmem:[#allocation20 + $0x1040] sm:$0xff]
    %v6709 = vld [vmem:[#allocation20 + $0x1048] sm:$0xff]
    %v6710 = vld [vmem:[#allocation20 + $0x1050] sm:$0xff]
    %v6711 = vld [vmem:[#allocation20 + $0x1058] sm:$0xff]
    %v6712 = vld [vmem:[#allocation20 + $0x1060] sm:$0xff]
    %v6713 = vld [vmem:[#allocation20 + $0x1068] sm:$0xff]
    %v6714 = vld [vmem:[#allocation20 + $0x1070] sm:$0xff]
    %v6715 = vld [vmem:[#allocation20 + $0x1078] sm:$0xff]
    %v6716 = vld [vmem:[#allocation20 + $0x1080] sm:$0xff]
    %v6717 = vld [vmem:[#allocation20 + $0x1088] sm:$0xff]
    %v6718 = vld [vmem:[#allocation20 + $0x1090] sm:$0xff]
    %v6719 = vld [vmem:[#allocation20 + $0x1098] sm:$0xff]
    %v6720 = vld [vmem:[#allocation20 + $0x10a0] sm:$0xff]
    %v6721 = vld [vmem:[#allocation20 + $0x10a8] sm:$0xff]
    %v6722 = vld [vmem:[#allocation20 + $0x10b0] sm:$0xff]
    %v6723 = vld [vmem:[#allocation20 + $0x10b8] sm:$0xff]
    %v6724 = vld [vmem:[#allocation20 + $0x10c0] sm:$0xff]
    %v6725 = vld [vmem:[#allocation20 + $0x10c8] sm:$0xff]
    %v6726 = vld [vmem:[#allocation20 + $0x10d0] sm:$0xff]
    %v6727 = vld [vmem:[#allocation20 + $0x10d8] sm:$0xff]
    %v6728 = vld [vmem:[#allocation20 + $0x10e0] sm:$0xff]
    %v6729 = vld [vmem:[#allocation20 + $0x10e8] sm:$0xff]
    %v6730 = vld [vmem:[#allocation20 + $0x10f0] sm:$0xff]
    %v6731 = vld [vmem:[#allocation20 + $0x10f8] sm:$0xff]
    %v6732 = vld [vmem:[#allocation20 + $0x1100] sm:$0xff]
    %v6733 = vld [vmem:[#allocation20 + $0x1108] sm:$0xff]
    %v6734 = vld [vmem:[#allocation20 + $0x1110] sm:$0xff]
    %v6735 = vld [vmem:[#allocation20 + $0x1118] sm:$0xff]
    %v6736 = vld [vmem:[#allocation20 + $0x1120] sm:$0xff]
    %v6737 = vld [vmem:[#allocation20 + $0x1128] sm:$0xff]
    %v6738 = vld [vmem:[#allocation20 + $0x1130] sm:$0xff]
    %v6739 = vld [vmem:[#allocation20 + $0x1138] sm:$0xff]
    %v6740 = vld [vmem:[#allocation20 + $0x1140] sm:$0xff]
    %v6741 = vld [vmem:[#allocation20 + $0x1148] sm:$0xff]
    %v6742 = vld [vmem:[#allocation20 + $0x1150] sm:$0xff]
    %v6743 = vld [vmem:[#allocation20 + $0x1158] sm:$0xff]
    %v6744 = vld [vmem:[#allocation20 + $0x1160] sm:$0xff]
    %v6745 = vld [vmem:[#allocation20 + $0x1168] sm:$0xff]
    %v6746 = vld [vmem:[#allocation20 + $0x1170] sm:$0xff]
    %v6747 = vld [vmem:[#allocation20 + $0x1178] sm:$0xff]
    %v6748 = vld [vmem:[#allocation20 + $0x1180] sm:$0xff]
    %v6749 = vld [vmem:[#allocation20 + $0x1188] sm:$0xff]
    %v6750 = vld [vmem:[#allocation20 + $0x1190] sm:$0xff]
    %v6751 = vld [vmem:[#allocation20 + $0x1198] sm:$0xff]
    %v6752 = vld [vmem:[#allocation20 + $0x11a0] sm:$0xff]
    %v6753 = vld [vmem:[#allocation20 + $0x11a8] sm:$0xff]
    %v6754 = vld [vmem:[#allocation20 + $0x11b0] sm:$0xff]
    %v6755 = vld [vmem:[#allocation20 + $0x11b8] sm:$0xff]
    %v6756 = vld [vmem:[#allocation20 + $0x11c0] sm:$0xff]
    %v6757 = vld [vmem:[#allocation20 + $0x11c8] sm:$0xff]
    %v6758 = vld [vmem:[#allocation20 + $0x11d0] sm:$0xff]
    %v6759 = vld [vmem:[#allocation20 + $0x11d8] sm:$0xff]
    %v6760 = vld [vmem:[#allocation20 + $0x11e0] sm:$0xff]
    %v6761 = vld [vmem:[#allocation20 + $0x11e8] sm:$0xff]
    %v6762 = vld [vmem:[#allocation20 + $0x11f0] sm:$0xff]
    %v6763 = vld [vmem:[#allocation20 + $0x11f8] sm:$0xff]
    %v6764 = vld [vmem:[#allocation20 + $0x1200] sm:$0xff]
    %v6765 = vld [vmem:[#allocation20 + $0x1208] sm:$0xff]
    %v6766 = vld [vmem:[#allocation20 + $0x1210] sm:$0xff]
    %v6767 = vld [vmem:[#allocation20 + $0x1218] sm:$0xff]
    %v6768 = vld [vmem:[#allocation20 + $0x1220] sm:$0xff]
    %v6769 = vld [vmem:[#allocation20 + $0x1228] sm:$0xff]
    %v6770 = vld [vmem:[#allocation20 + $0x1230] sm:$0xff]
    %v6771 = vld [vmem:[#allocation20 + $0x1238] sm:$0xff]
    %v6772 = vld [vmem:[#allocation20 + $0x1240] sm:$0xff]
    %v6773 = vld [vmem:[#allocation20 + $0x1248] sm:$0xff]
    %v6774 = vld [vmem:[#allocation20 + $0x1250] sm:$0xff]
    %v6775 = vld [vmem:[#allocation20 + $0x1258] sm:$0xff]
    %v6776 = vld [vmem:[#allocation20 + $0x1260] sm:$0xff]
    %v6777 = vld [vmem:[#allocation20 + $0x1268] sm:$0xff]
    %v6778 = vld [vmem:[#allocation20 + $0x1270] sm:$0xff]
    %v6779 = vld [vmem:[#allocation20 + $0x1278] sm:$0xff]
    %v6780 = vld [vmem:[#allocation20 + $0x1280] sm:$0xff]
    %v6781 = vld [vmem:[#allocation20 + $0x1288] sm:$0xff]
    %v6782 = vld [vmem:[#allocation20 + $0x1290] sm:$0xff]
    %v6783 = vld [vmem:[#allocation20 + $0x1298] sm:$0xff]
    %v6784 = vld [vmem:[#allocation20 + $0x12a0] sm:$0xff]
    %v6785 = vld [vmem:[#allocation20 + $0x12a8] sm:$0xff]
    %v6786 = vld [vmem:[#allocation20 + $0x12b0] sm:$0xff]
    %v6787 = vld [vmem:[#allocation20 + $0x12b8] sm:$0xff]
    %v6788 = vld [vmem:[#allocation21] sm:$0xff]
    %v7389 = vunpack.c.l.b16 %v6188
    %v7390 = vunpack.c.h.b16 %v6188
    %v7391 = vunpack.c.l.b16 %v6189
    %v7392 = vunpack.c.h.b16 %v6189
    %v7393 = vunpack.c.l.b16 %v6190
    %v7394 = vunpack.c.h.b16 %v6190
    %v7395 = vunpack.c.l.b16 %v6191
    %v7396 = vunpack.c.h.b16 %v6191
    %v7397 = vunpack.c.l.b16 %v6192
    %v7398 = vunpack.c.h.b16 %v6192
    %v7399 = vunpack.c.l.b16 %v6193
    %v7400 = vunpack.c.h.b16 %v6193
    %v7401 = vunpack.c.l.b16 %v6194
    %v7402 = vunpack.c.h.b16 %v6194
    %v7403 = vunpack.c.l.b16 %v6195
    %v7404 = vunpack.c.h.b16 %v6195
    %v7405 = vunpack.c.l.b16 %v6196
    %v7406 = vunpack.c.h.b16 %v6196
    %v7407 = vunpack.c.l.b16 %v6197
    %v7408 = vunpack.c.h.b16 %v6197
    %v7409 = vunpack.c.l.b16 %v6198
    %v7410 = vunpack.c.h.b16 %v6198
    %v7411 = vunpack.c.l.b16 %v6199
    %v7412 = vunpack.c.h.b16 %v6199
    %v7413 = vunpack.c.l.b16 %v6200
    %v7414 = vunpack.c.h.b16 %v6200
    %v7415 = vunpack.c.l.b16 %v6201
    %v7416 = vunpack.c.h.b16 %v6201
    %v7417 = vunpack.c.l.b16 %v6202
    %v7418 = vunpack.c.h.b16 %v6202
    %v7419 = vunpack.c.l.b16 %v6203
    %v7420 = vunpack.c.h.b16 %v6203
    %v7421 = vunpack.c.l.b16 %v6204
    %v7422 = vunpack.c.h.b16 %v6204
    %v7423 = vunpack.c.l.b16 %v6205
    %v7424 = vunpack.c.h.b16 %v6205
    %v7425 = vunpack.c.l.b16 %v6206
    %v7426 = vunpack.c.h.b16 %v6206
    %v7427 = vunpack.c.l.b16 %v6207
    %v7428 = vunpack.c.h.b16 %v6207
    %v7429 = vunpack.c.l.b16 %v6208
    %v7430 = vunpack.c.h.b16 %v6208
    %v7431 = vunpack.c.l.b16 %v6209
    %v7432 = vunpack.c.h.b16 %v6209
    %v7433 = vunpack.c.l.b16 %v6210
    %v7434 = vunpack.c.h.b16 %v6210
    %v7435 = vunpack.c.l.b16 %v6211
    %v7436 = vunpack.c.h.b16 %v6211
    %v7437 = vunpack.c.l.b16 %v6212
    %v7438 = vunpack.c.h.b16 %v6212
    %v7439 = vunpack.c.l.b16 %v6213
    %v7440 = vunpack.c.h.b16 %v6213
    %v7441 = vunpack.c.l.b16 %v6214
    %v7442 = vunpack.c.h.b16 %v6214
    %v7443 = vunpack.c.l.b16 %v6215
    %v7444 = vunpack.c.h.b16 %v6215
    %v7445 = vunpack.c.l.b16 %v6216
    %v7446 = vunpack.c.h.b16 %v6216
    %v7447 = vunpack.c.l.b16 %v6217
    %v7448 = vunpack.c.h.b16 %v6217
    %v7449 = vunpack.c.l.b16 %v6218
    %v7450 = vunpack.c.h.b16 %v6218
    %v7451 = vunpack.c.l.b16 %v6219
    %v7452 = vunpack.c.h.b16 %v6219
    %v7453 = vunpack.c.l.b16 %v6220
    %v7454 = vunpack.c.h.b16 %v6220
    %v7455 = vunpack.c.l.b16 %v6221
    %v7456 = vunpack.c.h.b16 %v6221
    %v7457 = vunpack.c.l.b16 %v6222
    %v7458 = vunpack.c.h.b16 %v6222
    %v7459 = vunpack.c.l.b16 %v6223
    %v7460 = vunpack.c.h.b16 %v6223
    %v7461 = vunpack.c.l.b16 %v6224
    %v7462 = vunpack.c.h.b16 %v6224
    %v7463 = vunpack.c.l.b16 %v6225
    %v7464 = vunpack.c.h.b16 %v6225
    %v7465 = vunpack.c.l.b16 %v6226
    %v7466 = vunpack.c.h.b16 %v6226
    %v7467 = vunpack.c.l.b16 %v6227
    %v7468 = vunpack.c.h.b16 %v6227
    %v7469 = vunpack.c.l.b16 %v6228
    %v7470 = vunpack.c.h.b16 %v6228
    %v7471 = vunpack.c.l.b16 %v6229
    %v7472 = vunpack.c.h.b16 %v6229
    %v7473 = vunpack.c.l.b16 %v6230
    %v7474 = vunpack.c.h.b16 %v6230
    %v7475 = vunpack.c.l.b16 %v6231
    %v7476 = vunpack.c.h.b16 %v6231
    %v7477 = vunpack.c.l.b16 %v6232
    %v7478 = vunpack.c.h.b16 %v6232
    %v7479 = vunpack.c.l.b16 %v6233
    %v7480 = vunpack.c.h.b16 %v6233
    %v7481 = vunpack.c.l.b16 %v6234
    %v7482 = vunpack.c.h.b16 %v6234
    %v7483 = vunpack.c.l.b16 %v6235
    %v7484 = vunpack.c.h.b16 %v6235
    %v7485 = vunpack.c.l.b16 %v6236
    %v7486 = vunpack.c.h.b16 %v6236
    %v7487 = vunpack.c.l.b16 %v6237
    %v7488 = vunpack.c.h.b16 %v6237
    %v7489 = vunpack.c.l.b16 %v6238
    %v7490 = vunpack.c.h.b16 %v6238
    %v7491 = vunpack.c.l.b16 %v6239
    %v7492 = vunpack.c.h.b16 %v6239
    %v7493 = vunpack.c.l.b16 %v6240
    %v7494 = vunpack.c.h.b16 %v6240
    %v7495 = vunpack.c.l.b16 %v6241
    %v7496 = vunpack.c.h.b16 %v6241
    %v7497 = vunpack.c.l.b16 %v6242
    %v7498 = vunpack.c.h.b16 %v6242
    %v7499 = vunpack.c.l.b16 %v6243
    %v7500 = vunpack.c.h.b16 %v6243
    %v7501 = vunpack.c.l.b16 %v6244
    %v7502 = vunpack.c.h.b16 %v6244
    %v7503 = vunpack.c.l.b16 %v6245
    %v7504 = vunpack.c.h.b16 %v6245
    %v7505 = vunpack.c.l.b16 %v6246
    %v7506 = vunpack.c.h.b16 %v6246
    %v7507 = vunpack.c.l.b16 %v6247
    %v7508 = vunpack.c.h.b16 %v6247
    %v7509 = vunpack.c.l.b16 %v6248
    %v7510 = vunpack.c.h.b16 %v6248
    %v7511 = vunpack.c.l.b16 %v6249
    %v7512 = vunpack.c.h.b16 %v6249
    %v7513 = vunpack.c.l.b16 %v6250
    %v7514 = vunpack.c.h.b16 %v6250
    %v7515 = vunpack.c.l.b16 %v6251
    %v7516 = vunpack.c.h.b16 %v6251
    %v7517 = vunpack.c.l.b16 %v6252
    %v7518 = vunpack.c.h.b16 %v6252
    %v7519 = vunpack.c.l.b16 %v6253
    %v7520 = vunpack.c.h.b16 %v6253
    %v7521 = vunpack.c.l.b16 %v6254
    %v7522 = vunpack.c.h.b16 %v6254
    %v7523 = vunpack.c.l.b16 %v6255
    %v7524 = vunpack.c.h.b16 %v6255
    %v7525 = vunpack.c.l.b16 %v6256
    %v7526 = vunpack.c.h.b16 %v6256
    %v7527 = vunpack.c.l.b16 %v6257
    %v7528 = vunpack.c.h.b16 %v6257
    %v7529 = vunpack.c.l.b16 %v6258
    %v7530 = vunpack.c.h.b16 %v6258
    %v7531 = vunpack.c.l.b16 %v6259
    %v7532 = vunpack.c.h.b16 %v6259
    %v7533 = vunpack.c.l.b16 %v6260
    %v7534 = vunpack.c.h.b16 %v6260
    %v7535 = vunpack.c.l.b16 %v6261
    %v7536 = vunpack.c.h.b16 %v6261
    %v7537 = vunpack.c.l.b16 %v6262
    %v7538 = vunpack.c.h.b16 %v6262
    %v7539 = vunpack.c.l.b16 %v6263
    %v7540 = vunpack.c.h.b16 %v6263
    %v7541 = vunpack.c.l.b16 %v6264
    %v7542 = vunpack.c.h.b16 %v6264
    %v7543 = vunpack.c.l.b16 %v6265
    %v7544 = vunpack.c.h.b16 %v6265
    %v7545 = vunpack.c.l.b16 %v6266
    %v7546 = vunpack.c.h.b16 %v6266
    %v7547 = vunpack.c.l.b16 %v6267
    %v7548 = vunpack.c.h.b16 %v6267
    %v7549 = vunpack.c.l.b16 %v6268
    %v7550 = vunpack.c.h.b16 %v6268
    %v7551 = vunpack.c.l.b16 %v6269
    %v7552 = vunpack.c.h.b16 %v6269
    %v7553 = vunpack.c.l.b16 %v6270
    %v7554 = vunpack.c.h.b16 %v6270
    %v7555 = vunpack.c.l.b16 %v6271
    %v7556 = vunpack.c.h.b16 %v6271
    %v7557 = vunpack.c.l.b16 %v6272
    %v7558 = vunpack.c.h.b16 %v6272
    %v7559 = vunpack.c.l.b16 %v6273
    %v7560 = vunpack.c.h.b16 %v6273
    %v7561 = vunpack.c.l.b16 %v6274
    %v7562 = vunpack.c.h.b16 %v6274
    %v7563 = vunpack.c.l.b16 %v6275
    %v7564 = vunpack.c.h.b16 %v6275
    %v7565 = vunpack.c.l.b16 %v6276
    %v7566 = vunpack.c.h.b16 %v6276
    %v7567 = vunpack.c.l.b16 %v6277
    %v7568 = vunpack.c.h.b16 %v6277
    %v7569 = vunpack.c.l.b16 %v6278
    %v7570 = vunpack.c.h.b16 %v6278
    %v7571 = vunpack.c.l.b16 %v6279
    %v7572 = vunpack.c.h.b16 %v6279
    %v7573 = vunpack.c.l.b16 %v6280
    %v7574 = vunpack.c.h.b16 %v6280
    %v7575 = vunpack.c.l.b16 %v6281
    %v7576 = vunpack.c.h.b16 %v6281
    %v7577 = vunpack.c.l.b16 %v6282
    %v7578 = vunpack.c.h.b16 %v6282
    %v7579 = vunpack.c.l.b16 %v6283
    %v7580 = vunpack.c.h.b16 %v6283
    %v7581 = vunpack.c.l.b16 %v6284
    %v7582 = vunpack.c.h.b16 %v6284
    %v7583 = vunpack.c.l.b16 %v6285
    %v7584 = vunpack.c.h.b16 %v6285
    %v7585 = vunpack.c.l.b16 %v6286
    %v7586 = vunpack.c.h.b16 %v6286
    %v7587 = vunpack.c.l.b16 %v6287
    %v7588 = vunpack.c.h.b16 %v6287
    %v7589 = vunpack.c.l.b16 %v6288
    %v7590 = vunpack.c.h.b16 %v6288
    %v7591 = vunpack.c.l.b16 %v6289
    %v7592 = vunpack.c.h.b16 %v6289
    %v7593 = vunpack.c.l.b16 %v6290
    %v7594 = vunpack.c.h.b16 %v6290
    %v7595 = vunpack.c.l.b16 %v6291
    %v7596 = vunpack.c.h.b16 %v6291
    %v7597 = vunpack.c.l.b16 %v6292
    %v7598 = vunpack.c.h.b16 %v6292
    %v7599 = vunpack.c.l.b16 %v6293
    %v7600 = vunpack.c.h.b16 %v6293
    %v7601 = vunpack.c.l.b16 %v6294
    %v7602 = vunpack.c.h.b16 %v6294
    %v7603 = vunpack.c.l.b16 %v6295
    %v7604 = vunpack.c.h.b16 %v6295
    %v7605 = vunpack.c.l.b16 %v6296
    %v7606 = vunpack.c.h.b16 %v6296
    %v7607 = vunpack.c.l.b16 %v6297
    %v7608 = vunpack.c.h.b16 %v6297
    %v7609 = vunpack.c.l.b16 %v6298
    %v7610 = vunpack.c.h.b16 %v6298
    %v7611 = vunpack.c.l.b16 %v6299
    %v7612 = vunpack.c.h.b16 %v6299
    %v7613 = vunpack.c.l.b16 %v6300
    %v7614 = vunpack.c.h.b16 %v6300
    %v7615 = vunpack.c.l.b16 %v6301
    %v7616 = vunpack.c.h.b16 %v6301
    %v7617 = vunpack.c.l.b16 %v6302
    %v7618 = vunpack.c.h.b16 %v6302
    %v7619 = vunpack.c.l.b16 %v6303
    %v7620 = vunpack.c.h.b16 %v6303
    %v7621 = vunpack.c.l.b16 %v6304
    %v7622 = vunpack.c.h.b16 %v6304
    %v7623 = vunpack.c.l.b16 %v6305
    %v7624 = vunpack.c.h.b16 %v6305
    %v7625 = vunpack.c.l.b16 %v6306
    %v7626 = vunpack.c.h.b16 %v6306
    %v7627 = vunpack.c.l.b16 %v6307
    %v7628 = vunpack.c.h.b16 %v6307
    %v7629 = vunpack.c.l.b16 %v6308
    %v7630 = vunpack.c.h.b16 %v6308
    %v7631 = vunpack.c.l.b16 %v6309
    %v7632 = vunpack.c.h.b16 %v6309
    %v7633 = vunpack.c.l.b16 %v6310
    %v7634 = vunpack.c.h.b16 %v6310
    %v7635 = vunpack.c.l.b16 %v6311
    %v7636 = vunpack.c.h.b16 %v6311
    %v7637 = vunpack.c.l.b16 %v6312
    %v7638 = vunpack.c.h.b16 %v6312
    %v7639 = vunpack.c.l.b16 %v6313
    %v7640 = vunpack.c.h.b16 %v6313
    %v7641 = vunpack.c.l.b16 %v6314
    %v7642 = vunpack.c.h.b16 %v6314
    %v7643 = vunpack.c.l.b16 %v6315
    %v7644 = vunpack.c.h.b16 %v6315
    %v7645 = vunpack.c.l.b16 %v6316
    %v7646 = vunpack.c.h.b16 %v6316
    %v7647 = vunpack.c.l.b16 %v6317
    %v7648 = vunpack.c.h.b16 %v6317
    %v7649 = vunpack.c.l.b16 %v6318
    %v7650 = vunpack.c.h.b16 %v6318
    %v7651 = vunpack.c.l.b16 %v6319
    %v7652 = vunpack.c.h.b16 %v6319
    %v7653 = vunpack.c.l.b16 %v6320
    %v7654 = vunpack.c.h.b16 %v6320
    %v7655 = vunpack.c.l.b16 %v6321
    %v7656 = vunpack.c.h.b16 %v6321
    %v7657 = vunpack.c.l.b16 %v6322
    %v7658 = vunpack.c.h.b16 %v6322
    %v7659 = vunpack.c.l.b16 %v6323
    %v7660 = vunpack.c.h.b16 %v6323
    %v7661 = vunpack.c.l.b16 %v6324
    %v7662 = vunpack.c.h.b16 %v6324
    %v7663 = vunpack.c.l.b16 %v6325
    %v7664 = vunpack.c.h.b16 %v6325
    %v7665 = vunpack.c.l.b16 %v6326
    %v7666 = vunpack.c.h.b16 %v6326
    %v7667 = vunpack.c.l.b16 %v6327
    %v7668 = vunpack.c.h.b16 %v6327
    %v7669 = vunpack.c.l.b16 %v6328
    %v7670 = vunpack.c.h.b16 %v6328
    %v7671 = vunpack.c.l.b16 %v6329
    %v7672 = vunpack.c.h.b16 %v6329
    %v7673 = vunpack.c.l.b16 %v6330
    %v7674 = vunpack.c.h.b16 %v6330
    %v7675 = vunpack.c.l.b16 %v6331
    %v7676 = vunpack.c.h.b16 %v6331
    %v7677 = vunpack.c.l.b16 %v6332
    %v7678 = vunpack.c.h.b16 %v6332
    %v7679 = vunpack.c.l.b16 %v6333
    %v7680 = vunpack.c.h.b16 %v6333
    %v7681 = vunpack.c.l.b16 %v6334
    %v7682 = vunpack.c.h.b16 %v6334
    %v7683 = vunpack.c.l.b16 %v6335
    %v7684 = vunpack.c.h.b16 %v6335
    %v7685 = vunpack.c.l.b16 %v6336
    %v7686 = vunpack.c.h.b16 %v6336
    %v7687 = vunpack.c.l.b16 %v6337
    %v7688 = vunpack.c.h.b16 %v6337
    %v7689 = vunpack.c.l.b16 %v6338
    %v7690 = vunpack.c.h.b16 %v6338
    %v7691 = vunpack.c.l.b16 %v6339
    %v7692 = vunpack.c.h.b16 %v6339
    %v7693 = vunpack.c.l.b16 %v6340
    %v7694 = vunpack.c.h.b16 %v6340
    %v7695 = vunpack.c.l.b16 %v6341
    %v7696 = vunpack.c.h.b16 %v6341
    %v7697 = vunpack.c.l.b16 %v6342
    %v7698 = vunpack.c.h.b16 %v6342
    %v7699 = vunpack.c.l.b16 %v6343
    %v7700 = vunpack.c.h.b16 %v6343
    %v7701 = vunpack.c.l.b16 %v6344
    %v7702 = vunpack.c.h.b16 %v6344
    %v7703 = vunpack.c.l.b16 %v6345
    %v7704 = vunpack.c.h.b16 %v6345
    %v7705 = vunpack.c.l.b16 %v6346
    %v7706 = vunpack.c.h.b16 %v6346
    %v7707 = vunpack.c.l.b16 %v6347
    %v7708 = vunpack.c.h.b16 %v6347
    %v7709 = vunpack.c.l.b16 %v6348
    %v7710 = vunpack.c.h.b16 %v6348
    %v7711 = vunpack.c.l.b16 %v6349
    %v7712 = vunpack.c.h.b16 %v6349
    %v7713 = vunpack.c.l.b16 %v6350
    %v7714 = vunpack.c.h.b16 %v6350
    %v7715 = vunpack.c.l.b16 %v6351
    %v7716 = vunpack.c.h.b16 %v6351
    %v7717 = vunpack.c.l.b16 %v6352
    %v7718 = vunpack.c.h.b16 %v6352
    %v7719 = vunpack.c.l.b16 %v6353
    %v7720 = vunpack.c.h.b16 %v6353
    %v7721 = vunpack.c.l.b16 %v6354
    %v7722 = vunpack.c.h.b16 %v6354
    %v7723 = vunpack.c.l.b16 %v6355
    %v7724 = vunpack.c.h.b16 %v6355
    %v7725 = vunpack.c.l.b16 %v6356
    %v7726 = vunpack.c.h.b16 %v6356
    %v7727 = vunpack.c.l.b16 %v6357
    %v7728 = vunpack.c.h.b16 %v6357
    %v7729 = vunpack.c.l.b16 %v6358
    %v7730 = vunpack.c.h.b16 %v6358
    %v7731 = vunpack.c.l.b16 %v6359
    %v7732 = vunpack.c.h.b16 %v6359
    %v7733 = vunpack.c.l.b16 %v6360
    %v7734 = vunpack.c.h.b16 %v6360
    %v7735 = vunpack.c.l.b16 %v6361
    %v7736 = vunpack.c.h.b16 %v6361
    %v7737 = vunpack.c.l.b16 %v6362
    %v7738 = vunpack.c.h.b16 %v6362
    %v7739 = vunpack.c.l.b16 %v6363
    %v7740 = vunpack.c.h.b16 %v6363
    %v7741 = vunpack.c.l.b16 %v6364
    %v7742 = vunpack.c.h.b16 %v6364
    %v7743 = vunpack.c.l.b16 %v6365
    %v7744 = vunpack.c.h.b16 %v6365
    %v7745 = vunpack.c.l.b16 %v6366
    %v7746 = vunpack.c.h.b16 %v6366
    %v7747 = vunpack.c.l.b16 %v6367
    %v7748 = vunpack.c.h.b16 %v6367
    %v7749 = vunpack.c.l.b16 %v6368
    %v7750 = vunpack.c.h.b16 %v6368
    %v7751 = vunpack.c.l.b16 %v6369
    %v7752 = vunpack.c.h.b16 %v6369
    %v7753 = vunpack.c.l.b16 %v6370
    %v7754 = vunpack.c.h.b16 %v6370
    %v7755 = vunpack.c.l.b16 %v6371
    %v7756 = vunpack.c.h.b16 %v6371
    %v7757 = vunpack.c.l.b16 %v6372
    %v7758 = vunpack.c.h.b16 %v6372
    %v7759 = vunpack.c.l.b16 %v6373
    %v7760 = vunpack.c.h.b16 %v6373
    %v7761 = vunpack.c.l.b16 %v6374
    %v7762 = vunpack.c.h.b16 %v6374
    %v7763 = vunpack.c.l.b16 %v6375
    %v7764 = vunpack.c.h.b16 %v6375
    %v7765 = vunpack.c.l.b16 %v6376
    %v7766 = vunpack.c.h.b16 %v6376
    %v7767 = vunpack.c.l.b16 %v6377
    %v7768 = vunpack.c.h.b16 %v6377
    %v7769 = vunpack.c.l.b16 %v6378
    %v7770 = vunpack.c.h.b16 %v6378
    %v7771 = vunpack.c.l.b16 %v6379
    %v7772 = vunpack.c.h.b16 %v6379
    %v7773 = vunpack.c.l.b16 %v6380
    %v7774 = vunpack.c.h.b16 %v6380
    %v7775 = vunpack.c.l.b16 %v6381
    %v7776 = vunpack.c.h.b16 %v6381
    %v7777 = vunpack.c.l.b16 %v6382
    %v7778 = vunpack.c.h.b16 %v6382
    %v7779 = vunpack.c.l.b16 %v6383
    %v7780 = vunpack.c.h.b16 %v6383
    %v7781 = vunpack.c.l.b16 %v6384
    %v7782 = vunpack.c.h.b16 %v6384
    %v7783 = vunpack.c.l.b16 %v6385
    %v7784 = vunpack.c.h.b16 %v6385
    %v7785 = vunpack.c.l.b16 %v6386
    %v7786 = vunpack.c.h.b16 %v6386
    %v7787 = vunpack.c.l.b16 %v6387
    %v7788 = vunpack.c.h.b16 %v6387
    %v7789 = vunpack.c.l.b16 %v6388
    %v7790 = vunpack.c.h.b16 %v6388
    %v7791 = vunpack.c.l.b16 %v6389
    %v7792 = vunpack.c.h.b16 %v6389
    %v7793 = vunpack.c.l.b16 %v6390
    %v7794 = vunpack.c.h.b16 %v6390
    %v7795 = vunpack.c.l.b16 %v6391
    %v7796 = vunpack.c.h.b16 %v6391
    %v7797 = vunpack.c.l.b16 %v6392
    %v7798 = vunpack.c.h.b16 %v6392
    %v7799 = vunpack.c.l.b16 %v6393
    %v7800 = vunpack.c.h.b16 %v6393
    %v7801 = vunpack.c.l.b16 %v6394
    %v7802 = vunpack.c.h.b16 %v6394
    %v7803 = vunpack.c.l.b16 %v6395
    %v7804 = vunpack.c.h.b16 %v6395
    %v7805 = vunpack.c.l.b16 %v6396
    %v7806 = vunpack.c.h.b16 %v6396
    %v7807 = vunpack.c.l.b16 %v6397
    %v7808 = vunpack.c.h.b16 %v6397
    %v7809 = vunpack.c.l.b16 %v6398
    %v7810 = vunpack.c.h.b16 %v6398
    %v7811 = vunpack.c.l.b16 %v6399
    %v7812 = vunpack.c.h.b16 %v6399
    %v7813 = vunpack.c.l.b16 %v6400
    %v7814 = vunpack.c.h.b16 %v6400
    %v7815 = vunpack.c.l.b16 %v6401
    %v7816 = vunpack.c.h.b16 %v6401
    %v7817 = vunpack.c.l.b16 %v6402
    %v7818 = vunpack.c.h.b16 %v6402
    %v7819 = vunpack.c.l.b16 %v6403
    %v7820 = vunpack.c.h.b16 %v6403
    %v7821 = vunpack.c.l.b16 %v6404
    %v7822 = vunpack.c.h.b16 %v6404
    %v7823 = vunpack.c.l.b16 %v6405
    %v7824 = vunpack.c.h.b16 %v6405
    %v7825 = vunpack.c.l.b16 %v6406
    %v7826 = vunpack.c.h.b16 %v6406
    %v7827 = vunpack.c.l.b16 %v6407
    %v7828 = vunpack.c.h.b16 %v6407
    %v7829 = vunpack.c.l.b16 %v6408
    %v7830 = vunpack.c.h.b16 %v6408
    %v7831 = vunpack.c.l.b16 %v6409
    %v7832 = vunpack.c.h.b16 %v6409
    %v7833 = vunpack.c.l.b16 %v6410
    %v7834 = vunpack.c.h.b16 %v6410
    %v7835 = vunpack.c.l.b16 %v6411
    %v7836 = vunpack.c.h.b16 %v6411
    %v7837 = vunpack.c.l.b16 %v6412
    %v7838 = vunpack.c.h.b16 %v6412
    %v7839 = vunpack.c.l.b16 %v6413
    %v7840 = vunpack.c.h.b16 %v6413
    %v7841 = vunpack.c.l.b16 %v6414
    %v7842 = vunpack.c.h.b16 %v6414
    %v7843 = vunpack.c.l.b16 %v6415
    %v7844 = vunpack.c.h.b16 %v6415
    %v7845 = vunpack.c.l.b16 %v6416
    %v7846 = vunpack.c.h.b16 %v6416
    %v7847 = vunpack.c.l.b16 %v6417
    %v7848 = vunpack.c.h.b16 %v6417
    %v7849 = vunpack.c.l.b16 %v6418
    %v7850 = vunpack.c.h.b16 %v6418
    %v7851 = vunpack.c.l.b16 %v6419
    %v7852 = vunpack.c.h.b16 %v6419
    %v7853 = vunpack.c.l.b16 %v6420
    %v7854 = vunpack.c.h.b16 %v6420
    %v7855 = vunpack.c.l.b16 %v6421
    %v7856 = vunpack.c.h.b16 %v6421
    %v7857 = vunpack.c.l.b16 %v6422
    %v7858 = vunpack.c.h.b16 %v6422
    %v7859 = vunpack.c.l.b16 %v6423
    %v7860 = vunpack.c.h.b16 %v6423
    %v7861 = vunpack.c.l.b16 %v6424
    %v7862 = vunpack.c.h.b16 %v6424
    %v7863 = vunpack.c.l.b16 %v6425
    %v7864 = vunpack.c.h.b16 %v6425
    %v7865 = vunpack.c.l.b16 %v6426
    %v7866 = vunpack.c.h.b16 %v6426
    %v7867 = vunpack.c.l.b16 %v6427
    %v7868 = vunpack.c.h.b16 %v6427
    %v7869 = vunpack.c.l.b16 %v6428
    %v7870 = vunpack.c.h.b16 %v6428
    %v7871 = vunpack.c.l.b16 %v6429
    %v7872 = vunpack.c.h.b16 %v6429
    %v7873 = vunpack.c.l.b16 %v6430
    %v7874 = vunpack.c.h.b16 %v6430
    %v7875 = vunpack.c.l.b16 %v6431
    %v7876 = vunpack.c.h.b16 %v6431
    %v7877 = vunpack.c.l.b16 %v6432
    %v7878 = vunpack.c.h.b16 %v6432
    %v7879 = vunpack.c.l.b16 %v6433
    %v7880 = vunpack.c.h.b16 %v6433
    %v7881 = vunpack.c.l.b16 %v6434
    %v7882 = vunpack.c.h.b16 %v6434
    %v7883 = vunpack.c.l.b16 %v6435
    %v7884 = vunpack.c.h.b16 %v6435
    %v7885 = vunpack.c.l.b16 %v6436
    %v7886 = vunpack.c.h.b16 %v6436
    %v7887 = vunpack.c.l.b16 %v6437
    %v7888 = vunpack.c.h.b16 %v6437
    %v7889 = vunpack.c.l.b16 %v6438
    %v7890 = vunpack.c.h.b16 %v6438
    %v7891 = vunpack.c.l.b16 %v6439
    %v7892 = vunpack.c.h.b16 %v6439
    %v7893 = vunpack.c.l.b16 %v6440
    %v7894 = vunpack.c.h.b16 %v6440
    %v7895 = vunpack.c.l.b16 %v6441
    %v7896 = vunpack.c.h.b16 %v6441
    %v7897 = vunpack.c.l.b16 %v6442
    %v7898 = vunpack.c.h.b16 %v6442
    %v7899 = vunpack.c.l.b16 %v6443
    %v7900 = vunpack.c.h.b16 %v6443
    %v7901 = vunpack.c.l.b16 %v6444
    %v7902 = vunpack.c.h.b16 %v6444
    %v7903 = vunpack.c.l.b16 %v6445
    %v7904 = vunpack.c.h.b16 %v6445
    %v7905 = vunpack.c.l.b16 %v6446
    %v7906 = vunpack.c.h.b16 %v6446
    %v7907 = vunpack.c.l.b16 %v6447
    %v7908 = vunpack.c.h.b16 %v6447
    %v7909 = vunpack.c.l.b16 %v6448
    %v7910 = vunpack.c.h.b16 %v6448
    %v7911 = vunpack.c.l.b16 %v6449
    %v7912 = vunpack.c.h.b16 %v6449
    %v7913 = vunpack.c.l.b16 %v6450
    %v7914 = vunpack.c.h.b16 %v6450
    %v7915 = vunpack.c.l.b16 %v6451
    %v7916 = vunpack.c.h.b16 %v6451
    %v7917 = vunpack.c.l.b16 %v6452
    %v7918 = vunpack.c.h.b16 %v6452
    %v7919 = vunpack.c.l.b16 %v6453
    %v7920 = vunpack.c.h.b16 %v6453
    %v7921 = vunpack.c.l.b16 %v6454
    %v7922 = vunpack.c.h.b16 %v6454
    %v7923 = vunpack.c.l.b16 %v6455
    %v7924 = vunpack.c.h.b16 %v6455
    %v7925 = vunpack.c.l.b16 %v6456
    %v7926 = vunpack.c.h.b16 %v6456
    %v7927 = vunpack.c.l.b16 %v6457
    %v7928 = vunpack.c.h.b16 %v6457
    %v7929 = vunpack.c.l.b16 %v6458
    %v7930 = vunpack.c.h.b16 %v6458
    %v7931 = vunpack.c.l.b16 %v6459
    %v7932 = vunpack.c.h.b16 %v6459
    %v7933 = vunpack.c.l.b16 %v6460
    %v7934 = vunpack.c.h.b16 %v6460
    %v7935 = vunpack.c.l.b16 %v6461
    %v7936 = vunpack.c.h.b16 %v6461
    %v7937 = vunpack.c.l.b16 %v6462
    %v7938 = vunpack.c.h.b16 %v6462
    %v7939 = vunpack.c.l.b16 %v6463
    %v7940 = vunpack.c.h.b16 %v6463
    %v7941 = vunpack.c.l.b16 %v6464
    %v7942 = vunpack.c.h.b16 %v6464
    %v7943 = vunpack.c.l.b16 %v6465
    %v7944 = vunpack.c.h.b16 %v6465
    %v7945 = vunpack.c.l.b16 %v6466
    %v7946 = vunpack.c.h.b16 %v6466
    %v7947 = vunpack.c.l.b16 %v6467
    %v7948 = vunpack.c.h.b16 %v6467
    %v7949 = vunpack.c.l.b16 %v6468
    %v7950 = vunpack.c.h.b16 %v6468
    %v7951 = vunpack.c.l.b16 %v6469
    %v7952 = vunpack.c.h.b16 %v6469
    %v7953 = vunpack.c.l.b16 %v6470
    %v7954 = vunpack.c.h.b16 %v6470
    %v7955 = vunpack.c.l.b16 %v6471
    %v7956 = vunpack.c.h.b16 %v6471
    %v7957 = vunpack.c.l.b16 %v6472
    %v7958 = vunpack.c.h.b16 %v6472
    %v7959 = vunpack.c.l.b16 %v6473
    %v7960 = vunpack.c.h.b16 %v6473
    %v7961 = vunpack.c.l.b16 %v6474
    %v7962 = vunpack.c.h.b16 %v6474
    %v7963 = vunpack.c.l.b16 %v6475
    %v7964 = vunpack.c.h.b16 %v6475
    %v7965 = vunpack.c.l.b16 %v6476
    %v7966 = vunpack.c.h.b16 %v6476
    %v7967 = vunpack.c.l.b16 %v6477
    %v7968 = vunpack.c.h.b16 %v6477
    %v7969 = vunpack.c.l.b16 %v6478
    %v7970 = vunpack.c.h.b16 %v6478
    %v7971 = vunpack.c.l.b16 %v6479
    %v7972 = vunpack.c.h.b16 %v6479
    %v7973 = vunpack.c.l.b16 %v6480
    %v7974 = vunpack.c.h.b16 %v6480
    %v7975 = vunpack.c.l.b16 %v6481
    %v7976 = vunpack.c.h.b16 %v6481
    %v7977 = vunpack.c.l.b16 %v6482
    %v7978 = vunpack.c.h.b16 %v6482
    %v7979 = vunpack.c.l.b16 %v6483
    %v7980 = vunpack.c.h.b16 %v6483
    %v7981 = vunpack.c.l.b16 %v6484
    %v7982 = vunpack.c.h.b16 %v6484
    %v7983 = vunpack.c.l.b16 %v6485
    %v7984 = vunpack.c.h.b16 %v6485
    %v7985 = vunpack.c.l.b16 %v6486
    %v7986 = vunpack.c.h.b16 %v6486
    %v7987 = vunpack.c.l.b16 %v6487
    %v7988 = vunpack.c.h.b16 %v6487
    %v7989 = vunpack.c.l.b16 %v6488
    %v7990 = vunpack.c.h.b16 %v6488
    %v7991 = vunpack.c.l.b16 %v6489
    %v7992 = vunpack.c.h.b16 %v6489
    %v7993 = vunpack.c.l.b16 %v6490
    %v7994 = vunpack.c.h.b16 %v6490
    %v7995 = vunpack.c.l.b16 %v6491
    %v7996 = vunpack.c.h.b16 %v6491
    %v7997 = vunpack.c.l.b16 %v6492
    %v7998 = vunpack.c.h.b16 %v6492
    %v7999 = vunpack.c.l.b16 %v6493
    %v8000 = vunpack.c.h.b16 %v6493
    %v8001 = vunpack.c.l.b16 %v6494
    %v8002 = vunpack.c.h.b16 %v6494
    %v8003 = vunpack.c.l.b16 %v6495
    %v8004 = vunpack.c.h.b16 %v6495
    %v8005 = vunpack.c.l.b16 %v6496
    %v8006 = vunpack.c.h.b16 %v6496
    %v8007 = vunpack.c.l.b16 %v6497
    %v8008 = vunpack.c.h.b16 %v6497
    %v8009 = vunpack.c.l.b16 %v6498
    %v8010 = vunpack.c.h.b16 %v6498
    %v8011 = vunpack.c.l.b16 %v6499
    %v8012 = vunpack.c.h.b16 %v6499
    %v8013 = vunpack.c.l.b16 %v6500
    %v8014 = vunpack.c.h.b16 %v6500
    %v8015 = vunpack.c.l.b16 %v6501
    %v8016 = vunpack.c.h.b16 %v6501
    %v8017 = vunpack.c.l.b16 %v6502
    %v8018 = vunpack.c.h.b16 %v6502
    %v8019 = vunpack.c.l.b16 %v6503
    %v8020 = vunpack.c.h.b16 %v6503
    %v8021 = vunpack.c.l.b16 %v6504
    %v8022 = vunpack.c.h.b16 %v6504
    %v8023 = vunpack.c.l.b16 %v6505
    %v8024 = vunpack.c.h.b16 %v6505
    %v8025 = vunpack.c.l.b16 %v6506
    %v8026 = vunpack.c.h.b16 %v6506
    %v8027 = vunpack.c.l.b16 %v6507
    %v8028 = vunpack.c.h.b16 %v6507
    %v8029 = vunpack.c.l.b16 %v6508
    %v8030 = vunpack.c.h.b16 %v6508
    %v8031 = vunpack.c.l.b16 %v6509
    %v8032 = vunpack.c.h.b16 %v6509
    %v8033 = vunpack.c.l.b16 %v6510
    %v8034 = vunpack.c.h.b16 %v6510
    %v8035 = vunpack.c.l.b16 %v6511
    %v8036 = vunpack.c.h.b16 %v6511
    %v8037 = vunpack.c.l.b16 %v6512
    %v8038 = vunpack.c.h.b16 %v6512
    %v8039 = vunpack.c.l.b16 %v6513
    %v8040 = vunpack.c.h.b16 %v6513
    %v8041 = vunpack.c.l.b16 %v6514
    %v8042 = vunpack.c.h.b16 %v6514
    %v8043 = vunpack.c.l.b16 %v6515
    %v8044 = vunpack.c.h.b16 %v6515
    %v8045 = vunpack.c.l.b16 %v6516
    %v8046 = vunpack.c.h.b16 %v6516
    %v8047 = vunpack.c.l.b16 %v6517
    %v8048 = vunpack.c.h.b16 %v6517
    %v8049 = vunpack.c.l.b16 %v6518
    %v8050 = vunpack.c.h.b16 %v6518
    %v8051 = vunpack.c.l.b16 %v6519
    %v8052 = vunpack.c.h.b16 %v6519
    %v8053 = vunpack.c.l.b16 %v6520
    %v8054 = vunpack.c.h.b16 %v6520
    %v8055 = vunpack.c.l.b16 %v6521
    %v8056 = vunpack.c.h.b16 %v6521
    %v8057 = vunpack.c.l.b16 %v6522
    %v8058 = vunpack.c.h.b16 %v6522
    %v8059 = vunpack.c.l.b16 %v6523
    %v8060 = vunpack.c.h.b16 %v6523
    %v8061 = vunpack.c.l.b16 %v6524
    %v8062 = vunpack.c.h.b16 %v6524
    %v8063 = vunpack.c.l.b16 %v6525
    %v8064 = vunpack.c.h.b16 %v6525
    %v8065 = vunpack.c.l.b16 %v6526
    %v8066 = vunpack.c.h.b16 %v6526
    %v8067 = vunpack.c.l.b16 %v6527
    %v8068 = vunpack.c.h.b16 %v6527
    %v8069 = vunpack.c.l.b16 %v6528
    %v8070 = vunpack.c.h.b16 %v6528
    %v8071 = vunpack.c.l.b16 %v6529
    %v8072 = vunpack.c.h.b16 %v6529
    %v8073 = vunpack.c.l.b16 %v6530
    %v8074 = vunpack.c.h.b16 %v6530
    %v8075 = vunpack.c.l.b16 %v6531
    %v8076 = vunpack.c.h.b16 %v6531
    %v8077 = vunpack.c.l.b16 %v6532
    %v8078 = vunpack.c.h.b16 %v6532
    %v8079 = vunpack.c.l.b16 %v6533
    %v8080 = vunpack.c.h.b16 %v6533
    %v8081 = vunpack.c.l.b16 %v6534
    %v8082 = vunpack.c.h.b16 %v6534
    %v8083 = vunpack.c.l.b16 %v6535
    %v8084 = vunpack.c.h.b16 %v6535
    %v8085 = vunpack.c.l.b16 %v6536
    %v8086 = vunpack.c.h.b16 %v6536
    %v8087 = vunpack.c.l.b16 %v6537
    %v8088 = vunpack.c.h.b16 %v6537
    %v8089 = vunpack.c.l.b16 %v6538
    %v8090 = vunpack.c.h.b16 %v6538
    %v8091 = vunpack.c.l.b16 %v6539
    %v8092 = vunpack.c.h.b16 %v6539
    %v8093 = vunpack.c.l.b16 %v6540
    %v8094 = vunpack.c.h.b16 %v6540
    %v8095 = vunpack.c.l.b16 %v6541
    %v8096 = vunpack.c.h.b16 %v6541
    %v8097 = vunpack.c.l.b16 %v6542
    %v8098 = vunpack.c.h.b16 %v6542
    %v8099 = vunpack.c.l.b16 %v6543
    %v8100 = vunpack.c.h.b16 %v6543
    %v8101 = vunpack.c.l.b16 %v6544
    %v8102 = vunpack.c.h.b16 %v6544
    %v8103 = vunpack.c.l.b16 %v6545
    %v8104 = vunpack.c.h.b16 %v6545
    %v8105 = vunpack.c.l.b16 %v6546
    %v8106 = vunpack.c.h.b16 %v6546
    %v8107 = vunpack.c.l.b16 %v6547
    %v8108 = vunpack.c.h.b16 %v6547
    %v8109 = vunpack.c.l.b16 %v6548
    %v8110 = vunpack.c.h.b16 %v6548
    %v8111 = vunpack.c.l.b16 %v6549
    %v8112 = vunpack.c.h.b16 %v6549
    %v8113 = vunpack.c.l.b16 %v6550
    %v8114 = vunpack.c.h.b16 %v6550
    %v8115 = vunpack.c.l.b16 %v6551
    %v8116 = vunpack.c.h.b16 %v6551
    %v8117 = vunpack.c.l.b16 %v6552
    %v8118 = vunpack.c.h.b16 %v6552
    %v8119 = vunpack.c.l.b16 %v6553
    %v8120 = vunpack.c.h.b16 %v6553
    %v8121 = vunpack.c.l.b16 %v6554
    %v8122 = vunpack.c.h.b16 %v6554
    %v8123 = vunpack.c.l.b16 %v6555
    %v8124 = vunpack.c.h.b16 %v6555
    %v8125 = vunpack.c.l.b16 %v6556
    %v8126 = vunpack.c.h.b16 %v6556
    %v8127 = vunpack.c.l.b16 %v6557
    %v8128 = vunpack.c.h.b16 %v6557
    %v8129 = vunpack.c.l.b16 %v6558
    %v8130 = vunpack.c.h.b16 %v6558
    %v8131 = vunpack.c.l.b16 %v6559
    %v8132 = vunpack.c.h.b16 %v6559
    %v8133 = vunpack.c.l.b16 %v6560
    %v8134 = vunpack.c.h.b16 %v6560
    %v8135 = vunpack.c.l.b16 %v6561
    %v8136 = vunpack.c.h.b16 %v6561
    %v8137 = vunpack.c.l.b16 %v6562
    %v8138 = vunpack.c.h.b16 %v6562
    %v8139 = vunpack.c.l.b16 %v6563
    %v8140 = vunpack.c.h.b16 %v6563
    %v8141 = vunpack.c.l.b16 %v6564
    %v8142 = vunpack.c.h.b16 %v6564
    %v8143 = vunpack.c.l.b16 %v6565
    %v8144 = vunpack.c.h.b16 %v6565
    %v8145 = vunpack.c.l.b16 %v6566
    %v8146 = vunpack.c.h.b16 %v6566
    %v8147 = vunpack.c.l.b16 %v6567
    %v8148 = vunpack.c.h.b16 %v6567
    %v8149 = vunpack.c.l.b16 %v6568
    %v8150 = vunpack.c.h.b16 %v6568
    %v8151 = vunpack.c.l.b16 %v6569
    %v8152 = vunpack.c.h.b16 %v6569
    %v8153 = vunpack.c.l.b16 %v6570
    %v8154 = vunpack.c.h.b16 %v6570
    %v8155 = vunpack.c.l.b16 %v6571
    %v8156 = vunpack.c.h.b16 %v6571
    %v8157 = vunpack.c.l.b16 %v6572
    %v8158 = vunpack.c.h.b16 %v6572
    %v8159 = vunpack.c.l.b16 %v6573
    %v8160 = vunpack.c.h.b16 %v6573
    %v8161 = vunpack.c.l.b16 %v6574
    %v8162 = vunpack.c.h.b16 %v6574
    %v8163 = vunpack.c.l.b16 %v6575
    %v8164 = vunpack.c.h.b16 %v6575
    %v8165 = vunpack.c.l.b16 %v6576
    %v8166 = vunpack.c.h.b16 %v6576
    %v8167 = vunpack.c.l.b16 %v6577
    %v8168 = vunpack.c.h.b16 %v6577
    %v8169 = vunpack.c.l.b16 %v6578
    %v8170 = vunpack.c.h.b16 %v6578
    %v8171 = vunpack.c.l.b16 %v6579
    %v8172 = vunpack.c.h.b16 %v6579
    %v8173 = vunpack.c.l.b16 %v6580
    %v8174 = vunpack.c.h.b16 %v6580
    %v8175 = vunpack.c.l.b16 %v6581
    %v8176 = vunpack.c.h.b16 %v6581
    %v8177 = vunpack.c.l.b16 %v6582
    %v8178 = vunpack.c.h.b16 %v6582
    %v8179 = vunpack.c.l.b16 %v6583
    %v8180 = vunpack.c.h.b16 %v6583
    %v8181 = vunpack.c.l.b16 %v6584
    %v8182 = vunpack.c.h.b16 %v6584
    %v8183 = vunpack.c.l.b16 %v6585
    %v8184 = vunpack.c.h.b16 %v6585
    %v8185 = vunpack.c.l.b16 %v6586
    %v8186 = vunpack.c.h.b16 %v6586
    %v8187 = vunpack.c.l.b16 %v6587
    %v8188 = vunpack.c.h.b16 %v6587
    %v8189 = vunpack.c.l.b16 %v6588
    %v8190 = vunpack.c.h.b16 %v6588
    %v8191 = vunpack.c.l.b16 %v6589
    %v8192 = vunpack.c.h.b16 %v6589
    %v8193 = vunpack.c.l.b16 %v6590
    %v8194 = vunpack.c.h.b16 %v6590
    %v8195 = vunpack.c.l.b16 %v6591
    %v8196 = vunpack.c.h.b16 %v6591
    %v8197 = vunpack.c.l.b16 %v6592
    %v8198 = vunpack.c.h.b16 %v6592
    %v8199 = vunpack.c.l.b16 %v6593
    %v8200 = vunpack.c.h.b16 %v6593
    %v8201 = vunpack.c.l.b16 %v6594
    %v8202 = vunpack.c.h.b16 %v6594
    %v8203 = vunpack.c.l.b16 %v6595
    %v8204 = vunpack.c.h.b16 %v6595
    %v8205 = vunpack.c.l.b16 %v6596
    %v8206 = vunpack.c.h.b16 %v6596
    %v8207 = vunpack.c.l.b16 %v6597
    %v8208 = vunpack.c.h.b16 %v6597
    %v8209 = vunpack.c.l.b16 %v6598
    %v8210 = vunpack.c.h.b16 %v6598
    %v8211 = vunpack.c.l.b16 %v6599
    %v8212 = vunpack.c.h.b16 %v6599
    %v8213 = vunpack.c.l.b16 %v6600
    %v8214 = vunpack.c.h.b16 %v6600
    %v8215 = vunpack.c.l.b16 %v6601
    %v8216 = vunpack.c.h.b16 %v6601
    %v8217 = vunpack.c.l.b16 %v6602
    %v8218 = vunpack.c.h.b16 %v6602
    %v8219 = vunpack.c.l.b16 %v6603
    %v8220 = vunpack.c.h.b16 %v6603
    %v8221 = vunpack.c.l.b16 %v6604
    %v8222 = vunpack.c.h.b16 %v6604
    %v8223 = vunpack.c.l.b16 %v6605
    %v8224 = vunpack.c.h.b16 %v6605
    %v8225 = vunpack.c.l.b16 %v6606
    %v8226 = vunpack.c.h.b16 %v6606
    %v8227 = vunpack.c.l.b16 %v6607
    %v8228 = vunpack.c.h.b16 %v6607
    %v8229 = vunpack.c.l.b16 %v6608
    %v8230 = vunpack.c.h.b16 %v6608
    %v8231 = vunpack.c.l.b16 %v6609
    %v8232 = vunpack.c.h.b16 %v6609
    %v8233 = vunpack.c.l.b16 %v6610
    %v8234 = vunpack.c.h.b16 %v6610
    %v8235 = vunpack.c.l.b16 %v6611
    %v8236 = vunpack.c.h.b16 %v6611
    %v8237 = vunpack.c.l.b16 %v6612
    %v8238 = vunpack.c.h.b16 %v6612
    %v8239 = vunpack.c.l.b16 %v6613
    %v8240 = vunpack.c.h.b16 %v6613
    %v8241 = vunpack.c.l.b16 %v6614
    %v8242 = vunpack.c.h.b16 %v6614
    %v8243 = vunpack.c.l.b16 %v6615
    %v8244 = vunpack.c.h.b16 %v6615
    %v8245 = vunpack.c.l.b16 %v6616
    %v8246 = vunpack.c.h.b16 %v6616
    %v8247 = vunpack.c.l.b16 %v6617
    %v8248 = vunpack.c.h.b16 %v6617
    %v8249 = vunpack.c.l.b16 %v6618
    %v8250 = vunpack.c.h.b16 %v6618
    %v8251 = vunpack.c.l.b16 %v6619
    %v8252 = vunpack.c.h.b16 %v6619
    %v8253 = vunpack.c.l.b16 %v6620
    %v8254 = vunpack.c.h.b16 %v6620
    %v8255 = vunpack.c.l.b16 %v6621
    %v8256 = vunpack.c.h.b16 %v6621
    %v8257 = vunpack.c.l.b16 %v6622
    %v8258 = vunpack.c.h.b16 %v6622
    %v8259 = vunpack.c.l.b16 %v6623
    %v8260 = vunpack.c.h.b16 %v6623
    %v8261 = vunpack.c.l.b16 %v6624
    %v8262 = vunpack.c.h.b16 %v6624
    %v8263 = vunpack.c.l.b16 %v6625
    %v8264 = vunpack.c.h.b16 %v6625
    %v8265 = vunpack.c.l.b16 %v6626
    %v8266 = vunpack.c.h.b16 %v6626
    %v8267 = vunpack.c.l.b16 %v6627
    %v8268 = vunpack.c.h.b16 %v6627
    %v8269 = vunpack.c.l.b16 %v6628
    %v8270 = vunpack.c.h.b16 %v6628
    %v8271 = vunpack.c.l.b16 %v6629
    %v8272 = vunpack.c.h.b16 %v6629
    %v8273 = vunpack.c.l.b16 %v6630
    %v8274 = vunpack.c.h.b16 %v6630
    %v8275 = vunpack.c.l.b16 %v6631
    %v8276 = vunpack.c.h.b16 %v6631
    %v8277 = vunpack.c.l.b16 %v6632
    %v8278 = vunpack.c.h.b16 %v6632
    %v8279 = vunpack.c.l.b16 %v6633
    %v8280 = vunpack.c.h.b16 %v6633
    %v8281 = vunpack.c.l.b16 %v6634
    %v8282 = vunpack.c.h.b16 %v6634
    %v8283 = vunpack.c.l.b16 %v6635
    %v8284 = vunpack.c.h.b16 %v6635
    %v8285 = vunpack.c.l.b16 %v6636
    %v8286 = vunpack.c.h.b16 %v6636
    %v8287 = vunpack.c.l.b16 %v6637
    %v8288 = vunpack.c.h.b16 %v6637
    %v8289 = vunpack.c.l.b16 %v6638
    %v8290 = vunpack.c.h.b16 %v6638
    %v8291 = vunpack.c.l.b16 %v6639
    %v8292 = vunpack.c.h.b16 %v6639
    %v8293 = vunpack.c.l.b16 %v6640
    %v8294 = vunpack.c.h.b16 %v6640
    %v8295 = vunpack.c.l.b16 %v6641
    %v8296 = vunpack.c.h.b16 %v6641
    %v8297 = vunpack.c.l.b16 %v6642
    %v8298 = vunpack.c.h.b16 %v6642
    %v8299 = vunpack.c.l.b16 %v6643
    %v8300 = vunpack.c.h.b16 %v6643
    %v8301 = vunpack.c.l.b16 %v6644
    %v8302 = vunpack.c.h.b16 %v6644
    %v8303 = vunpack.c.l.b16 %v6645
    %v8304 = vunpack.c.h.b16 %v6645
    %v8305 = vunpack.c.l.b16 %v6646
    %v8306 = vunpack.c.h.b16 %v6646
    %v8307 = vunpack.c.l.b16 %v6647
    %v8308 = vunpack.c.h.b16 %v6647
    %v8309 = vunpack.c.l.b16 %v6648
    %v8310 = vunpack.c.h.b16 %v6648
    %v8311 = vunpack.c.l.b16 %v6649
    %v8312 = vunpack.c.h.b16 %v6649
    %v8313 = vunpack.c.l.b16 %v6650
    %v8314 = vunpack.c.h.b16 %v6650
    %v8315 = vunpack.c.l.b16 %v6651
    %v8316 = vunpack.c.h.b16 %v6651
    %v8317 = vunpack.c.l.b16 %v6652
    %v8318 = vunpack.c.h.b16 %v6652
    %v8319 = vunpack.c.l.b16 %v6653
    %v8320 = vunpack.c.h.b16 %v6653
    %v8321 = vunpack.c.l.b16 %v6654
    %v8322 = vunpack.c.h.b16 %v6654
    %v8323 = vunpack.c.l.b16 %v6655
    %v8324 = vunpack.c.h.b16 %v6655
    %v8325 = vunpack.c.l.b16 %v6656
    %v8326 = vunpack.c.h.b16 %v6656
    %v8327 = vunpack.c.l.b16 %v6657
    %v8328 = vunpack.c.h.b16 %v6657
    %v8329 = vunpack.c.l.b16 %v6658
    %v8330 = vunpack.c.h.b16 %v6658
    %v8331 = vunpack.c.l.b16 %v6659
    %v8332 = vunpack.c.h.b16 %v6659
    %v8333 = vunpack.c.l.b16 %v6660
    %v8334 = vunpack.c.h.b16 %v6660
    %v8335 = vunpack.c.l.b16 %v6661
    %v8336 = vunpack.c.h.b16 %v6661
    %v8337 = vunpack.c.l.b16 %v6662
    %v8338 = vunpack.c.h.b16 %v6662
    %v8339 = vunpack.c.l.b16 %v6663
    %v8340 = vunpack.c.h.b16 %v6663
    %v8341 = vunpack.c.l.b16 %v6664
    %v8342 = vunpack.c.h.b16 %v6664
    %v8343 = vunpack.c.l.b16 %v6665
    %v8344 = vunpack.c.h.b16 %v6665
    %v8345 = vunpack.c.l.b16 %v6666
    %v8346 = vunpack.c.h.b16 %v6666
    %v8347 = vunpack.c.l.b16 %v6667
    %v8348 = vunpack.c.h.b16 %v6667
    %v8349 = vunpack.c.l.b16 %v6668
    %v8350 = vunpack.c.h.b16 %v6668
    %v8351 = vunpack.c.l.b16 %v6669
    %v8352 = vunpack.c.h.b16 %v6669
    %v8353 = vunpack.c.l.b16 %v6670
    %v8354 = vunpack.c.h.b16 %v6670
    %v8355 = vunpack.c.l.b16 %v6671
    %v8356 = vunpack.c.h.b16 %v6671
    %v8357 = vunpack.c.l.b16 %v6672
    %v8358 = vunpack.c.h.b16 %v6672
    %v8359 = vunpack.c.l.b16 %v6673
    %v8360 = vunpack.c.h.b16 %v6673
    %v8361 = vunpack.c.l.b16 %v6674
    %v8362 = vunpack.c.h.b16 %v6674
    %v8363 = vunpack.c.l.b16 %v6675
    %v8364 = vunpack.c.h.b16 %v6675
    %v8365 = vunpack.c.l.b16 %v6676
    %v8366 = vunpack.c.h.b16 %v6676
    %v8367 = vunpack.c.l.b16 %v6677
    %v8368 = vunpack.c.h.b16 %v6677
    %v8369 = vunpack.c.l.b16 %v6678
    %v8370 = vunpack.c.h.b16 %v6678
    %v8371 = vunpack.c.l.b16 %v6679
    %v8372 = vunpack.c.h.b16 %v6679
    %v8373 = vunpack.c.l.b16 %v6680
    %v8374 = vunpack.c.h.b16 %v6680
    %v8375 = vunpack.c.l.b16 %v6681
    %v8376 = vunpack.c.h.b16 %v6681
    %v8377 = vunpack.c.l.b16 %v6682
    %v8378 = vunpack.c.h.b16 %v6682
    %v8379 = vunpack.c.l.b16 %v6683
    %v8380 = vunpack.c.h.b16 %v6683
    %v8381 = vunpack.c.l.b16 %v6684
    %v8382 = vunpack.c.h.b16 %v6684
    %v8383 = vunpack.c.l.b16 %v6685
    %v8384 = vunpack.c.h.b16 %v6685
    %v8385 = vunpack.c.l.b16 %v6686
    %v8386 = vunpack.c.h.b16 %v6686
    %v8387 = vunpack.c.l.b16 %v6687
    %v8388 = vunpack.c.h.b16 %v6687
    %v8389 = vunpack.c.l.b16 %v6688
    %v8390 = vunpack.c.h.b16 %v6688
    %v8391 = vunpack.c.l.b16 %v6689
    %v8392 = vunpack.c.h.b16 %v6689
    %v8393 = vunpack.c.l.b16 %v6690
    %v8394 = vunpack.c.h.b16 %v6690
    %v8395 = vunpack.c.l.b16 %v6691
    %v8396 = vunpack.c.h.b16 %v6691
    %v8397 = vunpack.c.l.b16 %v6692
    %v8398 = vunpack.c.h.b16 %v6692
    %v8399 = vunpack.c.l.b16 %v6693
    %v8400 = vunpack.c.h.b16 %v6693
    %v8401 = vunpack.c.l.b16 %v6694
    %v8402 = vunpack.c.h.b16 %v6694
    %v8403 = vunpack.c.l.b16 %v6695
    %v8404 = vunpack.c.h.b16 %v6695
    %v8405 = vunpack.c.l.b16 %v6696
    %v8406 = vunpack.c.h.b16 %v6696
    %v8407 = vunpack.c.l.b16 %v6697
    %v8408 = vunpack.c.h.b16 %v6697
    %v8409 = vunpack.c.l.b16 %v6698
    %v8410 = vunpack.c.h.b16 %v6698
    %v8411 = vunpack.c.l.b16 %v6699
    %v8412 = vunpack.c.h.b16 %v6699
    %v8413 = vunpack.c.l.b16 %v6700
    %v8414 = vunpack.c.h.b16 %v6700
    %v8415 = vunpack.c.l.b16 %v6701
    %v8416 = vunpack.c.h.b16 %v6701
    %v8417 = vunpack.c.l.b16 %v6702
    %v8418 = vunpack.c.h.b16 %v6702
    %v8419 = vunpack.c.l.b16 %v6703
    %v8420 = vunpack.c.h.b16 %v6703
    %v8421 = vunpack.c.l.b16 %v6704
    %v8422 = vunpack.c.h.b16 %v6704
    %v8423 = vunpack.c.l.b16 %v6705
    %v8424 = vunpack.c.h.b16 %v6705
    %v8425 = vunpack.c.l.b16 %v6706
    %v8426 = vunpack.c.h.b16 %v6706
    %v8427 = vunpack.c.l.b16 %v6707
    %v8428 = vunpack.c.h.b16 %v6707
    %v8429 = vunpack.c.l.b16 %v6708
    %v8430 = vunpack.c.h.b16 %v6708
    %v8431 = vunpack.c.l.b16 %v6709
    %v8432 = vunpack.c.h.b16 %v6709
    %v8433 = vunpack.c.l.b16 %v6710
    %v8434 = vunpack.c.h.b16 %v6710
    %v8435 = vunpack.c.l.b16 %v6711
    %v8436 = vunpack.c.h.b16 %v6711
    %v8437 = vunpack.c.l.b16 %v6712
    %v8438 = vunpack.c.h.b16 %v6712
    %v8439 = vunpack.c.l.b16 %v6713
    %v8440 = vunpack.c.h.b16 %v6713
    %v8441 = vunpack.c.l.b16 %v6714
    %v8442 = vunpack.c.h.b16 %v6714
    %v8443 = vunpack.c.l.b16 %v6715
    %v8444 = vunpack.c.h.b16 %v6715
    %v8445 = vunpack.c.l.b16 %v6716
    %v8446 = vunpack.c.h.b16 %v6716
    %v8447 = vunpack.c.l.b16 %v6717
    %v8448 = vunpack.c.h.b16 %v6717
    %v8449 = vunpack.c.l.b16 %v6718
    %v8450 = vunpack.c.h.b16 %v6718
    %v8451 = vunpack.c.l.b16 %v6719
    %v8452 = vunpack.c.h.b16 %v6719
    %v8453 = vunpack.c.l.b16 %v6720
    %v8454 = vunpack.c.h.b16 %v6720
    %v8455 = vunpack.c.l.b16 %v6721
    %v8456 = vunpack.c.h.b16 %v6721
    %v8457 = vunpack.c.l.b16 %v6722
    %v8458 = vunpack.c.h.b16 %v6722
    %v8459 = vunpack.c.l.b16 %v6723
    %v8460 = vunpack.c.h.b16 %v6723
    %v8461 = vunpack.c.l.b16 %v6724
    %v8462 = vunpack.c.h.b16 %v6724
    %v8463 = vunpack.c.l.b16 %v6725
    %v8464 = vunpack.c.h.b16 %v6725
    %v8465 = vunpack.c.l.b16 %v6726
    %v8466 = vunpack.c.h.b16 %v6726
    %v8467 = vunpack.c.l.b16 %v6727
    %v8468 = vunpack.c.h.b16 %v6727
    %v8469 = vunpack.c.l.b16 %v6728
    %v8470 = vunpack.c.h.b16 %v6728
    %v8471 = vunpack.c.l.b16 %v6729
    %v8472 = vunpack.c.h.b16 %v6729
    %v8473 = vunpack.c.l.b16 %v6730
    %v8474 = vunpack.c.h.b16 %v6730
    %v8475 = vunpack.c.l.b16 %v6731
    %v8476 = vunpack.c.h.b16 %v6731
    %v8477 = vunpack.c.l.b16 %v6732
    %v8478 = vunpack.c.h.b16 %v6732
    %v8479 = vunpack.c.l.b16 %v6733
    %v8480 = vunpack.c.h.b16 %v6733
    %v8481 = vunpack.c.l.b16 %v6734
    %v8482 = vunpack.c.h.b16 %v6734
    %v8483 = vunpack.c.l.b16 %v6735
    %v8484 = vunpack.c.h.b16 %v6735
    %v8485 = vunpack.c.l.b16 %v6736
    %v8486 = vunpack.c.h.b16 %v6736
    %v8487 = vunpack.c.l.b16 %v6737
    %v8488 = vunpack.c.h.b16 %v6737
    %v8489 = vunpack.c.l.b16 %v6738
    %v8490 = vunpack.c.h.b16 %v6738
    %v8491 = vunpack.c.l.b16 %v6739
    %v8492 = vunpack.c.h.b16 %v6739
    %v8493 = vunpack.c.l.b16 %v6740
    %v8494 = vunpack.c.h.b16 %v6740
    %v8495 = vunpack.c.l.b16 %v6741
    %v8496 = vunpack.c.h.b16 %v6741
    %v8497 = vunpack.c.l.b16 %v6742
    %v8498 = vunpack.c.h.b16 %v6742
    %v8499 = vunpack.c.l.b16 %v6743
    %v8500 = vunpack.c.h.b16 %v6743
    %v8501 = vunpack.c.l.b16 %v6744
    %v8502 = vunpack.c.h.b16 %v6744
    %v8503 = vunpack.c.l.b16 %v6745
    %v8504 = vunpack.c.h.b16 %v6745
    %v8505 = vunpack.c.l.b16 %v6746
    %v8506 = vunpack.c.h.b16 %v6746
    %v8507 = vunpack.c.l.b16 %v6747
    %v8508 = vunpack.c.h.b16 %v6747
    %v8509 = vunpack.c.l.b16 %v6748
    %v8510 = vunpack.c.h.b16 %v6748
    %v8511 = vunpack.c.l.b16 %v6749
    %v8512 = vunpack.c.h.b16 %v6749
    %v8513 = vunpack.c.l.b16 %v6750
    %v8514 = vunpack.c.h.b16 %v6750
    %v8515 = vunpack.c.l.b16 %v6751
    %v8516 = vunpack.c.h.b16 %v6751
    %v8517 = vunpack.c.l.b16 %v6752
    %v8518 = vunpack.c.h.b16 %v6752
    %v8519 = vunpack.c.l.b16 %v6753
    %v8520 = vunpack.c.h.b16 %v6753
    %v8521 = vunpack.c.l.b16 %v6754
    %v8522 = vunpack.c.h.b16 %v6754
    %v8523 = vunpack.c.l.b16 %v6755
    %v8524 = vunpack.c.h.b16 %v6755
    %v8525 = vunpack.c.l.b16 %v6756
    %v8526 = vunpack.c.h.b16 %v6756
    %v8527 = vunpack.c.l.b16 %v6757
    %v8528 = vunpack.c.h.b16 %v6757
    %v8529 = vunpack.c.l.b16 %v6758
    %v8530 = vunpack.c.h.b16 %v6758
    %v8531 = vunpack.c.l.b16 %v6759
    %v8532 = vunpack.c.h.b16 %v6759
    %v8533 = vunpack.c.l.b16 %v6760
    %v8534 = vunpack.c.h.b16 %v6760
    %v8535 = vunpack.c.l.b16 %v6761
    %v8536 = vunpack.c.h.b16 %v6761
    %v8537 = vunpack.c.l.b16 %v6762
    %v8538 = vunpack.c.h.b16 %v6762
    %v8539 = vunpack.c.l.b16 %v6763
    %v8540 = vunpack.c.h.b16 %v6763
    %v8541 = vunpack.c.l.b16 %v6764
    %v8542 = vunpack.c.h.b16 %v6764
    %v8543 = vunpack.c.l.b16 %v6765
    %v8544 = vunpack.c.h.b16 %v6765
    %v8545 = vunpack.c.l.b16 %v6766
    %v8546 = vunpack.c.h.b16 %v6766
    %v8547 = vunpack.c.l.b16 %v6767
    %v8548 = vunpack.c.h.b16 %v6767
    %v8549 = vunpack.c.l.b16 %v6768
    %v8550 = vunpack.c.h.b16 %v6768
    %v8551 = vunpack.c.l.b16 %v6769
    %v8552 = vunpack.c.h.b16 %v6769
    %v8553 = vunpack.c.l.b16 %v6770
    %v8554 = vunpack.c.h.b16 %v6770
    %v8555 = vunpack.c.l.b16 %v6771
    %v8556 = vunpack.c.h.b16 %v6771
    %v8557 = vunpack.c.l.b16 %v6772
    %v8558 = vunpack.c.h.b16 %v6772
    %v8559 = vunpack.c.l.b16 %v6773
    %v8560 = vunpack.c.h.b16 %v6773
    %v8561 = vunpack.c.l.b16 %v6774
    %v8562 = vunpack.c.h.b16 %v6774
    %v8563 = vunpack.c.l.b16 %v6775
    %v8564 = vunpack.c.h.b16 %v6775
    %v8565 = vunpack.c.l.b16 %v6776
    %v8566 = vunpack.c.h.b16 %v6776
    %v8567 = vunpack.c.l.b16 %v6777
    %v8568 = vunpack.c.h.b16 %v6777
    %v8569 = vunpack.c.l.b16 %v6778
    %v8570 = vunpack.c.h.b16 %v6778
    %v8571 = vunpack.c.l.b16 %v6779
    %v8572 = vunpack.c.h.b16 %v6779
    %v8573 = vunpack.c.l.b16 %v6780
    %v8574 = vunpack.c.h.b16 %v6780
    %v8575 = vunpack.c.l.b16 %v6781
    %v8576 = vunpack.c.h.b16 %v6781
    %v8577 = vunpack.c.l.b16 %v6782
    %v8578 = vunpack.c.h.b16 %v6782
    %v8579 = vunpack.c.l.b16 %v6783
    %v8580 = vunpack.c.h.b16 %v6783
    %v8581 = vunpack.c.l.b16 %v6784
    %v8582 = vunpack.c.h.b16 %v6784
    %v8583 = vunpack.c.l.b16 %v6785
    %v8584 = vunpack.c.h.b16 %v6785
    %v8585 = vunpack.c.l.b16 %v6786
    %v8586 = vunpack.c.h.b16 %v6786
    %v8587 = vunpack.c.l.b16 %v6787
    %v8588 = vunpack.c.h.b16 %v6787
    %v8589 = vpack.c.b16 %v7397, %v7389
    %v8590 = vpack.c.b16 %v7398, %v7390
    %v8591 = vpack.c.b16 %v7399, %v7391
    %v8592 = vpack.c.b16 %v7400, %v7392
    %v8593 = vpack.c.b16 %v7401, %v7393
    %v8594 = vpack.c.b16 %v7402, %v7394
    %v8595 = vpack.c.b16 %v7403, %v7395
    %v8596 = vpack.c.b16 %v7404, %v7396
    %v8597 = vpack.c.b16 %v7413, %v7405
    %v8598 = vpack.c.b16 %v7414, %v7406
    %v8599 = vpack.c.b16 %v7415, %v7407
    %v8600 = vpack.c.b16 %v7416, %v7408
    %v8601 = vpack.c.b16 %v7417, %v7409
    %v8602 = vpack.c.b16 %v7418, %v7410
    %v8603 = vpack.c.b16 %v7419, %v7411
    %v8604 = vpack.c.b16 %v7420, %v7412
    %v8605 = vpack.c.b16 %v7429, %v7421
    %v8606 = vpack.c.b16 %v7430, %v7422
    %v8607 = vpack.c.b16 %v7431, %v7423
    %v8608 = vpack.c.b16 %v7432, %v7424
    %v8609 = vpack.c.b16 %v7433, %v7425
    %v8610 = vpack.c.b16 %v7434, %v7426
    %v8611 = vpack.c.b16 %v7435, %v7427
    %v8612 = vpack.c.b16 %v7436, %v7428
    %v8613 = vpack.c.b16 %v7445, %v7437
    %v8614 = vpack.c.b16 %v7446, %v7438
    %v8615 = vpack.c.b16 %v7447, %v7439
    %v8616 = vpack.c.b16 %v7448, %v7440
    %v8617 = vpack.c.b16 %v7449, %v7441
    %v8618 = vpack.c.b16 %v7450, %v7442
    %v8619 = vpack.c.b16 %v7451, %v7443
    %v8620 = vpack.c.b16 %v7452, %v7444
    %v8621 = vpack.c.b16 %v7461, %v7453
    %v8622 = vpack.c.b16 %v7462, %v7454
    %v8623 = vpack.c.b16 %v7463, %v7455
    %v8624 = vpack.c.b16 %v7464, %v7456
    %v8625 = vpack.c.b16 %v7465, %v7457
    %v8626 = vpack.c.b16 %v7466, %v7458
    %v8627 = vpack.c.b16 %v7467, %v7459
    %v8628 = vpack.c.b16 %v7468, %v7460
    %v8629 = vpack.c.b16 %v7477, %v7469
    %v8630 = vpack.c.b16 %v7478, %v7470
    %v8631 = vpack.c.b16 %v7479, %v7471
    %v8632 = vpack.c.b16 %v7480, %v7472
    %v8633 = vpack.c.b16 %v7481, %v7473
    %v8634 = vpack.c.b16 %v7482, %v7474
    %v8635 = vpack.c.b16 %v7483, %v7475
    %v8636 = vpack.c.b16 %v7484, %v7476
    %v8637 = vpack.c.b16 %v7493, %v7485
    %v8638 = vpack.c.b16 %v7494, %v7486
    %v8639 = vpack.c.b16 %v7495, %v7487
    %v8640 = vpack.c.b16 %v7496, %v7488
    %v8641 = vpack.c.b16 %v7497, %v7489
    %v8642 = vpack.c.b16 %v7498, %v7490
    %v8643 = vpack.c.b16 %v7499, %v7491
    %v8644 = vpack.c.b16 %v7500, %v7492
    %v8645 = vpack.c.b16 %v7509, %v7501
    %v8646 = vpack.c.b16 %v7510, %v7502
    %v8647 = vpack.c.b16 %v7511, %v7503
    %v8648 = vpack.c.b16 %v7512, %v7504
    %v8649 = vpack.c.b16 %v7513, %v7505
    %v8650 = vpack.c.b16 %v7514, %v7506
    %v8651 = vpack.c.b16 %v7515, %v7507
    %v8652 = vpack.c.b16 %v7516, %v7508
    %v8653 = vpack.c.b16 %v7525, %v7517
    %v8654 = vpack.c.b16 %v7526, %v7518
    %v8655 = vpack.c.b16 %v7527, %v7519
    %v8656 = vpack.c.b16 %v7528, %v7520
    %v8657 = vpack.c.b16 %v7529, %v7521
    %v8658 = vpack.c.b16 %v7530, %v7522
    %v8659 = vpack.c.b16 %v7531, %v7523
    %v8660 = vpack.c.b16 %v7532, %v7524
    %v8661 = vpack.c.b16 %v7541, %v7533
    %v8662 = vpack.c.b16 %v7542, %v7534
    %v8663 = vpack.c.b16 %v7543, %v7535
    %v8664 = vpack.c.b16 %v7544, %v7536
    %v8665 = vpack.c.b16 %v7545, %v7537
    %v8666 = vpack.c.b16 %v7546, %v7538
    %v8667 = vpack.c.b16 %v7547, %v7539
    %v8668 = vpack.c.b16 %v7548, %v7540
    %v8669 = vpack.c.b16 %v7557, %v7549
    %v8670 = vpack.c.b16 %v7558, %v7550
    %v8671 = vpack.c.b16 %v7559, %v7551
    %v8672 = vpack.c.b16 %v7560, %v7552
    %v8673 = vpack.c.b16 %v7561, %v7553
    %v8674 = vpack.c.b16 %v7562, %v7554
    %v8675 = vpack.c.b16 %v7563, %v7555
    %v8676 = vpack.c.b16 %v7564, %v7556
    %v8677 = vpack.c.b16 %v7573, %v7565
    %v8678 = vpack.c.b16 %v7574, %v7566
    %v8679 = vpack.c.b16 %v7575, %v7567
    %v8680 = vpack.c.b16 %v7576, %v7568
    %v8681 = vpack.c.b16 %v7577, %v7569
    %v8682 = vpack.c.b16 %v7578, %v7570
    %v8683 = vpack.c.b16 %v7579, %v7571
    %v8684 = vpack.c.b16 %v7580, %v7572
    %v8685 = vpack.c.b16 %v7589, %v7581
    %v8686 = vpack.c.b16 %v7590, %v7582
    %v8687 = vpack.c.b16 %v7591, %v7583
    %v8688 = vpack.c.b16 %v7592, %v7584
    %v8689 = vpack.c.b16 %v7593, %v7585
    %v8690 = vpack.c.b16 %v7594, %v7586
    %v8691 = vpack.c.b16 %v7595, %v7587
    %v8692 = vpack.c.b16 %v7596, %v7588
    %v8693 = vpack.c.b16 %v7605, %v7597
    %v8694 = vpack.c.b16 %v7606, %v7598
    %v8695 = vpack.c.b16 %v7607, %v7599
    %v8696 = vpack.c.b16 %v7608, %v7600
    %v8697 = vpack.c.b16 %v7609, %v7601
    %v8698 = vpack.c.b16 %v7610, %v7602
    %v8699 = vpack.c.b16 %v7611, %v7603
    %v8700 = vpack.c.b16 %v7612, %v7604
    %v8701 = vpack.c.b16 %v7621, %v7613
    %v8702 = vpack.c.b16 %v7622, %v7614
    %v8703 = vpack.c.b16 %v7623, %v7615
    %v8704 = vpack.c.b16 %v7624, %v7616
    %v8705 = vpack.c.b16 %v7625, %v7617
    %v8706 = vpack.c.b16 %v7626, %v7618
    %v8707 = vpack.c.b16 %v7627, %v7619
    %v8708 = vpack.c.b16 %v7628, %v7620
    %v8709 = vpack.c.b16 %v7637, %v7629
    %v8710 = vpack.c.b16 %v7638, %v7630
    %v8711 = vpack.c.b16 %v7639, %v7631
    %v8712 = vpack.c.b16 %v7640, %v7632
    %v8713 = vpack.c.b16 %v7641, %v7633
    %v8714 = vpack.c.b16 %v7642, %v7634
    %v8715 = vpack.c.b16 %v7643, %v7635
    %v8716 = vpack.c.b16 %v7644, %v7636
    %v8717 = vpack.c.b16 %v7653, %v7645
    %v8718 = vpack.c.b16 %v7654, %v7646
    %v8719 = vpack.c.b16 %v7655, %v7647
    %v8720 = vpack.c.b16 %v7656, %v7648
    %v8721 = vpack.c.b16 %v7657, %v7649
    %v8722 = vpack.c.b16 %v7658, %v7650
    %v8723 = vpack.c.b16 %v7659, %v7651
    %v8724 = vpack.c.b16 %v7660, %v7652
    %v8725 = vpack.c.b16 %v7669, %v7661
    %v8726 = vpack.c.b16 %v7670, %v7662
    %v8727 = vpack.c.b16 %v7671, %v7663
    %v8728 = vpack.c.b16 %v7672, %v7664
    %v8729 = vpack.c.b16 %v7673, %v7665
    %v8730 = vpack.c.b16 %v7674, %v7666
    %v8731 = vpack.c.b16 %v7675, %v7667
    %v8732 = vpack.c.b16 %v7676, %v7668
    %v8733 = vpack.c.b16 %v7685, %v7677
    %v8734 = vpack.c.b16 %v7686, %v7678
    %v8735 = vpack.c.b16 %v7687, %v7679
    %v8736 = vpack.c.b16 %v7688, %v7680
    %v8737 = vpack.c.b16 %v7689, %v7681
    %v8738 = vpack.c.b16 %v7690, %v7682
    %v8739 = vpack.c.b16 %v7691, %v7683
    %v8740 = vpack.c.b16 %v7692, %v7684
    %v8741 = vpack.c.b16 %v7701, %v7693
    %v8742 = vpack.c.b16 %v7702, %v7694
    %v8743 = vpack.c.b16 %v7703, %v7695
    %v8744 = vpack.c.b16 %v7704, %v7696
    %v8745 = vpack.c.b16 %v7705, %v7697
    %v8746 = vpack.c.b16 %v7706, %v7698
    %v8747 = vpack.c.b16 %v7707, %v7699
    %v8748 = vpack.c.b16 %v7708, %v7700
    %v8749 = vpack.c.b16 %v7717, %v7709
    %v8750 = vpack.c.b16 %v7718, %v7710
    %v8751 = vpack.c.b16 %v7719, %v7711
    %v8752 = vpack.c.b16 %v7720, %v7712
    %v8753 = vpack.c.b16 %v7721, %v7713
    %v8754 = vpack.c.b16 %v7722, %v7714
    %v8755 = vpack.c.b16 %v7723, %v7715
    %v8756 = vpack.c.b16 %v7724, %v7716
    %v8757 = vpack.c.b16 %v7733, %v7725
    %v8758 = vpack.c.b16 %v7734, %v7726
    %v8759 = vpack.c.b16 %v7735, %v7727
    %v8760 = vpack.c.b16 %v7736, %v7728
    %v8761 = vpack.c.b16 %v7737, %v7729
    %v8762 = vpack.c.b16 %v7738, %v7730
    %v8763 = vpack.c.b16 %v7739, %v7731
    %v8764 = vpack.c.b16 %v7740, %v7732
    %v8765 = vpack.c.b16 %v7749, %v7741
    %v8766 = vpack.c.b16 %v7750, %v7742
    %v8767 = vpack.c.b16 %v7751, %v7743
    %v8768 = vpack.c.b16 %v7752, %v7744
    %v8769 = vpack.c.b16 %v7753, %v7745
    %v8770 = vpack.c.b16 %v7754, %v7746
    %v8771 = vpack.c.b16 %v7755, %v7747
    %v8772 = vpack.c.b16 %v7756, %v7748
    %v8773 = vpack.c.b16 %v7765, %v7757
    %v8774 = vpack.c.b16 %v7766, %v7758
    %v8775 = vpack.c.b16 %v7767, %v7759
    %v8776 = vpack.c.b16 %v7768, %v7760
    %v8777 = vpack.c.b16 %v7769, %v7761
    %v8778 = vpack.c.b16 %v7770, %v7762
    %v8779 = vpack.c.b16 %v7771, %v7763
    %v8780 = vpack.c.b16 %v7772, %v7764
    %v8781 = vpack.c.b16 %v7781, %v7773
    %v8782 = vpack.c.b16 %v7782, %v7774
    %v8783 = vpack.c.b16 %v7783, %v7775
    %v8784 = vpack.c.b16 %v7784, %v7776
    %v8785 = vpack.c.b16 %v7785, %v7777
    %v8786 = vpack.c.b16 %v7786, %v7778
    %v8787 = vpack.c.b16 %v7787, %v7779
    %v8788 = vpack.c.b16 %v7788, %v7780
    %v8789 = vpack.c.b16 %v7797, %v7789
    %v8790 = vpack.c.b16 %v7798, %v7790
    %v8791 = vpack.c.b16 %v7799, %v7791
    %v8792 = vpack.c.b16 %v7800, %v7792
    %v8793 = vpack.c.b16 %v7801, %v7793
    %v8794 = vpack.c.b16 %v7802, %v7794
    %v8795 = vpack.c.b16 %v7803, %v7795
    %v8796 = vpack.c.b16 %v7804, %v7796
    %v8797 = vpack.c.b16 %v7813, %v7805
    %v8798 = vpack.c.b16 %v7814, %v7806
    %v8799 = vpack.c.b16 %v7815, %v7807
    %v8800 = vpack.c.b16 %v7816, %v7808
    %v8801 = vpack.c.b16 %v7817, %v7809
    %v8802 = vpack.c.b16 %v7818, %v7810
    %v8803 = vpack.c.b16 %v7819, %v7811
    %v8804 = vpack.c.b16 %v7820, %v7812
    %v8805 = vpack.c.b16 %v7829, %v7821
    %v8806 = vpack.c.b16 %v7830, %v7822
    %v8807 = vpack.c.b16 %v7831, %v7823
    %v8808 = vpack.c.b16 %v7832, %v7824
    %v8809 = vpack.c.b16 %v7833, %v7825
    %v8810 = vpack.c.b16 %v7834, %v7826
    %v8811 = vpack.c.b16 %v7835, %v7827
    %v8812 = vpack.c.b16 %v7836, %v7828
    %v8813 = vpack.c.b16 %v7845, %v7837
    %v8814 = vpack.c.b16 %v7846, %v7838
    %v8815 = vpack.c.b16 %v7847, %v7839
    %v8816 = vpack.c.b16 %v7848, %v7840
    %v8817 = vpack.c.b16 %v7849, %v7841
    %v8818 = vpack.c.b16 %v7850, %v7842
    %v8819 = vpack.c.b16 %v7851, %v7843
    %v8820 = vpack.c.b16 %v7852, %v7844
    %v8821 = vpack.c.b16 %v7861, %v7853
    %v8822 = vpack.c.b16 %v7862, %v7854
    %v8823 = vpack.c.b16 %v7863, %v7855
    %v8824 = vpack.c.b16 %v7864, %v7856
    %v8825 = vpack.c.b16 %v7865, %v7857
    %v8826 = vpack.c.b16 %v7866, %v7858
    %v8827 = vpack.c.b16 %v7867, %v7859
    %v8828 = vpack.c.b16 %v7868, %v7860
    %v8829 = vpack.c.b16 %v7877, %v7869
    %v8830 = vpack.c.b16 %v7878, %v7870
    %v8831 = vpack.c.b16 %v7879, %v7871
    %v8832 = vpack.c.b16 %v7880, %v7872
    %v8833 = vpack.c.b16 %v7881, %v7873
    %v8834 = vpack.c.b16 %v7882, %v7874
    %v8835 = vpack.c.b16 %v7883, %v7875
    %v8836 = vpack.c.b16 %v7884, %v7876
    %v8837 = vpack.c.b16 %v7893, %v7885
    %v8838 = vpack.c.b16 %v7894, %v7886
    %v8839 = vpack.c.b16 %v7895, %v7887
    %v8840 = vpack.c.b16 %v7896, %v7888
    %v8841 = vpack.c.b16 %v7897, %v7889
    %v8842 = vpack.c.b16 %v7898, %v7890
    %v8843 = vpack.c.b16 %v7899, %v7891
    %v8844 = vpack.c.b16 %v7900, %v7892
    %v8845 = vpack.c.b16 %v7909, %v7901
    %v8846 = vpack.c.b16 %v7910, %v7902
    %v8847 = vpack.c.b16 %v7911, %v7903
    %v8848 = vpack.c.b16 %v7912, %v7904
    %v8849 = vpack.c.b16 %v7913, %v7905
    %v8850 = vpack.c.b16 %v7914, %v7906
    %v8851 = vpack.c.b16 %v7915, %v7907
    %v8852 = vpack.c.b16 %v7916, %v7908
    %v8853 = vpack.c.b16 %v7925, %v7917
    %v8854 = vpack.c.b16 %v7926, %v7918
    %v8855 = vpack.c.b16 %v7927, %v7919
    %v8856 = vpack.c.b16 %v7928, %v7920
    %v8857 = vpack.c.b16 %v7929, %v7921
    %v8858 = vpack.c.b16 %v7930, %v7922
    %v8859 = vpack.c.b16 %v7931, %v7923
    %v8860 = vpack.c.b16 %v7932, %v7924
    %v8861 = vpack.c.b16 %v7941, %v7933
    %v8862 = vpack.c.b16 %v7942, %v7934
    %v8863 = vpack.c.b16 %v7943, %v7935
    %v8864 = vpack.c.b16 %v7944, %v7936
    %v8865 = vpack.c.b16 %v7945, %v7937
    %v8866 = vpack.c.b16 %v7946, %v7938
    %v8867 = vpack.c.b16 %v7947, %v7939
    %v8868 = vpack.c.b16 %v7948, %v7940
    %v8869 = vpack.c.b16 %v7957, %v7949
    %v8870 = vpack.c.b16 %v7958, %v7950
    %v8871 = vpack.c.b16 %v7959, %v7951
    %v8872 = vpack.c.b16 %v7960, %v7952
    %v8873 = vpack.c.b16 %v7961, %v7953
    %v8874 = vpack.c.b16 %v7962, %v7954
    %v8875 = vpack.c.b16 %v7963, %v7955
    %v8876 = vpack.c.b16 %v7964, %v7956
    %v8877 = vpack.c.b16 %v7973, %v7965
    %v8878 = vpack.c.b16 %v7974, %v7966
    %v8879 = vpack.c.b16 %v7975, %v7967
    %v8880 = vpack.c.b16 %v7976, %v7968
    %v8881 = vpack.c.b16 %v7977, %v7969
    %v8882 = vpack.c.b16 %v7978, %v7970
    %v8883 = vpack.c.b16 %v7979, %v7971
    %v8884 = vpack.c.b16 %v7980, %v7972
    %v8885 = vpack.c.b16 %v7989, %v7981
    %v8886 = vpack.c.b16 %v7990, %v7982
    %v8887 = vpack.c.b16 %v7991, %v7983
    %v8888 = vpack.c.b16 %v7992, %v7984
    %v8889 = vpack.c.b16 %v7993, %v7985
    %v8890 = vpack.c.b16 %v7994, %v7986
    %v8891 = vpack.c.b16 %v7995, %v7987
    %v8892 = vpack.c.b16 %v7996, %v7988
    %v8893 = vpack.c.b16 %v8005, %v7997
    %v8894 = vpack.c.b16 %v8006, %v7998
    %v8895 = vpack.c.b16 %v8007, %v7999
    %v8896 = vpack.c.b16 %v8008, %v8000
    %v8897 = vpack.c.b16 %v8009, %v8001
    %v8898 = vpack.c.b16 %v8010, %v8002
    %v8899 = vpack.c.b16 %v8011, %v8003
    %v8900 = vpack.c.b16 %v8012, %v8004
    %v8901 = vpack.c.b16 %v8021, %v8013
    %v8902 = vpack.c.b16 %v8022, %v8014
    %v8903 = vpack.c.b16 %v8023, %v8015
    %v8904 = vpack.c.b16 %v8024, %v8016
    %v8905 = vpack.c.b16 %v8025, %v8017
    %v8906 = vpack.c.b16 %v8026, %v8018
    %v8907 = vpack.c.b16 %v8027, %v8019
    %v8908 = vpack.c.b16 %v8028, %v8020
    %v8909 = vpack.c.b16 %v8037, %v8029
    %v8910 = vpack.c.b16 %v8038, %v8030
    %v8911 = vpack.c.b16 %v8039, %v8031
    %v8912 = vpack.c.b16 %v8040, %v8032
    %v8913 = vpack.c.b16 %v8041, %v8033
    %v8914 = vpack.c.b16 %v8042, %v8034
    %v8915 = vpack.c.b16 %v8043, %v8035
    %v8916 = vpack.c.b16 %v8044, %v8036
    %v8917 = vpack.c.b16 %v8053, %v8045
    %v8918 = vpack.c.b16 %v8054, %v8046
    %v8919 = vpack.c.b16 %v8055, %v8047
    %v8920 = vpack.c.b16 %v8056, %v8048
    %v8921 = vpack.c.b16 %v8057, %v8049
    %v8922 = vpack.c.b16 %v8058, %v8050
    %v8923 = vpack.c.b16 %v8059, %v8051
    %v8924 = vpack.c.b16 %v8060, %v8052
    %v8925 = vpack.c.b16 %v8069, %v8061
    %v8926 = vpack.c.b16 %v8070, %v8062
    %v8927 = vpack.c.b16 %v8071, %v8063
    %v8928 = vpack.c.b16 %v8072, %v8064
    %v8929 = vpack.c.b16 %v8073, %v8065
    %v8930 = vpack.c.b16 %v8074, %v8066
    %v8931 = vpack.c.b16 %v8075, %v8067
    %v8932 = vpack.c.b16 %v8076, %v8068
    %v8933 = vpack.c.b16 %v8085, %v8077
    %v8934 = vpack.c.b16 %v8086, %v8078
    %v8935 = vpack.c.b16 %v8087, %v8079
    %v8936 = vpack.c.b16 %v8088, %v8080
    %v8937 = vpack.c.b16 %v8089, %v8081
    %v8938 = vpack.c.b16 %v8090, %v8082
    %v8939 = vpack.c.b16 %v8091, %v8083
    %v8940 = vpack.c.b16 %v8092, %v8084
    %v8941 = vpack.c.b16 %v8101, %v8093
    %v8942 = vpack.c.b16 %v8102, %v8094
    %v8943 = vpack.c.b16 %v8103, %v8095
    %v8944 = vpack.c.b16 %v8104, %v8096
    %v8945 = vpack.c.b16 %v8105, %v8097
    %v8946 = vpack.c.b16 %v8106, %v8098
    %v8947 = vpack.c.b16 %v8107, %v8099
    %v8948 = vpack.c.b16 %v8108, %v8100
    %v8949 = vpack.c.b16 %v8117, %v8109
    %v8950 = vpack.c.b16 %v8118, %v8110
    %v8951 = vpack.c.b16 %v8119, %v8111
    %v8952 = vpack.c.b16 %v8120, %v8112
    %v8953 = vpack.c.b16 %v8121, %v8113
    %v8954 = vpack.c.b16 %v8122, %v8114
    %v8955 = vpack.c.b16 %v8123, %v8115
    %v8956 = vpack.c.b16 %v8124, %v8116
    %v8957 = vpack.c.b16 %v8133, %v8125
    %v8958 = vpack.c.b16 %v8134, %v8126
    %v8959 = vpack.c.b16 %v8135, %v8127
    %v8960 = vpack.c.b16 %v8136, %v8128
    %v8961 = vpack.c.b16 %v8137, %v8129
    %v8962 = vpack.c.b16 %v8138, %v8130
    %v8963 = vpack.c.b16 %v8139, %v8131
    %v8964 = vpack.c.b16 %v8140, %v8132
    %v8965 = vpack.c.b16 %v8149, %v8141
    %v8966 = vpack.c.b16 %v8150, %v8142
    %v8967 = vpack.c.b16 %v8151, %v8143
    %v8968 = vpack.c.b16 %v8152, %v8144
    %v8969 = vpack.c.b16 %v8153, %v8145
    %v8970 = vpack.c.b16 %v8154, %v8146
    %v8971 = vpack.c.b16 %v8155, %v8147
    %v8972 = vpack.c.b16 %v8156, %v8148
    %v8973 = vpack.c.b16 %v8165, %v8157
    %v8974 = vpack.c.b16 %v8166, %v8158
    %v8975 = vpack.c.b16 %v8167, %v8159
    %v8976 = vpack.c.b16 %v8168, %v8160
    %v8977 = vpack.c.b16 %v8169, %v8161
    %v8978 = vpack.c.b16 %v8170, %v8162
    %v8979 = vpack.c.b16 %v8171, %v8163
    %v8980 = vpack.c.b16 %v8172, %v8164
    %v8981 = vpack.c.b16 %v8181, %v8173
    %v8982 = vpack.c.b16 %v8182, %v8174
    %v8983 = vpack.c.b16 %v8183, %v8175
    %v8984 = vpack.c.b16 %v8184, %v8176
    %v8985 = vpack.c.b16 %v8185, %v8177
    %v8986 = vpack.c.b16 %v8186, %v8178
    %v8987 = vpack.c.b16 %v8187, %v8179
    %v8988 = vpack.c.b16 %v8188, %v8180
    %v8989 = vpack.c.b16 %v8197, %v8189
    %v8990 = vpack.c.b16 %v8198, %v8190
    %v8991 = vpack.c.b16 %v8199, %v8191
    %v8992 = vpack.c.b16 %v8200, %v8192
    %v8993 = vpack.c.b16 %v8201, %v8193
    %v8994 = vpack.c.b16 %v8202, %v8194
    %v8995 = vpack.c.b16 %v8203, %v8195
    %v8996 = vpack.c.b16 %v8204, %v8196
    %v8997 = vpack.c.b16 %v8213, %v8205
    %v8998 = vpack.c.b16 %v8214, %v8206
    %v8999 = vpack.c.b16 %v8215, %v8207
    %v9000 = vpack.c.b16 %v8216, %v8208
    %v9001 = vpack.c.b16 %v8217, %v8209
    %v9002 = vpack.c.b16 %v8218, %v8210
    %v9003 = vpack.c.b16 %v8219, %v8211
    %v9004 = vpack.c.b16 %v8220, %v8212
    %v9005 = vpack.c.b16 %v8229, %v8221
    %v9006 = vpack.c.b16 %v8230, %v8222
    %v9007 = vpack.c.b16 %v8231, %v8223
    %v9008 = vpack.c.b16 %v8232, %v8224
    %v9009 = vpack.c.b16 %v8233, %v8225
    %v9010 = vpack.c.b16 %v8234, %v8226
    %v9011 = vpack.c.b16 %v8235, %v8227
    %v9012 = vpack.c.b16 %v8236, %v8228
    %v9013 = vpack.c.b16 %v8245, %v8237
    %v9014 = vpack.c.b16 %v8246, %v8238
    %v9015 = vpack.c.b16 %v8247, %v8239
    %v9016 = vpack.c.b16 %v8248, %v8240
    %v9017 = vpack.c.b16 %v8249, %v8241
    %v9018 = vpack.c.b16 %v8250, %v8242
    %v9019 = vpack.c.b16 %v8251, %v8243
    %v9020 = vpack.c.b16 %v8252, %v8244
    %v9021 = vpack.c.b16 %v8261, %v8253
    %v9022 = vpack.c.b16 %v8262, %v8254
    %v9023 = vpack.c.b16 %v8263, %v8255
    %v9024 = vpack.c.b16 %v8264, %v8256
    %v9025 = vpack.c.b16 %v8265, %v8257
    %v9026 = vpack.c.b16 %v8266, %v8258
    %v9027 = vpack.c.b16 %v8267, %v8259
    %v9028 = vpack.c.b16 %v8268, %v8260
    %v9029 = vpack.c.b16 %v8277, %v8269
    %v9030 = vpack.c.b16 %v8278, %v8270
    %v9031 = vpack.c.b16 %v8279, %v8271
    %v9032 = vpack.c.b16 %v8280, %v8272
    %v9033 = vpack.c.b16 %v8281, %v8273
    %v9034 = vpack.c.b16 %v8282, %v8274
    %v9035 = vpack.c.b16 %v8283, %v8275
    %v9036 = vpack.c.b16 %v8284, %v8276
    %v9037 = vpack.c.b16 %v8293, %v8285
    %v9038 = vpack.c.b16 %v8294, %v8286
    %v9039 = vpack.c.b16 %v8295, %v8287
    %v9040 = vpack.c.b16 %v8296, %v8288
    %v9041 = vpack.c.b16 %v8297, %v8289
    %v9042 = vpack.c.b16 %v8298, %v8290
    %v9043 = vpack.c.b16 %v8299, %v8291
    %v9044 = vpack.c.b16 %v8300, %v8292
    %v9045 = vpack.c.b16 %v8309, %v8301
    %v9046 = vpack.c.b16 %v8310, %v8302
    %v9047 = vpack.c.b16 %v8311, %v8303
    %v9048 = vpack.c.b16 %v8312, %v8304
    %v9049 = vpack.c.b16 %v8313, %v8305
    %v9050 = vpack.c.b16 %v8314, %v8306
    %v9051 = vpack.c.b16 %v8315, %v8307
    %v9052 = vpack.c.b16 %v8316, %v8308
    %v9053 = vpack.c.b16 %v8325, %v8317
    %v9054 = vpack.c.b16 %v8326, %v8318
    %v9055 = vpack.c.b16 %v8327, %v8319
    %v9056 = vpack.c.b16 %v8328, %v8320
    %v9057 = vpack.c.b16 %v8329, %v8321
    %v9058 = vpack.c.b16 %v8330, %v8322
    %v9059 = vpack.c.b16 %v8331, %v8323
    %v9060 = vpack.c.b16 %v8332, %v8324
    %v9061 = vpack.c.b16 %v8341, %v8333
    %v9062 = vpack.c.b16 %v8342, %v8334
    %v9063 = vpack.c.b16 %v8343, %v8335
    %v9064 = vpack.c.b16 %v8344, %v8336
    %v9065 = vpack.c.b16 %v8345, %v8337
    %v9066 = vpack.c.b16 %v8346, %v8338
    %v9067 = vpack.c.b16 %v8347, %v8339
    %v9068 = vpack.c.b16 %v8348, %v8340
    %v9069 = vpack.c.b16 %v8357, %v8349
    %v9070 = vpack.c.b16 %v8358, %v8350
    %v9071 = vpack.c.b16 %v8359, %v8351
    %v9072 = vpack.c.b16 %v8360, %v8352
    %v9073 = vpack.c.b16 %v8361, %v8353
    %v9074 = vpack.c.b16 %v8362, %v8354
    %v9075 = vpack.c.b16 %v8363, %v8355
    %v9076 = vpack.c.b16 %v8364, %v8356
    %v9077 = vpack.c.b16 %v8373, %v8365
    %v9078 = vpack.c.b16 %v8374, %v8366
    %v9079 = vpack.c.b16 %v8375, %v8367
    %v9080 = vpack.c.b16 %v8376, %v8368
    %v9081 = vpack.c.b16 %v8377, %v8369
    %v9082 = vpack.c.b16 %v8378, %v8370
    %v9083 = vpack.c.b16 %v8379, %v8371
    %v9084 = vpack.c.b16 %v8380, %v8372
    %v9085 = vpack.c.b16 %v8389, %v8381
    %v9086 = vpack.c.b16 %v8390, %v8382
    %v9087 = vpack.c.b16 %v8391, %v8383
    %v9088 = vpack.c.b16 %v8392, %v8384
    %v9089 = vpack.c.b16 %v8393, %v8385
    %v9090 = vpack.c.b16 %v8394, %v8386
    %v9091 = vpack.c.b16 %v8395, %v8387
    %v9092 = vpack.c.b16 %v8396, %v8388
    %v9093 = vpack.c.b16 %v8405, %v8397
    %v9094 = vpack.c.b16 %v8406, %v8398
    %v9095 = vpack.c.b16 %v8407, %v8399
    %v9096 = vpack.c.b16 %v8408, %v8400
    %v9097 = vpack.c.b16 %v8409, %v8401
    %v9098 = vpack.c.b16 %v8410, %v8402
    %v9099 = vpack.c.b16 %v8411, %v8403
    %v9100 = vpack.c.b16 %v8412, %v8404
    %v9101 = vpack.c.b16 %v8421, %v8413
    %v9102 = vpack.c.b16 %v8422, %v8414
    %v9103 = vpack.c.b16 %v8423, %v8415
    %v9104 = vpack.c.b16 %v8424, %v8416
    %v9105 = vpack.c.b16 %v8425, %v8417
    %v9106 = vpack.c.b16 %v8426, %v8418
    %v9107 = vpack.c.b16 %v8427, %v8419
    %v9108 = vpack.c.b16 %v8428, %v8420
    %v9109 = vpack.c.b16 %v8437, %v8429
    %v9110 = vpack.c.b16 %v8438, %v8430
    %v9111 = vpack.c.b16 %v8439, %v8431
    %v9112 = vpack.c.b16 %v8440, %v8432
    %v9113 = vpack.c.b16 %v8441, %v8433
    %v9114 = vpack.c.b16 %v8442, %v8434
    %v9115 = vpack.c.b16 %v8443, %v8435
    %v9116 = vpack.c.b16 %v8444, %v8436
    %v9117 = vpack.c.b16 %v8453, %v8445
    %v9118 = vpack.c.b16 %v8454, %v8446
    %v9119 = vpack.c.b16 %v8455, %v8447
    %v9120 = vpack.c.b16 %v8456, %v8448
    %v9121 = vpack.c.b16 %v8457, %v8449
    %v9122 = vpack.c.b16 %v8458, %v8450
    %v9123 = vpack.c.b16 %v8459, %v8451
    %v9124 = vpack.c.b16 %v8460, %v8452
    %v9125 = vpack.c.b16 %v8469, %v8461
    %v9126 = vpack.c.b16 %v8470, %v8462
    %v9127 = vpack.c.b16 %v8471, %v8463
    %v9128 = vpack.c.b16 %v8472, %v8464
    %v9129 = vpack.c.b16 %v8473, %v8465
    %v9130 = vpack.c.b16 %v8474, %v8466
    %v9131 = vpack.c.b16 %v8475, %v8467
    %v9132 = vpack.c.b16 %v8476, %v8468
    %v9133 = vpack.c.b16 %v8485, %v8477
    %v9134 = vpack.c.b16 %v8486, %v8478
    %v9135 = vpack.c.b16 %v8487, %v8479
    %v9136 = vpack.c.b16 %v8488, %v8480
    %v9137 = vpack.c.b16 %v8489, %v8481
    %v9138 = vpack.c.b16 %v8490, %v8482
    %v9139 = vpack.c.b16 %v8491, %v8483
    %v9140 = vpack.c.b16 %v8492, %v8484
    %v9141 = vpack.c.b16 %v8501, %v8493
    %v9142 = vpack.c.b16 %v8502, %v8494
    %v9143 = vpack.c.b16 %v8503, %v8495
    %v9144 = vpack.c.b16 %v8504, %v8496
    %v9145 = vpack.c.b16 %v8505, %v8497
    %v9146 = vpack.c.b16 %v8506, %v8498
    %v9147 = vpack.c.b16 %v8507, %v8499
    %v9148 = vpack.c.b16 %v8508, %v8500
    %v9149 = vpack.c.b16 %v8517, %v8509
    %v9150 = vpack.c.b16 %v8518, %v8510
    %v9151 = vpack.c.b16 %v8519, %v8511
    %v9152 = vpack.c.b16 %v8520, %v8512
    %v9153 = vpack.c.b16 %v8521, %v8513
    %v9154 = vpack.c.b16 %v8522, %v8514
    %v9155 = vpack.c.b16 %v8523, %v8515
    %v9156 = vpack.c.b16 %v8524, %v8516
    %v9157 = vpack.c.b16 %v8533, %v8525
    %v9158 = vpack.c.b16 %v8534, %v8526
    %v9159 = vpack.c.b16 %v8535, %v8527
    %v9160 = vpack.c.b16 %v8536, %v8528
    %v9161 = vpack.c.b16 %v8537, %v8529
    %v9162 = vpack.c.b16 %v8538, %v8530
    %v9163 = vpack.c.b16 %v8539, %v8531
    %v9164 = vpack.c.b16 %v8540, %v8532
    %v9165 = vpack.c.b16 %v8549, %v8541
    %v9166 = vpack.c.b16 %v8550, %v8542
    %v9167 = vpack.c.b16 %v8551, %v8543
    %v9168 = vpack.c.b16 %v8552, %v8544
    %v9169 = vpack.c.b16 %v8553, %v8545
    %v9170 = vpack.c.b16 %v8554, %v8546
    %v9171 = vpack.c.b16 %v8555, %v8547
    %v9172 = vpack.c.b16 %v8556, %v8548
    %v9173 = vpack.c.b16 %v8565, %v8557
    %v9174 = vpack.c.b16 %v8566, %v8558
    %v9175 = vpack.c.b16 %v8567, %v8559
    %v9176 = vpack.c.b16 %v8568, %v8560
    %v9177 = vpack.c.b16 %v8569, %v8561
    %v9178 = vpack.c.b16 %v8570, %v8562
    %v9179 = vpack.c.b16 %v8571, %v8563
    %v9180 = vpack.c.b16 %v8572, %v8564
    %v9181 = vpack.c.b16 %v8581, %v8573
    %v9182 = vpack.c.b16 %v8582, %v8574
    %v9183 = vpack.c.b16 %v8583, %v8575
    %v9184 = vpack.c.b16 %v8584, %v8576
    %v9185 = vpack.c.b16 %v8585, %v8577
    %v9186 = vpack.c.b16 %v8586, %v8578
    %v9187 = vpack.c.b16 %v8587, %v8579
    %v9188 = vpack.c.b16 %v8588, %v8580
    %v9790 = vlaneseq
    %v9791 = vshrl.u32 %v9790, 7
    %v9792 = vsub.s32 0, %v9791
    %v9793 = vrot.slane %v6788, %v9792
    %v9794 = vlaneseq
    %v9795 = vshrl.u32 %v9794, 7
    %v9796 = vsub.s32 1, %v9795
    %v9797 = vrot.slane %v6788, %v9796
    %v9798 = vlaneseq
    %v9799 = vshrl.u32 %v9798, 7
    %v9800 = vsub.s32 2, %v9799
    %v9801 = vrot.slane %v6788, %v9800
    %v9802 = vlaneseq
    %v9803 = vshrl.u32 %v9802, 7
    %v9804 = vsub.s32 3, %v9803
    %v9805 = vrot.slane %v6788, %v9804
    %v9806 = vlaneseq
    %v9807 = vshrl.u32 %v9806, 7
    %v9808 = vsub.s32 4, %v9807
    %v9809 = vrot.slane %v6788, %v9808
    %v9810 = vlaneseq
    %v9811 = vshrl.u32 %v9810, 7
    %v9812 = vsub.s32 5, %v9811
    %v9813 = vrot.slane %v6788, %v9812
    %v9814 = vlaneseq
    %v9815 = vshrl.u32 %v9814, 7
    %v9816 = vsub.s32 6, %v9815
    %v9817 = vrot.slane %v6788, %v9816
    %v9818 = vlaneseq
    %v9819 = vshrl.u32 %v9818, 7
    %v9820 = vsub.s32 7, %v9819
    %v9821 = vrot.slane %v6788, %v9820
    %v9831 = vsel %vm6158, %v6187, 0
    %9833 = vmatprep.subr.bf16.mxu0 %v8590
    %9834 = vmatpush1.bf16.msra.mxu0 %v8589
    %9835 = vmatprep.subr.bf16.mxu0 %v8598
    %9836 = vmatpush1.bf16.msra.mxu0 %v8597
    %9837 = vmatprep.subr.bf16.mxu0 %v8606
    %9838 = vmatpush1.bf16.msra.mxu0 %v8605
    %9839 = vmatprep.subr.bf16.mxu0 %v8614
    %9840 = vmatpush1.bf16.msra.mxu0 %v8613
    %9841 = vmatprep.subr.bf16.mxu0 %v8622
    %9842 = vmatpush1.bf16.msra.mxu0 %v8621
    %9843 = vmatprep.subr.bf16.mxu0 %v8630
    %9844 = vmatpush1.bf16.msra.mxu0 %v8629
    %9845 = vmatprep.subr.bf16.mxu0 %v8638
    %9846 = vmatpush1.bf16.msra.mxu0 %v8637
    %9847 = vmatprep.subr.bf16.mxu0 %v8646
    %9848 = vmatpush1.bf16.msra.mxu0 %v8645
    %9849 = vmatprep.subr.bf16.mxu0 %v8654
    %9850 = vmatpush1.bf16.msra.mxu0 %v8653
    %9851 = vmatprep.subr.bf16.mxu0 %v8662
    %9852 = vmatpush1.bf16.msra.mxu0 %v8661
    %9853 = vmatprep.subr.bf16.mxu0 %v8670
    %9854 = vmatpush1.bf16.msra.mxu0 %v8669
    %9855 = vmatprep.subr.bf16.mxu0 %v8678
    %9856 = vmatpush1.bf16.msra.mxu0 %v8677
    %9857 = vmatprep.subr.bf16.mxu0 %v8686
    %9858 = vmatpush1.bf16.msra.mxu0 %v8685
    %9859 = vmatprep.subr.bf16.mxu0 %v8694
    %9860 = vmatpush1.bf16.msra.mxu0 %v8693
    %9861 = vmatprep.subr.bf16.mxu0 %v8702
    %9862 = vmatpush1.bf16.msra.mxu0 %v8701
    %9863 = vmatprep.subr.bf16.mxu0 %v8710
    %9864 = vmatpush1.bf16.msra.mxu0 %v8709
    %9865 = vmatprep.mubr.bf16.mxu0 %v6179
    %9866 = vmatmul.mubr.bf16.gmra.mrb[0].mxu0 %v6178
    %v9867 = vpop.f32.mrb[0].mxu0
    %v9868 = vadd.f32 %v9793, %v9867
    %v9869 = vpop.f32.mrb[0].mxu0
    %v9870 = vadd.f32 %v9797, %v9869
    %v9871 = vpop.f32.mrb[0].mxu0
    %v9872 = vpop.f32.mrb[0].mxu0
    %9873 = vdwg.mxu0
    %9874 = vmatprep.subr.bf16.mxu0 %v8718
    %9875 = vmatpush1.bf16.msra.mxu0 %v8717
    %9876 = vmatprep.subr.bf16.mxu0 %v8726
    %9877 = vmatpush1.bf16.msra.mxu0 %v8725
    %9878 = vmatprep.subr.bf16.mxu0 %v8734
    %9879 = vmatpush1.bf16.msra.mxu0 %v8733
    %9880 = vmatprep.subr.bf16.mxu0 %v8742
    %9881 = vmatpush1.bf16.msra.mxu0 %v8741
    %9882 = vmatprep.subr.bf16.mxu0 %v8750
    %9883 = vmatpush1.bf16.msra.mxu0 %v8749
    %9884 = vmatprep.subr.bf16.mxu0 %v8758
    %9885 = vmatpush1.bf16.msra.mxu0 %v8757
    %9886 = vmatprep.subr.bf16.mxu0 %v8766
    %9887 = vmatpush1.bf16.msra.mxu0 %v8765
    %9888 = vmatprep.subr.bf16.mxu0 %v8774
    %9889 = vmatpush1.bf16.msra.mxu0 %v8773
    %9890 = vmatprep.subr.bf16.mxu0 %v8782
    %9891 = vmatpush1.bf16.msra.mxu0 %v8781
    %9892 = vmatprep.subr.bf16.mxu0 %v8790
    %9893 = vmatpush1.bf16.msra.mxu0 %v8789
    %9894 = vmatprep.subr.bf16.mxu0 %v8798
    %9895 = vmatpush1.bf16.msra.mxu0 %v8797
    %9896 = vmatprep.subr.bf16.mxu0 %v8806
    %9897 = vmatpush1.bf16.msra.mxu0 %v8805
    %9898 = vmatprep.subr.bf16.mxu0 %v8814
    %9899 = vmatpush1.bf16.msra.mxu0 %v8813
    %9900 = vmatprep.subr.bf16.mxu0 %v8822
    %9901 = vmatpush1.bf16.msra.mxu0 %v8821
    %9902 = vmatprep.subr.bf16.mxu0 %v8830
    %9903 = vmatpush1.bf16.msra.mxu0 %v8829
    %9904 = vmatprep.subr.bf16.mxu0 %v8838
    %9905 = vmatpush1.bf16.msra.mxu0 %v8837
    %9906 = vmatprep.mubr.bf16.mxu0 %v6181
    %9907 = vmatmul.mubr.bf16.gmra.mrb[0].mxu0 %v6180
    %v9908 = vpop.f32.mrb[0].mxu0
    %v9909 = vadd.f32 %v9868, %v9908
    %v9910 = vpop.f32.mrb[0].mxu0
    %v9911 = vadd.f32 %v9870, %v9910
    %v9912 = vpop.f32.mrb[0].mxu0
    %v9913 = vpop.f32.mrb[0].mxu0
    %9914 = vdwg.mxu0
    %9915 = vmatprep.subr.bf16.mxu0 %v8846
    %9916 = vmatpush1.bf16.msra.mxu0 %v8845
    %9917 = vmatprep.subr.bf16.mxu0 %v8854
    %9918 = vmatpush1.bf16.msra.mxu0 %v8853
    %9919 = vmatprep.subr.bf16.mxu0 %v8862
    %9920 = vmatpush1.bf16.msra.mxu0 %v8861
    %9921 = vmatprep.subr.bf16.mxu0 %v8870
    %9922 = vmatpush1.bf16.msra.mxu0 %v8869
    %9923 = vmatprep.subr.bf16.mxu0 %v8878
    %9924 = vmatpush1.bf16.msra.mxu0 %v8877
    %9925 = vmatprep.subr.bf16.mxu0 %v8886
    %9926 = vmatpush1.bf16.msra.mxu0 %v8885
    %9927 = vmatprep.subr.bf16.mxu0 %v8894
    %9928 = vmatpush1.bf16.msra.mxu0 %v8893
    %9929 = vmatprep.subr.bf16.mxu0 %v8902
    %9930 = vmatpush1.bf16.msra.mxu0 %v8901
    %9931 = vmatprep.subr.bf16.mxu0 %v8910
    %9932 = vmatpush1.bf16.msra.mxu0 %v8909
    %9933 = vmatprep.subr.bf16.mxu0 %v8918
    %9934 = vmatpush1.bf16.msra.mxu0 %v8917
    %9935 = vmatprep.subr.bf16.mxu0 %v8926
    %9936 = vmatpush1.bf16.msra.mxu0 %v8925
    %9937 = vmatprep.subr.bf16.mxu0 %v8934
    %9938 = vmatpush1.bf16.msra.mxu0 %v8933
    %9939 = vmatprep.subr.bf16.mxu0 %v8942
    %9940 = vmatpush1.bf16.msra.mxu0 %v8941
    %9941 = vmatprep.subr.bf16.mxu0 %v8950
    %9942 = vmatpush1.bf16.msra.mxu0 %v8949
    %9943 = vmatprep.subr.bf16.mxu0 %v8958
    %9944 = vmatpush1.bf16.msra.mxu0 %v8957
    %9945 = vmatprep.subr.bf16.mxu0 %v8966
    %9946 = vmatpush1.bf16.msra.mxu0 %v8965
    %9947 = vmatprep.mubr.bf16.mxu0 %v6183
    %9948 = vmatmul.mubr.bf16.gmra.mrb[0].mxu0 %v6182
    %v9949 = vpop.f32.mrb[0].mxu0
    %v9950 = vadd.f32 %v9909, %v9949
    %v9951 = vpop.f32.mrb[0].mxu0
    %v9952 = vadd.f32 %v9911, %v9951
    %v9953 = vpop.f32.mrb[0].mxu0
    %v9954 = vpop.f32.mrb[0].mxu0
    %9955 = vdwg.mxu0
    %9956 = vmatprep.subr.bf16.mxu0 %v8974
    %9957 = vmatpush1.bf16.msra.mxu0 %v8973
    %9958 = vmatprep.subr.bf16.mxu0 %v8982
    %9959 = vmatpush1.bf16.msra.mxu0 %v8981
    %9960 = vmatprep.subr.bf16.mxu0 %v8990
    %9961 = vmatpush1.bf16.msra.mxu0 %v8989
    %9962 = vmatprep.subr.bf16.mxu0 %v8998
    %9963 = vmatpush1.bf16.msra.mxu0 %v8997
    %9964 = vmatprep.subr.bf16.mxu0 %v9006
    %9965 = vmatpush1.bf16.msra.mxu0 %v9005
    %9966 = vmatprep.subr.bf16.mxu0 %v9014
    %9967 = vmatpush1.bf16.msra.mxu0 %v9013
    %9968 = vmatprep.subr.bf16.mxu0 %v9022
    %9969 = vmatpush1.bf16.msra.mxu0 %v9021
    %9970 = vmatprep.subr.bf16.mxu0 %v9030
    %9971 = vmatpush1.bf16.msra.mxu0 %v9029
    %9972 = vmatprep.subr.bf16.mxu0 %v9038
    %9973 = vmatpush1.bf16.msra.mxu0 %v9037
    %9974 = vmatprep.subr.bf16.mxu0 %v9046
    %9975 = vmatpush1.bf16.msra.mxu0 %v9045
    %9976 = vmatprep.subr.bf16.mxu0 %v9054
    %9977 = vmatpush1.bf16.msra.mxu0 %v9053
    %9978 = vmatprep.subr.bf16.mxu0 %v9062
    %9979 = vmatpush1.bf16.msra.mxu0 %v9061
    %9980 = vmatprep.subr.bf16.mxu0 %v9070
    %9981 = vmatpush1.bf16.msra.mxu0 %v9069
    %9982 = vmatprep.subr.bf16.mxu0 %v9078
    %9983 = vmatpush1.bf16.msra.mxu0 %v9077
    %9984 = vmatprep.subr.bf16.mxu0 %v9086
    %9985 = vmatpush1.bf16.msra.mxu0 %v9085
    %9986 = vmatprep.subr.bf16.mxu0 %v9094
    %9987 = vmatpush1.bf16.msra.mxu0 %v9093
    %9988 = vmatprep.mubr.bf16.mxu0 %v6185
    %9989 = vmatmul.mubr.bf16.gmra.mrb[0].mxu0 %v6184
    %v9990 = vpop.f32.mrb[0].mxu0
    %v9991 = vadd.f32 %v9950, %v9990
    %v9992 = vpop.f32.mrb[0].mxu0
    %v9993 = vadd.f32 %v9952, %v9992
    %v9994 = vpop.f32.mrb[0].mxu0
    %v9995 = vpop.f32.mrb[0].mxu0
    %9996 = vdwg.mxu0
    %9997 = vmatprep.subr.bf16.mxu0 %v9102
    %9998 = vmatpush1.bf16.msra.mxu0 %v9101
    %9999 = vmatprep.subr.bf16.mxu0 %v9110
    %10000 = vmatpush1.bf16.msra.mxu0 %v9109
    %10001 = vmatprep.subr.bf16.mxu0 %v9118
    %10002 = vmatpush1.bf16.msra.mxu0 %v9117
    %10003 = vmatprep.subr.bf16.mxu0 %v9126
    %10004 = vmatpush1.bf16.msra.mxu0 %v9125
    %10005 = vmatprep.subr.bf16.mxu0 %v9134
    %10006 = vmatpush1.bf16.msra.mxu0 %v9133
    %10007 = vmatprep.subr.bf16.mxu0 %v9142
    %10008 = vmatpush1.bf16.msra.mxu0 %v9141
    %10009 = vmatprep.subr.bf16.mxu0 %v9150
    %10010 = vmatpush1.bf16.msra.mxu0 %v9149
    %10011 = vmatprep.subr.bf16.mxu0 %v9158
    %10012 = vmatpush1.bf16.msra.mxu0 %v9157
    %10013 = vmatprep.subr.bf16.mxu0 %v9166
    %10014 = vmatpush1.bf16.msra.mxu0 %v9165
    %10015 = vmatprep.subr.bf16.mxu0 %v9174
    %10016 = vmatpush1.bf16.msra.mxu0 %v9173
    %10017 = vmatprep.subr.bf16.mxu0 %v9182
    %10018 = vmatpush1.bf16.msra.mxu0 %v9181
    %10019 = vmatprep.subr.bf16.mxu0 0
    %10020 = vmatpush1.bf16.msra.mxu0 0
    %10021 = vmatprep.subr.bf16.mxu0 0
    %10022 = vmatpush1.bf16.msra.mxu0 0
    %10023 = vmatprep.subr.bf16.mxu0 0
    %10024 = vmatpush1.bf16.msra.mxu0 0
    %10025 = vmatprep.subr.bf16.mxu0 0
    %10026 = vmatpush1.bf16.msra.mxu0 0
    %10027 = vmatprep.subr.bf16.mxu0 0
    %10028 = vmatpush1.bf16.msra.mxu0 0
    %10029 = vmatprep.mubr.bf16.mxu0 %v9831
    %10030 = vmatmul.mubr.bf16.gmra.mrb[0].mxu0 %v6186
    %v10031 = vpop.f32.mrb[0].mxu0
    %v10032 = vadd.f32 %v9991, %v10031
    %v10033 = vpop.f32.mrb[0].mxu0
    %v10034 = vadd.f32 %v9993, %v10033
    %v10035 = vpop.f32.mrb[0].mxu0
    %v10036 = vpop.f32.mrb[0].mxu0
    %10037 = vdwg.mxu0
    %10038 = vmatprep.subr.bf16.mxu0 %v8592
    %10039 = vmatpush1.bf16.msra.mxu0 %v8591
    %10040 = vmatprep.subr.bf16.mxu0 %v8600
    %10041 = vmatpush1.bf16.msra.mxu0 %v8599
    %10042 = vmatprep.subr.bf16.mxu0 %v8608
    %10043 = vmatpush1.bf16.msra.mxu0 %v8607
    %10044 = vmatprep.subr.bf16.mxu0 %v8616
    %10045 = vmatpush1.bf16.msra.mxu0 %v8615
    %10046 = vmatprep.subr.bf16.mxu0 %v8624
    %10047 = vmatpush1.bf16.msra.mxu0 %v8623
    %10048 = vmatprep.subr.bf16.mxu0 %v8632
    %10049 = vmatpush1.bf16.msra.mxu0 %v8631
    %10050 = vmatprep.subr.bf16.mxu0 %v8640
    %10051 = vmatpush1.bf16.msra.mxu0 %v8639
    %10052 = vmatprep.subr.bf16.mxu0 %v8648
    %10053 = vmatpush1.bf16.msra.mxu0 %v8647
    %10054 = vmatprep.subr.bf16.mxu0 %v8656
    %10055 = vmatpush1.bf16.msra.mxu0 %v8655
    %10056 = vmatprep.subr.bf16.mxu0 %v8664
    %10057 = vmatpush1.bf16.msra.mxu0 %v8663
    %10058 = vmatprep.subr.bf16.mxu0 %v8672
    %10059 = vmatpush1.bf16.msra.mxu0 %v8671
    %10060 = vmatprep.subr.bf16.mxu0 %v8680
    %10061 = vmatpush1.bf16.msra.mxu0 %v8679
    %10062 = vmatprep.subr.bf16.mxu0 %v8688
    %10063 = vmatpush1.bf16.msra.mxu0 %v8687
    %10064 = vmatprep.subr.bf16.mxu0 %v8696
    %10065 = vmatpush1.bf16.msra.mxu0 %v8695
    %10066 = vmatprep.subr.bf16.mxu0 %v8704
    %10067 = vmatpush1.bf16.msra.mxu0 %v8703
    %10068 = vmatprep.subr.bf16.mxu0 %v8712
    %10069 = vmatpush1.bf16.msra.mxu0 %v8711
    %10070 = vmatprep.mubr.bf16.mxu0 %v6179
    %10071 = vmatmul.mubr.bf16.gmra.mrb[0].mxu0 %v6178
    %v10072 = vpop.f32.mrb[0].mxu0
    %v10073 = vadd.f32 %v9801, %v10072
    %v10074 = vpop.f32.mrb[0].mxu0
    %v10075 = vadd.f32 %v9805, %v10074
    %v10076 = vpop.f32.mrb[0].mxu0
    %v10077 = vpop.f32.mrb[0].mxu0
    %10078 = vdwg.mxu0
    %10079 = vmatprep.subr.bf16.mxu0 %v8720
    %10080 = vmatpush1.bf16.msra.mxu0 %v8719
    %10081 = vmatprep.subr.bf16.mxu0 %v8728
    %10082 = vmatpush1.bf16.msra.mxu0 %v8727
    %10083 = vmatprep.subr.bf16.mxu0 %v8736
    %10084 = vmatpush1.bf16.msra.mxu0 %v8735
    %10085 = vmatprep.subr.bf16.mxu0 %v8744
    %10086 = vmatpush1.bf16.msra.mxu0 %v8743
    %10087 = vmatprep.subr.bf16.mxu0 %v8752
    %10088 = vmatpush1.bf16.msra.mxu0 %v8751
    %10089 = vmatprep.subr.bf16.mxu0 %v8760
    %10090 = vmatpush1.bf16.msra.mxu0 %v8759
    %10091 = vmatprep.subr.bf16.mxu0 %v8768
    %10092 = vmatpush1.bf16.msra.mxu0 %v8767
    %10093 = vmatprep.subr.bf16.mxu0 %v8776
    %10094 = vmatpush1.bf16.msra.mxu0 %v8775
    %10095 = vmatprep.subr.bf16.mxu0 %v8784
    %10096 = vmatpush1.bf16.msra.mxu0 %v8783
    %10097 = vmatprep.subr.bf16.mxu0 %v8792
    %10098 = vmatpush1.bf16.msra.mxu0 %v8791
    %10099 = vmatprep.subr.bf16.mxu0 %v8800
    %10100 = vmatpush1.bf16.msra.mxu0 %v8799
    %10101 = vmatprep.subr.bf16.mxu0 %v8808
    %10102 = vmatpush1.bf16.msra.mxu0 %v8807
    %10103 = vmatprep.subr.bf16.mxu0 %v8816
    %10104 = vmatpush1.bf16.msra.mxu0 %v8815
    %10105 = vmatprep.subr.bf16.mxu0 %v8824
    %10106 = vmatpush1.bf16.msra.mxu0 %v8823
    %10107 = vmatprep.subr.bf16.mxu0 %v8832
    %10108 = vmatpush1.bf16.msra.mxu0 %v8831
    %10109 = vmatprep.subr.bf16.mxu0 %v8840
    %10110 = vmatpush1.bf16.msra.mxu0 %v8839
    %10111 = vmatprep.mubr.bf16.mxu0 %v6181
    %10112 = vmatmul.mubr.bf16.gmra.mrb[0].mxu0 %v6180
    %v10113 = vpop.f32.mrb[0].mxu0
    %v10114 = vadd.f32 %v10073, %v10113
    %v10115 = vpop.f32.mrb[0].mxu0
    %v10116 = vadd.f32 %v10075, %v10115
    %v10117 = vpop.f32.mrb[0].mxu0
    %v10118 = vpop.f32.mrb[0].mxu0
    %10119 = vdwg.mxu0
    %10120 = vmatprep.subr.bf16.mxu0 %v8848
    %10121 = vmatpush1.bf16.msra.mxu0 %v8847
    %10122 = vmatprep.subr.bf16.mxu0 %v8856
    %10123 = vmatpush1.bf16.msra.mxu0 %v8855
    %10124 = vmatprep.subr.bf16.mxu0 %v8864
    %10125 = vmatpush1.bf16.msra.mxu0 %v8863
    %10126 = vmatprep.subr.bf16.mxu0 %v8872
    %10127 = vmatpush1.bf16.msra.mxu0 %v8871
    %10128 = vmatprep.subr.bf16.mxu0 %v8880
    %10129 = vmatpush1.bf16.msra.mxu0 %v8879
    %10130 = vmatprep.subr.bf16.mxu0 %v8888
    %10131 = vmatpush1.bf16.msra.mxu0 %v8887
    %10132 = vmatprep.subr.bf16.mxu0 %v8896
    %10133 = vmatpush1.bf16.msra.mxu0 %v8895
    %10134 = vmatprep.subr.bf16.mxu0 %v8904
    %10135 = vmatpush1.bf16.msra.mxu0 %v8903
    %10136 = vmatprep.subr.bf16.mxu0 %v8912
    %10137 = vmatpush1.bf16.msra.mxu0 %v8911
    %10138 = vmatprep.subr.bf16.mxu0 %v8920
    %10139 = vmatpush1.bf16.msra.mxu0 %v8919
    %10140 = vmatprep.subr.bf16.mxu0 %v8928
    %10141 = vmatpush1.bf16.msra.mxu0 %v8927
    %10142 = vmatprep.subr.bf16.mxu0 %v8936
    %10143 = vmatpush1.bf16.msra.mxu0 %v8935
    %10144 = vmatprep.subr.bf16.mxu0 %v8944
    %10145 = vmatpush1.bf16.msra.mxu0 %v8943
    %10146 = vmatprep.subr.bf16.mxu0 %v8952
    %10147 = vmatpush1.bf16.msra.mxu0 %v8951
    %10148 = vmatprep.subr.bf16.mxu0 %v8960
    %10149 = vmatpush1.bf16.msra.mxu0 %v8959
    %10150 = vmatprep.subr.bf16.mxu0 %v8968
    %10151 = vmatpush1.bf16.msra.mxu0 %v8967
    %10152 = vmatprep.mubr.bf16.mxu0 %v6183
    %10153 = vmatmul.mubr.bf16.gmra.mrb[0].mxu0 %v6182
    %v10154 = vpop.f32.mrb[0].mxu0
    %v10155 = vadd.f32 %v10114, %v10154
    %v10156 = vpop.f32.mrb[0].mxu0
    %v10157 = vadd.f32 %v10116, %v10156
    %v10158 = vpop.f32.mrb[0].mxu0
    %v10159 = vpop.f32.mrb[0].mxu0
    %10160 = vdwg.mxu0
    %10161 = vmatprep.subr.bf16.mxu0 %v8976
    %10162 = vmatpush1.bf16.msra.mxu0 %v8975
    %10163 = vmatprep.subr.bf16.mxu0 %v8984
    %10164 = vmatpush1.bf16.msra.mxu0 %v8983
    %10165 = vmatprep.subr.bf16.mxu0 %v8992
    %10166 = vmatpush1.bf16.msra.mxu0 %v8991
    %10167 = vmatprep.subr.bf16.mxu0 %v9000
    %10168 = vmatpush1.bf16.msra.mxu0 %v8999
    %10169 = vmatprep.subr.bf16.mxu0 %v9008
    %10170 = vmatpush1.bf16.msra.mxu0 %v9007
    %10171 = vmatprep.subr.bf16.mxu0 %v9016
    %10172 = vmatpush1.bf16.msra.mxu0 %v9015
    %10173 = vmatprep.subr.bf16.mxu0 %v9024
    %10174 = vmatpush1.bf16.msra.mxu0 %v9023
    %10175 = vmatprep.subr.bf16.mxu0 %v9032
    %10176 = vmatpush1.bf16.msra.mxu0 %v9031
    %10177 = vmatprep.subr.bf16.mxu0 %v9040
    %10178 = vmatpush1.bf16.msra.mxu0 %v9039
    %10179 = vmatprep.subr.bf16.mxu0 %v9048
    %10180 = vmatpush1.bf16.msra.mxu0 %v9047
    %10181 = vmatprep.subr.bf16.mxu0 %v9056
    %10182 = vmatpush1.bf16.msra.mxu0 %v9055
    %10183 = vmatprep.subr.bf16.mxu0 %v9064
    %10184 = vmatpush1.bf16.msra.mxu0 %v9063
    %10185 = vmatprep.subr.bf16.mxu0 %v9072
    %10186 = vmatpush1.bf16.msra.mxu0 %v9071
    %10187 = vmatprep.subr.bf16.mxu0 %v9080
    %10188 = vmatpush1.bf16.msra.mxu0 %v9079
    %10189 = vmatprep.subr.bf16.mxu0 %v9088
    %10190 = vmatpush1.bf16.msra.mxu0 %v9087
    %10191 = vmatprep.subr.bf16.mxu0 %v9096
    %10192 = vmatpush1.bf16.msra.mxu0 %v9095
    %10193 = vmatprep.mubr.bf16.mxu0 %v6185
    %10194 = vmatmul.mubr.bf16.gmra.mrb[0].mxu0 %v6184
    %v10195 = vpop.f32.mrb[0].mxu0
    %v10196 = vadd.f32 %v10155, %v10195
    %v10197 = vpop.f32.mrb[0].mxu0
    %v10198 = vadd.f32 %v10157, %v10197
    %v10199 = vpop.f32.mrb[0].mxu0
    %v10200 = vpop.f32.mrb[0].mxu0
    %10201 = vdwg.mxu0
    %10202 = vmatprep.subr.bf16.mxu0 %v9104
    %10203 = vmatpush1.bf16.msra.mxu0 %v9103
    %10204 = vmatprep.subr.bf16.mxu0 %v9112
    %10205 = vmatpush1.bf16.msra.mxu0 %v9111
    %10206 = vmatprep.subr.bf16.mxu0 %v9120
    %10207 = vmatpush1.bf16.msra.mxu0 %v9119
    %10208 = vmatprep.subr.bf16.mxu0 %v9128
    %10209 = vmatpush1.bf16.msra.mxu0 %v9127
    %10210 = vmatprep.subr.bf16.mxu0 %v9136
    %10211 = vmatpush1.bf16.msra.mxu0 %v9135
    %10212 = vmatprep.subr.bf16.mxu0 %v9144
    %10213 = vmatpush1.bf16.msra.mxu0 %v9143
    %10214 = vmatprep.subr.bf16.mxu0 %v9152
    %10215 = vmatpush1.bf16.msra.mxu0 %v9151
    %10216 = vmatprep.subr.bf16.mxu0 %v9160
    %10217 = vmatpush1.bf16.msra.mxu0 %v9159
    %10218 = vmatprep.subr.bf16.mxu0 %v9168
    %10219 = vmatpush1.bf16.msra.mxu0 %v9167
    %10220 = vmatprep.subr.bf16.mxu0 %v9176
    %10221 = vmatpush1.bf16.msra.mxu0 %v9175
    %10222 = vmatprep.subr.bf16.mxu0 %v9184
    %10223 = vmatpush1.bf16.msra.mxu0 %v9183
    %10224 = vmatprep.subr.bf16.mxu0 0
    %10225 = vmatpush1.bf16.msra.mxu0 0
    %10226 = vmatprep.subr.bf16.mxu0 0
    %10227 = vmatpush1.bf16.msra.mxu0 0
    %10228 = vmatprep.subr.bf16.mxu0 0
    %10229 = vmatpush1.bf16.msra.mxu0 0
    %10230 = vmatprep.subr.bf16.mxu0 0
    %10231 = vmatpush1.bf16.msra.mxu0 0
    %10232 = vmatprep.subr.bf16.mxu0 0
    %10233 = vmatpush1.bf16.msra.mxu0 0
    %10234 = vmatprep.mubr.bf16.mxu0 %v9831
    %10235 = vmatmul.mubr.bf16.gmra.mrb[0].mxu0 %v6186
    %v10236 = vpop.f32.mrb[0].mxu0
    %v10237 = vadd.f32 %v10196, %v10236
    %v10238 = vpop.f32.mrb[0].mxu0
    %v10239 = vadd.f32 %v10198, %v10238
    %v10240 = vpop.f32.mrb[0].mxu0
    %v10241 = vpop.f32.mrb[0].mxu0
    %10242 = vdwg.mxu0
    %10243 = vmatprep.subr.bf16.mxu0 %v8594
    %10244 = vmatpush1.bf16.msra.mxu0 %v8593
    %10245 = vmatprep.subr.bf16.mxu0 %v8602
    %10246 = vmatpush1.bf16.msra.mxu0 %v8601
    %10247 = vmatprep.subr.bf16.mxu0 %v8610
    %10248 = vmatpush1.bf16.msra.mxu0 %v8609
    %10249 = vmatprep.subr.bf16.mxu0 %v8618
    %10250 = vmatpush1.bf16.msra.mxu0 %v8617
    %10251 = vmatprep.subr.bf16.mxu0 %v8626
    %10252 = vmatpush1.bf16.msra.mxu0 %v8625
    %10253 = vmatprep.subr.bf16.mxu0 %v8634
    %10254 = vmatpush1.bf16.msra.mxu0 %v8633
    %10255 = vmatprep.subr.bf16.mxu0 %v8642
    %10256 = vmatpush1.bf16.msra.mxu0 %v8641
    %10257 = vmatprep.subr.bf16.mxu0 %v8650
    %10258 = vmatpush1.bf16.msra.mxu0 %v8649
    %10259 = vmatprep.subr.bf16.mxu0 %v8658
    %10260 = vmatpush1.bf16.msra.mxu0 %v8657
    %10261 = vmatprep.subr.bf16.mxu0 %v8666
    %10262 = vmatpush1.bf16.msra.mxu0 %v8665
    %10263 = vmatprep.subr.bf16.mxu0 %v8674
    %10264 = vmatpush1.bf16.msra.mxu0 %v8673
    %10265 = vmatprep.subr.bf16.mxu0 %v8682
    %10266 = vmatpush1.bf16.msra.mxu0 %v8681
    %10267 = vmatprep.subr.bf16.mxu0 %v8690
    %10268 = vmatpush1.bf16.msra.mxu0 %v8689
    %10269 = vmatprep.subr.bf16.mxu0 %v8698
    %10270 = vmatpush1.bf16.msra.mxu0 %v8697
    %10271 = vmatprep.subr.bf16.mxu0 %v8706
    %10272 = vmatpush1.bf16.msra.mxu0 %v8705
    %10273 = vmatprep.subr.bf16.mxu0 %v8714
    %10274 = vmatpush1.bf16.msra.mxu0 %v8713
    %10275 = vmatprep.mubr.bf16.mxu0 %v6179
    %10276 = vmatmul.mubr.bf16.gmra.mrb[0].mxu0 %v6178
    %v10277 = vpop.f32.mrb[0].mxu0
    %v10278 = vadd.f32 %v9809, %v10277
    %v10279 = vpop.f32.mrb[0].mxu0
    %v10280 = vadd.f32 %v9813, %v10279
    %v10281 = vpop.f32.mrb[0].mxu0
    %v10282 = vpop.f32.mrb[0].mxu0
    %10283 = vdwg.mxu0
    %10284 = vmatprep.subr.bf16.mxu0 %v8722
    %10285 = vmatpush1.bf16.msra.mxu0 %v8721
    %10286 = vmatprep.subr.bf16.mxu0 %v8730
    %10287 = vmatpush1.bf16.msra.mxu0 %v8729
    %10288 = vmatprep.subr.bf16.mxu0 %v8738
    %10289 = vmatpush1.bf16.msra.mxu0 %v8737
    %10290 = vmatprep.subr.bf16.mxu0 %v8746
    %10291 = vmatpush1.bf16.msra.mxu0 %v8745
    %10292 = vmatprep.subr.bf16.mxu0 %v8754
    %10293 = vmatpush1.bf16.msra.mxu0 %v8753
    %10294 = vmatprep.subr.bf16.mxu0 %v8762
    %10295 = vmatpush1.bf16.msra.mxu0 %v8761
    %10296 = vmatprep.subr.bf16.mxu0 %v8770
    %10297 = vmatpush1.bf16.msra.mxu0 %v8769
    %10298 = vmatprep.subr.bf16.mxu0 %v8778
    %10299 = vmatpush1.bf16.msra.mxu0 %v8777
    %10300 = vmatprep.subr.bf16.mxu0 %v8786
    %10301 = vmatpush1.bf16.msra.mxu0 %v8785
    %10302 = vmatprep.subr.bf16.mxu0 %v8794
    %10303 = vmatpush1.bf16.msra.mxu0 %v8793
    %10304 = vmatprep.subr.bf16.mxu0 %v8802
    %10305 = vmatpush1.bf16.msra.mxu0 %v8801
    %10306 = vmatprep.subr.bf16.mxu0 %v8810
    %10307 = vmatpush1.bf16.msra.mxu0 %v8809
    %10308 = vmatprep.subr.bf16.mxu0 %v8818
    %10309 = vmatpush1.bf16.msra.mxu0 %v8817
    %10310 = vmatprep.subr.bf16.mxu0 %v8826
    %10311 = vmatpush1.bf16.msra.mxu0 %v8825
    %10312 = vmatprep.subr.bf16.mxu0 %v8834
    %10313 = vmatpush1.bf16.msra.mxu0 %v8833
    %10314 = vmatprep.subr.bf16.mxu0 %v8842
    %10315 = vmatpush1.bf16.msra.mxu0 %v8841
    %10316 = vmatprep.mubr.bf16.mxu0 %v6181
    %10317 = vmatmul.mubr.bf16.gmra.mrb[0].mxu0 %v6180
    %v10318 = vpop.f32.mrb[0].mxu0
    %v10319 = vadd.f32 %v10278, %v10318
    %v10320 = vpop.f32.mrb[0].mxu0
    %v10321 = vadd.f32 %v10280, %v10320
    %v10322 = vpop.f32.mrb[0].mxu0
    %v10323 = vpop.f32.mrb[0].mxu0
    %10324 = vdwg.mxu0
    %10325 = vmatprep.subr.bf16.mxu0 %v8850
    %10326 = vmatpush1.bf16.msra.mxu0 %v8849
    %10327 = vmatprep.subr.bf16.mxu0 %v8858
    %10328 = vmatpush1.bf16.msra.mxu0 %v8857
    %10329 = vmatprep.subr.bf16.mxu0 %v8866
    %10330 = vmatpush1.bf16.msra.mxu0 %v8865
    %10331 = vmatprep.subr.bf16.mxu0 %v8874
    %10332 = vmatpush1.bf16.msra.mxu0 %v8873
    %10333 = vmatprep.subr.bf16.mxu0 %v8882
    %10334 = vmatpush1.bf16.msra.mxu0 %v8881
    %10335 = vmatprep.subr.bf16.mxu0 %v8890
    %10336 = vmatpush1.bf16.msra.mxu0 %v8889
    %10337 = vmatprep.subr.bf16.mxu0 %v8898
    %10338 = vmatpush1.bf16.msra.mxu0 %v8897
    %10339 = vmatprep.subr.bf16.mxu0 %v8906
    %10340 = vmatpush1.bf16.msra.mxu0 %v8905
    %10341 = vmatprep.subr.bf16.mxu0 %v8914
    %10342 = vmatpush1.bf16.msra.mxu0 %v8913
    %10343 = vmatprep.subr.bf16.mxu0 %v8922
    %10344 = vmatpush1.bf16.msra.mxu0 %v8921
    %10345 = vmatprep.subr.bf16.mxu0 %v8930
    %10346 = vmatpush1.bf16.msra.mxu0 %v8929
    %10347 = vmatprep.subr.bf16.mxu0 %v8938
    %10348 = vmatpush1.bf16.msra.mxu0 %v8937
    %10349 = vmatprep.subr.bf16.mxu0 %v8946
    %10350 = vmatpush1.bf16.msra.mxu0 %v8945
    %10351 = vmatprep.subr.bf16.mxu0 %v8954
    %10352 = vmatpush1.bf16.msra.mxu0 %v8953
    %10353 = vmatprep.subr.bf16.mxu0 %v8962
    %10354 = vmatpush1.bf16.msra.mxu0 %v8961
    %10355 = vmatprep.subr.bf16.mxu0 %v8970
    %10356 = vmatpush1.bf16.msra.mxu0 %v8969
    %10357 = vmatprep.mubr.bf16.mxu0 %v6183
    %10358 = vmatmul.mubr.bf16.gmra.mrb[0].mxu0 %v6182
    %v10359 = vpop.f32.mrb[0].mxu0
    %v10360 = vadd.f32 %v10319, %v10359
    %v10361 = vpop.f32.mrb[0].mxu0
    %v10362 = vadd.f32 %v10321, %v10361
    %v10363 = vpop.f32.mrb[0].mxu0
    %v10364 = vpop.f32.mrb[0].mxu0
    %10365 = vdwg.mxu0
    %10366 = vmatprep.subr.bf16.mxu0 %v8978
    %10367 = vmatpush1.bf16.msra.mxu0 %v8977
    %10368 = vmatprep.subr.bf16.mxu0 %v8986
    %10369 = vmatpush1.bf16.msra.mxu0 %v8985
    %10370 = vmatprep.subr.bf16.mxu0 %v8994
    %10371 = vmatpush1.bf16.msra.mxu0 %v8993
    %10372 = vmatprep.subr.bf16.mxu0 %v9002
    %10373 = vmatpush1.bf16.msra.mxu0 %v9001
    %10374 = vmatprep.subr.bf16.mxu0 %v9010
    %10375 = vmatpush1.bf16.msra.mxu0 %v9009
    %10376 = vmatprep.subr.bf16.mxu0 %v9018
    %10377 = vmatpush1.bf16.msra.mxu0 %v9017
    %10378 = vmatprep.subr.bf16.mxu0 %v9026
    %10379 = vmatpush1.bf16.msra.mxu0 %v9025
    %10380 = vmatprep.subr.bf16.mxu0 %v9034
    %10381 = vmatpush1.bf16.msra.mxu0 %v9033
    %10382 = vmatprep.subr.bf16.mxu0 %v9042
    %10383 = vmatpush1.bf16.msra.mxu0 %v9041
    %10384 = vmatprep.subr.bf16.mxu0 %v9050
    %10385 = vmatpush1.bf16.msra.mxu0 %v9049
    %10386 = vmatprep.subr.bf16.mxu0 %v9058
    %10387 = vmatpush1.bf16.msra.mxu0 %v9057
    %10388 = vmatprep.subr.bf16.mxu0 %v9066
    %10389 = vmatpush1.bf16.msra.mxu0 %v9065
    %10390 = vmatprep.subr.bf16.mxu0 %v9074
    %10391 = vmatpush1.bf16.msra.mxu0 %v9073
    %10392 = vmatprep.subr.bf16.mxu0 %v9082
    %10393 = vmatpush1.bf16.msra.mxu0 %v9081
    %10394 = vmatprep.subr.bf16.mxu0 %v9090
    %10395 = vmatpush1.bf16.msra.mxu0 %v9089
    %10396 = vmatprep.subr.bf16.mxu0 %v9098
    %10397 = vmatpush1.bf16.msra.mxu0 %v9097
    %10398 = vmatprep.mubr.bf16.mxu0 %v6185
    %10399 = vmatmul.mubr.bf16.gmra.mrb[0].mxu0 %v6184
    %v10400 = vpop.f32.mrb[0].mxu0
    %v10401 = vadd.f32 %v10360, %v10400
    %v10402 = vpop.f32.mrb[0].mxu0
    %v10403 = vadd.f32 %v10362, %v10402
    %v10404 = vpop.f32.mrb[0].mxu0
    %v10405 = vpop.f32.mrb[0].mxu0
    %10406 = vdwg.mxu0
    %10407 = vmatprep.subr.bf16.mxu0 %v9106
    %10408 = vmatpush1.bf16.msra.mxu0 %v9105
    %10409 = vmatprep.subr.bf16.mxu0 %v9114
    %10410 = vmatpush1.bf16.msra.mxu0 %v9113
    %10411 = vmatprep.subr.bf16.mxu0 %v9122
    %10412 = vmatpush1.bf16.msra.mxu0 %v9121
    %10413 = vmatprep.subr.bf16.mxu0 %v9130
    %10414 = vmatpush1.bf16.msra.mxu0 %v9129
    %10415 = vmatprep.subr.bf16.mxu0 %v9138
    %10416 = vmatpush1.bf16.msra.mxu0 %v9137
    %10417 = vmatprep.subr.bf16.mxu0 %v9146
    %10418 = vmatpush1.bf16.msra.mxu0 %v9145
    %10419 = vmatprep.subr.bf16.mxu0 %v9154
    %10420 = vmatpush1.bf16.msra.mxu0 %v9153
    %10421 = vmatprep.subr.bf16.mxu0 %v9162
    %10422 = vmatpush1.bf16.msra.mxu0 %v9161
    %10423 = vmatprep.subr.bf16.mxu0 %v9170
    %10424 = vmatpush1.bf16.msra.mxu0 %v9169
    %10425 = vmatprep.subr.bf16.mxu0 %v9178
    %10426 = vmatpush1.bf16.msra.mxu0 %v9177
    %10427 = vmatprep.subr.bf16.mxu0 %v9186
    %10428 = vmatpush1.bf16.msra.mxu0 %v9185
    %10429 = vmatprep.subr.bf16.mxu0 0
    %10430 = vmatpush1.bf16.msra.mxu0 0
    %10431 = vmatprep.subr.bf16.mxu0 0
    %10432 = vmatpush1.bf16.msra.mxu0 0
    %10433 = vmatprep.subr.bf16.mxu0 0
    %10434 = vmatpush1.bf16.msra.mxu0 0
    %10435 = vmatprep.subr.bf16.mxu0 0
    %10436 = vmatpush1.bf16.msra.mxu0 0
    %10437 = vmatprep.subr.bf16.mxu0 0
    %10438 = vmatpush1.bf16.msra.mxu0 0
    %10439 = vmatprep.mubr.bf16.mxu0 %v9831
    %10440 = vmatmul.mubr.bf16.gmra.mrb[0].mxu0 %v6186
    %v10441 = vpop.f32.mrb[0].mxu0
    %v10442 = vadd.f32 %v10401, %v10441
    %v10443 = vpop.f32.mrb[0].mxu0
    %v10444 = vadd.f32 %v10403, %v10443
    %v10445 = vpop.f32.mrb[0].mxu0
    %v10446 = vpop.f32.mrb[0].mxu0
    %10447 = vdwg.mxu0
    %10448 = vmatprep.subr.bf16.mxu0 %v8596
    %10449 = vmatpush1.bf16.msra.mxu0 %v8595
    %10450 = vmatprep.subr.bf16.mxu0 %v8604
    %10451 = vmatpush1.bf16.msra.mxu0 %v8603
    %10452 = vmatprep.subr.bf16.mxu0 %v8612
    %10453 = vmatpush1.bf16.msra.mxu0 %v8611
    %10454 = vmatprep.subr.bf16.mxu0 %v8620
    %10455 = vmatpush1.bf16.msra.mxu0 %v8619
    %10456 = vmatprep.subr.bf16.mxu0 %v8628
    %10457 = vmatpush1.bf16.msra.mxu0 %v8627
    %10458 = vmatprep.subr.bf16.mxu0 %v8636
    %10459 = vmatpush1.bf16.msra.mxu0 %v8635
    %10460 = vmatprep.subr.bf16.mxu0 %v8644
    %10461 = vmatpush1.bf16.msra.mxu0 %v8643
    %10462 = vmatprep.subr.bf16.mxu0 %v8652
    %10463 = vmatpush1.bf16.msra.mxu0 %v8651
    %10464 = vmatprep.subr.bf16.mxu0 %v8660
    %10465 = vmatpush1.bf16.msra.mxu0 %v8659
    %10466 = vmatprep.subr.bf16.mxu0 %v8668
    %10467 = vmatpush1.bf16.msra.mxu0 %v8667
    %10468 = vmatprep.subr.bf16.mxu0 %v8676
    %10469 = vmatpush1.bf16.msra.mxu0 %v8675
    %10470 = vmatprep.subr.bf16.mxu0 %v8684
    %10471 = vmatpush1.bf16.msra.mxu0 %v8683
    %10472 = vmatprep.subr.bf16.mxu0 %v8692
    %10473 = vmatpush1.bf16.msra.mxu0 %v8691
    %10474 = vmatprep.subr.bf16.mxu0 %v8700
    %10475 = vmatpush1.bf16.msra.mxu0 %v8699
    %10476 = vmatprep.subr.bf16.mxu0 %v8708
    %10477 = vmatpush1.bf16.msra.mxu0 %v8707
    %10478 = vmatprep.subr.bf16.mxu0 %v8716
    %10479 = vmatpush1.bf16.msra.mxu0 %v8715
    %10480 = vmatprep.mubr.bf16.mxu0 %v6179
    %10481 = vmatmul.mubr.bf16.gmra.mrb[0].mxu0 %v6178
    %v10482 = vpop.f32.mrb[0].mxu0
    %v10483 = vadd.f32 %v9817, %v10482
    %v10484 = vpop.f32.mrb[0].mxu0
    %v10485 = vadd.f32 %v9821, %v10484
    %v10486 = vpop.f32.mrb[0].mxu0
    %v10487 = vpop.f32.mrb[0].mxu0
    %10488 = vdwg.mxu0
    %10489 = vmatprep.subr.bf16.mxu0 %v8724
    %10490 = vmatpush1.bf16.msra.mxu0 %v8723
    %10491 = vmatprep.subr.bf16.mxu0 %v8732
    %10492 = vmatpush1.bf16.msra.mxu0 %v8731
    %10493 = vmatprep.subr.bf16.mxu0 %v8740
    %10494 = vmatpush1.bf16.msra.mxu0 %v8739
    %10495 = vmatprep.subr.bf16.mxu0 %v8748
    %10496 = vmatpush1.bf16.msra.mxu0 %v8747
    %10497 = vmatprep.subr.bf16.mxu0 %v8756
    %10498 = vmatpush1.bf16.msra.mxu0 %v8755
    %10499 = vmatprep.subr.bf16.mxu0 %v8764
    %10500 = vmatpush1.bf16.msra.mxu0 %v8763
    %10501 = vmatprep.subr.bf16.mxu0 %v8772
    %10502 = vmatpush1.bf16.msra.mxu0 %v8771
    %10503 = vmatprep.subr.bf16.mxu0 %v8780
    %10504 = vmatpush1.bf16.msra.mxu0 %v8779
    %10505 = vmatprep.subr.bf16.mxu0 %v8788
    %10506 = vmatpush1.bf16.msra.mxu0 %v8787
    %10507 = vmatprep.subr.bf16.mxu0 %v8796
    %10508 = vmatpush1.bf16.msra.mxu0 %v8795
    %10509 = vmatprep.subr.bf16.mxu0 %v8804
    %10510 = vmatpush1.bf16.msra.mxu0 %v8803
    %10511 = vmatprep.subr.bf16.mxu0 %v8812
    %10512 = vmatpush1.bf16.msra.mxu0 %v8811
    %10513 = vmatprep.subr.bf16.mxu0 %v8820
    %10514 = vmatpush1.bf16.msra.mxu0 %v8819
    %10515 = vmatprep.subr.bf16.mxu0 %v8828
    %10516 = vmatpush1.bf16.msra.mxu0 %v8827
    %10517 = vmatprep.subr.bf16.mxu0 %v8836
    %10518 = vmatpush1.bf16.msra.mxu0 %v8835
    %10519 = vmatprep.subr.bf16.mxu0 %v8844
    %10520 = vmatpush1.bf16.msra.mxu0 %v8843
    %10521 = vmatprep.mubr.bf16.mxu0 %v6181
    %10522 = vmatmul.mubr.bf16.gmra.mrb[0].mxu0 %v6180
    %v10523 = vpop.f32.mrb[0].mxu0
    %v10524 = vadd.f32 %v10483, %v10523
    %v10525 = vpop.f32.mrb[0].mxu0
    %v10526 = vadd.f32 %v10485, %v10525
    %v10527 = vpop.f32.mrb[0].mxu0
    %v10528 = vpop.f32.mrb[0].mxu0
    %10529 = vdwg.mxu0
    %10530 = vmatprep.subr.bf16.mxu0 %v8852
    %10531 = vmatpush1.bf16.msra.mxu0 %v8851
    %10532 = vmatprep.subr.bf16.mxu0 %v8860
    %10533 = vmatpush1.bf16.msra.mxu0 %v8859
    %10534 = vmatprep.subr.bf16.mxu0 %v8868
    %10535 = vmatpush1.bf16.msra.mxu0 %v8867
    %10536 = vmatprep.subr.bf16.mxu0 %v8876
    %10537 = vmatpush1.bf16.msra.mxu0 %v8875
    %10538 = vmatprep.subr.bf16.mxu0 %v8884
    %10539 = vmatpush1.bf16.msra.mxu0 %v8883
    %10540 = vmatprep.subr.bf16.mxu0 %v8892
    %10541 = vmatpush1.bf16.msra.mxu0 %v8891
    %10542 = vmatprep.subr.bf16.mxu0 %v8900
    %10543 = vmatpush1.bf16.msra.mxu0 %v8899
    %10544 = vmatprep.subr.bf16.mxu0 %v8908
    %10545 = vmatpush1.bf16.msra.mxu0 %v8907
    %10546 = vmatprep.subr.bf16.mxu0 %v8916
    %10547 = vmatpush1.bf16.msra.mxu0 %v8915
    %10548 = vmatprep.subr.bf16.mxu0 %v8924
    %10549 = vmatpush1.bf16.msra.mxu0 %v8923
    %10550 = vmatprep.subr.bf16.mxu0 %v8932
    %10551 = vmatpush1.bf16.msra.mxu0 %v8931
    %10552 = vmatprep.subr.bf16.mxu0 %v8940
    %10553 = vmatpush1.bf16.msra.mxu0 %v8939
    %10554 = vmatprep.subr.bf16.mxu0 %v8948
    %10555 = vmatpush1.bf16.msra.mxu0 %v8947
    %10556 = vmatprep.subr.bf16.mxu0 %v8956
    %10557 = vmatpush1.bf16.msra.mxu0 %v8955
    %10558 = vmatprep.subr.bf16.mxu0 %v8964
    %10559 = vmatpush1.bf16.msra.mxu0 %v8963
    %10560 = vmatprep.subr.bf16.mxu0 %v8972
    %10561 = vmatpush1.bf16.msra.mxu0 %v8971
    %10562 = vmatprep.mubr.bf16.mxu0 %v6183
    %10563 = vmatmul.mubr.bf16.gmra.mrb[0].mxu0 %v6182
    %v10564 = vpop.f32.mrb[0].mxu0
    %v10565 = vadd.f32 %v10524, %v10564
    %v10566 = vpop.f32.mrb[0].mxu0
    %v10567 = vadd.f32 %v10526, %v10566
    %v10568 = vpop.f32.mrb[0].mxu0
    %v10569 = vpop.f32.mrb[0].mxu0
    %10570 = vdwg.mxu0
    %10571 = vmatprep.subr.bf16.mxu0 %v8980
    %10572 = vmatpush1.bf16.msra.mxu0 %v8979
    %10573 = vmatprep.subr.bf16.mxu0 %v8988
    %10574 = vmatpush1.bf16.msra.mxu0 %v8987
    %10575 = vmatprep.subr.bf16.mxu0 %v8996
    %10576 = vmatpush1.bf16.msra.mxu0 %v8995
    %10577 = vmatprep.subr.bf16.mxu0 %v9004
    %10578 = vmatpush1.bf16.msra.mxu0 %v9003
    %10579 = vmatprep.subr.bf16.mxu0 %v9012
    %10580 = vmatpush1.bf16.msra.mxu0 %v9011
    %10581 = vmatprep.subr.bf16.mxu0 %v9020
    %10582 = vmatpush1.bf16.msra.mxu0 %v9019
    %10583 = vmatprep.subr.bf16.mxu0 %v9028
    %10584 = vmatpush1.bf16.msra.mxu0 %v9027
    %10585 = vmatprep.subr.bf16.mxu0 %v9036
    %10586 = vmatpush1.bf16.msra.mxu0 %v9035
    %10587 = vmatprep.subr.bf16.mxu0 %v9044
    %10588 = vmatpush1.bf16.msra.mxu0 %v9043
    %10589 = vmatprep.subr.bf16.mxu0 %v9052
    %10590 = vmatpush1.bf16.msra.mxu0 %v9051
    %10591 = vmatprep.subr.bf16.mxu0 %v9060
    %10592 = vmatpush1.bf16.msra.mxu0 %v9059
    %10593 = vmatprep.subr.bf16.mxu0 %v9068
    %10594 = vmatpush1.bf16.msra.mxu0 %v9067
    %10595 = vmatprep.subr.bf16.mxu0 %v9076
    %10596 = vmatpush1.bf16.msra.mxu0 %v9075
    %10597 = vmatprep.subr.bf16.mxu0 %v9084
    %10598 = vmatpush1.bf16.msra.mxu0 %v9083
    %10599 = vmatprep.subr.bf16.mxu0 %v9092
    %10600 = vmatpush1.bf16.msra.mxu0 %v9091
    %10601 = vmatprep.subr.bf16.mxu0 %v9100
    %10602 = vmatpush1.bf16.msra.mxu0 %v9099
    %10603 = vmatprep.mubr.bf16.mxu0 %v6185
    %10604 = vmatmul.mubr.bf16.gmra.mrb[0].mxu0 %v6184
    %v10605 = vpop.f32.mrb[0].mxu0
    %v10606 = vadd.f32 %v10565, %v10605
    %v10607 = vpop.f32.mrb[0].mxu0
    %v10608 = vadd.f32 %v10567, %v10607
    %v10609 = vpop.f32.mrb[0].mxu0
    %v10610 = vpop.f32.mrb[0].mxu0
    %10611 = vdwg.mxu0
    %10612 = vmatprep.subr.bf16.mxu0 %v9108
    %10613 = vmatpush1.bf16.msra.mxu0 %v9107
    %10614 = vmatprep.subr.bf16.mxu0 %v9116
    %10615 = vmatpush1.bf16.msra.mxu0 %v9115
    %10616 = vmatprep.subr.bf16.mxu0 %v9124
    %10617 = vmatpush1.bf16.msra.mxu0 %v9123
    %10618 = vmatprep.subr.bf16.mxu0 %v9132
    %10619 = vmatpush1.bf16.msra.mxu0 %v9131
    %10620 = vmatprep.subr.bf16.mxu0 %v9140
    %10621 = vmatpush1.bf16.msra.mxu0 %v9139
    %10622 = vmatprep.subr.bf16.mxu0 %v9148
    %10623 = vmatpush1.bf16.msra.mxu0 %v9147
    %10624 = vmatprep.subr.bf16.mxu0 %v9156
    %10625 = vmatpush1.bf16.msra.mxu0 %v9155
    %10626 = vmatprep.subr.bf16.mxu0 %v9164
    %10627 = vmatpush1.bf16.msra.mxu0 %v9163
    %10628 = vmatprep.subr.bf16.mxu0 %v9172
    %10629 = vmatpush1.bf16.msra.mxu0 %v9171
    %10630 = vmatprep.subr.bf16.mxu0 %v9180
    %10631 = vmatpush1.bf16.msra.mxu0 %v9179
    %10632 = vmatprep.subr.bf16.mxu0 %v9188
    %10633 = vmatpush1.bf16.msra.mxu0 %v9187
    %10634 = vmatprep.subr.bf16.mxu0 0
    %10635 = vmatpush1.bf16.msra.mxu0 0
    %10636 = vmatprep.subr.bf16.mxu0 0
    %10637 = vmatpush1.bf16.msra.mxu0 0
    %10638 = vmatprep.subr.bf16.mxu0 0
    %10639 = vmatpush1.bf16.msra.mxu0 0
    %10640 = vmatprep.subr.bf16.mxu0 0
    %10641 = vmatpush1.bf16.msra.mxu0 0
    %10642 = vmatprep.subr.bf16.mxu0 0
    %10643 = vmatpush1.bf16.msra.mxu0 0
    %10644 = vmatprep.mubr.bf16.mxu0 %v9831
    %10645 = vmatmul.mubr.bf16.gmra.mrb[0].mxu0 %v6186
    %v10646 = vpop.f32.mrb[0].mxu0
    %v10647 = vadd.f32 %v10606, %v10646
    %v10648 = vpop.f32.mrb[0].mxu0
    %v10649 = vadd.f32 %v10608, %v10648
    %v10650 = vpop.f32.mrb[0].mxu0
    %v10651 = vpop.f32.mrb[0].mxu0
    %10652 = vdwg.mxu0
    %vm10653 = vcmp.ge.f32.partialorder %v10032, 0.0
    %vm10654 = vcmp.ge.f32.partialorder %v10034, 0.0
    %vm10655 = vcmp.ge.f32.partialorder %v10237, 0.0
    %vm10656 = vcmp.ge.f32.partialorder %v10239, 0.0
    %vm10657 = vcmp.ge.f32.partialorder %v10442, 0.0
    %vm10658 = vcmp.ge.f32.partialorder %v10444, 0.0
    %vm10659 = vcmp.ge.f32.partialorder %v10647, 0.0
    %vm10660 = vcmp.ge.f32.partialorder %v10649, 0.0
    %v10661 = vmul.f32 %v10032, 0.2
    %v10662 = vmul.f32 %v10034, 0.2
    %v10663 = vmul.f32 %v10237, 0.2
    %v10664 = vmul.f32 %v10239, 0.2
    %v10665 = vmul.f32 %v10442, 0.2
    %v10666 = vmul.f32 %v10444, 0.2
    %v10667 = vmul.f32 %v10647, 0.2
    %v10668 = vmul.f32 %v10649, 0.2
    %v10669 = vsel %vm10653, %v10032, %v10661
    %v10670 = vsel %vm10654, %v10034, %v10662
    %v10671 = vsel %vm10655, %v10237, %v10663
    %v10672 = vsel %vm10656, %v10239, %v10664
    %v10673 = vsel %vm10657, %v10442, %v10665
    %v10674 = vsel %vm10658, %v10444, %v10666
    %v10675 = vsel %vm10659, %v10647, %v10667
    %v10676 = vsel %vm10660, %v10649, %v10668
    %v10677 = vld [vmem:[#allocation23] sm:$0xff]
    %v10678 = vpack.c.bf16 %v10669, %v10669
    %v10679 = vpack.c.bf16 %v10670, %v10670
    %v10680 = vpack.c.bf16 %v10671, %v10671
    %v10681 = vpack.c.bf16 %v10672, %v10672
    %v10682 = vpack.c.bf16 %v10673, %v10673
    %v10683 = vpack.c.bf16 %v10674, %v10674
    %v10684 = vpack.c.bf16 %v10675, %v10675
    %v10685 = vpack.c.bf16 %v10676, %v10676
    %v10686 = vunpack.c.l.bf16 %v10677
    %v10687 = vunpack.c.h.bf16 %v10677
    %v10688 = vunpack.c.l.bf16 %v10678
    %v10689 = vunpack.c.l.bf16 %v10679
    %v10690 = vunpack.c.l.bf16 %v10680
    %v10691 = vunpack.c.l.bf16 %v10681
    %v10692 = vunpack.c.l.bf16 %v10682
    %v10693 = vunpack.c.l.bf16 %v10683
    %v10694 = vunpack.c.l.bf16 %v10684
    %v10695 = vunpack.c.l.bf16 %v10685
    %v10704 = vcombine.low %v10688, %v10689
    %v10705 = vcombine.low %v10690, %v10691
    %v10707 = vunpack.c.l.s4 1983009808
    %v10708 = vunpack.c.0.s8 %v10707
    %v10709 = vlaneseq
    %v10710 = vshrl.u32 %v10709, 7
    %v10711 = vsub.s32 %v10708, %v10710
    %v10712 = vrot.slane %v10704, %v10711
    %v10714 = vunpack.c.l.s4 1983009808
    %v10715 = vunpack.c.0.s8 %v10714
    %v10716 = vlaneseq
    %v10717 = vshrl.u32 %v10716, 7
    %v10718 = vsub.s32 %v10715, %v10717
    %v10719 = vrot.slane %v10705, %v10718
    %v10720 = vcombine.low %v10712, %v10719
    %v10721 = vcombine.low %v10692, %v10693
    %v10722 = vcombine.low %v10694, %v10695
    %v10724 = vunpack.c.l.s4 1983009808
    %v10725 = vunpack.c.0.s8 %v10724
    %v10726 = vlaneseq
    %v10727 = vshrl.u32 %v10726, 7
    %v10728 = vsub.s32 %v10725, %v10727
    %v10729 = vrot.slane %v10721, %v10728
    %v10731 = vunpack.c.l.s4 1983009808
    %v10732 = vunpack.c.0.s8 %v10731
    %v10733 = vlaneseq
    %v10734 = vshrl.u32 %v10733, 7
    %v10735 = vsub.s32 %v10732, %v10734
    %v10736 = vrot.slane %v10722, %v10735
    %v10737 = vcombine.low %v10729, %v10736
    %v10740 = vmul.f32 %v10686, %v10720
    %v10741 = vmul.f32 %v10687, %v10737
    %v10744 = vlaneseq
    %v10745 = vshrl.u32 %v10744, 7
    %v10746 = vsub.s32 0, %v10745
    %v10747 = vrot.slane %v10740, %v10746
    %v10748 = vlaneseq
    %v10749 = vshrl.u32 %v10748, 7
    %v10750 = vsub.s32 2, %v10749
    %v10751 = vrot.slane %v10740, %v10750
    %v10752 = vlaneseq
    %v10753 = vshrl.u32 %v10752, 7
    %v10754 = vsub.s32 4, %v10753
    %v10755 = vrot.slane %v10740, %v10754
    %v10756 = vlaneseq
    %v10757 = vshrl.u32 %v10756, 7
    %v10758 = vsub.s32 6, %v10757
    %v10759 = vrot.slane %v10740, %v10758
    %v10760 = vlaneseq
    %v10761 = vshrl.u32 %v10760, 7
    %v10762 = vsub.s32 0, %v10761
    %v10763 = vrot.slane %v10741, %v10762
    %v10764 = vlaneseq
    %v10765 = vshrl.u32 %v10764, 7
    %v10766 = vsub.s32 2, %v10765
    %v10767 = vrot.slane %v10741, %v10766
    %v10768 = vlaneseq
    %v10769 = vshrl.u32 %v10768, 7
    %v10770 = vsub.s32 4, %v10769
    %v10771 = vrot.slane %v10741, %v10770
    %v10772 = vlaneseq
    %v10773 = vshrl.u32 %v10772, 7
    %v10774 = vsub.s32 6, %v10773
    %v10775 = vrot.slane %v10741, %v10774
    %vm10784 = vcmask 1040384
    %v10785 = vsel %vm10784, %v10747, 0.0
    %v10786 = vsel %vm10784, %v10751, 0.0
    %v10787 = vadd.f32 %v10785, %v10786
    %v10788 = vsel %vm10784, %v10755, 0.0
    %v10789 = vadd.f32 %v10787, %v10788
    %v10790 = vsel %vm10784, %v10759, 0.0
    %v10791 = vadd.f32 %v10789, %v10790
    %v10792 = vsel %vm10784, %v10763, 0.0
    %v10793 = vadd.f32 %v10791, %v10792
    %v10794 = vsel %vm10784, %v10767, 0.0
    %v10795 = vadd.f32 %v10793, %v10794
    %v10796 = vsel %vm10784, %v10771, 0.0
    %v10797 = vadd.f32 %v10795, %v10796
    %v10798 = vsel %vm10784, %v10775, 0.0
    %v10799 = vadd.f32 %v10797, %v10798
    %10800 = vadd.xlane.f32.xlu0 %v10799
    %v10801 = vpop.xlane.xlu0 %10800
    %v10802 = vld [vmem:[#allocation2] sm:$0x1]
    %v10803 = vadd.f32 %v10801, %v10802
    %vm10804 = vcmask 0
    %10805 = vst.msk [vmem:[#allocation24] sm:$0x1] %vm10804, %v10803
    // Predicated region
    $region118: #{tpu_custom_call.1} parent=1 // pred_check
      _
    $region119: #{tpu_custom_call.1} parent=1 // pred_check_branch
      %10807 = sbr.rel (0) target = $region121
    $region120: #{tpu_custom_call.1} parent=1 // pred_region
      %s10809 = ssub.s32 16, 16
      %10810 = vsyncadd [#allocation5], %s10809
      %s10812 = sshll.u32 [#allocation24], 4
      %s10813 = int_to_ptr.vmem [resolvable:$true] %s10812
      %10815 = dma.vmem_to_hbm [thread:$0]  %s10813, 16, %s16, [#allocation5]
    $region121: #{tpu_custom_call.1} parent=1 // pred_fallthru
      _
    // Predicated region
    $region122: #{tpu_custom_call.1} parent=1 // pred_check
      _
    $region123: #{tpu_custom_call.1} parent=1 // pred_check_branch
      %10817 = sbr.rel (0) target = $region125
    $region124: #{tpu_custom_call.1} parent=1 // pred_region
      %10818 = dma.done [#allocation5], 16
    $region125: #{tpu_custom_call.1} parent=1 // pred_fallthru
      _
    %10819 = vsyncpa [#allocation4], 1
    %10820 = vsyncpa [#allocation7], 1
    %10821 = vsyncpa [#allocation10], 1
    %10822 = vsyncpa [#allocation13], 1
    %10823 = vsyncpa [#allocation16], 1
    %10824 = vsyncpa [#allocation19], 1
    %10825 = vsyncpa [#allocation22], 1
    %10826 = vsyncpa [#allocation5], 1

</llo_original>
